<compile_context>
chip_gen: v7x
topology: tpu7x:2x2x1
jax: 0.10.0
libtpu: 0.0.40
codegen_flags: <defaults>
</compile_context>

<pallas_src>
import jax
import jax.numpy as jnp
import numpy as np
from jax import lax
from jax.experimental import pallas as pl
from jax.experimental.pallas import tpu as pltpu

SCALE = 1.0
LN_EPS = 1e-5

# (in_dim, out_dim, degree) for chebykan1..4 and the final "model" layer.
LAYERS = [(3, 256, 40), (256, 64, 5), (64, 16, 4), (16, 4, 3), (4, 1, 2)]
DEG1 = 40
K1 = 3 * DEG1            # 120 basis rows for layer 1 (degrees 1..40, degree-major)
K1_PAD = 128             # padded so the layer-1 MXU contraction is aligned


# ----------------------------- kernel helpers ------------------------------
def _layernorm_t(h, gamma, beta):
    """LayerNorm over the channel (sublane) axis of a (C, tm) f32 tile."""
    mu = jnp.mean(h, axis=0, keepdims=True)                       # (1, tm)
    var = jnp.mean(h * h, axis=0, keepdims=True) - mu * mu        # one pass
    inv = lax.rsqrt(jnp.maximum(var, 0.0) + LN_EPS)
    return (h - mu) * inv * gamma + beta


def _cheby_layer_t(h, wt_ref, c0_ref):
    """ChebyKAN layer in (channels, points) layout, degree-wise accumulation.

    h:      (d_in, tm) f32 pre-activation
    wt_ref: (degree, d_out, d_in) bf16 coefficients for Chebyshev degrees 1..deg
    c0_ref: (d_out, 1) f32 bias holding the folded degree-0 (constant) term

    tanh runs in f32 and is cast to bf16 once; the recurrence and the MXU
    operands are bf16 (no per-degree casts); accumulation is f32.
    """
    n_deg = wt_ref.shape[0]
    t = jnp.tanh(h).astype(jnp.bfloat16)      # cast once
    tj_prev = jnp.ones_like(t)                # T_0 (bf16)
    tj = t                                    # T_1
    acc = jnp.dot(wt_ref[0], tj, preferred_element_type=jnp.float32)
    for j in range(1, n_deg):
        tj, tj_prev = 2.0 * t * tj - tj_prev, tj        # bf16 recurrence
        acc = acc + jnp.dot(wt_ref[j], tj, preferred_element_type=jnp.float32)
    return acc + c0_ref[...]


# --------------------------------- kernel -----------------------------------
def capudf_kernel(x_ref,
                  w1, c1, g1, be1,
                  w2, c2, g2, be2,
                  w3, c3, g3, be3,
                  w4, c4, g4, be4,
                  w5a, w5b, c5,
                  o_ref,
                  basis_scr):
    tm = x_ref.shape[-1]
    f32 = jnp.float32
    bf16 = jnp.bfloat16

    # ---- chebykan1: 3 -> 256, deg 40 (bf16 lane-dense basis in VMEM) -------
    t = jnp.tanh(x_ref[...] * SCALE)                  # (3, tm) f32 recurrence
    tj_prev = jnp.ones_like(t)                        # T_0 (folded into c1)
    tj = t                                            # T_1
    basis_scr[pl.ds(0, 3), :] = tj.astype(bf16)
    for j in range(2, DEG1 + 1):
        tj, tj_prev = 2.0 * t * tj - tj_prev, tj
        basis_scr[pl.ds(3 * (j - 1), 3), :] = tj.astype(bf16)
    # Zero the 8 pad rows every step (aligned 8-row store).  Must NOT be
    # gated on program_id==0: on megacore the second core never sees step 0
    # and its per-core scratch could hold NaN (0 * NaN = NaN through w1's
    # zero columns).  Cost is negligible (~8*tm bf16 stores per tile).
    basis_scr[pl.ds(K1, K1_PAD - K1), :] = jnp.zeros((K1_PAD - K1, tm), bf16)
    h = jnp.dot(w1[...], basis_scr[...], preferred_element_type=f32) + c1[...]
    h = _layernorm_t(h, g1[...], be1[...])            # (256, tm)

    # ---- chebykan2: 256 -> 64, deg 5 (bf16 recurrence + MXU, f32 acc) ------
    h = _cheby_layer_t(h, w2, c2)                     # (64, tm)
    h = _layernorm_t(h, g2[...], be2[...])

    # ---- chebykan3: 64 -> 16, deg 4 -----------------------------------------
    h = _cheby_layer_t(h, w3, c3)                     # (16, tm)
    h = _layernorm_t(h, g3[...], be3[...])

    # ---- chebykan4: 16 -> 4, deg 3 (bf16 single-pass, MXU mostly idle) -----
    h = _cheby_layer_t(h, w4, c4)                     # (4, tm)
    h = _layernorm_t(h, g4[...], be4[...])

    # ---- model: 4 -> 1, deg 2, on the VPU (MXU would be >97% idle) ---------
    t = jnp.tanh(h)                                   # (4, tm) f32
    t2 = 2.0 * t * t - 1.0                            # T_2
    out = c5[...] + jnp.sum(w5a[...] * t + w5b[...] * t2,
                            axis=0, keepdims=True)    # (1, tm)
    o_ref[...] = (jnp.abs(out) * (1.0 / SCALE)).astype(o_ref.dtype)


# ----------------------------- parameter setup ------------------------------
def init_params(key):
    """Raw parameters matching ChebyKANLayer / nn.LayerNorm defaults."""
    coeffs, ln = [], []
    for (d_in, d_out, deg) in LAYERS:
        key, sub = jax.random.split(key)
        std = 1.0 / (d_in * (deg + 1))
        coeffs.append(std * jax.random.normal(sub, (d_in, d_out, deg + 1),
                                              dtype=jnp.float32))
    for (_, d_out, _) in LAYERS[:4]:
        ln.append((jnp.ones((d_out,), jnp.float32),
                   jnp.zeros((d_out,), jnp.float32)))
    return {"coeffs": coeffs, "ln": ln}


def pack_params(raw):
    """Repack raw parameters into the kernel's transposed / fused layouts."""
    p = {}
    bf16 = jnp.bfloat16
    # layer 1: degrees 1..40, degree-major 3*(j-1)+i rows, zero-padded to 128,
    # transposed, bf16; degree-0 term folded into an f32 bias.
    c1 = raw["coeffs"][0]                                         # (3, 256, 41)
    k1 = jnp.transpose(c1[:, :, 1:], (2, 0, 1)).reshape(K1, 256)  # (120, 256)
    k1 = jnp.pad(k1, ((0, K1_PAD - K1), (0, 0)))                  # (128, 256)
    p["w1"] = k1.T.astype(bf16)                                   # (256, 128)
    p["c1"] = jnp.sum(c1[:, :, 0].astype(bf16).astype(jnp.float32),
                      axis=0)[:, None]                            # (256, 1)
    # layers 2-4: (degree, d_out, d_in) bf16 for degrees 1..deg plus a
    # degree-0 f32 bias computed from coefficients rounded to bf16 (what the
    # MXU would have seen).
    for li in (2, 3, 4):
        c = raw["coeffs"][li - 1]                                 # (din,dout,deg+1)
        p[f"w{li}"] = jnp.transpose(c, (2, 1, 0)).astype(bf16)[1:]   # (deg,dout,din)
        p[f"c{li}"] = jnp.sum(c[:, :, 0].astype(bf16).astype(jnp.float32),
                              axis=0)[:, None]                    # (dout, 1)
    # layer 5 ("model", 4 -> 1, deg 2): evaluated on the VPU in f32.
    c5 = raw["coeffs"][4]                                         # (4, 1, 3)
    p["w5a"] = c5[:, :, 1]                                        # (4, 1)  degree 1
    p["w5b"] = c5[:, :, 2]                                        # (4, 1)  degree 2
    p["c5"] = jnp.sum(c5[:, :, 0], axis=0, keepdims=True)         # (1, 1)  degree 0
    for li in range(1, 5):
        g, b = raw["ln"][li - 1]
        p[f"g{li}"] = g[:, None]                                  # (dout, 1)
        p[f"be{li}"] = b[:, None]
    return p


# ----------------------------- wrapper --------------------------------------
_PARAM_ORDER = ["w1", "c1", "g1", "be1",
                "w2", "c2", "g2", "be2",
                "w3", "c3", "g3", "be3",
                "w4", "c4", "g4", "be4",
                "w5a", "w5b", "c5"]


def capudf_forward(points, packed, *, tm=1024):
    """UDF forward pass.  points: (n, 3) float32 -> (n, 1) float32.

    tm: point tile (multiple of 128).  Prefer 1024-2048 for large point
    clouds; on v7x keep n_pad/tm even so both TensorCores stay busy.
    """
    n, d = points.shape
    assert d == 3
    n_pad = ((n + tm - 1) // tm) * tm
    xt = jnp.transpose(points).astype(jnp.float32)                # (3, n)
    if n_pad != n:
        xt = jnp.pad(xt, ((0, 0), (0, n_pad - n)))

    weight_args = [packed[k] for k in _PARAM_ORDER]
    zero_map = {2: (lambda i: (0, 0)), 3: (lambda i: (0, 0, 0))}
    in_specs = [pl.BlockSpec((3, tm), lambda i: (0, i))]
    in_specs += [pl.BlockSpec(a.shape, zero_map[a.ndim]) for a in weight_args]

    out = pl.pallas_call(
        capudf_kernel,
        out_shape=jax.ShapeDtypeStruct((1, n_pad), jnp.float32),
        grid_spec=pltpu.PrefetchScalarGridSpec(
            num_scalar_prefetch=0,
            grid=(n_pad // tm,),
            in_specs=in_specs,
            out_specs=pl.BlockSpec((1, tm), lambda i: (0, i)),
            scratch_shapes=[pltpu.VMEM((K1_PAD, tm), jnp.bfloat16)],
        ),
        compiler_params=pltpu.CompilerParams(
            dimension_semantics=("parallel",),
            vmem_limit_bytes=48 * 1024 * 1024,
        ),
    )(xt, *weight_args)
    return out[0, :n].reshape(n, 1)


# ----------------------------- pure-JAX reference ----------------------------
def _cheby_features_ref(x, degree, t_dtype=jnp.float32):
    t = jnp.tanh(x).astype(t_dtype)          # tanh in f32, cast once
    feats = [jnp.ones_like(t), t]
    for _ in range(degree - 1):
        feats.append(2.0 * t * feats[-1] - feats[-2])
    return jnp.stack(feats[: degree + 1], axis=-1)     # (n, d_in, degree+1)


def reference_forward(points, raw):
    """Reference with the same precision policy as the kernel: bf16 MXU
    operands for layers 1-4 (bf16 recurrence for layers 2-4), f32
    accumulation / layer-1 recurrence / LayerNorm / final layer."""
    h = points.astype(jnp.float32) * SCALE
    for li, (d_in, d_out, deg) in enumerate(LAYERS, start=1):
        c = raw["coeffs"][li - 1]
        rec_dt = jnp.float32 if li in (1, 5) else jnp.bfloat16
        dt = jnp.bfloat16 if li <= 4 else jnp.float32
        feats = _cheby_features_ref(h, deg, rec_dt)
        h = jnp.einsum("bid,iod->bo", feats.astype(dt), c.astype(dt),
                       preferred_element_type=jnp.float32)
        if li <= 4:
            g, b = raw["ln"][li - 1]
            mu = jnp.mean(h, axis=-1, keepdims=True)
            var = jnp.mean(h * h, axis=-1, keepdims=True) - mu * mu
            h = (h - mu) * lax.rsqrt(jnp.maximum(var, 0.0) + LN_EPS) * g + b
    return jnp.abs(h) / SCALE


if __name__ == "__main__":
    key = jax.random.PRNGKey(0)
    pkey, xkey = jax.random.split(key)
    raw = init_params(pkey)
    packed = pack_params(raw)

    # Small deterministic batch of 3-D query points.  n=1024 with tm=512 gives
    # an even grid of 2 tiles (keeps both v7x TensorCores busy).
    n_points = 1024
    points = jax.random.uniform(xkey, (n_points, 3), dtype=jnp.float32,
                                minval=-1.0, maxval=1.0)

    out = jax.block_until_ready(capudf_forward(points, packed, tm=512))
    ref = jax.block_until_ready(reference_forward(points, raw))

    np.testing.assert_allclose(np.asarray(out), np.asarray(ref),
                               rtol=1e-2, atol=2e-3)
    assert out.shape == (n_points, 1)
    print("KERNEL_OK")
</pallas_src>

<mosaic_0001>
module attributes {stable_mosaic.version = 11 : i64} {
  func.func @capudf_kernel(%arg0: i32, %arg1: memref<3x512xf32, #tpu.memory_space<vmem>>, %arg2: memref<256x128xbf16, #tpu.memory_space<vmem>>, %arg3: memref<256x1xf32, #tpu.memory_space<vmem>>, %arg4: memref<256x1xf32, #tpu.memory_space<vmem>>, %arg5: memref<256x1xf32, #tpu.memory_space<vmem>>, %arg6: memref<5x64x256xbf16, #tpu.memory_space<vmem>>, %arg7: memref<64x1xf32, #tpu.memory_space<vmem>>, %arg8: memref<64x1xf32, #tpu.memory_space<vmem>>, %arg9: memref<64x1xf32, #tpu.memory_space<vmem>>, %arg10: memref<4x16x64xbf16, #tpu.memory_space<vmem>>, %arg11: memref<16x1xf32, #tpu.memory_space<vmem>>, %arg12: memref<16x1xf32, #tpu.memory_space<vmem>>, %arg13: memref<16x1xf32, #tpu.memory_space<vmem>>, %arg14: memref<3x4x16xbf16, #tpu.memory_space<vmem>>, %arg15: memref<4x1xf32, #tpu.memory_space<vmem>>, %arg16: memref<4x1xf32, #tpu.memory_space<vmem>>, %arg17: memref<4x1xf32, #tpu.memory_space<vmem>>, %arg18: memref<4x1xf32, #tpu.memory_space<vmem>>, %arg19: memref<4x1xf32, #tpu.memory_space<vmem>>, %arg20: memref<1x1xf32, #tpu.memory_space<vmem>>, %arg21: memref<1x512xf32, #tpu.memory_space<vmem>>, %arg22: memref<128x512xbf16, #tpu.memory_space<vmem>>) attributes {dimension_semantics = [#tpu.dimension_semantics<parallel>], iteration_bounds = array<i64: 2>, scalar_prefetch = 0 : i64, scratch_operands = 1 : i64, tpu.core_type = #tpu.core_type<tc>, window_params = [{transform_indices = @transform_0, window_bounds = array<i64: 3, 512>}, {pipeline_mode = #tpu.pipeline_mode<synchronous>, transform_indices = @transform_1, window_bounds = array<i64: 256, 128>}, {pipeline_mode = #tpu.pipeline_mode<synchronous>, transform_indices = @transform_2, window_bounds = array<i64: 256, 1>}, {pipeline_mode = #tpu.pipeline_mode<synchronous>, transform_indices = @transform_3, window_bounds = array<i64: 256, 1>}, {pipeline_mode = #tpu.pipeline_mode<synchronous>, transform_indices = @transform_4, window_bounds = array<i64: 256, 1>}, {pipeline_mode = #tpu.pipeline_mode<synchronous>, transform_indices = @transform_5, window_bounds = array<i64: 5, 64, 256>}, {pipeline_mode = #tpu.pipeline_mode<synchronous>, transform_indices = @transform_6, window_bounds = array<i64: 64, 1>}, {pipeline_mode = #tpu.pipeline_mode<synchronous>, transform_indices = @transform_7, window_bounds = array<i64: 64, 1>}, {pipeline_mode = #tpu.pipeline_mode<synchronous>, transform_indices = @transform_8, window_bounds = array<i64: 64, 1>}, {pipeline_mode = #tpu.pipeline_mode<synchronous>, transform_indices = @transform_9, window_bounds = array<i64: 4, 16, 64>}, {pipeline_mode = #tpu.pipeline_mode<synchronous>, transform_indices = @transform_10, window_bounds = array<i64: 16, 1>}, {pipeline_mode = #tpu.pipeline_mode<synchronous>, transform_indices = @transform_11, window_bounds = array<i64: 16, 1>}, {pipeline_mode = #tpu.pipeline_mode<synchronous>, transform_indices = @transform_12, window_bounds = array<i64: 16, 1>}, {pipeline_mode = #tpu.pipeline_mode<synchronous>, transform_indices = @transform_13, window_bounds = array<i64: 3, 4, 16>}, {pipeline_mode = #tpu.pipeline_mode<synchronous>, transform_indices = @transform_14, window_bounds = array<i64: 4, 1>}, {pipeline_mode = #tpu.pipeline_mode<synchronous>, transform_indices = @transform_15, window_bounds = array<i64: 4, 1>}, {pipeline_mode = #tpu.pipeline_mode<synchronous>, transform_indices = @transform_16, window_bounds = array<i64: 4, 1>}, {pipeline_mode = #tpu.pipeline_mode<synchronous>, transform_indices = @transform_17, window_bounds = array<i64: 4, 1>}, {pipeline_mode = #tpu.pipeline_mode<synchronous>, transform_indices = @transform_18, window_bounds = array<i64: 4, 1>}, {pipeline_mode = #tpu.pipeline_mode<synchronous>, transform_indices = @transform_19, window_bounds = array<i64: 1, 1>}, {transform_indices = @transform_20, window_bounds = array<i64: 1, 512>}]} {
    %c0 = arith.constant 0 : index
    %c0_0 = arith.constant 0 : index
    %0 = vector.load %arg1[%c0, %c0_0] : memref<3x512xf32, #tpu.memory_space<vmem>>, vector<3x512xf32>
    %cst = arith.constant 1.000000e+00 : f32
    %1 = vector.broadcast %cst : f32 to vector<3x512xf32>
    %2 = arith.mulf %0, %1 : vector<3x512xf32>
    %3 = math.tanh %2 : vector<3x512xf32>
    %cst_1 = arith.constant 1.000000e+00 : f32
    %4 = vector.broadcast %cst_1 : f32 to vector<3x512xf32>
    %5 = arith.truncf %3 : vector<3x512xf32> to vector<3x512xbf16>
    %c0_2 = arith.constant 0 : index
    %c0_3 = arith.constant 0 : index
    %6 = vector.load %arg22[%c0_2, %c0_3] : memref<128x512xbf16, #tpu.memory_space<vmem>>, vector<3x512xbf16>
    tpu.vector_store %arg22[%c0_2, %c0_3], %5 {strides = array<i32>} : memref<128x512xbf16, #tpu.memory_space<vmem>>, vector<3x512xbf16>,
    %cst_4 = arith.constant 2.000000e+00 : f32
    %7 = vector.broadcast %cst_4 : f32 to vector<3x512xf32>
    %8 = arith.mulf %7, %3 : vector<3x512xf32>
    %9 = arith.mulf %8, %3 : vector<3x512xf32>
    %10 = arith.subf %9, %4 : vector<3x512xf32>
    %11 = arith.truncf %10 : vector<3x512xf32> to vector<3x512xbf16>
    %c3 = arith.constant 3 : index
    %c0_5 = arith.constant 0 : index
    %12 = vector.load %arg22[%c3, %c0_5] : memref<128x512xbf16, #tpu.memory_space<vmem>>, vector<3x512xbf16>
    tpu.vector_store %arg22[%c3, %c0_5], %11 {strides = array<i32>} : memref<128x512xbf16, #tpu.memory_space<vmem>>, vector<3x512xbf16>,
    %cst_6 = arith.constant 2.000000e+00 : f32
    %13 = vector.broadcast %cst_6 : f32 to vector<3x512xf32>
    %14 = arith.mulf %13, %3 : vector<3x512xf32>
    %15 = arith.mulf %14, %10 : vector<3x512xf32>
    %16 = arith.subf %15, %3 : vector<3x512xf32>
    %17 = arith.truncf %16 : vector<3x512xf32> to vector<3x512xbf16>
    %c6 = arith.constant 6 : index
    %c0_7 = arith.constant 0 : index
    %18 = vector.load %arg22[%c6, %c0_7] : memref<128x512xbf16, #tpu.memory_space<vmem>>, vector<3x512xbf16>
    tpu.vector_store %arg22[%c6, %c0_7], %17 {strides = array<i32>} : memref<128x512xbf16, #tpu.memory_space<vmem>>, vector<3x512xbf16>,
    %cst_8 = arith.constant 2.000000e+00 : f32
    %19 = vector.broadcast %cst_8 : f32 to vector<3x512xf32>
    %20 = arith.mulf %19, %3 : vector<3x512xf32>
    %21 = arith.mulf %20, %16 : vector<3x512xf32>
    %22 = arith.subf %21, %10 : vector<3x512xf32>
    %23 = arith.truncf %22 : vector<3x512xf32> to vector<3x512xbf16>
    %c9 = arith.constant 9 : index
    %c0_9 = arith.constant 0 : index
    %24 = vector.load %arg22[%c9, %c0_9] : memref<128x512xbf16, #tpu.memory_space<vmem>>, vector<3x512xbf16>
    tpu.vector_store %arg22[%c9, %c0_9], %23 {strides = array<i32>} : memref<128x512xbf16, #tpu.memory_space<vmem>>, vector<3x512xbf16>,
    %cst_10 = arith.constant 2.000000e+00 : f32
    %25 = vector.broadcast %cst_10 : f32 to vector<3x512xf32>
    %26 = arith.mulf %25, %3 : vector<3x512xf32>
    %27 = arith.mulf %26, %22 : vector<3x512xf32>
    %28 = arith.subf %27, %16 : vector<3x512xf32>
    %29 = arith.truncf %28 : vector<3x512xf32> to vector<3x512xbf16>
    %c12 = arith.constant 12 : index
    %c0_11 = arith.constant 0 : index
    %30 = vector.load %arg22[%c12, %c0_11] : memref<128x512xbf16, #tpu.memory_space<vmem>>, vector<3x512xbf16>
    tpu.vector_store %arg22[%c12, %c0_11], %29 {strides = array<i32>} : memref<128x512xbf16, #tpu.memory_space<vmem>>, vector<3x512xbf16>,
    %cst_12 = arith.constant 2.000000e+00 : f32
    %31 = vector.broadcast %cst_12 : f32 to vector<3x512xf32>
    %32 = arith.mulf %31, %3 : vector<3x512xf32>
    %33 = arith.mulf %32, %28 : vector<3x512xf32>
    %34 = arith.subf %33, %22 : vector<3x512xf32>
    %35 = arith.truncf %34 : vector<3x512xf32> to vector<3x512xbf16>
    %c15 = arith.constant 15 : index
    %c0_13 = arith.constant 0 : index
    %36 = vector.load %arg22[%c15, %c0_13] : memref<128x512xbf16, #tpu.memory_space<vmem>>, vector<3x512xbf16>
    tpu.vector_store %arg22[%c15, %c0_13], %35 {strides = array<i32>} : memref<128x512xbf16, #tpu.memory_space<vmem>>, vector<3x512xbf16>,
    %cst_14 = arith.constant 2.000000e+00 : f32
    %37 = vector.broadcast %cst_14 : f32 to vector<3x512xf32>
    %38 = arith.mulf %37, %3 : vector<3x512xf32>
    %39 = arith.mulf %38, %34 : vector<3x512xf32>
    %40 = arith.subf %39, %28 : vector<3x512xf32>
    %41 = arith.truncf %40 : vector<3x512xf32> to vector<3x512xbf16>
    %c18 = arith.constant 18 : index
    %c0_15 = arith.constant 0 : index
    %42 = vector.load %arg22[%c18, %c0_15] : memref<128x512xbf16, #tpu.memory_space<vmem>>, vector<3x512xbf16>
    tpu.vector_store %arg22[%c18, %c0_15], %41 {strides = array<i32>} : memref<128x512xbf16, #tpu.memory_space<vmem>>, vector<3x512xbf16>,
    %cst_16 = arith.constant 2.000000e+00 : f32
    %43 = vector.broadcast %cst_16 : f32 to vector<3x512xf32>
    %44 = arith.mulf %43, %3 : vector<3x512xf32>
    %45 = arith.mulf %44, %40 : vector<3x512xf32>
    %46 = arith.subf %45, %34 : vector<3x512xf32>
    %47 = arith.truncf %46 : vector<3x512xf32> to vector<3x512xbf16>
    %c21 = arith.constant 21 : index
    %c0_17 = arith.constant 0 : index
    %48 = vector.load %arg22[%c21, %c0_17] : memref<128x512xbf16, #tpu.memory_space<vmem>>, vector<3x512xbf16>
    tpu.vector_store %arg22[%c21, %c0_17], %47 {strides = array<i32>} : memref<128x512xbf16, #tpu.memory_space<vmem>>, vector<3x512xbf16>,
    %cst_18 = arith.constant 2.000000e+00 : f32
    %49 = vector.broadcast %cst_18 : f32 to vector<3x512xf32>
    %50 = arith.mulf %49, %3 : vector<3x512xf32>
    %51 = arith.mulf %50, %46 : vector<3x512xf32>
    %52 = arith.subf %51, %40 : vector<3x512xf32>
    %53 = arith.truncf %52 : vector<3x512xf32> to vector<3x512xbf16>
    %c24 = arith.constant 24 : index
    %c0_19 = arith.constant 0 : index
    %54 = vector.load %arg22[%c24, %c0_19] : memref<128x512xbf16, #tpu.memory_space<vmem>>, vector<3x512xbf16>
    tpu.vector_store %arg22[%c24, %c0_19], %53 {strides = array<i32>} : memref<128x512xbf16, #tpu.memory_space<vmem>>, vector<3x512xbf16>,
    %cst_20 = arith.constant 2.000000e+00 : f32
    %55 = vector.broadcast %cst_20 : f32 to vector<3x512xf32>
    %56 = arith.mulf %55, %3 : vector<3x512xf32>
    %57 = arith.mulf %56, %52 : vector<3x512xf32>
    %58 = arith.subf %57, %46 : vector<3x512xf32>
    %59 = arith.truncf %58 : vector<3x512xf32> to vector<3x512xbf16>
    %c27 = arith.constant 27 : index
    %c0_21 = arith.constant 0 : index
    %60 = vector.load %arg22[%c27, %c0_21] : memref<128x512xbf16, #tpu.memory_space<vmem>>, vector<3x512xbf16>
    tpu.vector_store %arg22[%c27, %c0_21], %59 {strides = array<i32>} : memref<128x512xbf16, #tpu.memory_space<vmem>>, vector<3x512xbf16>,
    %cst_22 = arith.constant 2.000000e+00 : f32
    %61 = vector.broadcast %cst_22 : f32 to vector<3x512xf32>
    %62 = arith.mulf %61, %3 : vector<3x512xf32>
    %63 = arith.mulf %62, %58 : vector<3x512xf32>
    %64 = arith.subf %63, %52 : vector<3x512xf32>
    %65 = arith.truncf %64 : vector<3x512xf32> to vector<3x512xbf16>
    %c30 = arith.constant 30 : index
    %c0_23 = arith.constant 0 : index
    %66 = vector.load %arg22[%c30, %c0_23] : memref<128x512xbf16, #tpu.memory_space<vmem>>, vector<3x512xbf16>
    tpu.vector_store %arg22[%c30, %c0_23], %65 {strides = array<i32>} : memref<128x512xbf16, #tpu.memory_space<vmem>>, vector<3x512xbf16>,
    %cst_24 = arith.constant 2.000000e+00 : f32
    %67 = vector.broadcast %cst_24 : f32 to vector<3x512xf32>
    %68 = arith.mulf %67, %3 : vector<3x512xf32>
    %69 = arith.mulf %68, %64 : vector<3x512xf32>
    %70 = arith.subf %69, %58 : vector<3x512xf32>
    %71 = arith.truncf %70 : vector<3x512xf32> to vector<3x512xbf16>
    %c33 = arith.constant 33 : index
    %c0_25 = arith.constant 0 : index
    %72 = vector.load %arg22[%c33, %c0_25] : memref<128x512xbf16, #tpu.memory_space<vmem>>, vector<3x512xbf16>
    tpu.vector_store %arg22[%c33, %c0_25], %71 {strides = array<i32>} : memref<128x512xbf16, #tpu.memory_space<vmem>>, vector<3x512xbf16>,
    %cst_26 = arith.constant 2.000000e+00 : f32
    %73 = vector.broadcast %cst_26 : f32 to vector<3x512xf32>
    %74 = arith.mulf %73, %3 : vector<3x512xf32>
    %75 = arith.mulf %74, %70 : vector<3x512xf32>
    %76 = arith.subf %75, %64 : vector<3x512xf32>
    %77 = arith.truncf %76 : vector<3x512xf32> to vector<3x512xbf16>
    %c36 = arith.constant 36 : index
    %c0_27 = arith.constant 0 : index
    %78 = vector.load %arg22[%c36, %c0_27] : memref<128x512xbf16, #tpu.memory_space<vmem>>, vector<3x512xbf16>
    tpu.vector_store %arg22[%c36, %c0_27], %77 {strides = array<i32>} : memref<128x512xbf16, #tpu.memory_space<vmem>>, vector<3x512xbf16>,
    %cst_28 = arith.constant 2.000000e+00 : f32
    %79 = vector.broadcast %cst_28 : f32 to vector<3x512xf32>
    %80 = arith.mulf %79, %3 : vector<3x512xf32>
    %81 = arith.mulf %80, %76 : vector<3x512xf32>
    %82 = arith.subf %81, %70 : vector<3x512xf32>
    %83 = arith.truncf %82 : vector<3x512xf32> to vector<3x512xbf16>
    %c39 = arith.constant 39 : index
    %c0_29 = arith.constant 0 : index
    %84 = vector.load %arg22[%c39, %c0_29] : memref<128x512xbf16, #tpu.memory_space<vmem>>, vector<3x512xbf16>
    tpu.vector_store %arg22[%c39, %c0_29], %83 {strides = array<i32>} : memref<128x512xbf16, #tpu.memory_space<vmem>>, vector<3x512xbf16>,
    %cst_30 = arith.constant 2.000000e+00 : f32
    %85 = vector.broadcast %cst_30 : f32 to vector<3x512xf32>
    %86 = arith.mulf %85, %3 : vector<3x512xf32>
    %87 = arith.mulf %86, %82 : vector<3x512xf32>
    %88 = arith.subf %87, %76 : vector<3x512xf32>
    %89 = arith.truncf %88 : vector<3x512xf32> to vector<3x512xbf16>
    %c42 = arith.constant 42 : index
    %c0_31 = arith.constant 0 : index
    %90 = vector.load %arg22[%c42, %c0_31] : memref<128x512xbf16, #tpu.memory_space<vmem>>, vector<3x512xbf16>
    tpu.vector_store %arg22[%c42, %c0_31], %89 {strides = array<i32>} : memref<128x512xbf16, #tpu.memory_space<vmem>>, vector<3x512xbf16>,
    %cst_32 = arith.constant 2.000000e+00 : f32
    %91 = vector.broadcast %cst_32 : f32 to vector<3x512xf32>
    %92 = arith.mulf %91, %3 : vector<3x512xf32>
    %93 = arith.mulf %92, %88 : vector<3x512xf32>
    %94 = arith.subf %93, %82 : vector<3x512xf32>
    %95 = arith.truncf %94 : vector<3x512xf32> to vector<3x512xbf16>
    %c45 = arith.constant 45 : index
    %c0_33 = arith.constant 0 : index
    %96 = vector.load %arg22[%c45, %c0_33] : memref<128x512xbf16, #tpu.memory_space<vmem>>, vector<3x512xbf16>
    tpu.vector_store %arg22[%c45, %c0_33], %95 {strides = array<i32>} : memref<128x512xbf16, #tpu.memory_space<vmem>>, vector<3x512xbf16>,
    %cst_34 = arith.constant 2.000000e+00 : f32
    %97 = vector.broadcast %cst_34 : f32 to vector<3x512xf32>
    %98 = arith.mulf %97, %3 : vector<3x512xf32>
    %99 = arith.mulf %98, %94 : vector<3x512xf32>
    %100 = arith.subf %99, %88 : vector<3x512xf32>
    %101 = arith.truncf %100 : vector<3x512xf32> to vector<3x512xbf16>
    %c48 = arith.constant 48 : index
    %c0_35 = arith.constant 0 : index
    %102 = vector.load %arg22[%c48, %c0_35] : memref<128x512xbf16, #tpu.memory_space<vmem>>, vector<3x512xbf16>
    tpu.vector_store %arg22[%c48, %c0_35], %101 {strides = array<i32>} : memref<128x512xbf16, #tpu.memory_space<vmem>>, vector<3x512xbf16>,
    %cst_36 = arith.constant 2.000000e+00 : f32
    %103 = vector.broadcast %cst_36 : f32 to vector<3x512xf32>
    %104 = arith.mulf %103, %3 : vector<3x512xf32>
    %105 = arith.mulf %104, %100 : vector<3x512xf32>
    %106 = arith.subf %105, %94 : vector<3x512xf32>
    %107 = arith.truncf %106 : vector<3x512xf32> to vector<3x512xbf16>
    %c51 = arith.constant 51 : index
    %c0_37 = arith.constant 0 : index
    %108 = vector.load %arg22[%c51, %c0_37] : memref<128x512xbf16, #tpu.memory_space<vmem>>, vector<3x512xbf16>
    tpu.vector_store %arg22[%c51, %c0_37], %107 {strides = array<i32>} : memref<128x512xbf16, #tpu.memory_space<vmem>>, vector<3x512xbf16>,
    %cst_38 = arith.constant 2.000000e+00 : f32
    %109 = vector.broadcast %cst_38 : f32 to vector<3x512xf32>
    %110 = arith.mulf %109, %3 : vector<3x512xf32>
    %111 = arith.mulf %110, %106 : vector<3x512xf32>
    %112 = arith.subf %111, %100 : vector<3x512xf32>
    %113 = arith.truncf %112 : vector<3x512xf32> to vector<3x512xbf16>
    %c54 = arith.constant 54 : index
    %c0_39 = arith.constant 0 : index
    %114 = vector.load %arg22[%c54, %c0_39] : memref<128x512xbf16, #tpu.memory_space<vmem>>, vector<3x512xbf16>
    tpu.vector_store %arg22[%c54, %c0_39], %113 {strides = array<i32>} : memref<128x512xbf16, #tpu.memory_space<vmem>>, vector<3x512xbf16>,
    %cst_40 = arith.constant 2.000000e+00 : f32
    %115 = vector.broadcast %cst_40 : f32 to vector<3x512xf32>
    %116 = arith.mulf %115, %3 : vector<3x512xf32>
    %117 = arith.mulf %116, %112 : vector<3x512xf32>
    %118 = arith.subf %117, %106 : vector<3x512xf32>
    %119 = arith.truncf %118 : vector<3x512xf32> to vector<3x512xbf16>
    %c57 = arith.constant 57 : index
    %c0_41 = arith.constant 0 : index
    %120 = vector.load %arg22[%c57, %c0_41] : memref<128x512xbf16, #tpu.memory_space<vmem>>, vector<3x512xbf16>
    tpu.vector_store %arg22[%c57, %c0_41], %119 {strides = array<i32>} : memref<128x512xbf16, #tpu.memory_space<vmem>>, vector<3x512xbf16>,
    %cst_42 = arith.constant 2.000000e+00 : f32
    %121 = vector.broadcast %cst_42 : f32 to vector<3x512xf32>
    %122 = arith.mulf %121, %3 : vector<3x512xf32>
    %123 = arith.mulf %122, %118 : vector<3x512xf32>
    %124 = arith.subf %123, %112 : vector<3x512xf32>
    %125 = arith.truncf %124 : vector<3x512xf32> to vector<3x512xbf16>
    %c60 = arith.constant 60 : index
    %c0_43 = arith.constant 0 : index
    %126 = vector.load %arg22[%c60, %c0_43] : memref<128x512xbf16, #tpu.memory_space<vmem>>, vector<3x512xbf16>
    tpu.vector_store %arg22[%c60, %c0_43], %125 {strides = array<i32>} : memref<128x512xbf16, #tpu.memory_space<vmem>>, vector<3x512xbf16>,
    %cst_44 = arith.constant 2.000000e+00 : f32
    %127 = vector.broadcast %cst_44 : f32 to vector<3x512xf32>
    %128 = arith.mulf %127, %3 : vector<3x512xf32>
    %129 = arith.mulf %128, %124 : vector<3x512xf32>
    %130 = arith.subf %129, %118 : vector<3x512xf32>
    %131 = arith.truncf %130 : vector<3x512xf32> to vector<3x512xbf16>
    %c63 = arith.constant 63 : index
    %c0_45 = arith.constant 0 : index
    %132 = vector.load %arg22[%c63, %c0_45] : memref<128x512xbf16, #tpu.memory_space<vmem>>, vector<3x512xbf16>
    tpu.vector_store %arg22[%c63, %c0_45], %131 {strides = array<i32>} : memref<128x512xbf16, #tpu.memory_space<vmem>>, vector<3x512xbf16>,
    %cst_46 = arith.constant 2.000000e+00 : f32
    %133 = vector.broadcast %cst_46 : f32 to vector<3x512xf32>
    %134 = arith.mulf %133, %3 : vector<3x512xf32>
    %135 = arith.mulf %134, %130 : vector<3x512xf32>
    %136 = arith.subf %135, %124 : vector<3x512xf32>
    %137 = arith.truncf %136 : vector<3x512xf32> to vector<3x512xbf16>
    %c66 = arith.constant 66 : index
    %c0_47 = arith.constant 0 : index
    %138 = vector.load %arg22[%c66, %c0_47] : memref<128x512xbf16, #tpu.memory_space<vmem>>, vector<3x512xbf16>
    tpu.vector_store %arg22[%c66, %c0_47], %137 {strides = array<i32>} : memref<128x512xbf16, #tpu.memory_space<vmem>>, vector<3x512xbf16>,
    %cst_48 = arith.constant 2.000000e+00 : f32
    %139 = vector.broadcast %cst_48 : f32 to vector<3x512xf32>
    %140 = arith.mulf %139, %3 : vector<3x512xf32>
    %141 = arith.mulf %140, %136 : vector<3x512xf32>
    %142 = arith.subf %141, %130 : vector<3x512xf32>
    %143 = arith.truncf %142 : vector<3x512xf32> to vector<3x512xbf16>
    %c69 = arith.constant 69 : index
    %c0_49 = arith.constant 0 : index
    %144 = vector.load %arg22[%c69, %c0_49] : memref<128x512xbf16, #tpu.memory_space<vmem>>, vector<3x512xbf16>
    tpu.vector_store %arg22[%c69, %c0_49], %143 {strides = array<i32>} : memref<128x512xbf16, #tpu.memory_space<vmem>>, vector<3x512xbf16>,
    %cst_50 = arith.constant 2.000000e+00 : f32
    %145 = vector.broadcast %cst_50 : f32 to vector<3x512xf32>
    %146 = arith.mulf %145, %3 : vector<3x512xf32>
    %147 = arith.mulf %146, %142 : vector<3x512xf32>
    %148 = arith.subf %147, %136 : vector<3x512xf32>
    %149 = arith.truncf %148 : vector<3x512xf32> to vector<3x512xbf16>
    %c72 = arith.constant 72 : index
    %c0_51 = arith.constant 0 : index
    %150 = vector.load %arg22[%c72, %c0_51] : memref<128x512xbf16, #tpu.memory_space<vmem>>, vector<3x512xbf16>
    tpu.vector_store %arg22[%c72, %c0_51], %149 {strides = array<i32>} : memref<128x512xbf16, #tpu.memory_space<vmem>>, vector<3x512xbf16>,
    %cst_52 = arith.constant 2.000000e+00 : f32
    %151 = vector.broadcast %cst_52 : f32 to vector<3x512xf32>
    %152 = arith.mulf %151, %3 : vector<3x512xf32>
    %153 = arith.mulf %152, %148 : vector<3x512xf32>
    %154 = arith.subf %153, %142 : vector<3x512xf32>
    %155 = arith.truncf %154 : vector<3x512xf32> to vector<3x512xbf16>
    %c75 = arith.constant 75 : index
    %c0_53 = arith.constant 0 : index
    %156 = vector.load %arg22[%c75, %c0_53] : memref<128x512xbf16, #tpu.memory_space<vmem>>, vector<3x512xbf16>
    tpu.vector_store %arg22[%c75, %c0_53], %155 {strides = array<i32>} : memref<128x512xbf16, #tpu.memory_space<vmem>>, vector<3x512xbf16>,
    %cst_54 = arith.constant 2.000000e+00 : f32
    %157 = vector.broadcast %cst_54 : f32 to vector<3x512xf32>
    %158 = arith.mulf %157, %3 : vector<3x512xf32>
    %159 = arith.mulf %158, %154 : vector<3x512xf32>
    %160 = arith.subf %159, %148 : vector<3x512xf32>
    %161 = arith.truncf %160 : vector<3x512xf32> to vector<3x512xbf16>
    %c78 = arith.constant 78 : index
    %c0_55 = arith.constant 0 : index
    %162 = vector.load %arg22[%c78, %c0_55] : memref<128x512xbf16, #tpu.memory_space<vmem>>, vector<3x512xbf16>
    tpu.vector_store %arg22[%c78, %c0_55], %161 {strides = array<i32>} : memref<128x512xbf16, #tpu.memory_space<vmem>>, vector<3x512xbf16>,
    %cst_56 = arith.constant 2.000000e+00 : f32
    %163 = vector.broadcast %cst_56 : f32 to vector<3x512xf32>
    %164 = arith.mulf %163, %3 : vector<3x512xf32>
    %165 = arith.mulf %164, %160 : vector<3x512xf32>
    %166 = arith.subf %165, %154 : vector<3x512xf32>
    %167 = arith.truncf %166 : vector<3x512xf32> to vector<3x512xbf16>
    %c81 = arith.constant 81 : index
    %c0_57 = arith.constant 0 : index
    %168 = vector.load %arg22[%c81, %c0_57] : memref<128x512xbf16, #tpu.memory_space<vmem>>, vector<3x512xbf16>
    tpu.vector_store %arg22[%c81, %c0_57], %167 {strides = array<i32>} : memref<128x512xbf16, #tpu.memory_space<vmem>>, vector<3x512xbf16>,
    %cst_58 = arith.constant 2.000000e+00 : f32
    %169 = vector.broadcast %cst_58 : f32 to vector<3x512xf32>
    %170 = arith.mulf %169, %3 : vector<3x512xf32>
    %171 = arith.mulf %170, %166 : vector<3x512xf32>
    %172 = arith.subf %171, %160 : vector<3x512xf32>
    %173 = arith.truncf %172 : vector<3x512xf32> to vector<3x512xbf16>
    %c84 = arith.constant 84 : index
    %c0_59 = arith.constant 0 : index
    %174 = vector.load %arg22[%c84, %c0_59] : memref<128x512xbf16, #tpu.memory_space<vmem>>, vector<3x512xbf16>
    tpu.vector_store %arg22[%c84, %c0_59], %173 {strides = array<i32>} : memref<128x512xbf16, #tpu.memory_space<vmem>>, vector<3x512xbf16>,
    %cst_60 = arith.constant 2.000000e+00 : f32
    %175 = vector.broadcast %cst_60 : f32 to vector<3x512xf32>
    %176 = arith.mulf %175, %3 : vector<3x512xf32>
    %177 = arith.mulf %176, %172 : vector<3x512xf32>
    %178 = arith.subf %177, %166 : vector<3x512xf32>
    %179 = arith.truncf %178 : vector<3x512xf32> to vector<3x512xbf16>
    %c87 = arith.constant 87 : index
    %c0_61 = arith.constant 0 : index
    %180 = vector.load %arg22[%c87, %c0_61] : memref<128x512xbf16, #tpu.memory_space<vmem>>, vector<3x512xbf16>
    tpu.vector_store %arg22[%c87, %c0_61], %179 {strides = array<i32>} : memref<128x512xbf16, #tpu.memory_space<vmem>>, vector<3x512xbf16>,
    %cst_62 = arith.constant 2.000000e+00 : f32
    %181 = vector.broadcast %cst_62 : f32 to vector<3x512xf32>
    %182 = arith.mulf %181, %3 : vector<3x512xf32>
    %183 = arith.mulf %182, %178 : vector<3x512xf32>
    %184 = arith.subf %183, %172 : vector<3x512xf32>
    %185 = arith.truncf %184 : vector<3x512xf32> to vector<3x512xbf16>
    %c90 = arith.constant 90 : index
    %c0_63 = arith.constant 0 : index
    %186 = vector.load %arg22[%c90, %c0_63] : memref<128x512xbf16, #tpu.memory_space<vmem>>, vector<3x512xbf16>
    tpu.vector_store %arg22[%c90, %c0_63], %185 {strides = array<i32>} : memref<128x512xbf16, #tpu.memory_space<vmem>>, vector<3x512xbf16>,
    %cst_64 = arith.constant 2.000000e+00 : f32
    %187 = vector.broadcast %cst_64 : f32 to vector<3x512xf32>
    %188 = arith.mulf %187, %3 : vector<3x512xf32>
    %189 = arith.mulf %188, %184 : vector<3x512xf32>
    %190 = arith.subf %189, %178 : vector<3x512xf32>
    %191 = arith.truncf %190 : vector<3x512xf32> to vector<3x512xbf16>
    %c93 = arith.constant 93 : index
    %c0_65 = arith.constant 0 : index
    %192 = vector.load %arg22[%c93, %c0_65] : memref<128x512xbf16, #tpu.memory_space<vmem>>, vector<3x512xbf16>
    tpu.vector_store %arg22[%c93, %c0_65], %191 {strides = array<i32>} : memref<128x512xbf16, #tpu.memory_space<vmem>>, vector<3x512xbf16>,
    %cst_66 = arith.constant 2.000000e+00 : f32
    %193 = vector.broadcast %cst_66 : f32 to vector<3x512xf32>
    %194 = arith.mulf %193, %3 : vector<3x512xf32>
    %195 = arith.mulf %194, %190 : vector<3x512xf32>
    %196 = arith.subf %195, %184 : vector<3x512xf32>
    %197 = arith.truncf %196 : vector<3x512xf32> to vector<3x512xbf16>
    %c96 = arith.constant 96 : index
    %c0_67 = arith.constant 0 : index
    %198 = vector.load %arg22[%c96, %c0_67] : memref<128x512xbf16, #tpu.memory_space<vmem>>, vector<3x512xbf16>
    tpu.vector_store %arg22[%c96, %c0_67], %197 {strides = array<i32>} : memref<128x512xbf16, #tpu.memory_space<vmem>>, vector<3x512xbf16>,
    %cst_68 = arith.constant 2.000000e+00 : f32
    %199 = vector.broadcast %cst_68 : f32 to vector<3x512xf32>
    %200 = arith.mulf %199, %3 : vector<3x512xf32>
    %201 = arith.mulf %200, %196 : vector<3x512xf32>
    %202 = arith.subf %201, %190 : vector<3x512xf32>
    %203 = arith.truncf %202 : vector<3x512xf32> to vector<3x512xbf16>
    %c99 = arith.constant 99 : index
    %c0_69 = arith.constant 0 : index
    %204 = vector.load %arg22[%c99, %c0_69] : memref<128x512xbf16, #tpu.memory_space<vmem>>, vector<3x512xbf16>
    tpu.vector_store %arg22[%c99, %c0_69], %203 {strides = array<i32>} : memref<128x512xbf16, #tpu.memory_space<vmem>>, vector<3x512xbf16>,
    %cst_70 = arith.constant 2.000000e+00 : f32
    %205 = vector.broadcast %cst_70 : f32 to vector<3x512xf32>
    %206 = arith.mulf %205, %3 : vector<3x512xf32>
    %207 = arith.mulf %206, %202 : vector<3x512xf32>
    %208 = arith.subf %207, %196 : vector<3x512xf32>
    %209 = arith.truncf %208 : vector<3x512xf32> to vector<3x512xbf16>
    %c102 = arith.constant 102 : index
    %c0_71 = arith.constant 0 : index
    %210 = vector.load %arg22[%c102, %c0_71] : memref<128x512xbf16, #tpu.memory_space<vmem>>, vector<3x512xbf16>
    tpu.vector_store %arg22[%c102, %c0_71], %209 {strides = array<i32>} : memref<128x512xbf16, #tpu.memory_space<vmem>>, vector<3x512xbf16>,
    %cst_72 = arith.constant 2.000000e+00 : f32
    %211 = vector.broadcast %cst_72 : f32 to vector<3x512xf32>
    %212 = arith.mulf %211, %3 : vector<3x512xf32>
    %213 = arith.mulf %212, %208 : vector<3x512xf32>
    %214 = arith.subf %213, %202 : vector<3x512xf32>
    %215 = arith.truncf %214 : vector<3x512xf32> to vector<3x512xbf16>
    %c105 = arith.constant 105 : index
    %c0_73 = arith.constant 0 : index
    %216 = vector.load %arg22[%c105, %c0_73] : memref<128x512xbf16, #tpu.memory_space<vmem>>, vector<3x512xbf16>
    tpu.vector_store %arg22[%c105, %c0_73], %215 {strides = array<i32>} : memref<128x512xbf16, #tpu.memory_space<vmem>>, vector<3x512xbf16>,
    %cst_74 = arith.constant 2.000000e+00 : f32
    %217 = vector.broadcast %cst_74 : f32 to vector<3x512xf32>
    %218 = arith.mulf %217, %3 : vector<3x512xf32>
    %219 = arith.mulf %218, %214 : vector<3x512xf32>
    %220 = arith.subf %219, %208 : vector<3x512xf32>
    %221 = arith.truncf %220 : vector<3x512xf32> to vector<3x512xbf16>
    %c108 = arith.constant 108 : index
    %c0_75 = arith.constant 0 : index
    %222 = vector.load %arg22[%c108, %c0_75] : memref<128x512xbf16, #tpu.memory_space<vmem>>, vector<3x512xbf16>
    tpu.vector_store %arg22[%c108, %c0_75], %221 {strides = array<i32>} : memref<128x512xbf16, #tpu.memory_space<vmem>>, vector<3x512xbf16>,
    %cst_76 = arith.constant 2.000000e+00 : f32
    %223 = vector.broadcast %cst_76 : f32 to vector<3x512xf32>
    %224 = arith.mulf %223, %3 : vector<3x512xf32>
    %225 = arith.mulf %224, %220 : vector<3x512xf32>
    %226 = arith.subf %225, %214 : vector<3x512xf32>
    %227 = arith.truncf %226 : vector<3x512xf32> to vector<3x512xbf16>
    %c111 = arith.constant 111 : index
    %c0_77 = arith.constant 0 : index
    %228 = vector.load %arg22[%c111, %c0_77] : memref<128x512xbf16, #tpu.memory_space<vmem>>, vector<3x512xbf16>
    tpu.vector_store %arg22[%c111, %c0_77], %227 {strides = array<i32>} : memref<128x512xbf16, #tpu.memory_space<vmem>>, vector<3x512xbf16>,
    %cst_78 = arith.constant 2.000000e+00 : f32
    %229 = vector.broadcast %cst_78 : f32 to vector<3x512xf32>
    %230 = arith.mulf %229, %3 : vector<3x512xf32>
    %231 = arith.mulf %230, %226 : vector<3x512xf32>
    %232 = arith.subf %231, %220 : vector<3x512xf32>
    %233 = arith.truncf %232 : vector<3x512xf32> to vector<3x512xbf16>
    %c114 = arith.constant 114 : index
    %c0_79 = arith.constant 0 : index
    %234 = vector.load %arg22[%c114, %c0_79] : memref<128x512xbf16, #tpu.memory_space<vmem>>, vector<3x512xbf16>
    tpu.vector_store %arg22[%c114, %c0_79], %233 {strides = array<i32>} : memref<128x512xbf16, #tpu.memory_space<vmem>>, vector<3x512xbf16>,
    %cst_80 = arith.constant 2.000000e+00 : f32
    %235 = vector.broadcast %cst_80 : f32 to vector<3x512xf32>
    %236 = arith.mulf %235, %3 : vector<3x512xf32>
    %237 = arith.mulf %236, %232 : vector<3x512xf32>
    %238 = arith.subf %237, %226 : vector<3x512xf32>
    %239 = arith.truncf %238 : vector<3x512xf32> to vector<3x512xbf16>
    %c117 = arith.constant 117 : index
    %c0_81 = arith.constant 0 : index
    %240 = vector.load %arg22[%c117, %c0_81] : memref<128x512xbf16, #tpu.memory_space<vmem>>, vector<3x512xbf16>
    tpu.vector_store %arg22[%c117, %c0_81], %239 {strides = array<i32>} : memref<128x512xbf16, #tpu.memory_space<vmem>>, vector<3x512xbf16>,
    %cst_82 = arith.constant 0.000000e+00 : bf16
    %241 = vector.broadcast %cst_82 : bf16 to vector<8x512xbf16>
    %c120 = arith.constant 120 : index
    %c0_83 = arith.constant 0 : index
    %242 = vector.load %arg22[%c120, %c0_83] : memref<128x512xbf16, #tpu.memory_space<vmem>>, vector<8x512xbf16>
    tpu.vector_store %arg22[%c120, %c0_83], %241 {strides = array<i32>} : memref<128x512xbf16, #tpu.memory_space<vmem>>, vector<8x512xbf16>,
    %c0_84 = arith.constant 0 : index
    %c0_85 = arith.constant 0 : index
    %243 = vector.load %arg2[%c0_84, %c0_85] : memref<256x128xbf16, #tpu.memory_space<vmem>>, vector<256x128xbf16>
    %c0_86 = arith.constant 0 : index
    %c0_87 = arith.constant 0 : index
    %244 = vector.load %arg22[%c0_86, %c0_87] : memref<128x512xbf16, #tpu.memory_space<vmem>>, vector<128x512xbf16>
    %cst_88 = arith.constant dense<0.000000e+00> : vector<256x512xf32>
    %245 = tpu.matmul %243, %244, %cst_88 {dimension_numbers = #tpu.dot_dimension_numbers<[1], [0], [0], [1], [0, 0, 1, 1], [], []>} : vector<256x128xbf16>, vector<128x512xbf16>, vector<256x512xf32> -> vector<256x512xf32>
    %c0_89 = arith.constant 0 : index
    %c0_90 = arith.constant 0 : index
    %246 = vector.load %arg3[%c0_89, %c0_90] : memref<256x1xf32, #tpu.memory_space<vmem>>, vector<256x1xf32>
    %247 = vector.broadcast %246 : vector<256x1xf32> to vector<256x512xf32>
    %248 = arith.addf %245, %247 : vector<256x512xf32>
    %c0_91 = arith.constant 0 : index
    %c0_92 = arith.constant 0 : index
    %249 = vector.load %arg4[%c0_91, %c0_92] : memref<256x1xf32, #tpu.memory_space<vmem>>, vector<256x1xf32>
    %c0_93 = arith.constant 0 : index
    %c0_94 = arith.constant 0 : index
    %250 = vector.load %arg5[%c0_93, %c0_94] : memref<256x1xf32, #tpu.memory_space<vmem>>, vector<256x1xf32>
    %cst_95 = arith.constant dense<0.000000e+00> : vector<512xf32>
    %251 = vector.multi_reduction <add>, %248, %cst_95 [0] : vector<256x512xf32> to vector<512xf32>
    %252 = vector.shape_cast %251 : vector<512xf32> to vector<1x512xf32>
    %cst_96 = arith.constant 2.560000e+02 : f32
    %253 = vector.broadcast %cst_96 : f32 to vector<1x512xf32>
    %254 = arith.divf %252, %253 : vector<1x512xf32>
    %255 = arith.mulf %248, %248 : vector<256x512xf32>
    %cst_97 = arith.constant dense<0.000000e+00> : vector<512xf32>
    %256 = vector.multi_reduction <add>, %255, %cst_97 [0] : vector<256x512xf32> to vector<512xf32>
    %257 = vector.shape_cast %256 : vector<512xf32> to vector<1x512xf32>
    %cst_98 = arith.constant 2.560000e+02 : f32
    %258 = vector.broadcast %cst_98 : f32 to vector<1x512xf32>
    %259 = arith.divf %257, %258 : vector<1x512xf32>
    %260 = arith.mulf %254, %254 : vector<1x512xf32>
    %261 = arith.subf %259, %260 : vector<1x512xf32>
    %cst_99 = arith.constant 0.000000e+00 : f32
    %262 = vector.broadcast %cst_99 : f32 to vector<1x512xf32>
    %263 = arith.maximumf %261, %262 : vector<1x512xf32>
    %cst_100 = arith.constant 9.99999974E-6 : f32
    %264 = vector.broadcast %cst_100 : f32 to vector<1x512xf32>
    %265 = arith.addf %263, %264 : vector<1x512xf32>
    %266 = math.rsqrt %265 : vector<1x512xf32>
    %267 = vector.broadcast %254 : vector<1x512xf32> to vector<256x512xf32>
    %268 = arith.subf %248, %267 : vector<256x512xf32>
    %269 = vector.broadcast %266 : vector<1x512xf32> to vector<256x512xf32>
    %270 = arith.mulf %268, %269 : vector<256x512xf32>
    %271 = vector.broadcast %249 : vector<256x1xf32> to vector<256x512xf32>
    %272 = arith.mulf %270, %271 : vector<256x512xf32>
    %273 = vector.broadcast %250 : vector<256x1xf32> to vector<256x512xf32>
    %274 = arith.addf %272, %273 : vector<256x512xf32>
    %275 = math.tanh %274 : vector<256x512xf32>
    %276 = arith.truncf %275 : vector<256x512xf32> to vector<256x512xbf16>
    %cst_101 = arith.constant 1.000000e+00 : bf16
    %277 = vector.broadcast %cst_101 : bf16 to vector<256x512xbf16>
    %c0_102 = arith.constant 0 : index
    %c0_103 = arith.constant 0 : index
    %c0_104 = arith.constant 0 : index
    %278 = vector.load %arg6[%c0_102, %c0_103, %c0_104] : memref<5x64x256xbf16, #tpu.memory_space<vmem>>, vector<1x64x256xbf16>
    %279 = vector.shape_cast %278 : vector<1x64x256xbf16> to vector<64x256xbf16>
    %cst_105 = arith.constant dense<0.000000e+00> : vector<64x512xf32>
    %280 = tpu.matmul %279, %276, %cst_105 {dimension_numbers = #tpu.dot_dimension_numbers<[1], [0], [0], [1], [0, 0, 1, 1], [], []>} : vector<64x256xbf16>, vector<256x512xbf16>, vector<64x512xf32> -> vector<64x512xf32>
    %cst_106 = arith.constant 2.000000e+00 : bf16
    %281 = vector.broadcast %cst_106 : bf16 to vector<256x512xbf16>
    %282 = arith.mulf %281, %276 : vector<256x512xbf16>
    %283 = arith.mulf %282, %276 : vector<256x512xbf16>
    %284 = arith.subf %283, %277 : vector<256x512xbf16>
    %c1 = arith.constant 1 : index
    %c0_107 = arith.constant 0 : index
    %c0_108 = arith.constant 0 : index
    %285 = vector.load %arg6[%c1, %c0_107, %c0_108] : memref<5x64x256xbf16, #tpu.memory_space<vmem>>, vector<1x64x256xbf16>
    %286 = vector.shape_cast %285 : vector<1x64x256xbf16> to vector<64x256xbf16>
    %cst_109 = arith.constant dense<0.000000e+00> : vector<64x512xf32>
    %287 = tpu.matmul %286, %284, %cst_109 {dimension_numbers = #tpu.dot_dimension_numbers<[1], [0], [0], [1], [0, 0, 1, 1], [], []>} : vector<64x256xbf16>, vector<256x512xbf16>, vector<64x512xf32> -> vector<64x512xf32>
    %288 = arith.addf %280, %287 : vector<64x512xf32>
    %cst_110 = arith.constant 2.000000e+00 : bf16
    %289 = vector.broadcast %cst_110 : bf16 to vector<256x512xbf16>
    %290 = arith.mulf %289, %276 : vector<256x512xbf16>
    %291 = arith.mulf %290, %284 : vector<256x512xbf16>
    %292 = arith.subf %291, %276 : vector<256x512xbf16>
    %c2 = arith.constant 2 : index
    %c0_111 = arith.constant 0 : index
    %c0_112 = arith.constant 0 : index
    %293 = vector.load %arg6[%c2, %c0_111, %c0_112] : memref<5x64x256xbf16, #tpu.memory_space<vmem>>, vector<1x64x256xbf16>
    %294 = vector.shape_cast %293 : vector<1x64x256xbf16> to vector<64x256xbf16>
    %cst_113 = arith.constant dense<0.000000e+00> : vector<64x512xf32>
    %295 = tpu.matmul %294, %292, %cst_113 {dimension_numbers = #tpu.dot_dimension_numbers<[1], [0], [0], [1], [0, 0, 1, 1], [], []>} : vector<64x256xbf16>, vector<256x512xbf16>, vector<64x512xf32> -> vector<64x512xf32>
    %296 = arith.addf %288, %295 : vector<64x512xf32>
    %cst_114 = arith.constant 2.000000e+00 : bf16
    %297 = vector.broadcast %cst_114 : bf16 to vector<256x512xbf16>
    %298 = arith.mulf %297, %276 : vector<256x512xbf16>
    %299 = arith.mulf %298, %292 : vector<256x512xbf16>
    %300 = arith.subf %299, %284 : vector<256x512xbf16>
    %c3_115 = arith.constant 3 : index
    %c0_116 = arith.constant 0 : index
    %c0_117 = arith.constant 0 : index
    %301 = vector.load %arg6[%c3_115, %c0_116, %c0_117] : memref<5x64x256xbf16, #tpu.memory_space<vmem>>, vector<1x64x256xbf16>
    %302 = vector.shape_cast %301 : vector<1x64x256xbf16> to vector<64x256xbf16>
    %cst_118 = arith.constant dense<0.000000e+00> : vector<64x512xf32>
    %303 = tpu.matmul %302, %300, %cst_118 {dimension_numbers = #tpu.dot_dimension_numbers<[1], [0], [0], [1], [0, 0, 1, 1], [], []>} : vector<64x256xbf16>, vector<256x512xbf16>, vector<64x512xf32> -> vector<64x512xf32>
    %304 = arith.addf %296, %303 : vector<64x512xf32>
    %cst_119 = arith.constant 2.000000e+00 : bf16
    %305 = vector.broadcast %cst_119 : bf16 to vector<256x512xbf16>
    %306 = arith.mulf %305, %276 : vector<256x512xbf16>
    %307 = arith.mulf %306, %300 : vector<256x512xbf16>
    %308 = arith.subf %307, %292 : vector<256x512xbf16>
    %c4 = arith.constant 4 : index
    %c0_120 = arith.constant 0 : index
    %c0_121 = arith.constant 0 : index
    %309 = vector.load %arg6[%c4, %c0_120, %c0_121] : memref<5x64x256xbf16, #tpu.memory_space<vmem>>, vector<1x64x256xbf16>
    %310 = vector.shape_cast %309 : vector<1x64x256xbf16> to vector<64x256xbf16>
    %cst_122 = arith.constant dense<0.000000e+00> : vector<64x512xf32>
    %311 = tpu.matmul %310, %308, %cst_122 {dimension_numbers = #tpu.dot_dimension_numbers<[1], [0], [0], [1], [0, 0, 1, 1], [], []>} : vector<64x256xbf16>, vector<256x512xbf16>, vector<64x512xf32> -> vector<64x512xf32>
    %312 = arith.addf %304, %311 : vector<64x512xf32>
    %c0_123 = arith.constant 0 : index
    %c0_124 = arith.constant 0 : index
    %313 = vector.load %arg7[%c0_123, %c0_124] : memref<64x1xf32, #tpu.memory_space<vmem>>, vector<64x1xf32>
    %314 = vector.broadcast %313 : vector<64x1xf32> to vector<64x512xf32>
    %315 = arith.addf %312, %314 : vector<64x512xf32>
    %c0_125 = arith.constant 0 : index
    %c0_126 = arith.constant 0 : index
    %316 = vector.load %arg8[%c0_125, %c0_126] : memref<64x1xf32, #tpu.memory_space<vmem>>, vector<64x1xf32>
    %c0_127 = arith.constant 0 : index
    %c0_128 = arith.constant 0 : index
    %317 = vector.load %arg9[%c0_127, %c0_128] : memref<64x1xf32, #tpu.memory_space<vmem>>, vector<64x1xf32>
    %cst_129 = arith.constant dense<0.000000e+00> : vector<512xf32>
    %318 = vector.multi_reduction <add>, %315, %cst_129 [0] : vector<64x512xf32> to vector<512xf32>
    %319 = vector.shape_cast %318 : vector<512xf32> to vector<1x512xf32>
    %cst_130 = arith.constant 6.400000e+01 : f32
    %320 = vector.broadcast %cst_130 : f32 to vector<1x512xf32>
    %321 = arith.divf %319, %320 : vector<1x512xf32>
    %322 = arith.mulf %315, %315 : vector<64x512xf32>
    %cst_131 = arith.constant dense<0.000000e+00> : vector<512xf32>
    %323 = vector.multi_reduction <add>, %322, %cst_131 [0] : vector<64x512xf32> to vector<512xf32>
    %324 = vector.shape_cast %323 : vector<512xf32> to vector<1x512xf32>
    %cst_132 = arith.constant 6.400000e+01 : f32
    %325 = vector.broadcast %cst_132 : f32 to vector<1x512xf32>
    %326 = arith.divf %324, %325 : vector<1x512xf32>
    %327 = arith.mulf %321, %321 : vector<1x512xf32>
    %328 = arith.subf %326, %327 : vector<1x512xf32>
    %cst_133 = arith.constant 0.000000e+00 : f32
    %329 = vector.broadcast %cst_133 : f32 to vector<1x512xf32>
    %330 = arith.maximumf %328, %329 : vector<1x512xf32>
    %cst_134 = arith.constant 9.99999974E-6 : f32
    %331 = vector.broadcast %cst_134 : f32 to vector<1x512xf32>
    %332 = arith.addf %330, %331 : vector<1x512xf32>
    %333 = math.rsqrt %332 : vector<1x512xf32>
    %334 = vector.broadcast %321 : vector<1x512xf32> to vector<64x512xf32>
    %335 = arith.subf %315, %334 : vector<64x512xf32>
    %336 = vector.broadcast %333 : vector<1x512xf32> to vector<64x512xf32>
    %337 = arith.mulf %335, %336 : vector<64x512xf32>
    %338 = vector.broadcast %316 : vector<64x1xf32> to vector<64x512xf32>
    %339 = arith.mulf %337, %338 : vector<64x512xf32>
    %340 = vector.broadcast %317 : vector<64x1xf32> to vector<64x512xf32>
    %341 = arith.addf %339, %340 : vector<64x512xf32>
    %342 = math.tanh %341 : vector<64x512xf32>
    %343 = arith.truncf %342 : vector<64x512xf32> to vector<64x512xbf16>
    %cst_135 = arith.constant 1.000000e+00 : bf16
    %344 = vector.broadcast %cst_135 : bf16 to vector<64x512xbf16>
    %c0_136 = arith.constant 0 : index
    %c0_137 = arith.constant 0 : index
    %c0_138 = arith.constant 0 : index
    %345 = vector.load %arg10[%c0_136, %c0_137, %c0_138] : memref<4x16x64xbf16, #tpu.memory_space<vmem>>, vector<1x16x64xbf16>
    %346 = vector.shape_cast %345 : vector<1x16x64xbf16> to vector<16x64xbf16>
    %cst_139 = arith.constant dense<0.000000e+00> : vector<16x512xf32>
    %347 = tpu.matmul %346, %343, %cst_139 {dimension_numbers = #tpu.dot_dimension_numbers<[1], [0], [0], [1], [0, 0, 1, 1], [], []>} : vector<16x64xbf16>, vector<64x512xbf16>, vector<16x512xf32> -> vector<16x512xf32>
    %cst_140 = arith.constant 2.000000e+00 : bf16
    %348 = vector.broadcast %cst_140 : bf16 to vector<64x512xbf16>
    %349 = arith.mulf %348, %343 : vector<64x512xbf16>
    %350 = arith.mulf %349, %343 : vector<64x512xbf16>
    %351 = arith.subf %350, %344 : vector<64x512xbf16>
    %c1_141 = arith.constant 1 : index
    %c0_142 = arith.constant 0 : index
    %c0_143 = arith.constant 0 : index
    %352 = vector.load %arg10[%c1_141, %c0_142, %c0_143] : memref<4x16x64xbf16, #tpu.memory_space<vmem>>, vector<1x16x64xbf16>
    %353 = vector.shape_cast %352 : vector<1x16x64xbf16> to vector<16x64xbf16>
    %cst_144 = arith.constant dense<0.000000e+00> : vector<16x512xf32>
    %354 = tpu.matmul %353, %351, %cst_144 {dimension_numbers = #tpu.dot_dimension_numbers<[1], [0], [0], [1], [0, 0, 1, 1], [], []>} : vector<16x64xbf16>, vector<64x512xbf16>, vector<16x512xf32> -> vector<16x512xf32>
    %355 = arith.addf %347, %354 : vector<16x512xf32>
    %cst_145 = arith.constant 2.000000e+00 : bf16
    %356 = vector.broadcast %cst_145 : bf16 to vector<64x512xbf16>
    %357 = arith.mulf %356, %343 : vector<64x512xbf16>
    %358 = arith.mulf %357, %351 : vector<64x512xbf16>
    %359 = arith.subf %358, %343 : vector<64x512xbf16>
    %c2_146 = arith.constant 2 : index
    %c0_147 = arith.constant 0 : index
    %c0_148 = arith.constant 0 : index
    %360 = vector.load %arg10[%c2_146, %c0_147, %c0_148] : memref<4x16x64xbf16, #tpu.memory_space<vmem>>, vector<1x16x64xbf16>
    %361 = vector.shape_cast %360 : vector<1x16x64xbf16> to vector<16x64xbf16>
    %cst_149 = arith.constant dense<0.000000e+00> : vector<16x512xf32>
    %362 = tpu.matmul %361, %359, %cst_149 {dimension_numbers = #tpu.dot_dimension_numbers<[1], [0], [0], [1], [0, 0, 1, 1], [], []>} : vector<16x64xbf16>, vector<64x512xbf16>, vector<16x512xf32> -> vector<16x512xf32>
    %363 = arith.addf %355, %362 : vector<16x512xf32>
    %cst_150 = arith.constant 2.000000e+00 : bf16
    %364 = vector.broadcast %cst_150 : bf16 to vector<64x512xbf16>
    %365 = arith.mulf %364, %343 : vector<64x512xbf16>
    %366 = arith.mulf %365, %359 : vector<64x512xbf16>
    %367 = arith.subf %366, %351 : vector<64x512xbf16>
    %c3_151 = arith.constant 3 : index
    %c0_152 = arith.constant 0 : index
    %c0_153 = arith.constant 0 : index
    %368 = vector.load %arg10[%c3_151, %c0_152, %c0_153] : memref<4x16x64xbf16, #tpu.memory_space<vmem>>, vector<1x16x64xbf16>
    %369 = vector.shape_cast %368 : vector<1x16x64xbf16> to vector<16x64xbf16>
    %cst_154 = arith.constant dense<0.000000e+00> : vector<16x512xf32>
    %370 = tpu.matmul %369, %367, %cst_154 {dimension_numbers = #tpu.dot_dimension_numbers<[1], [0], [0], [1], [0, 0, 1, 1], [], []>} : vector<16x64xbf16>, vector<64x512xbf16>, vector<16x512xf32> -> vector<16x512xf32>
    %371 = arith.addf %363, %370 : vector<16x512xf32>
    %c0_155 = arith.constant 0 : index
    %c0_156 = arith.constant 0 : index
    %372 = vector.load %arg11[%c0_155, %c0_156] : memref<16x1xf32, #tpu.memory_space<vmem>>, vector<16x1xf32>
    %373 = vector.broadcast %372 : vector<16x1xf32> to vector<16x512xf32>
    %374 = arith.addf %371, %373 : vector<16x512xf32>
    %c0_157 = arith.constant 0 : index
    %c0_158 = arith.constant 0 : index
    %375 = vector.load %arg12[%c0_157, %c0_158] : memref<16x1xf32, #tpu.memory_space<vmem>>, vector<16x1xf32>
    %c0_159 = arith.constant 0 : index
    %c0_160 = arith.constant 0 : index
    %376 = vector.load %arg13[%c0_159, %c0_160] : memref<16x1xf32, #tpu.memory_space<vmem>>, vector<16x1xf32>
    %cst_161 = arith.constant dense<0.000000e+00> : vector<512xf32>
    %377 = vector.multi_reduction <add>, %374, %cst_161 [0] : vector<16x512xf32> to vector<512xf32>
    %378 = vector.shape_cast %377 : vector<512xf32> to vector<1x512xf32>
    %cst_162 = arith.constant 1.600000e+01 : f32
    %379 = vector.broadcast %cst_162 : f32 to vector<1x512xf32>
    %380 = arith.divf %378, %379 : vector<1x512xf32>
    %381 = arith.mulf %374, %374 : vector<16x512xf32>
    %cst_163 = arith.constant dense<0.000000e+00> : vector<512xf32>
    %382 = vector.multi_reduction <add>, %381, %cst_163 [0] : vector<16x512xf32> to vector<512xf32>
    %383 = vector.shape_cast %382 : vector<512xf32> to vector<1x512xf32>
    %cst_164 = arith.constant 1.600000e+01 : f32
    %384 = vector.broadcast %cst_164 : f32 to vector<1x512xf32>
    %385 = arith.divf %383, %384 : vector<1x512xf32>
    %386 = arith.mulf %380, %380 : vector<1x512xf32>
    %387 = arith.subf %385, %386 : vector<1x512xf32>
    %cst_165 = arith.constant 0.000000e+00 : f32
    %388 = vector.broadcast %cst_165 : f32 to vector<1x512xf32>
    %389 = arith.maximumf %387, %388 : vector<1x512xf32>
    %cst_166 = arith.constant 9.99999974E-6 : f32
    %390 = vector.broadcast %cst_166 : f32 to vector<1x512xf32>
    %391 = arith.addf %389, %390 : vector<1x512xf32>
    %392 = math.rsqrt %391 : vector<1x512xf32>
    %393 = vector.broadcast %380 : vector<1x512xf32> to vector<16x512xf32>
    %394 = arith.subf %374, %393 : vector<16x512xf32>
    %395 = vector.broadcast %392 : vector<1x512xf32> to vector<16x512xf32>
    %396 = arith.mulf %394, %395 : vector<16x512xf32>
    %397 = vector.broadcast %375 : vector<16x1xf32> to vector<16x512xf32>
    %398 = arith.mulf %396, %397 : vector<16x512xf32>
    %399 = vector.broadcast %376 : vector<16x1xf32> to vector<16x512xf32>
    %400 = arith.addf %398, %399 : vector<16x512xf32>
    %401 = math.tanh %400 : vector<16x512xf32>
    %402 = arith.truncf %401 : vector<16x512xf32> to vector<16x512xbf16>
    %cst_167 = arith.constant 1.000000e+00 : bf16
    %403 = vector.broadcast %cst_167 : bf16 to vector<16x512xbf16>
    %c0_168 = arith.constant 0 : index
    %c0_169 = arith.constant 0 : index
    %c0_170 = arith.constant 0 : index
    %404 = vector.load %arg14[%c0_168, %c0_169, %c0_170] : memref<3x4x16xbf16, #tpu.memory_space<vmem>>, vector<1x4x16xbf16>
    %405 = vector.shape_cast %404 : vector<1x4x16xbf16> to vector<4x16xbf16>
    %cst_171 = arith.constant dense<0.000000e+00> : vector<4x512xf32>
    %406 = tpu.matmul %405, %402, %cst_171 {dimension_numbers = #tpu.dot_dimension_numbers<[1], [0], [0], [1], [0, 0, 1, 1], [], []>} : vector<4x16xbf16>, vector<16x512xbf16>, vector<4x512xf32> -> vector<4x512xf32>
    %cst_172 = arith.constant 2.000000e+00 : bf16
    %407 = vector.broadcast %cst_172 : bf16 to vector<16x512xbf16>
    %408 = arith.mulf %407, %402 : vector<16x512xbf16>
    %409 = arith.mulf %408, %402 : vector<16x512xbf16>
    %410 = arith.subf %409, %403 : vector<16x512xbf16>
    %c1_173 = arith.constant 1 : index
    %c0_174 = arith.constant 0 : index
    %c0_175 = arith.constant 0 : index
    %411 = vector.load %arg14[%c1_173, %c0_174, %c0_175] : memref<3x4x16xbf16, #tpu.memory_space<vmem>>, vector<1x4x16xbf16>
    %412 = vector.shape_cast %411 : vector<1x4x16xbf16> to vector<4x16xbf16>
    %cst_176 = arith.constant dense<0.000000e+00> : vector<4x512xf32>
    %413 = tpu.matmul %412, %410, %cst_176 {dimension_numbers = #tpu.dot_dimension_numbers<[1], [0], [0], [1], [0, 0, 1, 1], [], []>} : vector<4x16xbf16>, vector<16x512xbf16>, vector<4x512xf32> -> vector<4x512xf32>
    %414 = arith.addf %406, %413 : vector<4x512xf32>
    %cst_177 = arith.constant 2.000000e+00 : bf16
    %415 = vector.broadcast %cst_177 : bf16 to vector<16x512xbf16>
    %416 = arith.mulf %415, %402 : vector<16x512xbf16>
    %417 = arith.mulf %416, %410 : vector<16x512xbf16>
    %418 = arith.subf %417, %402 : vector<16x512xbf16>
    %c2_178 = arith.constant 2 : index
    %c0_179 = arith.constant 0 : index
    %c0_180 = arith.constant 0 : index
    %419 = vector.load %arg14[%c2_178, %c0_179, %c0_180] : memref<3x4x16xbf16, #tpu.memory_space<vmem>>, vector<1x4x16xbf16>
    %420 = vector.shape_cast %419 : vector<1x4x16xbf16> to vector<4x16xbf16>
    %cst_181 = arith.constant dense<0.000000e+00> : vector<4x512xf32>
    %421 = tpu.matmul %420, %418, %cst_181 {dimension_numbers = #tpu.dot_dimension_numbers<[1], [0], [0], [1], [0, 0, 1, 1], [], []>} : vector<4x16xbf16>, vector<16x512xbf16>, vector<4x512xf32> -> vector<4x512xf32>
    %422 = arith.addf %414, %421 : vector<4x512xf32>
    %c0_182 = arith.constant 0 : index
    %c0_183 = arith.constant 0 : index
    %423 = vector.load %arg15[%c0_182, %c0_183] : memref<4x1xf32, #tpu.memory_space<vmem>>, vector<4x1xf32>
    %424 = vector.broadcast %423 : vector<4x1xf32> to vector<4x512xf32>
    %425 = arith.addf %422, %424 : vector<4x512xf32>
    %c0_184 = arith.constant 0 : index
    %c0_185 = arith.constant 0 : index
    %426 = vector.load %arg16[%c0_184, %c0_185] : memref<4x1xf32, #tpu.memory_space<vmem>>, vector<4x1xf32>
    %c0_186 = arith.constant 0 : index
    %c0_187 = arith.constant 0 : index
    %427 = vector.load %arg17[%c0_186, %c0_187] : memref<4x1xf32, #tpu.memory_space<vmem>>, vector<4x1xf32>
    %cst_188 = arith.constant dense<0.000000e+00> : vector<512xf32>
    %428 = vector.multi_reduction <add>, %425, %cst_188 [0] : vector<4x512xf32> to vector<512xf32>
    %429 = vector.shape_cast %428 : vector<512xf32> to vector<1x512xf32>
    %cst_189 = arith.constant 4.000000e+00 : f32
    %430 = vector.broadcast %cst_189 : f32 to vector<1x512xf32>
    %431 = arith.divf %429, %430 : vector<1x512xf32>
    %432 = arith.mulf %425, %425 : vector<4x512xf32>
    %cst_190 = arith.constant dense<0.000000e+00> : vector<512xf32>
    %433 = vector.multi_reduction <add>, %432, %cst_190 [0] : vector<4x512xf32> to vector<512xf32>
    %434 = vector.shape_cast %433 : vector<512xf32> to vector<1x512xf32>
    %cst_191 = arith.constant 4.000000e+00 : f32
    %435 = vector.broadcast %cst_191 : f32 to vector<1x512xf32>
    %436 = arith.divf %434, %435 : vector<1x512xf32>
    %437 = arith.mulf %431, %431 : vector<1x512xf32>
    %438 = arith.subf %436, %437 : vector<1x512xf32>
    %cst_192 = arith.constant 0.000000e+00 : f32
    %439 = vector.broadcast %cst_192 : f32 to vector<1x512xf32>
    %440 = arith.maximumf %438, %439 : vector<1x512xf32>
    %cst_193 = arith.constant 9.99999974E-6 : f32
    %441 = vector.broadcast %cst_193 : f32 to vector<1x512xf32>
    %442 = arith.addf %440, %441 : vector<1x512xf32>
    %443 = math.rsqrt %442 : vector<1x512xf32>
    %444 = vector.broadcast %431 : vector<1x512xf32> to vector<4x512xf32>
    %445 = arith.subf %425, %444 : vector<4x512xf32>
    %446 = vector.broadcast %443 : vector<1x512xf32> to vector<4x512xf32>
    %447 = arith.mulf %445, %446 : vector<4x512xf32>
    %448 = vector.broadcast %426 : vector<4x1xf32> to vector<4x512xf32>
    %449 = arith.mulf %447, %448 : vector<4x512xf32>
    %450 = vector.broadcast %427 : vector<4x1xf32> to vector<4x512xf32>
    %451 = arith.addf %449, %450 : vector<4x512xf32>
    %452 = math.tanh %451 : vector<4x512xf32>
    %cst_194 = arith.constant 2.000000e+00 : f32
    %453 = vector.broadcast %cst_194 : f32 to vector<4x512xf32>
    %454 = arith.mulf %453, %452 : vector<4x512xf32>
    %455 = arith.mulf %454, %452 : vector<4x512xf32>
    %cst_195 = arith.constant 1.000000e+00 : f32
    %456 = vector.broadcast %cst_195 : f32 to vector<4x512xf32>
    %457 = arith.subf %455, %456 : vector<4x512xf32>
    %c0_196 = arith.constant 0 : index
    %c0_197 = arith.constant 0 : index
    %458 = vector.load %arg20[%c0_196, %c0_197] : memref<1x1xf32, #tpu.memory_space<vmem>>, vector<1x1xf32>
    %c0_198 = arith.constant 0 : index
    %c0_199 = arith.constant 0 : index
    %459 = vector.load %arg18[%c0_198, %c0_199] : memref<4x1xf32, #tpu.memory_space<vmem>>, vector<4x1xf32>
    %460 = vector.broadcast %459 : vector<4x1xf32> to vector<4x512xf32>
    %461 = arith.mulf %460, %452 : vector<4x512xf32>
    %c0_200 = arith.constant 0 : index
    %c0_201 = arith.constant 0 : index
    %462 = vector.load %arg19[%c0_200, %c0_201] : memref<4x1xf32, #tpu.memory_space<vmem>>, vector<4x1xf32>
    %463 = vector.broadcast %462 : vector<4x1xf32> to vector<4x512xf32>
    %464 = arith.mulf %463, %457 : vector<4x512xf32>
    %465 = arith.addf %461, %464 : vector<4x512xf32>
    %cst_202 = arith.constant dense<0.000000e+00> : vector<512xf32>
    %466 = vector.multi_reduction <add>, %465, %cst_202 [0] : vector<4x512xf32> to vector<512xf32>
    %467 = vector.shape_cast %466 : vector<512xf32> to vector<1x512xf32>
    %468 = vector.broadcast %458 : vector<1x1xf32> to vector<1x512xf32>
    %469 = arith.addf %468, %467 : vector<1x512xf32>
    %470 = math.absf %469 : vector<1x512xf32>
    %cst_203 = arith.constant 1.000000e+00 : f32
    %471 = vector.broadcast %cst_203 : f32 to vector<1x512xf32>
    %472 = arith.mulf %470, %471 : vector<1x512xf32>
    %c0_204 = arith.constant 0 : index
    %c0_205 = arith.constant 0 : index
    %473 = vector.load %arg21[%c0_204, %c0_205] : memref<1x512xf32, #tpu.memory_space<vmem>>, vector<1x512xf32>
    tpu.vector_store %arg21[%c0_204, %c0_205], %472 {strides = array<i32>} : memref<1x512xf32, #tpu.memory_space<vmem>>, vector<1x512xf32>,
    return
  }
  func.func @transform_0(%arg0: i32) -> (i32, i32) {
    %c0_i32 = arith.constant 0 : i32
    %c0_i32_0 = arith.constant 0 : i32
    return %c0_i32, %arg0 : i32, i32
  }
  func.func @transform_1(%arg0: i32) -> (i32, i32) {
    %c0_i32 = arith.constant 0 : i32
    %c0_i32_0 = arith.constant 0 : i32
    %c0_i32_1 = arith.constant 0 : i32
    return %c0_i32, %c0_i32_0 : i32, i32
  }
  func.func @transform_2(%arg0: i32) -> (i32, i32) {
    %c0_i32 = arith.constant 0 : i32
    %c0_i32_0 = arith.constant 0 : i32
    %c0_i32_1 = arith.constant 0 : i32
    return %c0_i32, %c0_i32_0 : i32, i32
  }
  func.func @transform_3(%arg0: i32) -> (i32, i32) {
    %c0_i32 = arith.constant 0 : i32
    %c0_i32_0 = arith.constant 0 : i32
    %c0_i32_1 = arith.constant 0 : i32
    return %c0_i32, %c0_i32_0 : i32, i32
  }
  func.func @transform_4(%arg0: i32) -> (i32, i32) {
    %c0_i32 = arith.constant 0 : i32
    %c0_i32_0 = arith.constant 0 : i32
    %c0_i32_1 = arith.constant 0 : i32
    return %c0_i32, %c0_i32_0 : i32, i32
  }
  func.func @transform_5(%arg0: i32) -> (i32, i32, i32) {
    %c0_i32 = arith.constant 0 : i32
    %c0_i32_0 = arith.constant 0 : i32
    %c0_i32_1 = arith.constant 0 : i32
    %c0_i32_2 = arith.constant 0 : i32
    return %c0_i32, %c0_i32_0, %c0_i32_1 : i32, i32, i32
  }
  func.func @transform_6(%arg0: i32) -> (i32, i32) {
    %c0_i32 = arith.constant 0 : i32
    %c0_i32_0 = arith.constant 0 : i32
    %c0_i32_1 = arith.constant 0 : i32
    return %c0_i32, %c0_i32_0 : i32, i32
  }
  func.func @transform_7(%arg0: i32) -> (i32, i32) {
    %c0_i32 = arith.constant 0 : i32
    %c0_i32_0 = arith.constant 0 : i32
    %c0_i32_1 = arith.constant 0 : i32
    return %c0_i32, %c0_i32_0 : i32, i32
  }
  func.func @transform_8(%arg0: i32) -> (i32, i32) {
    %c0_i32 = arith.constant 0 : i32
    %c0_i32_0 = arith.constant 0 : i32
    %c0_i32_1 = arith.constant 0 : i32
    return %c0_i32, %c0_i32_0 : i32, i32
  }
  func.func @transform_9(%arg0: i32) -> (i32, i32, i32) {
    %c0_i32 = arith.constant 0 : i32
    %c0_i32_0 = arith.constant 0 : i32
    %c0_i32_1 = arith.constant 0 : i32
    %c0_i32_2 = arith.constant 0 : i32
    return %c0_i32, %c0_i32_0, %c0_i32_1 : i32, i32, i32
  }
  func.func @transform_10(%arg0: i32) -> (i32, i32) {
    %c0_i32 = arith.constant 0 : i32
    %c0_i32_0 = arith.constant 0 : i32
    %c0_i32_1 = arith.constant 0 : i32
    return %c0_i32, %c0_i32_0 : i32, i32
  }
  func.func @transform_11(%arg0: i32) -> (i32, i32) {
    %c0_i32 = arith.constant 0 : i32
    %c0_i32_0 = arith.constant 0 : i32
    %c0_i32_1 = arith.constant 0 : i32
    return %c0_i32, %c0_i32_0 : i32, i32
  }
  func.func @transform_12(%arg0: i32) -> (i32, i32) {
    %c0_i32 = arith.constant 0 : i32
    %c0_i32_0 = arith.constant 0 : i32
    %c0_i32_1 = arith.constant 0 : i32
    return %c0_i32, %c0_i32_0 : i32, i32
  }
  func.func @transform_13(%arg0: i32) -> (i32, i32, i32) {
    %c0_i32 = arith.constant 0 : i32
    %c0_i32_0 = arith.constant 0 : i32
    %c0_i32_1 = arith.constant 0 : i32
    %c0_i32_2 = arith.constant 0 : i32
    return %c0_i32, %c0_i32_0, %c0_i32_1 : i32, i32, i32
  }
  func.func @transform_14(%arg0: i32) -> (i32, i32) {
    %c0_i32 = arith.constant 0 : i32
    %c0_i32_0 = arith.constant 0 : i32
    %c0_i32_1 = arith.constant 0 : i32
    return %c0_i32, %c0_i32_0 : i32, i32
  }
  func.func @transform_15(%arg0: i32) -> (i32, i32) {
    %c0_i32 = arith.constant 0 : i32
    %c0_i32_0 = arith.constant 0 : i32
    %c0_i32_1 = arith.constant 0 : i32
    return %c0_i32, %c0_i32_0 : i32, i32
  }
  func.func @transform_16(%arg0: i32) -> (i32, i32) {
    %c0_i32 = arith.constant 0 : i32
    %c0_i32_0 = arith.constant 0 : i32
    %c0_i32_1 = arith.constant 0 : i32
    return %c0_i32, %c0_i32_0 : i32, i32
  }
  func.func @transform_17(%arg0: i32) -> (i32, i32) {
    %c0_i32 = arith.constant 0 : i32
    %c0_i32_0 = arith.constant 0 : i32
    %c0_i32_1 = arith.constant 0 : i32
    return %c0_i32, %c0_i32_0 : i32, i32
  }
  func.func @transform_18(%arg0: i32) -> (i32, i32) {
    %c0_i32 = arith.constant 0 : i32
    %c0_i32_0 = arith.constant 0 : i32
    %c0_i32_1 = arith.constant 0 : i32
    return %c0_i32, %c0_i32_0 : i32, i32
  }
  func.func @transform_19(%arg0: i32) -> (i32, i32) {
    %c0_i32 = arith.constant 0 : i32
    %c0_i32_0 = arith.constant 0 : i32
    %c0_i32_1 = arith.constant 0 : i32
    return %c0_i32, %c0_i32_0 : i32, i32
  }
  func.func @transform_20(%arg0: i32) -> (i32, i32) {
    %c0_i32 = arith.constant 0 : i32
    %c0_i32_0 = arith.constant 0 : i32
    return %c0_i32, %arg0 : i32, i32
  }
}

</mosaic_0001>

<llo_original>
// kernel: tpu_custom_call.1
$region0: #{tpu_custom_call.1}
  #allocation0 [shape = 'u32[]', space=smem, size = 0x4, offset = 0x4, fixed_abs, tag = 'smem constant byte address 0x4 - core index']
  #allocation1 [shape = 'u32[144,128]{1,0:T(1,128)}', space=vmem, size = 0x12000, scoped, tag = 'internal scratch']
  #allocation2 [shape = 'bf16[128,512]{1,0:T(16,128)(2,1)}', space=vmem, size = 0x20000, scoped, tag = 'scratch operand']
  #allocation3 [shape = 'f32[1,1]{1,0:T(1,128)S(1)}', space=vmem, size = 0x200, scoped, tag = 'scoped memory for tpu_custom_call.1']
  %s0 = inlined_call_operand.vmem [shape: f32[3,1024], index: 0, kind: input, shape index: {}]
  %s1 = inlined_call_operand.vmem [shape: bf16[256,128], index: 1, kind: input, shape index: {}]
  %s2 = inlined_call_operand.vmem [shape: f32[256,1], index: 2, kind: input, shape index: {}]
  %s3 = inlined_call_operand.vmem [shape: f32[256,1], index: 3, kind: input, shape index: {}]
  %s4 = inlined_call_operand.vmem [shape: f32[256,1], index: 4, kind: input, shape index: {}]
  %s5 = inlined_call_operand.vmem [shape: bf16[5,64,256], index: 5, kind: input, shape index: {}]
  %s6 = inlined_call_operand.vmem [shape: f32[64,1], index: 6, kind: input, shape index: {}]
  %s7 = inlined_call_operand.vmem [shape: f32[64,1], index: 7, kind: input, shape index: {}]
  %s8 = inlined_call_operand.vmem [shape: f32[64,1], index: 8, kind: input, shape index: {}]
  %s9 = inlined_call_operand.vmem [shape: bf16[4,16,64], index: 9, kind: input, shape index: {}]
  %s10 = inlined_call_operand.vmem [shape: f32[16,1], index: 10, kind: input, shape index: {}]
  %s11 = inlined_call_operand.vmem [shape: f32[16,1], index: 11, kind: input, shape index: {}]
  %s12 = inlined_call_operand.vmem [shape: f32[16,1], index: 12, kind: input, shape index: {}]
  %s13 = inlined_call_operand.vmem [shape: bf16[3,4,16], index: 13, kind: input, shape index: {}]
  %s14 = inlined_call_operand.vmem [shape: f32[4,1], index: 14, kind: input, shape index: {}]
  %s15 = inlined_call_operand.vmem [shape: f32[4,1], index: 15, kind: input, shape index: {}]
  %s16 = inlined_call_operand.vmem [shape: f32[4,1], index: 16, kind: input, shape index: {}]
  %s17 = inlined_call_operand.vmem [shape: f32[4,1], index: 17, kind: input, shape index: {}]
  %s18 = inlined_call_operand.vmem [shape: f32[4,1], index: 18, kind: input, shape index: {}]
  %s19 = inlined_call_operand.<no memory space> [shape: f32[1,1], index: 19, kind: input, shape index: {}]
  %s20 = inlined_call_operand.hbm [shape: f32[1,1024], index: 20, kind: output, shape index: {}]
  %s21 = sld [smem:[#allocation0]]
  $region113: #{tpu_custom_call.1} parent=0
    _
  %s23 = ssub.s32 1, %s21
  %s24 = scalar_select 0, %s23, %s21
  %v25 = vstv %s19
  %26 = vst [vmem:[#allocation3] sm:$0x1] %v25
  $region1: #{tpu_custom_call.1} parent=0
    #allocation4 [shape = 'u8[4096]{0}', space=vmem, size = 0x1000, scoped, tag = 'output window, operand 0']
    #allocation5 [shape = 's32[2]{0}', space=sflag, size = 0x8, scoped, tag = 'scoped memory for tpu_custom_call.1']
    %27 = vsyncpa [#allocation5], 0
    %s28 = scalar_lea.sflag [#allocation5], 1
    %29 = vsyncpa %s28, 0
    loop: start=0, step=1, limit=4
    $region2: #{tpu_custom_call.1} parent=1 // loop_pre_header
      _
    $region3: #{tpu_custom_call.1} parent=1 // loop_header
      %s31 = sphi 0, %s35
      %p32 = scmp.ge.s32.totalorder %s31, 4
      %s41 = sphi 0, %s43
      %s44 = sphi 0, %s41
      %s45 = sphi 0, %s44
      %s61 = sphi 0, %s45
      %s65 = sphi 0, %s65
      %s67 = sphi 0, %s65
      %s68 = sphi 0, %s67
      %s82 = sphi 0, %s68
      %s86 = sphi 0, %s86
      %s88 = sphi 0, %s86
      %s89 = sphi 0, %s88
      %s103 = sphi 0, %s89
      %s107 = sphi 0, %s107
      %s109 = sphi 0, %s107
      %s110 = sphi 0, %s109
      %s124 = sphi 0, %s110
      %s128 = sphi 0, %s128
      %s130 = sphi 0, %s128
      %s131 = sphi 0, %s130
      %s145 = sphi 0, %s131
      %s149 = sphi 0, %s149
      %s151 = sphi 0, %s149
      %s152 = sphi 0, %s151
      %s166 = sphi 0, %s152
      %s170 = sphi 0, %s170
      %s172 = sphi 0, %s170
      %s173 = sphi 0, %s172
      %s187 = sphi 0, %s173
      %s191 = sphi 0, %s191
      %s193 = sphi 0, %s191
      %s194 = sphi 0, %s193
      %s208 = sphi 0, %s194
      %s212 = sphi 0, %s212
      %s214 = sphi 0, %s212
      %s215 = sphi 0, %s214
      %s229 = sphi 0, %s215
      %s233 = sphi 0, %s233
      %s235 = sphi 0, %s233
      %s236 = sphi 0, %s235
      %s250 = sphi 0, %s236
      %s254 = sphi 0, %s254
      %s256 = sphi 0, %s254
      %s257 = sphi 0, %s256
      %s271 = sphi 0, %s257
      %s275 = sphi 0, %s275
      %s277 = sphi 0, %s275
      %s278 = sphi 0, %s277
      %s292 = sphi 0, %s278
      %s296 = sphi 0, %s296
      %s298 = sphi 0, %s296
      %s299 = sphi 0, %s298
      %s313 = sphi 0, %s299
      %s317 = sphi 0, %s317
      %s319 = sphi 0, %s317
      %s320 = sphi 0, %s319
      %s334 = sphi 0, %s320
      %s338 = sphi 0, %s338
      %s340 = sphi 0, %s338
      %s341 = sphi 0, %s340
      %s355 = sphi 0, %s341
      %s359 = sphi 0, %s359
      %s361 = sphi 0, %s359
      %s362 = sphi 0, %s361
      %s376 = sphi 0, %s362
      %s380 = sphi 0, %s380
      %s382 = sphi 0, %s380
      %s383 = sphi 0, %s382
      %s397 = sphi 0, %s383
      %s401 = sphi 0, %s401
      %s403 = sphi 0, %s401
      %s404 = sphi 0, %s403
      %s418 = sphi 0, %s404
      %s422 = sphi 0, %s422
      %s424 = sphi 0, %s422
      %s425 = sphi 0, %s424
      %s439 = sphi 0, %s425
      %s443 = sphi 0, %s443
      %s445 = sphi 0, %s443
      %s446 = sphi 0, %s445
      %s460 = sphi 0, %s446
      %s466 = sphi 0, %s468
      %s469 = sphi 0, %s466
      %s470 = sphi 0, %s469
      %s486 = sphi 0, %s470
    $region4: #{tpu_custom_call.1} parent=1 // loop_header_branch
      %34 = sbr.rel (%p32) target = $region8
    $region5: #{tpu_custom_call.1} parent=1 // loop_body
      %s36 = ssub.s32 %s31, 1
      %s37 = ssub.s32 %s31, 2
      %s38 = sadd.s32 %s31, 1
      %s39 = ssub.s32 %s31, %s38
      %p40 = scmp.eq.s32.totalorder %s39, 0
      %s42 = sadd.s32 %s41, 1
      %s43 = scalar_select %p40, %s41, %s42
      %p46 = pneg %p40
      %p47 = scmp.eq.s32.totalorder %s31, 1
      %p48 = por %p46, %p47
      %p49 = scmp.ne.s32.totalorder %s41, %s44
      %p50 = scmp.eq.s32.totalorder %s31, 0
      %p51 = por %p49, %p50
      %p52 = scmp.ne.s32.totalorder %s41, %s44
      %p53 = scmp.eq.s32.totalorder %s36, 1
      %p54 = por %p52, %p53
      %p55 = scmp.ne.s32.totalorder %s44, %s45
      %p56 = scmp.eq.s32.totalorder %s36, 0
      %p57 = por %p55, %p56
      %p58 = scmp.ne.s32.totalorder %s44, %s45
      %p59 = scmp.eq.s32.totalorder %s37, 1
      %p60 = por %p58, %p59
      %p62 = scmp.ne.s32.totalorder %s45, %s61
      %p63 = scmp.eq.s32.totalorder %s37, 0
      %p64 = por %p62, %p63
      %s66 = sadd.s32 %s65, 1
      %p69 = scmp.eq.s32.totalorder %s31, 1
      %p70 = scmp.ne.s32.totalorder %s65, %s67
      %p71 = scmp.eq.s32.totalorder %s31, 0
      %p72 = por %p70, %p71
      %p73 = scmp.ne.s32.totalorder %s65, %s67
      %p74 = scmp.eq.s32.totalorder %s36, 1
      %p75 = por %p73, %p74
      %p76 = scmp.ne.s32.totalorder %s67, %s68
      %p77 = scmp.eq.s32.totalorder %s36, 0
      %p78 = por %p76, %p77
      %p79 = scmp.ne.s32.totalorder %s67, %s68
      %p80 = scmp.eq.s32.totalorder %s37, 1
      %p81 = por %p79, %p80
      %p83 = scmp.ne.s32.totalorder %s68, %s82
      %p84 = scmp.eq.s32.totalorder %s37, 0
      %p85 = por %p83, %p84
      %s87 = sadd.s32 %s86, 1
      %p90 = scmp.eq.s32.totalorder %s31, 1
      %p91 = scmp.ne.s32.totalorder %s86, %s88
      %p92 = scmp.eq.s32.totalorder %s31, 0
      %p93 = por %p91, %p92
      %p94 = scmp.ne.s32.totalorder %s86, %s88
      %p95 = scmp.eq.s32.totalorder %s36, 1
      %p96 = por %p94, %p95
      %p97 = scmp.ne.s32.totalorder %s88, %s89
      %p98 = scmp.eq.s32.totalorder %s36, 0
      %p99 = por %p97, %p98
      %p100 = scmp.ne.s32.totalorder %s88, %s89
      %p101 = scmp.eq.s32.totalorder %s37, 1
      %p102 = por %p100, %p101
      %p104 = scmp.ne.s32.totalorder %s89, %s103
      %p105 = scmp.eq.s32.totalorder %s37, 0
      %p106 = por %p104, %p105
      %s108 = sadd.s32 %s107, 1
      %p111 = scmp.eq.s32.totalorder %s31, 1
      %p112 = scmp.ne.s32.totalorder %s107, %s109
      %p113 = scmp.eq.s32.totalorder %s31, 0
      %p114 = por %p112, %p113
      %p115 = scmp.ne.s32.totalorder %s107, %s109
      %p116 = scmp.eq.s32.totalorder %s36, 1
      %p117 = por %p115, %p116
      %p118 = scmp.ne.s32.totalorder %s109, %s110
      %p119 = scmp.eq.s32.totalorder %s36, 0
      %p120 = por %p118, %p119
      %p121 = scmp.ne.s32.totalorder %s109, %s110
      %p122 = scmp.eq.s32.totalorder %s37, 1
      %p123 = por %p121, %p122
      %p125 = scmp.ne.s32.totalorder %s110, %s124
      %p126 = scmp.eq.s32.totalorder %s37, 0
      %p127 = por %p125, %p126
      %s129 = sadd.s32 %s128, 1
      %p132 = scmp.eq.s32.totalorder %s31, 1
      %p133 = scmp.ne.s32.totalorder %s128, %s130
      %p134 = scmp.eq.s32.totalorder %s31, 0
      %p135 = por %p133, %p134
      %p136 = scmp.ne.s32.totalorder %s128, %s130
      %p137 = scmp.eq.s32.totalorder %s36, 1
      %p138 = por %p136, %p137
      %p139 = scmp.ne.s32.totalorder %s130, %s131
      %p140 = scmp.eq.s32.totalorder %s36, 0
      %p141 = por %p139, %p140
      %p142 = scmp.ne.s32.totalorder %s130, %s131
      %p143 = scmp.eq.s32.totalorder %s37, 1
      %p144 = por %p142, %p143
      %p146 = scmp.ne.s32.totalorder %s131, %s145
      %p147 = scmp.eq.s32.totalorder %s37, 0
      %p148 = por %p146, %p147
      %s150 = sadd.s32 %s149, 1
      %p153 = scmp.eq.s32.totalorder %s31, 1
      %p154 = scmp.ne.s32.totalorder %s149, %s151
      %p155 = scmp.eq.s32.totalorder %s31, 0
      %p156 = por %p154, %p155
      %p157 = scmp.ne.s32.totalorder %s149, %s151
      %p158 = scmp.eq.s32.totalorder %s36, 1
      %p159 = por %p157, %p158
      %p160 = scmp.ne.s32.totalorder %s151, %s152
      %p161 = scmp.eq.s32.totalorder %s36, 0
      %p162 = por %p160, %p161
      %p163 = scmp.ne.s32.totalorder %s151, %s152
      %p164 = scmp.eq.s32.totalorder %s37, 1
      %p165 = por %p163, %p164
      %p167 = scmp.ne.s32.totalorder %s152, %s166
      %p168 = scmp.eq.s32.totalorder %s37, 0
      %p169 = por %p167, %p168
      %s171 = sadd.s32 %s170, 1
      %p174 = scmp.eq.s32.totalorder %s31, 1
      %p175 = scmp.ne.s32.totalorder %s170, %s172
      %p176 = scmp.eq.s32.totalorder %s31, 0
      %p177 = por %p175, %p176
      %p178 = scmp.ne.s32.totalorder %s170, %s172
      %p179 = scmp.eq.s32.totalorder %s36, 1
      %p180 = por %p178, %p179
      %p181 = scmp.ne.s32.totalorder %s172, %s173
      %p182 = scmp.eq.s32.totalorder %s36, 0
      %p183 = por %p181, %p182
      %p184 = scmp.ne.s32.totalorder %s172, %s173
      %p185 = scmp.eq.s32.totalorder %s37, 1
      %p186 = por %p184, %p185
      %p188 = scmp.ne.s32.totalorder %s173, %s187
      %p189 = scmp.eq.s32.totalorder %s37, 0
      %p190 = por %p188, %p189
      %s192 = sadd.s32 %s191, 1
      %p195 = scmp.eq.s32.totalorder %s31, 1
      %p196 = scmp.ne.s32.totalorder %s191, %s193
      %p197 = scmp.eq.s32.totalorder %s31, 0
      %p198 = por %p196, %p197
      %p199 = scmp.ne.s32.totalorder %s191, %s193
      %p200 = scmp.eq.s32.totalorder %s36, 1
      %p201 = por %p199, %p200
      %p202 = scmp.ne.s32.totalorder %s193, %s194
      %p203 = scmp.eq.s32.totalorder %s36, 0
      %p204 = por %p202, %p203
      %p205 = scmp.ne.s32.totalorder %s193, %s194
      %p206 = scmp.eq.s32.totalorder %s37, 1
      %p207 = por %p205, %p206
      %p209 = scmp.ne.s32.totalorder %s194, %s208
      %p210 = scmp.eq.s32.totalorder %s37, 0
      %p211 = por %p209, %p210
      %s213 = sadd.s32 %s212, 1
      %p216 = scmp.eq.s32.totalorder %s31, 1
      %p217 = scmp.ne.s32.totalorder %s212, %s214
      %p218 = scmp.eq.s32.totalorder %s31, 0
      %p219 = por %p217, %p218
      %p220 = scmp.ne.s32.totalorder %s212, %s214
      %p221 = scmp.eq.s32.totalorder %s36, 1
      %p222 = por %p220, %p221
      %p223 = scmp.ne.s32.totalorder %s214, %s215
      %p224 = scmp.eq.s32.totalorder %s36, 0
      %p225 = por %p223, %p224
      %p226 = scmp.ne.s32.totalorder %s214, %s215
      %p227 = scmp.eq.s32.totalorder %s37, 1
      %p228 = por %p226, %p227
      %p230 = scmp.ne.s32.totalorder %s215, %s229
      %p231 = scmp.eq.s32.totalorder %s37, 0
      %p232 = por %p230, %p231
      %s234 = sadd.s32 %s233, 1
      %p237 = scmp.eq.s32.totalorder %s31, 1
      %p238 = scmp.ne.s32.totalorder %s233, %s235
      %p239 = scmp.eq.s32.totalorder %s31, 0
      %p240 = por %p238, %p239
      %p241 = scmp.ne.s32.totalorder %s233, %s235
      %p242 = scmp.eq.s32.totalorder %s36, 1
      %p243 = por %p241, %p242
      %p244 = scmp.ne.s32.totalorder %s235, %s236
      %p245 = scmp.eq.s32.totalorder %s36, 0
      %p246 = por %p244, %p245
      %p247 = scmp.ne.s32.totalorder %s235, %s236
      %p248 = scmp.eq.s32.totalorder %s37, 1
      %p249 = por %p247, %p248
      %p251 = scmp.ne.s32.totalorder %s236, %s250
      %p252 = scmp.eq.s32.totalorder %s37, 0
      %p253 = por %p251, %p252
      %s255 = sadd.s32 %s254, 1
      %p258 = scmp.eq.s32.totalorder %s31, 1
      %p259 = scmp.ne.s32.totalorder %s254, %s256
      %p260 = scmp.eq.s32.totalorder %s31, 0
      %p261 = por %p259, %p260
      %p262 = scmp.ne.s32.totalorder %s254, %s256
      %p263 = scmp.eq.s32.totalorder %s36, 1
      %p264 = por %p262, %p263
      %p265 = scmp.ne.s32.totalorder %s256, %s257
      %p266 = scmp.eq.s32.totalorder %s36, 0
      %p267 = por %p265, %p266
      %p268 = scmp.ne.s32.totalorder %s256, %s257
      %p269 = scmp.eq.s32.totalorder %s37, 1
      %p270 = por %p268, %p269
      %p272 = scmp.ne.s32.totalorder %s257, %s271
      %p273 = scmp.eq.s32.totalorder %s37, 0
      %p274 = por %p272, %p273
      %s276 = sadd.s32 %s275, 1
      %p279 = scmp.eq.s32.totalorder %s31, 1
      %p280 = scmp.ne.s32.totalorder %s275, %s277
      %p281 = scmp.eq.s32.totalorder %s31, 0
      %p282 = por %p280, %p281
      %p283 = scmp.ne.s32.totalorder %s275, %s277
      %p284 = scmp.eq.s32.totalorder %s36, 1
      %p285 = por %p283, %p284
      %p286 = scmp.ne.s32.totalorder %s277, %s278
      %p287 = scmp.eq.s32.totalorder %s36, 0
      %p288 = por %p286, %p287
      %p289 = scmp.ne.s32.totalorder %s277, %s278
      %p290 = scmp.eq.s32.totalorder %s37, 1
      %p291 = por %p289, %p290
      %p293 = scmp.ne.s32.totalorder %s278, %s292
      %p294 = scmp.eq.s32.totalorder %s37, 0
      %p295 = por %p293, %p294
      %s297 = sadd.s32 %s296, 1
      %p300 = scmp.eq.s32.totalorder %s31, 1
      %p301 = scmp.ne.s32.totalorder %s296, %s298
      %p302 = scmp.eq.s32.totalorder %s31, 0
      %p303 = por %p301, %p302
      %p304 = scmp.ne.s32.totalorder %s296, %s298
      %p305 = scmp.eq.s32.totalorder %s36, 1
      %p306 = por %p304, %p305
      %p307 = scmp.ne.s32.totalorder %s298, %s299
      %p308 = scmp.eq.s32.totalorder %s36, 0
      %p309 = por %p307, %p308
      %p310 = scmp.ne.s32.totalorder %s298, %s299
      %p311 = scmp.eq.s32.totalorder %s37, 1
      %p312 = por %p310, %p311
      %p314 = scmp.ne.s32.totalorder %s299, %s313
      %p315 = scmp.eq.s32.totalorder %s37, 0
      %p316 = por %p314, %p315
      %s318 = sadd.s32 %s317, 1
      %p321 = scmp.eq.s32.totalorder %s31, 1
      %p322 = scmp.ne.s32.totalorder %s317, %s319
      %p323 = scmp.eq.s32.totalorder %s31, 0
      %p324 = por %p322, %p323
      %p325 = scmp.ne.s32.totalorder %s317, %s319
      %p326 = scmp.eq.s32.totalorder %s36, 1
      %p327 = por %p325, %p326
      %p328 = scmp.ne.s32.totalorder %s319, %s320
      %p329 = scmp.eq.s32.totalorder %s36, 0
      %p330 = por %p328, %p329
      %p331 = scmp.ne.s32.totalorder %s319, %s320
      %p332 = scmp.eq.s32.totalorder %s37, 1
      %p333 = por %p331, %p332
      %p335 = scmp.ne.s32.totalorder %s320, %s334
      %p336 = scmp.eq.s32.totalorder %s37, 0
      %p337 = por %p335, %p336
      %s339 = sadd.s32 %s338, 1
      %p342 = scmp.eq.s32.totalorder %s31, 1
      %p343 = scmp.ne.s32.totalorder %s338, %s340
      %p344 = scmp.eq.s32.totalorder %s31, 0
      %p345 = por %p343, %p344
      %p346 = scmp.ne.s32.totalorder %s338, %s340
      %p347 = scmp.eq.s32.totalorder %s36, 1
      %p348 = por %p346, %p347
      %p349 = scmp.ne.s32.totalorder %s340, %s341
      %p350 = scmp.eq.s32.totalorder %s36, 0
      %p351 = por %p349, %p350
      %p352 = scmp.ne.s32.totalorder %s340, %s341
      %p353 = scmp.eq.s32.totalorder %s37, 1
      %p354 = por %p352, %p353
      %p356 = scmp.ne.s32.totalorder %s341, %s355
      %p357 = scmp.eq.s32.totalorder %s37, 0
      %p358 = por %p356, %p357
      %s360 = sadd.s32 %s359, 1
      %p363 = scmp.eq.s32.totalorder %s31, 1
      %p364 = scmp.ne.s32.totalorder %s359, %s361
      %p365 = scmp.eq.s32.totalorder %s31, 0
      %p366 = por %p364, %p365
      %p367 = scmp.ne.s32.totalorder %s359, %s361
      %p368 = scmp.eq.s32.totalorder %s36, 1
      %p369 = por %p367, %p368
      %p370 = scmp.ne.s32.totalorder %s361, %s362
      %p371 = scmp.eq.s32.totalorder %s36, 0
      %p372 = por %p370, %p371
      %p373 = scmp.ne.s32.totalorder %s361, %s362
      %p374 = scmp.eq.s32.totalorder %s37, 1
      %p375 = por %p373, %p374
      %p377 = scmp.ne.s32.totalorder %s362, %s376
      %p378 = scmp.eq.s32.totalorder %s37, 0
      %p379 = por %p377, %p378
      %s381 = sadd.s32 %s380, 1
      %p384 = scmp.eq.s32.totalorder %s31, 1
      %p385 = scmp.ne.s32.totalorder %s380, %s382
      %p386 = scmp.eq.s32.totalorder %s31, 0
      %p387 = por %p385, %p386
      %p388 = scmp.ne.s32.totalorder %s380, %s382
      %p389 = scmp.eq.s32.totalorder %s36, 1
      %p390 = por %p388, %p389
      %p391 = scmp.ne.s32.totalorder %s382, %s383
      %p392 = scmp.eq.s32.totalorder %s36, 0
      %p393 = por %p391, %p392
      %p394 = scmp.ne.s32.totalorder %s382, %s383
      %p395 = scmp.eq.s32.totalorder %s37, 1
      %p396 = por %p394, %p395
      %p398 = scmp.ne.s32.totalorder %s383, %s397
      %p399 = scmp.eq.s32.totalorder %s37, 0
      %p400 = por %p398, %p399
      %s402 = sadd.s32 %s401, 1
      %p405 = scmp.eq.s32.totalorder %s31, 1
      %p406 = scmp.ne.s32.totalorder %s401, %s403
      %p407 = scmp.eq.s32.totalorder %s31, 0
      %p408 = por %p406, %p407
      %p409 = scmp.ne.s32.totalorder %s401, %s403
      %p410 = scmp.eq.s32.totalorder %s36, 1
      %p411 = por %p409, %p410
      %p412 = scmp.ne.s32.totalorder %s403, %s404
      %p413 = scmp.eq.s32.totalorder %s36, 0
      %p414 = por %p412, %p413
      %p415 = scmp.ne.s32.totalorder %s403, %s404
      %p416 = scmp.eq.s32.totalorder %s37, 1
      %p417 = por %p415, %p416
      %p419 = scmp.ne.s32.totalorder %s404, %s418
      %p420 = scmp.eq.s32.totalorder %s37, 0
      %p421 = por %p419, %p420
      %s423 = sadd.s32 %s422, 1
      %p426 = scmp.eq.s32.totalorder %s31, 1
      %p427 = scmp.ne.s32.totalorder %s422, %s424
      %p428 = scmp.eq.s32.totalorder %s31, 0
      %p429 = por %p427, %p428
      %p430 = scmp.ne.s32.totalorder %s422, %s424
      %p431 = scmp.eq.s32.totalorder %s36, 1
      %p432 = por %p430, %p431
      %p433 = scmp.ne.s32.totalorder %s424, %s425
      %p434 = scmp.eq.s32.totalorder %s36, 0
      %p435 = por %p433, %p434
      %p436 = scmp.ne.s32.totalorder %s424, %s425
      %p437 = scmp.eq.s32.totalorder %s37, 1
      %p438 = por %p436, %p437
      %p440 = scmp.ne.s32.totalorder %s425, %s439
      %p441 = scmp.eq.s32.totalorder %s37, 0
      %p442 = por %p440, %p441
      %s444 = sadd.s32 %s443, 1
      %p447 = scmp.eq.s32.totalorder %s31, 1
      %p448 = scmp.ne.s32.totalorder %s443, %s445
      %p449 = scmp.eq.s32.totalorder %s31, 0
      %p450 = por %p448, %p449
      %p451 = scmp.ne.s32.totalorder %s443, %s445
      %p452 = scmp.eq.s32.totalorder %s36, 1
      %p453 = por %p451, %p452
      %p454 = scmp.ne.s32.totalorder %s445, %s446
      %p455 = scmp.eq.s32.totalorder %s36, 0
      %p456 = por %p454, %p455
      %p457 = scmp.ne.s32.totalorder %s445, %s446
      %p458 = scmp.eq.s32.totalorder %s37, 1
      %p459 = por %p457, %p458
      %p461 = scmp.ne.s32.totalorder %s446, %s460
      %p462 = scmp.eq.s32.totalorder %s37, 0
      %p463 = por %p461, %p462
      %s464 = ssub.s32 %s31, %s38
      %p465 = scmp.eq.s32.totalorder %s464, 0
      %s467 = sadd.s32 %s466, 1
      %s468 = scalar_select %p465, %s466, %s467
      %p471 = pneg %p465
      %p472 = scmp.eq.s32.totalorder %s31, 1
      %p473 = por %p471, %p472
      %p474 = scmp.ne.s32.totalorder %s466, %s469
      %p475 = scmp.eq.s32.totalorder %s31, 0
      %p476 = por %p474, %p475
      %p477 = scmp.ne.s32.totalorder %s466, %s469
      %p478 = scmp.eq.s32.totalorder %s36, 1
      %p479 = por %p477, %p478
      %p480 = scmp.ne.s32.totalorder %s469, %s470
      %p481 = scmp.eq.s32.totalorder %s36, 0
      %p482 = por %p480, %p481
      %p483 = scmp.ne.s32.totalorder %s469, %s470
      %p484 = scmp.eq.s32.totalorder %s37, 1
      %p485 = por %p483, %p484
      %p487 = scmp.ne.s32.totalorder %s470, %s486
      %p488 = scmp.eq.s32.totalorder %s37, 0
      %p489 = por %p487, %p488
      %p490 = scmp.le.s32.totalorder 1, %s31
      %p491 = scmp.lt.s32.totalorder %s31, 3
      %p492 = pnand %p490, %p491
      %p493 = pneg %p492
      // Predicated region
      $region9: #{tpu_custom_call.1} parent=5 // pred_check
        _
      $region10: #{tpu_custom_call.1} parent=5 // pred_check_branch
        %495 = sbr.rel (%p492) target = $region12
      $region11: #{tpu_custom_call.1} parent=5 // pred_region
        %s496 = ssub.s32 %s31, 1
        // Predicated region
        $region13: #{tpu_custom_call.1} parent=11 // pred_check
          %p497 = pneg %p78
        $region14: #{tpu_custom_call.1} parent=11 // pred_check_branch
          %499 = sbr.rel (%p497) target = $region16
        $region15: #{tpu_custom_call.1} parent=11 // pred_region
          _
        $region16: #{tpu_custom_call.1} parent=11 // pred_fallthru
          _
        // Predicated region
        $region17: #{tpu_custom_call.1} parent=11 // pred_check
          %p500 = pneg %p99
        $region18: #{tpu_custom_call.1} parent=11 // pred_check_branch
          %502 = sbr.rel (%p500) target = $region20
        $region19: #{tpu_custom_call.1} parent=11 // pred_region
          _
        $region20: #{tpu_custom_call.1} parent=11 // pred_fallthru
          _
        // Predicated region
        $region21: #{tpu_custom_call.1} parent=11 // pred_check
          %p503 = pneg %p120
        $region22: #{tpu_custom_call.1} parent=11 // pred_check_branch
          %505 = sbr.rel (%p503) target = $region24
        $region23: #{tpu_custom_call.1} parent=11 // pred_region
          _
        $region24: #{tpu_custom_call.1} parent=11 // pred_fallthru
          _
        // Predicated region
        $region25: #{tpu_custom_call.1} parent=11 // pred_check
          %p506 = pneg %p141
        $region26: #{tpu_custom_call.1} parent=11 // pred_check_branch
          %508 = sbr.rel (%p506) target = $region28
        $region27: #{tpu_custom_call.1} parent=11 // pred_region
          _
        $region28: #{tpu_custom_call.1} parent=11 // pred_fallthru
          _
        // Predicated region
        $region29: #{tpu_custom_call.1} parent=11 // pred_check
          %p509 = pneg %p162
        $region30: #{tpu_custom_call.1} parent=11 // pred_check_branch
          %511 = sbr.rel (%p509) target = $region32
        $region31: #{tpu_custom_call.1} parent=11 // pred_region
          _
        $region32: #{tpu_custom_call.1} parent=11 // pred_fallthru
          _
        // Predicated region
        $region33: #{tpu_custom_call.1} parent=11 // pred_check
          %p512 = pneg %p183
        $region34: #{tpu_custom_call.1} parent=11 // pred_check_branch
          %514 = sbr.rel (%p512) target = $region36
        $region35: #{tpu_custom_call.1} parent=11 // pred_region
          _
        $region36: #{tpu_custom_call.1} parent=11 // pred_fallthru
          _
        // Predicated region
        $region37: #{tpu_custom_call.1} parent=11 // pred_check
          %p515 = pneg %p204
        $region38: #{tpu_custom_call.1} parent=11 // pred_check_branch
          %517 = sbr.rel (%p515) target = $region40
        $region39: #{tpu_custom_call.1} parent=11 // pred_region
          _
        $region40: #{tpu_custom_call.1} parent=11 // pred_fallthru
          _
        // Predicated region
        $region41: #{tpu_custom_call.1} parent=11 // pred_check
          %p518 = pneg %p225
        $region42: #{tpu_custom_call.1} parent=11 // pred_check_branch
          %520 = sbr.rel (%p518) target = $region44
        $region43: #{tpu_custom_call.1} parent=11 // pred_region
          _
        $region44: #{tpu_custom_call.1} parent=11 // pred_fallthru
          _
        // Predicated region
        $region45: #{tpu_custom_call.1} parent=11 // pred_check
          %p521 = pneg %p246
        $region46: #{tpu_custom_call.1} parent=11 // pred_check_branch
          %523 = sbr.rel (%p521) target = $region48
        $region47: #{tpu_custom_call.1} parent=11 // pred_region
          _
        $region48: #{tpu_custom_call.1} parent=11 // pred_fallthru
          _
        // Predicated region
        $region49: #{tpu_custom_call.1} parent=11 // pred_check
          %p524 = pneg %p267
        $region50: #{tpu_custom_call.1} parent=11 // pred_check_branch
          %526 = sbr.rel (%p524) target = $region52
        $region51: #{tpu_custom_call.1} parent=11 // pred_region
          _
        $region52: #{tpu_custom_call.1} parent=11 // pred_fallthru
          _
        // Predicated region
        $region53: #{tpu_custom_call.1} parent=11 // pred_check
          %p527 = pneg %p288
        $region54: #{tpu_custom_call.1} parent=11 // pred_check_branch
          %529 = sbr.rel (%p527) target = $region56
        $region55: #{tpu_custom_call.1} parent=11 // pred_region
          _
        $region56: #{tpu_custom_call.1} parent=11 // pred_fallthru
          _
        // Predicated region
        $region57: #{tpu_custom_call.1} parent=11 // pred_check
          %p530 = pneg %p309
        $region58: #{tpu_custom_call.1} parent=11 // pred_check_branch
          %532 = sbr.rel (%p530) target = $region60
        $region59: #{tpu_custom_call.1} parent=11 // pred_region
          _
        $region60: #{tpu_custom_call.1} parent=11 // pred_fallthru
          _
        // Predicated region
        $region61: #{tpu_custom_call.1} parent=11 // pred_check
          %p533 = pneg %p330
        $region62: #{tpu_custom_call.1} parent=11 // pred_check_branch
          %535 = sbr.rel (%p533) target = $region64
        $region63: #{tpu_custom_call.1} parent=11 // pred_region
          _
        $region64: #{tpu_custom_call.1} parent=11 // pred_fallthru
          _
        // Predicated region
        $region65: #{tpu_custom_call.1} parent=11 // pred_check
          %p536 = pneg %p351
        $region66: #{tpu_custom_call.1} parent=11 // pred_check_branch
          %538 = sbr.rel (%p536) target = $region68
        $region67: #{tpu_custom_call.1} parent=11 // pred_region
          _
        $region68: #{tpu_custom_call.1} parent=11 // pred_fallthru
          _
        // Predicated region
        $region69: #{tpu_custom_call.1} parent=11 // pred_check
          %p539 = pneg %p372
        $region70: #{tpu_custom_call.1} parent=11 // pred_check_branch
          %541 = sbr.rel (%p539) target = $region72
        $region71: #{tpu_custom_call.1} parent=11 // pred_region
          _
        $region72: #{tpu_custom_call.1} parent=11 // pred_fallthru
          _
        // Predicated region
        $region73: #{tpu_custom_call.1} parent=11 // pred_check
          %p542 = pneg %p393
        $region74: #{tpu_custom_call.1} parent=11 // pred_check_branch
          %544 = sbr.rel (%p542) target = $region76
        $region75: #{tpu_custom_call.1} parent=11 // pred_region
          _
        $region76: #{tpu_custom_call.1} parent=11 // pred_fallthru
          _
        // Predicated region
        $region77: #{tpu_custom_call.1} parent=11 // pred_check
          %p545 = pneg %p414
        $region78: #{tpu_custom_call.1} parent=11 // pred_check_branch
          %547 = sbr.rel (%p545) target = $region80
        $region79: #{tpu_custom_call.1} parent=11 // pred_region
          _
        $region80: #{tpu_custom_call.1} parent=11 // pred_fallthru
          _
        // Predicated region
        $region81: #{tpu_custom_call.1} parent=11 // pred_check
          %p548 = pneg %p435
        $region82: #{tpu_custom_call.1} parent=11 // pred_check_branch
          %550 = sbr.rel (%p548) target = $region84
        $region83: #{tpu_custom_call.1} parent=11 // pred_region
          _
        $region84: #{tpu_custom_call.1} parent=11 // pred_fallthru
          _
        // Predicated region
        $region85: #{tpu_custom_call.1} parent=11 // pred_check
          %p551 = pneg %p456
        $region86: #{tpu_custom_call.1} parent=11 // pred_check_branch
          %553 = sbr.rel (%p551) target = $region88
        $region87: #{tpu_custom_call.1} parent=11 // pred_region
          _
        $region88: #{tpu_custom_call.1} parent=11 // pred_fallthru
          _
      $region12: #{tpu_custom_call.1} parent=5 // pred_fallthru
        _
      %p554 = scmp.lt.s32.totalorder %s31, 2
      // Predicated region
      $region89: #{tpu_custom_call.1} parent=5 // pred_check
        %p555 = pneg %p554
      $region90: #{tpu_custom_call.1} parent=5 // pred_check_branch
        %557 = sbr.rel (%p555) target = $region92
      $region91: #{tpu_custom_call.1} parent=5 // pred_region
        // Predicated region
        $region93: #{tpu_custom_call.1} parent=91 // pred_check
          %p558 = pneg %p51
        $region94: #{tpu_custom_call.1} parent=91 // pred_check_branch
          %560 = sbr.rel (%p558) target = $region96
        $region95: #{tpu_custom_call.1} parent=91 // pred_region
          %s561 = smul.u32 4, %s31
          %p562 = scmp.lt.s32.totalorder %s561, 7
          %s563 = scalar_select %p562, %s561, 7
          %s564 = smul.addr %s563, 4
          %s565 = scalar_lea.vmem %s0, %s564
          %s566 = smul.u32 4, %s31
        $region96: #{tpu_custom_call.1} parent=91 // pred_fallthru
          _
      $region92: #{tpu_custom_call.1} parent=5 // pred_fallthru
        _
      %p567 = scmp.le.s32.totalorder 1, %s31
      %p568 = scmp.lt.s32.totalorder %s31, 3
      %p569 = pnand %p567, %p568
      %p570 = pneg %p569
      // Predicated region
      $region97: #{tpu_custom_call.1} parent=5 // pred_check
        _
      $region98: #{tpu_custom_call.1} parent=5 // pred_check_branch
        %572 = sbr.rel (%p569) target = $region100
      $region99: #{tpu_custom_call.1} parent=5 // pred_region
        %s573 = ssub.s32 %s31, 1
        %s574 = smul.u32 4, %s36
        %p575 = scmp.lt.s32.totalorder %s574, 7
        %s576 = scalar_select %p575, %s574, 7
        %s577 = smul.addr %s576, 4
        %s578 = scalar_lea.vmem %s0, %s577
        %p579 = pneg %p57
        %p580 = pneg %p54
        %p581 = pneg %p78
        %p582 = pneg %p75
        %p583 = pneg %p99
        %p584 = pneg %p96
        %p585 = pneg %p120
        %p586 = pneg %p117
        %p587 = pneg %p141
        %p588 = pneg %p138
        %p589 = pneg %p162
        %p590 = pneg %p159
        %p591 = pneg %p183
        %p592 = pneg %p180
        %p593 = pneg %p204
        %p594 = pneg %p201
        %p595 = pneg %p225
        %p596 = pneg %p222
        %p597 = pneg %p246
        %p598 = pneg %p243
        %p599 = pneg %p267
        %p600 = pneg %p264
        %p601 = pneg %p288
        %p602 = pneg %p285
        %p603 = pneg %p309
        %p604 = pneg %p306
        %p605 = pneg %p330
        %p606 = pneg %p327
        %p607 = pneg %p351
        %p608 = pneg %p348
        %p609 = pneg %p372
        %p610 = pneg %p369
        %p611 = pneg %p393
        %p612 = pneg %p390
        %p613 = pneg %p414
        %p614 = pneg %p411
        %p615 = pneg %p435
        %p616 = pneg %p432
        %p617 = pneg %p456
        %p618 = pneg %p453
        %p619 = pneg %p482
        %p620 = pneg %p479
        %s621 = sand.u32 %s469, 1
        %s622 = scalar_lea.sflag [#allocation5], %s621
        %s623 = sand.u32 %s469, 1
        %s624 = smul.addr %s623, 4
        %s625 = scalar_lea.vmem [#allocation4], %s624
        %s626 = smul.u32 4, %s36
        %p627 = scmp.lt.s32.totalorder %s626, 7
        %s628 = scalar_select %p627, %s626, 7
        %s629 = smul.addr %s628, 4
        %s630 = scalar_lea.vmem %s0, %s629
        %s631 = smul.u32 4, %s36
        %s632 = smul.u32 4, %s36
        %v636 = vld [vmem:[%s630] sm:$0x77]
        %v637 = vld [vmem:[%s630 + $0x8] sm:$0x77]
        %v638 = vtanh.pop %v636
        %v639 = vtanh.pop %v637
        %v642 = vcombine.high %v638, %v638
        %v643 = vcombine.high %v639, %v639
        %v646 = vpack.c.bf16 %v638, %v638
        %v647 = vpack.c.bf16 %v642, %v642
        %v648 = vpack.c.bf16 %v639, %v639
        %v649 = vpack.c.bf16 %v643, %v643
        %vm650 = vcmask 1041408
        %vm651 = vsmask.f32 1280
        %vm652 = vmand %vm650, %vm651
        %v653 = vld [vmem:[#allocation2] sm:$0x3]
        %v654 = vsel %vm652, %v646, %v653
        %655 = vst [vmem:[#allocation2] sm:$0x3] %v654
        %v656 = vld [vmem:[#allocation2 + $0x8] sm:$0x3]
        %v657 = vsel %vm652, %v647, %v656
        %658 = vst [vmem:[#allocation2 + $0x8] sm:$0x3] %v657
        %v659 = vld [vmem:[#allocation2 + $0x10] sm:$0x3]
        %v660 = vsel %vm652, %v648, %v659
        %661 = vst [vmem:[#allocation2 + $0x10] sm:$0x3] %v660
        %v662 = vld [vmem:[#allocation2 + $0x18] sm:$0x3]
        %v663 = vsel %vm652, %v649, %v662
        %664 = vst [vmem:[#allocation2 + $0x18] sm:$0x3] %v663
        %v665 = vmul.f32 %v638, 2.0
        %v666 = vmul.f32 %v639, 2.0
        %v667 = vmul.f32 %v665, %v638
        %v668 = vmul.f32 %v666, %v639
        %v669 = vsub.f32 %v667, 1.0
        %v670 = vsub.f32 %v668, 1.0
        %v673 = vcombine.high %v669, %v669
        %v674 = vcombine.high %v670, %v670
        %v677 = vpack.c.bf16 %v669, %v669
        %v678 = vpack.c.bf16 %v673, %v673
        %v679 = vpack.c.bf16 %v670, %v670
        %v680 = vpack.c.bf16 %v674, %v674
        %v682 = vshrl.u32 %v677, 16
        %v684 = vrot.slane %v682, 6
        %v685 = vshll.u32 %v677, 16
        %v687 = vrot.slane %v685, 7
        %v688 = vor.u32 %v684, %v687
        %v690 = vshrl.u32 %v678, 16
        %v692 = vrot.slane %v690, 6
        %v693 = vshll.u32 %v678, 16
        %v695 = vrot.slane %v693, 7
        %v696 = vor.u32 %v692, %v695
        %v698 = vshrl.u32 %v679, 16
        %v700 = vrot.slane %v698, 6
        %v701 = vshll.u32 %v679, 16
        %v703 = vrot.slane %v701, 7
        %v704 = vor.u32 %v700, %v703
        %v706 = vshrl.u32 %v680, 16
        %v708 = vrot.slane %v706, 6
        %v709 = vshll.u32 %v680, 16
        %v711 = vrot.slane %v709, 7
        %v712 = vor.u32 %v708, %v711
        %vm717 = vcmask 1042433
        %vm718 = vsmask.f32 7942
        %vm719 = vmand %vm717, %vm718
        %v720 = vld [vmem:[#allocation2] sm:$0x6]
        %v721 = vsel %vm719, %v688, %v720
        %722 = vst [vmem:[#allocation2] sm:$0x6] %v721
        %v723 = vld [vmem:[#allocation2 + $0x8] sm:$0x6]
        %v724 = vsel %vm719, %v696, %v723
        %725 = vst [vmem:[#allocation2 + $0x8] sm:$0x6] %v724
        %v726 = vld [vmem:[#allocation2 + $0x10] sm:$0x6]
        %v727 = vsel %vm719, %v704, %v726
        %728 = vst [vmem:[#allocation2 + $0x10] sm:$0x6] %v727
        %v729 = vld [vmem:[#allocation2 + $0x18] sm:$0x6]
        %v730 = vsel %vm719, %v712, %v729
        %731 = vst [vmem:[#allocation2 + $0x18] sm:$0x6] %v730
        %v732 = vmul.f32 %v665, %v669
        %v733 = vmul.f32 %v666, %v670
        %v734 = vsub.f32 %v732, %v638
        %v735 = vsub.f32 %v733, %v639
        %v738 = vcombine.high %v734, %v734
        %v739 = vcombine.high %v735, %v735
        %v742 = vpack.c.bf16 %v734, %v734
        %v743 = vpack.c.bf16 %v738, %v738
        %v744 = vpack.c.bf16 %v735, %v735
        %v745 = vpack.c.bf16 %v739, %v739
        %v750 = vrot.slane %v742, 5
        %v751 = vrot.slane %v743, 5
        %v752 = vrot.slane %v744, 5
        %v753 = vrot.slane %v745, 5
        %vm758 = vcmask 1044483
        %vm759 = vsmask.f32 4352
        %vm760 = vmand %vm758, %vm759
        %v761 = vld [vmem:[#allocation2] sm:$0x18]
        %v762 = vsel %vm760, %v750, %v761
        %763 = vst [vmem:[#allocation2] sm:$0x18] %v762
        %v764 = vld [vmem:[#allocation2 + $0x8] sm:$0x18]
        %v765 = vsel %vm760, %v751, %v764
        %766 = vst [vmem:[#allocation2 + $0x8] sm:$0x18] %v765
        %v767 = vld [vmem:[#allocation2 + $0x10] sm:$0x18]
        %v768 = vsel %vm760, %v752, %v767
        %769 = vst [vmem:[#allocation2 + $0x10] sm:$0x18] %v768
        %v770 = vld [vmem:[#allocation2 + $0x18] sm:$0x18]
        %v771 = vsel %vm760, %v753, %v770
        %772 = vst [vmem:[#allocation2 + $0x18] sm:$0x18] %v771
        %v773 = vmul.f32 %v665, %v734
        %v774 = vmul.f32 %v666, %v735
        %v775 = vsub.f32 %v773, %v669
        %v776 = vsub.f32 %v774, %v670
        %v779 = vcombine.high %v775, %v775
        %v780 = vcombine.high %v776, %v776
        %v783 = vpack.c.bf16 %v775, %v775
        %v784 = vpack.c.bf16 %v779, %v779
        %v785 = vpack.c.bf16 %v776, %v776
        %v786 = vpack.c.bf16 %v780, %v780
        %v788 = vshrl.u32 %v783, 16
        %v790 = vrot.slane %v788, 3
        %v791 = vshll.u32 %v783, 16
        %v793 = vrot.slane %v791, 4
        %v794 = vor.u32 %v790, %v793
        %v796 = vshrl.u32 %v784, 16
        %v798 = vrot.slane %v796, 3
        %v799 = vshll.u32 %v784, 16
        %v801 = vrot.slane %v799, 4
        %v802 = vor.u32 %v798, %v801
        %v804 = vshrl.u32 %v785, 16
        %v806 = vrot.slane %v804, 3
        %v807 = vshll.u32 %v785, 16
        %v809 = vrot.slane %v807, 4
        %v810 = vor.u32 %v806, %v809
        %v812 = vshrl.u32 %v786, 16
        %v814 = vrot.slane %v812, 3
        %v815 = vshll.u32 %v786, 16
        %v817 = vrot.slane %v815, 4
        %v818 = vor.u32 %v814, %v817
        %vm823 = vcmask 1045508
        %vm824 = vsmask.f32 7954
        %vm825 = vmand %vm823, %vm824
        %v826 = vld [vmem:[#allocation2] sm:$0x30]
        %v827 = vsel %vm825, %v794, %v826
        %828 = vst [vmem:[#allocation2] sm:$0x30] %v827
        %v829 = vld [vmem:[#allocation2 + $0x8] sm:$0x30]
        %v830 = vsel %vm825, %v802, %v829
        %831 = vst [vmem:[#allocation2 + $0x8] sm:$0x30] %v830
        %v832 = vld [vmem:[#allocation2 + $0x10] sm:$0x30]
        %v833 = vsel %vm825, %v810, %v832
        %834 = vst [vmem:[#allocation2 + $0x10] sm:$0x30] %v833
        %v835 = vld [vmem:[#allocation2 + $0x18] sm:$0x30]
        %v836 = vsel %vm825, %v818, %v835
        %837 = vst [vmem:[#allocation2 + $0x18] sm:$0x30] %v836
        %v838 = vmul.f32 %v665, %v775
        %v839 = vmul.f32 %v666, %v776
        %v840 = vsub.f32 %v838, %v734
        %v841 = vsub.f32 %v839, %v735
        %v844 = vcombine.high %v840, %v840
        %v845 = vcombine.high %v841, %v841
        %v848 = vpack.c.bf16 %v840, %v840
        %v849 = vpack.c.bf16 %v844, %v844
        %v850 = vpack.c.bf16 %v841, %v841
        %v851 = vpack.c.bf16 %v845, %v845
        %v856 = vrot.slane %v848, 2
        %v857 = vrot.slane %v849, 2
        %v858 = vrot.slane %v850, 2
        %v859 = vrot.slane %v851, 2
        %vm864 = vcmask 1047558
        %vm865 = vsmask.f32 7424
        %vm866 = vmand %vm864, %vm865
        %v867 = vld [vmem:[#allocation2] sm:$0xc0]
        %v868 = vsel %vm866, %v856, %v867
        %869 = vst [vmem:[#allocation2] sm:$0xc0] %v868
        %v870 = vld [vmem:[#allocation2 + $0x8] sm:$0xc0]
        %v871 = vsel %vm866, %v857, %v870
        %872 = vst [vmem:[#allocation2 + $0x8] sm:$0xc0] %v871
        %v873 = vld [vmem:[#allocation2 + $0x10] sm:$0xc0]
        %v874 = vsel %vm866, %v858, %v873
        %875 = vst [vmem:[#allocation2 + $0x10] sm:$0xc0] %v874
        %v876 = vld [vmem:[#allocation2 + $0x18] sm:$0xc0]
        %v877 = vsel %vm866, %v859, %v876
        %878 = vst [vmem:[#allocation2 + $0x18] sm:$0xc0] %v877
        %v879 = vmul.f32 %v665, %v840
        %v880 = vmul.f32 %v666, %v841
        %v881 = vsub.f32 %v879, %v775
        %v882 = vsub.f32 %v880, %v776
        %v885 = vcombine.high %v881, %v881
        %v886 = vcombine.high %v882, %v882
        %v889 = vpack.c.bf16 %v881, %v881
        %v890 = vpack.c.bf16 %v885, %v885
        %v891 = vpack.c.bf16 %v882, %v882
        %v892 = vpack.c.bf16 %v886, %v886
        %v894 = vshll.u32 %v889, 16
        %v896 = vrot.slane %v894, 1
        %v898 = vshll.u32 %v890, 16
        %v900 = vrot.slane %v898, 1
        %v902 = vshll.u32 %v891, 16
        %v904 = vrot.slane %v902, 1
        %v906 = vshll.u32 %v892, 16
        %v908 = vrot.slane %v906, 1
        %v909 = vshrl.u32 %v889, 16
        %v911 = vor.u32 %v909, %v896
        %v912 = vshrl.u32 %v890, 16
        %v914 = vor.u32 %v912, %v900
        %v915 = vshrl.u32 %v891, 16
        %v917 = vor.u32 %v915, %v904
        %v918 = vshrl.u32 %v892, 16
        %v920 = vor.u32 %v918, %v908
        %vm929 = vcmask 1047559
        %vm930 = vsmask.f32 7966
        %vm931 = vmand %vm929, %vm930
        %v932 = vld [vmem:[#allocation2] sm:$0x80]
        %v933 = vsel %vm931, %v896, %v932
        %934 = vst [vmem:[#allocation2] sm:$0x80] %v933
        %v935 = vld [vmem:[#allocation2 + $0x8] sm:$0x80]
        %v936 = vsel %vm931, %v900, %v935
        %937 = vst [vmem:[#allocation2 + $0x8] sm:$0x80] %v936
        %v938 = vld [vmem:[#allocation2 + $0x10] sm:$0x80]
        %v939 = vsel %vm931, %v904, %v938
        %940 = vst [vmem:[#allocation2 + $0x10] sm:$0x80] %v939
        %v941 = vld [vmem:[#allocation2 + $0x18] sm:$0x80]
        %v942 = vsel %vm931, %v908, %v941
        %943 = vst [vmem:[#allocation2 + $0x18] sm:$0x80] %v942
        %944 = vst [vmem:[#allocation2 + $0x20] sm:$0x1] %v911
        %945 = vst [vmem:[#allocation2 + $0x28] sm:$0x1] %v914
        %946 = vst [vmem:[#allocation2 + $0x30] sm:$0x1] %v917
        %947 = vst [vmem:[#allocation2 + $0x38] sm:$0x1] %v920
        %v948 = vmul.f32 %v665, %v881
        %v949 = vmul.f32 %v666, %v882
        %v950 = vsub.f32 %v948, %v840
        %v951 = vsub.f32 %v949, %v841
        %v954 = vcombine.high %v950, %v950
        %v955 = vcombine.high %v951, %v951
        %v958 = vpack.c.bf16 %v950, %v950
        %v959 = vpack.c.bf16 %v954, %v954
        %v960 = vpack.c.bf16 %v951, %v951
        %v961 = vpack.c.bf16 %v955, %v955
        %v966 = vrot.slane %v958, 7
        %v967 = vrot.slane %v959, 7
        %v968 = vrot.slane %v960, 7
        %v969 = vrot.slane %v961, 7
        %vm974 = vsmask.f32 2304
        %vm975 = vmand %vm717, %vm974
        %v976 = vld [vmem:[#allocation2 + $0x20] sm:$0x6]
        %v977 = vsel %vm975, %v966, %v976
        %978 = vst [vmem:[#allocation2 + $0x20] sm:$0x6] %v977
        %v979 = vld [vmem:[#allocation2 + $0x28] sm:$0x6]
        %v980 = vsel %vm975, %v967, %v979
        %981 = vst [vmem:[#allocation2 + $0x28] sm:$0x6] %v980
        %v982 = vld [vmem:[#allocation2 + $0x30] sm:$0x6]
        %v983 = vsel %vm975, %v968, %v982
        %984 = vst [vmem:[#allocation2 + $0x30] sm:$0x6] %v983
        %v985 = vld [vmem:[#allocation2 + $0x38] sm:$0x6]
        %v986 = vsel %vm975, %v969, %v985
        %987 = vst [vmem:[#allocation2 + $0x38] sm:$0x6] %v986
        %v988 = vmul.f32 %v665, %v950
        %v989 = vmul.f32 %v666, %v951
        %v990 = vsub.f32 %v988, %v881
        %v991 = vsub.f32 %v989, %v882
        %v994 = vcombine.high %v990, %v990
        %v995 = vcombine.high %v991, %v991
        %v998 = vpack.c.bf16 %v990, %v990
        %v999 = vpack.c.bf16 %v994, %v994
        %v1000 = vpack.c.bf16 %v991, %v991
        %v1001 = vpack.c.bf16 %v995, %v995
        %v1003 = vshrl.u32 %v998, 16
        %v1005 = vrot.slane %v1003, 5
        %v1006 = vshll.u32 %v998, 16
        %v1008 = vrot.slane %v1006, 6
        %v1009 = vor.u32 %v1005, %v1008
        %v1011 = vshrl.u32 %v999, 16
        %v1013 = vrot.slane %v1011, 5
        %v1014 = vshll.u32 %v999, 16
        %v1016 = vrot.slane %v1014, 6
        %v1017 = vor.u32 %v1013, %v1016
        %v1019 = vshrl.u32 %v1000, 16
        %v1021 = vrot.slane %v1019, 5
        %v1022 = vshll.u32 %v1000, 16
        %v1024 = vrot.slane %v1022, 6
        %v1025 = vor.u32 %v1021, %v1024
        %v1027 = vshrl.u32 %v1001, 16
        %v1029 = vrot.slane %v1027, 5
        %v1030 = vshll.u32 %v1001, 16
        %v1032 = vrot.slane %v1030, 6
        %v1033 = vor.u32 %v1029, %v1032
        %vm1038 = vcmask 1043458
        %vm1039 = vsmask.f32 7946
        %vm1040 = vmand %vm1038, %vm1039
        %v1041 = vld [vmem:[#allocation2 + $0x20] sm:$0xc]
        %v1042 = vsel %vm1040, %v1009, %v1041
        %1043 = vst [vmem:[#allocation2 + $0x20] sm:$0xc] %v1042
        %v1044 = vld [vmem:[#allocation2 + $0x28] sm:$0xc]
        %v1045 = vsel %vm1040, %v1017, %v1044
        %1046 = vst [vmem:[#allocation2 + $0x28] sm:$0xc] %v1045
        %v1047 = vld [vmem:[#allocation2 + $0x30] sm:$0xc]
        %v1048 = vsel %vm1040, %v1025, %v1047
        %1049 = vst [vmem:[#allocation2 + $0x30] sm:$0xc] %v1048
        %v1050 = vld [vmem:[#allocation2 + $0x38] sm:$0xc]
        %v1051 = vsel %vm1040, %v1033, %v1050
        %1052 = vst [vmem:[#allocation2 + $0x38] sm:$0xc] %v1051
        %v1053 = vmul.f32 %v665, %v990
        %v1054 = vmul.f32 %v666, %v991
        %v1055 = vsub.f32 %v1053, %v950
        %v1056 = vsub.f32 %v1054, %v951
        %v1059 = vcombine.high %v1055, %v1055
        %v1060 = vcombine.high %v1056, %v1056
        %v1063 = vpack.c.bf16 %v1055, %v1055
        %v1064 = vpack.c.bf16 %v1059, %v1059
        %v1065 = vpack.c.bf16 %v1056, %v1056
        %v1066 = vpack.c.bf16 %v1060, %v1060
        %v1071 = vrot.slane %v1063, 4
        %v1072 = vrot.slane %v1064, 4
        %v1073 = vrot.slane %v1065, 4
        %v1074 = vrot.slane %v1066, 4
        %vm1079 = vsmask.f32 5376
        %vm1080 = vmand %vm823, %vm1079
        %v1081 = vld [vmem:[#allocation2 + $0x20] sm:$0x30]
        %v1082 = vsel %vm1080, %v1071, %v1081
        %1083 = vst [vmem:[#allocation2 + $0x20] sm:$0x30] %v1082
        %v1084 = vld [vmem:[#allocation2 + $0x28] sm:$0x30]
        %v1085 = vsel %vm1080, %v1072, %v1084
        %1086 = vst [vmem:[#allocation2 + $0x28] sm:$0x30] %v1085
        %v1087 = vld [vmem:[#allocation2 + $0x30] sm:$0x30]
        %v1088 = vsel %vm1080, %v1073, %v1087
        %1089 = vst [vmem:[#allocation2 + $0x30] sm:$0x30] %v1088
        %v1090 = vld [vmem:[#allocation2 + $0x38] sm:$0x30]
        %v1091 = vsel %vm1080, %v1074, %v1090
        %1092 = vst [vmem:[#allocation2 + $0x38] sm:$0x30] %v1091
        %v1093 = vmul.f32 %v665, %v1055
        %v1094 = vmul.f32 %v666, %v1056
        %v1095 = vsub.f32 %v1093, %v990
        %v1096 = vsub.f32 %v1094, %v991
        %v1099 = vcombine.high %v1095, %v1095
        %v1100 = vcombine.high %v1096, %v1096
        %v1103 = vpack.c.bf16 %v1095, %v1095
        %v1104 = vpack.c.bf16 %v1099, %v1099
        %v1105 = vpack.c.bf16 %v1096, %v1096
        %v1106 = vpack.c.bf16 %v1100, %v1100
        %v1108 = vshrl.u32 %v1103, 16
        %v1110 = vrot.slane %v1108, 2
        %v1111 = vshll.u32 %v1103, 16
        %v1113 = vrot.slane %v1111, 3
        %v1114 = vor.u32 %v1110, %v1113
        %v1116 = vshrl.u32 %v1104, 16
        %v1118 = vrot.slane %v1116, 2
        %v1119 = vshll.u32 %v1104, 16
        %v1121 = vrot.slane %v1119, 3
        %v1122 = vor.u32 %v1118, %v1121
        %v1124 = vshrl.u32 %v1105, 16
        %v1126 = vrot.slane %v1124, 2
        %v1127 = vshll.u32 %v1105, 16
        %v1129 = vrot.slane %v1127, 3
        %v1130 = vor.u32 %v1126, %v1129
        %v1132 = vshrl.u32 %v1106, 16
        %v1134 = vrot.slane %v1132, 2
        %v1135 = vshll.u32 %v1106, 16
        %v1137 = vrot.slane %v1135, 3
        %v1138 = vor.u32 %v1134, %v1137
        %vm1143 = vcmask 1046533
        %vm1144 = vsmask.f32 7958
        %vm1145 = vmand %vm1143, %vm1144
        %v1146 = vld [vmem:[#allocation2 + $0x20] sm:$0x60]
        %v1147 = vsel %vm1145, %v1114, %v1146
        %1148 = vst [vmem:[#allocation2 + $0x20] sm:$0x60] %v1147
        %v1149 = vld [vmem:[#allocation2 + $0x28] sm:$0x60]
        %v1150 = vsel %vm1145, %v1122, %v1149
        %1151 = vst [vmem:[#allocation2 + $0x28] sm:$0x60] %v1150
        %v1152 = vld [vmem:[#allocation2 + $0x30] sm:$0x60]
        %v1153 = vsel %vm1145, %v1130, %v1152
        %1154 = vst [vmem:[#allocation2 + $0x30] sm:$0x60] %v1153
        %v1155 = vld [vmem:[#allocation2 + $0x38] sm:$0x60]
        %v1156 = vsel %vm1145, %v1138, %v1155
        %1157 = vst [vmem:[#allocation2 + $0x38] sm:$0x60] %v1156
        %v1158 = vmul.f32 %v665, %v1095
        %v1159 = vmul.f32 %v666, %v1096
        %v1160 = vsub.f32 %v1158, %v1055
        %v1161 = vsub.f32 %v1159, %v1056
        %v1164 = vcombine.high %v1160, %v1160
        %v1165 = vcombine.high %v1161, %v1161
        %v1168 = vpack.c.bf16 %v1160, %v1160
        %v1169 = vpack.c.bf16 %v1164, %v1164
        %v1170 = vpack.c.bf16 %v1161, %v1161
        %v1171 = vpack.c.bf16 %v1165, %v1165
        %v1176 = vrot.slane %v1168, 1
        %v1177 = vrot.slane %v1169, 1
        %v1178 = vrot.slane %v1170, 1
        %v1179 = vrot.slane %v1171, 1
        %1184 = vst [vmem:[#allocation2 + $0x20] sm:$0x80] %v1176
        %1185 = vst [vmem:[#allocation2 + $0x28] sm:$0x80] %v1177
        %1186 = vst [vmem:[#allocation2 + $0x30] sm:$0x80] %v1178
        %1187 = vst [vmem:[#allocation2 + $0x38] sm:$0x80] %v1179
        %vm1188 = vcmask 1040384
        %vm1189 = vsmask.f32 256
        %vm1190 = vmand %vm1188, %vm1189
        %v1191 = vld [vmem:[#allocation2 + $0x40] sm:$0x1]
        %v1192 = vsel %vm1190, %v1176, %v1191
        %1193 = vst [vmem:[#allocation2 + $0x40] sm:$0x1] %v1192
        %v1194 = vld [vmem:[#allocation2 + $0x48] sm:$0x1]
        %v1195 = vsel %vm1190, %v1177, %v1194
        %1196 = vst [vmem:[#allocation2 + $0x48] sm:$0x1] %v1195
        %v1197 = vld [vmem:[#allocation2 + $0x50] sm:$0x1]
        %v1198 = vsel %vm1190, %v1178, %v1197
        %1199 = vst [vmem:[#allocation2 + $0x50] sm:$0x1] %v1198
        %v1200 = vld [vmem:[#allocation2 + $0x58] sm:$0x1]
        %v1201 = vsel %vm1190, %v1179, %v1200
        %1202 = vst [vmem:[#allocation2 + $0x58] sm:$0x1] %v1201
        %v1203 = vmul.f32 %v665, %v1160
        %v1204 = vmul.f32 %v666, %v1161
        %v1205 = vsub.f32 %v1203, %v1095
        %v1206 = vsub.f32 %v1204, %v1096
        %v1209 = vcombine.high %v1205, %v1205
        %v1210 = vcombine.high %v1206, %v1206
        %v1213 = vpack.c.bf16 %v1205, %v1205
        %v1214 = vpack.c.bf16 %v1209, %v1209
        %v1215 = vpack.c.bf16 %v1206, %v1206
        %v1216 = vpack.c.bf16 %v1210, %v1210
        %v1218 = vshrl.u32 %v1213, 16
        %v1220 = vrot.slane %v1218, 7
        %v1221 = vshll.u32 %v1213, 16
        %v1223 = vor.u32 %v1220, %v1221
        %v1225 = vshrl.u32 %v1214, 16
        %v1227 = vrot.slane %v1225, 7
        %v1228 = vshll.u32 %v1214, 16
        %v1230 = vor.u32 %v1227, %v1228
        %v1232 = vshrl.u32 %v1215, 16
        %v1234 = vrot.slane %v1232, 7
        %v1235 = vshll.u32 %v1215, 16
        %v1237 = vor.u32 %v1234, %v1235
        %v1239 = vshrl.u32 %v1216, 16
        %v1241 = vrot.slane %v1239, 7
        %v1242 = vshll.u32 %v1216, 16
        %v1244 = vor.u32 %v1241, %v1242
        %vm1249 = vsmask.f32 7938
        %vm1250 = vmand %vm650, %vm1249
        %v1251 = vld [vmem:[#allocation2 + $0x40] sm:$0x3]
        %v1252 = vsel %vm1250, %v1223, %v1251
        %1253 = vst [vmem:[#allocation2 + $0x40] sm:$0x3] %v1252
        %v1254 = vld [vmem:[#allocation2 + $0x48] sm:$0x3]
        %v1255 = vsel %vm1250, %v1230, %v1254
        %1256 = vst [vmem:[#allocation2 + $0x48] sm:$0x3] %v1255
        %v1257 = vld [vmem:[#allocation2 + $0x50] sm:$0x3]
        %v1258 = vsel %vm1250, %v1237, %v1257
        %1259 = vst [vmem:[#allocation2 + $0x50] sm:$0x3] %v1258
        %v1260 = vld [vmem:[#allocation2 + $0x58] sm:$0x3]
        %v1261 = vsel %vm1250, %v1244, %v1260
        %1262 = vst [vmem:[#allocation2 + $0x58] sm:$0x3] %v1261
        %v1263 = vmul.f32 %v665, %v1205
        %v1264 = vmul.f32 %v666, %v1206
        %v1265 = vsub.f32 %v1263, %v1160
        %v1266 = vsub.f32 %v1264, %v1161
        %v1269 = vcombine.high %v1265, %v1265
        %v1270 = vcombine.high %v1266, %v1266
        %v1273 = vpack.c.bf16 %v1265, %v1265
        %v1274 = vpack.c.bf16 %v1269, %v1269
        %v1275 = vpack.c.bf16 %v1266, %v1266
        %v1276 = vpack.c.bf16 %v1270, %v1270
        %v1281 = vrot.slane %v1273, 6
        %v1282 = vrot.slane %v1274, 6
        %v1283 = vrot.slane %v1275, 6
        %v1284 = vrot.slane %v1276, 6
        %vm1289 = vsmask.f32 3328
        %vm1290 = vmand %vm1038, %vm1289
        %v1291 = vld [vmem:[#allocation2 + $0x40] sm:$0xc]
        %v1292 = vsel %vm1290, %v1281, %v1291
        %1293 = vst [vmem:[#allocation2 + $0x40] sm:$0xc] %v1292
        %v1294 = vld [vmem:[#allocation2 + $0x48] sm:$0xc]
        %v1295 = vsel %vm1290, %v1282, %v1294
        %1296 = vst [vmem:[#allocation2 + $0x48] sm:$0xc] %v1295
        %v1297 = vld [vmem:[#allocation2 + $0x50] sm:$0xc]
        %v1298 = vsel %vm1290, %v1283, %v1297
        %1299 = vst [vmem:[#allocation2 + $0x50] sm:$0xc] %v1298
        %v1300 = vld [vmem:[#allocation2 + $0x58] sm:$0xc]
        %v1301 = vsel %vm1290, %v1284, %v1300
        %1302 = vst [vmem:[#allocation2 + $0x58] sm:$0xc] %v1301
        %v1303 = vmul.f32 %v665, %v1265
        %v1304 = vmul.f32 %v666, %v1266
        %v1305 = vsub.f32 %v1303, %v1205
        %v1306 = vsub.f32 %v1304, %v1206
        %v1309 = vcombine.high %v1305, %v1305
        %v1310 = vcombine.high %v1306, %v1306
        %v1313 = vpack.c.bf16 %v1305, %v1305
        %v1314 = vpack.c.bf16 %v1309, %v1309
        %v1315 = vpack.c.bf16 %v1306, %v1306
        %v1316 = vpack.c.bf16 %v1310, %v1310
        %v1318 = vshrl.u32 %v1313, 16
        %v1320 = vrot.slane %v1318, 4
        %v1321 = vshll.u32 %v1313, 16
        %v1323 = vrot.slane %v1321, 5
        %v1324 = vor.u32 %v1320, %v1323
        %v1326 = vshrl.u32 %v1314, 16
        %v1328 = vrot.slane %v1326, 4
        %v1329 = vshll.u32 %v1314, 16
        %v1331 = vrot.slane %v1329, 5
        %v1332 = vor.u32 %v1328, %v1331
        %v1334 = vshrl.u32 %v1315, 16
        %v1336 = vrot.slane %v1334, 4
        %v1337 = vshll.u32 %v1315, 16
        %v1339 = vrot.slane %v1337, 5
        %v1340 = vor.u32 %v1336, %v1339
        %v1342 = vshrl.u32 %v1316, 16
        %v1344 = vrot.slane %v1342, 4
        %v1345 = vshll.u32 %v1316, 16
        %v1347 = vrot.slane %v1345, 5
        %v1348 = vor.u32 %v1344, %v1347
        %vm1353 = vsmask.f32 7950
        %vm1354 = vmand %vm758, %vm1353
        %v1355 = vld [vmem:[#allocation2 + $0x40] sm:$0x18]
        %v1356 = vsel %vm1354, %v1324, %v1355
        %1357 = vst [vmem:[#allocation2 + $0x40] sm:$0x18] %v1356
        %v1358 = vld [vmem:[#allocation2 + $0x48] sm:$0x18]
        %v1359 = vsel %vm1354, %v1332, %v1358
        %1360 = vst [vmem:[#allocation2 + $0x48] sm:$0x18] %v1359
        %v1361 = vld [vmem:[#allocation2 + $0x50] sm:$0x18]
        %v1362 = vsel %vm1354, %v1340, %v1361
        %1363 = vst [vmem:[#allocation2 + $0x50] sm:$0x18] %v1362
        %v1364 = vld [vmem:[#allocation2 + $0x58] sm:$0x18]
        %v1365 = vsel %vm1354, %v1348, %v1364
        %1366 = vst [vmem:[#allocation2 + $0x58] sm:$0x18] %v1365
        %v1367 = vmul.f32 %v665, %v1305
        %v1368 = vmul.f32 %v666, %v1306
        %v1369 = vsub.f32 %v1367, %v1265
        %v1370 = vsub.f32 %v1368, %v1266
        %v1373 = vcombine.high %v1369, %v1369
        %v1374 = vcombine.high %v1370, %v1370
        %v1377 = vpack.c.bf16 %v1369, %v1369
        %v1378 = vpack.c.bf16 %v1373, %v1373
        %v1379 = vpack.c.bf16 %v1370, %v1370
        %v1380 = vpack.c.bf16 %v1374, %v1374
        %v1385 = vrot.slane %v1377, 3
        %v1386 = vrot.slane %v1378, 3
        %v1387 = vrot.slane %v1379, 3
        %v1388 = vrot.slane %v1380, 3
        %vm1393 = vsmask.f32 6400
        %vm1394 = vmand %vm1143, %vm1393
        %v1395 = vld [vmem:[#allocation2 + $0x40] sm:$0x60]
        %v1396 = vsel %vm1394, %v1385, %v1395
        %1397 = vst [vmem:[#allocation2 + $0x40] sm:$0x60] %v1396
        %v1398 = vld [vmem:[#allocation2 + $0x48] sm:$0x60]
        %v1399 = vsel %vm1394, %v1386, %v1398
        %1400 = vst [vmem:[#allocation2 + $0x48] sm:$0x60] %v1399
        %v1401 = vld [vmem:[#allocation2 + $0x50] sm:$0x60]
        %v1402 = vsel %vm1394, %v1387, %v1401
        %1403 = vst [vmem:[#allocation2 + $0x50] sm:$0x60] %v1402
        %v1404 = vld [vmem:[#allocation2 + $0x58] sm:$0x60]
        %v1405 = vsel %vm1394, %v1388, %v1404
        %1406 = vst [vmem:[#allocation2 + $0x58] sm:$0x60] %v1405
        %v1407 = vmul.f32 %v665, %v1369
        %v1408 = vmul.f32 %v666, %v1370
        %v1409 = vsub.f32 %v1407, %v1305
        %v1410 = vsub.f32 %v1408, %v1306
        %v1413 = vcombine.high %v1409, %v1409
        %v1414 = vcombine.high %v1410, %v1410
        %v1417 = vpack.c.bf16 %v1409, %v1409
        %v1418 = vpack.c.bf16 %v1413, %v1413
        %v1419 = vpack.c.bf16 %v1410, %v1410
        %v1420 = vpack.c.bf16 %v1414, %v1414
        %v1422 = vshrl.u32 %v1417, 16
        %v1424 = vrot.slane %v1422, 1
        %v1425 = vshll.u32 %v1417, 16
        %v1427 = vrot.slane %v1425, 2
        %v1428 = vor.u32 %v1424, %v1427
        %v1430 = vshrl.u32 %v1418, 16
        %v1432 = vrot.slane %v1430, 1
        %v1433 = vshll.u32 %v1418, 16
        %v1435 = vrot.slane %v1433, 2
        %v1436 = vor.u32 %v1432, %v1435
        %v1438 = vshrl.u32 %v1419, 16
        %v1440 = vrot.slane %v1438, 1
        %v1441 = vshll.u32 %v1419, 16
        %v1443 = vrot.slane %v1441, 2
        %v1444 = vor.u32 %v1440, %v1443
        %v1446 = vshrl.u32 %v1420, 16
        %v1448 = vrot.slane %v1446, 1
        %v1449 = vshll.u32 %v1420, 16
        %v1451 = vrot.slane %v1449, 2
        %v1452 = vor.u32 %v1448, %v1451
        %vm1457 = vsmask.f32 7962
        %vm1458 = vmand %vm864, %vm1457
        %v1459 = vld [vmem:[#allocation2 + $0x40] sm:$0xc0]
        %v1460 = vsel %vm1458, %v1428, %v1459
        %1461 = vst [vmem:[#allocation2 + $0x40] sm:$0xc0] %v1460
        %v1462 = vld [vmem:[#allocation2 + $0x48] sm:$0xc0]
        %v1463 = vsel %vm1458, %v1436, %v1462
        %1464 = vst [vmem:[#allocation2 + $0x48] sm:$0xc0] %v1463
        %v1465 = vld [vmem:[#allocation2 + $0x50] sm:$0xc0]
        %v1466 = vsel %vm1458, %v1444, %v1465
        %1467 = vst [vmem:[#allocation2 + $0x50] sm:$0xc0] %v1466
        %v1468 = vld [vmem:[#allocation2 + $0x58] sm:$0xc0]
        %v1469 = vsel %vm1458, %v1452, %v1468
        %1470 = vst [vmem:[#allocation2 + $0x58] sm:$0xc0] %v1469
        %v1471 = vmul.f32 %v665, %v1409
        %v1472 = vmul.f32 %v666, %v1410
        %v1473 = vsub.f32 %v1471, %v1369
        %v1474 = vsub.f32 %v1472, %v1370
        %v1477 = vcombine.high %v1473, %v1473
        %v1478 = vcombine.high %v1474, %v1474
        %v1481 = vpack.c.bf16 %v1473, %v1473
        %v1482 = vpack.c.bf16 %v1477, %v1477
        %v1483 = vpack.c.bf16 %v1474, %v1474
        %v1484 = vpack.c.bf16 %v1478, %v1478
        %v1485 = vld [vmem:[#allocation2 + $0x60] sm:$0x3]
        %v1486 = vsel %vm652, %v1481, %v1485
        %1487 = vst [vmem:[#allocation2 + $0x60] sm:$0x3] %v1486
        %v1488 = vld [vmem:[#allocation2 + $0x68] sm:$0x3]
        %v1489 = vsel %vm652, %v1482, %v1488
        %1490 = vst [vmem:[#allocation2 + $0x68] sm:$0x3] %v1489
        %v1491 = vld [vmem:[#allocation2 + $0x70] sm:$0x3]
        %v1492 = vsel %vm652, %v1483, %v1491
        %1493 = vst [vmem:[#allocation2 + $0x70] sm:$0x3] %v1492
        %v1494 = vld [vmem:[#allocation2 + $0x78] sm:$0x3]
        %v1495 = vsel %vm652, %v1484, %v1494
        %1496 = vst [vmem:[#allocation2 + $0x78] sm:$0x3] %v1495
        %v1497 = vmul.f32 %v665, %v1473
        %v1498 = vmul.f32 %v666, %v1474
        %v1499 = vsub.f32 %v1497, %v1409
        %v1500 = vsub.f32 %v1498, %v1410
        %v1503 = vcombine.high %v1499, %v1499
        %v1504 = vcombine.high %v1500, %v1500
        %v1507 = vpack.c.bf16 %v1499, %v1499
        %v1508 = vpack.c.bf16 %v1503, %v1503
        %v1509 = vpack.c.bf16 %v1500, %v1500
        %v1510 = vpack.c.bf16 %v1504, %v1504
        %v1512 = vshrl.u32 %v1507, 16
        %v1514 = vrot.slane %v1512, 6
        %v1515 = vshll.u32 %v1507, 16
        %v1517 = vrot.slane %v1515, 7
        %v1518 = vor.u32 %v1514, %v1517
        %v1520 = vshrl.u32 %v1508, 16
        %v1522 = vrot.slane %v1520, 6
        %v1523 = vshll.u32 %v1508, 16
        %v1525 = vrot.slane %v1523, 7
        %v1526 = vor.u32 %v1522, %v1525
        %v1528 = vshrl.u32 %v1509, 16
        %v1530 = vrot.slane %v1528, 6
        %v1531 = vshll.u32 %v1509, 16
        %v1533 = vrot.slane %v1531, 7
        %v1534 = vor.u32 %v1530, %v1533
        %v1536 = vshrl.u32 %v1510, 16
        %v1538 = vrot.slane %v1536, 6
        %v1539 = vshll.u32 %v1510, 16
        %v1541 = vrot.slane %v1539, 7
        %v1542 = vor.u32 %v1538, %v1541
        %v1547 = vld [vmem:[#allocation2 + $0x60] sm:$0x6]
        %v1548 = vsel %vm719, %v1518, %v1547
        %1549 = vst [vmem:[#allocation2 + $0x60] sm:$0x6] %v1548
        %v1550 = vld [vmem:[#allocation2 + $0x68] sm:$0x6]
        %v1551 = vsel %vm719, %v1526, %v1550
        %1552 = vst [vmem:[#allocation2 + $0x68] sm:$0x6] %v1551
        %v1553 = vld [vmem:[#allocation2 + $0x70] sm:$0x6]
        %v1554 = vsel %vm719, %v1534, %v1553
        %1555 = vst [vmem:[#allocation2 + $0x70] sm:$0x6] %v1554
        %v1556 = vld [vmem:[#allocation2 + $0x78] sm:$0x6]
        %v1557 = vsel %vm719, %v1542, %v1556
        %1558 = vst [vmem:[#allocation2 + $0x78] sm:$0x6] %v1557
        %v1559 = vmul.f32 %v665, %v1499
        %v1560 = vmul.f32 %v666, %v1500
        %v1561 = vsub.f32 %v1559, %v1473
        %v1562 = vsub.f32 %v1560, %v1474
        %v1565 = vcombine.high %v1561, %v1561
        %v1566 = vcombine.high %v1562, %v1562
        %v1569 = vpack.c.bf16 %v1561, %v1561
        %v1570 = vpack.c.bf16 %v1565, %v1565
        %v1571 = vpack.c.bf16 %v1562, %v1562
        %v1572 = vpack.c.bf16 %v1566, %v1566
        %v1577 = vrot.slane %v1569, 5
        %v1578 = vrot.slane %v1570, 5
        %v1579 = vrot.slane %v1571, 5
        %v1580 = vrot.slane %v1572, 5
        %v1585 = vld [vmem:[#allocation2 + $0x60] sm:$0x18]
        %v1586 = vsel %vm760, %v1577, %v1585
        %1587 = vst [vmem:[#allocation2 + $0x60] sm:$0x18] %v1586
        %v1588 = vld [vmem:[#allocation2 + $0x68] sm:$0x18]
        %v1589 = vsel %vm760, %v1578, %v1588
        %1590 = vst [vmem:[#allocation2 + $0x68] sm:$0x18] %v1589
        %v1591 = vld [vmem:[#allocation2 + $0x70] sm:$0x18]
        %v1592 = vsel %vm760, %v1579, %v1591
        %1593 = vst [vmem:[#allocation2 + $0x70] sm:$0x18] %v1592
        %v1594 = vld [vmem:[#allocation2 + $0x78] sm:$0x18]
        %v1595 = vsel %vm760, %v1580, %v1594
        %1596 = vst [vmem:[#allocation2 + $0x78] sm:$0x18] %v1595
        %v1597 = vmul.f32 %v665, %v1561
        %v1598 = vmul.f32 %v666, %v1562
        %v1599 = vsub.f32 %v1597, %v1499
        %v1600 = vsub.f32 %v1598, %v1500
        %v1603 = vcombine.high %v1599, %v1599
        %v1604 = vcombine.high %v1600, %v1600
        %v1607 = vpack.c.bf16 %v1599, %v1599
        %v1608 = vpack.c.bf16 %v1603, %v1603
        %v1609 = vpack.c.bf16 %v1600, %v1600
        %v1610 = vpack.c.bf16 %v1604, %v1604
        %v1612 = vshrl.u32 %v1607, 16
        %v1614 = vrot.slane %v1612, 3
        %v1615 = vshll.u32 %v1607, 16
        %v1617 = vrot.slane %v1615, 4
        %v1618 = vor.u32 %v1614, %v1617
        %v1620 = vshrl.u32 %v1608, 16
        %v1622 = vrot.slane %v1620, 3
        %v1623 = vshll.u32 %v1608, 16
        %v1625 = vrot.slane %v1623, 4
        %v1626 = vor.u32 %v1622, %v1625
        %v1628 = vshrl.u32 %v1609, 16
        %v1630 = vrot.slane %v1628, 3
        %v1631 = vshll.u32 %v1609, 16
        %v1633 = vrot.slane %v1631, 4
        %v1634 = vor.u32 %v1630, %v1633
        %v1636 = vshrl.u32 %v1610, 16
        %v1638 = vrot.slane %v1636, 3
        %v1639 = vshll.u32 %v1610, 16
        %v1641 = vrot.slane %v1639, 4
        %v1642 = vor.u32 %v1638, %v1641
        %v1647 = vld [vmem:[#allocation2 + $0x60] sm:$0x30]
        %v1648 = vsel %vm825, %v1618, %v1647
        %1649 = vst [vmem:[#allocation2 + $0x60] sm:$0x30] %v1648
        %v1650 = vld [vmem:[#allocation2 + $0x68] sm:$0x30]
        %v1651 = vsel %vm825, %v1626, %v1650
        %1652 = vst [vmem:[#allocation2 + $0x68] sm:$0x30] %v1651
        %v1653 = vld [vmem:[#allocation2 + $0x70] sm:$0x30]
        %v1654 = vsel %vm825, %v1634, %v1653
        %1655 = vst [vmem:[#allocation2 + $0x70] sm:$0x30] %v1654
        %v1656 = vld [vmem:[#allocation2 + $0x78] sm:$0x30]
        %v1657 = vsel %vm825, %v1642, %v1656
        %1658 = vst [vmem:[#allocation2 + $0x78] sm:$0x30] %v1657
        %v1659 = vmul.f32 %v665, %v1599
        %v1660 = vmul.f32 %v666, %v1600
        %v1661 = vsub.f32 %v1659, %v1561
        %v1662 = vsub.f32 %v1660, %v1562
        %v1665 = vcombine.high %v1661, %v1661
        %v1666 = vcombine.high %v1662, %v1662
        %v1669 = vpack.c.bf16 %v1661, %v1661
        %v1670 = vpack.c.bf16 %v1665, %v1665
        %v1671 = vpack.c.bf16 %v1662, %v1662
        %v1672 = vpack.c.bf16 %v1666, %v1666
        %v1677 = vrot.slane %v1669, 2
        %v1678 = vrot.slane %v1670, 2
        %v1679 = vrot.slane %v1671, 2
        %v1680 = vrot.slane %v1672, 2
        %v1685 = vld [vmem:[#allocation2 + $0x60] sm:$0xc0]
        %v1686 = vsel %vm866, %v1677, %v1685
        %1687 = vst [vmem:[#allocation2 + $0x60] sm:$0xc0] %v1686
        %v1688 = vld [vmem:[#allocation2 + $0x68] sm:$0xc0]
        %v1689 = vsel %vm866, %v1678, %v1688
        %1690 = vst [vmem:[#allocation2 + $0x68] sm:$0xc0] %v1689
        %v1691 = vld [vmem:[#allocation2 + $0x70] sm:$0xc0]
        %v1692 = vsel %vm866, %v1679, %v1691
        %1693 = vst [vmem:[#allocation2 + $0x70] sm:$0xc0] %v1692
        %v1694 = vld [vmem:[#allocation2 + $0x78] sm:$0xc0]
        %v1695 = vsel %vm866, %v1680, %v1694
        %1696 = vst [vmem:[#allocation2 + $0x78] sm:$0xc0] %v1695
        %v1697 = vmul.f32 %v665, %v1661
        %v1698 = vmul.f32 %v666, %v1662
        %v1699 = vsub.f32 %v1697, %v1599
        %v1700 = vsub.f32 %v1698, %v1600
        %v1703 = vcombine.high %v1699, %v1699
        %v1704 = vcombine.high %v1700, %v1700
        %v1707 = vpack.c.bf16 %v1699, %v1699
        %v1708 = vpack.c.bf16 %v1703, %v1703
        %v1709 = vpack.c.bf16 %v1700, %v1700
        %v1710 = vpack.c.bf16 %v1704, %v1704
        %v1712 = vshll.u32 %v1707, 16
        %v1714 = vrot.slane %v1712, 1
        %v1716 = vshll.u32 %v1708, 16
        %v1718 = vrot.slane %v1716, 1
        %v1720 = vshll.u32 %v1709, 16
        %v1722 = vrot.slane %v1720, 1
        %v1724 = vshll.u32 %v1710, 16
        %v1726 = vrot.slane %v1724, 1
        %v1727 = vshrl.u32 %v1707, 16
        %v1729 = vor.u32 %v1727, %v1714
        %v1730 = vshrl.u32 %v1708, 16
        %v1732 = vor.u32 %v1730, %v1718
        %v1733 = vshrl.u32 %v1709, 16
        %v1735 = vor.u32 %v1733, %v1722
        %v1736 = vshrl.u32 %v1710, 16
        %v1738 = vor.u32 %v1736, %v1726
        %v1747 = vld [vmem:[#allocation2 + $0x60] sm:$0x80]
        %v1748 = vsel %vm931, %v1714, %v1747
        %1749 = vst [vmem:[#allocation2 + $0x60] sm:$0x80] %v1748
        %v1750 = vld [vmem:[#allocation2 + $0x68] sm:$0x80]
        %v1751 = vsel %vm931, %v1718, %v1750
        %1752 = vst [vmem:[#allocation2 + $0x68] sm:$0x80] %v1751
        %v1753 = vld [vmem:[#allocation2 + $0x70] sm:$0x80]
        %v1754 = vsel %vm931, %v1722, %v1753
        %1755 = vst [vmem:[#allocation2 + $0x70] sm:$0x80] %v1754
        %v1756 = vld [vmem:[#allocation2 + $0x78] sm:$0x80]
        %v1757 = vsel %vm931, %v1726, %v1756
        %1758 = vst [vmem:[#allocation2 + $0x78] sm:$0x80] %v1757
        %1759 = vst [vmem:[#allocation2 + $0x80] sm:$0x1] %v1729
        %1760 = vst [vmem:[#allocation2 + $0x88] sm:$0x1] %v1732
        %1761 = vst [vmem:[#allocation2 + $0x90] sm:$0x1] %v1735
        %1762 = vst [vmem:[#allocation2 + $0x98] sm:$0x1] %v1738
        %v1763 = vmul.f32 %v665, %v1699
        %v1764 = vmul.f32 %v666, %v1700
        %v1765 = vsub.f32 %v1763, %v1661
        %v1766 = vsub.f32 %v1764, %v1662
        %v1769 = vcombine.high %v1765, %v1765
        %v1770 = vcombine.high %v1766, %v1766
        %v1773 = vpack.c.bf16 %v1765, %v1765
        %v1774 = vpack.c.bf16 %v1769, %v1769
        %v1775 = vpack.c.bf16 %v1766, %v1766
        %v1776 = vpack.c.bf16 %v1770, %v1770
        %v1781 = vrot.slane %v1773, 7
        %v1782 = vrot.slane %v1774, 7
        %v1783 = vrot.slane %v1775, 7
        %v1784 = vrot.slane %v1776, 7
        %v1789 = vld [vmem:[#allocation2 + $0x80] sm:$0x6]
        %v1790 = vsel %vm975, %v1781, %v1789
        %1791 = vst [vmem:[#allocation2 + $0x80] sm:$0x6] %v1790
        %v1792 = vld [vmem:[#allocation2 + $0x88] sm:$0x6]
        %v1793 = vsel %vm975, %v1782, %v1792
        %1794 = vst [vmem:[#allocation2 + $0x88] sm:$0x6] %v1793
        %v1795 = vld [vmem:[#allocation2 + $0x90] sm:$0x6]
        %v1796 = vsel %vm975, %v1783, %v1795
        %1797 = vst [vmem:[#allocation2 + $0x90] sm:$0x6] %v1796
        %v1798 = vld [vmem:[#allocation2 + $0x98] sm:$0x6]
        %v1799 = vsel %vm975, %v1784, %v1798
        %1800 = vst [vmem:[#allocation2 + $0x98] sm:$0x6] %v1799
        %v1801 = vmul.f32 %v665, %v1765
        %v1802 = vmul.f32 %v666, %v1766
        %v1803 = vsub.f32 %v1801, %v1699
        %v1804 = vsub.f32 %v1802, %v1700
        %v1807 = vcombine.high %v1803, %v1803
        %v1808 = vcombine.high %v1804, %v1804
        %v1811 = vpack.c.bf16 %v1803, %v1803
        %v1812 = vpack.c.bf16 %v1807, %v1807
        %v1813 = vpack.c.bf16 %v1804, %v1804
        %v1814 = vpack.c.bf16 %v1808, %v1808
        %v1816 = vshrl.u32 %v1811, 16
        %v1818 = vrot.slane %v1816, 5
        %v1819 = vshll.u32 %v1811, 16
        %v1821 = vrot.slane %v1819, 6
        %v1822 = vor.u32 %v1818, %v1821
        %v1824 = vshrl.u32 %v1812, 16
        %v1826 = vrot.slane %v1824, 5
        %v1827 = vshll.u32 %v1812, 16
        %v1829 = vrot.slane %v1827, 6
        %v1830 = vor.u32 %v1826, %v1829
        %v1832 = vshrl.u32 %v1813, 16
        %v1834 = vrot.slane %v1832, 5
        %v1835 = vshll.u32 %v1813, 16
        %v1837 = vrot.slane %v1835, 6
        %v1838 = vor.u32 %v1834, %v1837
        %v1840 = vshrl.u32 %v1814, 16
        %v1842 = vrot.slane %v1840, 5
        %v1843 = vshll.u32 %v1814, 16
        %v1845 = vrot.slane %v1843, 6
        %v1846 = vor.u32 %v1842, %v1845
        %v1851 = vld [vmem:[#allocation2 + $0x80] sm:$0xc]
        %v1852 = vsel %vm1040, %v1822, %v1851
        %1853 = vst [vmem:[#allocation2 + $0x80] sm:$0xc] %v1852
        %v1854 = vld [vmem:[#allocation2 + $0x88] sm:$0xc]
        %v1855 = vsel %vm1040, %v1830, %v1854
        %1856 = vst [vmem:[#allocation2 + $0x88] sm:$0xc] %v1855
        %v1857 = vld [vmem:[#allocation2 + $0x90] sm:$0xc]
        %v1858 = vsel %vm1040, %v1838, %v1857
        %1859 = vst [vmem:[#allocation2 + $0x90] sm:$0xc] %v1858
        %v1860 = vld [vmem:[#allocation2 + $0x98] sm:$0xc]
        %v1861 = vsel %vm1040, %v1846, %v1860
        %1862 = vst [vmem:[#allocation2 + $0x98] sm:$0xc] %v1861
        %v1863 = vmul.f32 %v665, %v1803
        %v1864 = vmul.f32 %v666, %v1804
        %v1865 = vsub.f32 %v1863, %v1765
        %v1866 = vsub.f32 %v1864, %v1766
        %v1869 = vcombine.high %v1865, %v1865
        %v1870 = vcombine.high %v1866, %v1866
        %v1873 = vpack.c.bf16 %v1865, %v1865
        %v1874 = vpack.c.bf16 %v1869, %v1869
        %v1875 = vpack.c.bf16 %v1866, %v1866
        %v1876 = vpack.c.bf16 %v1870, %v1870
        %v1881 = vrot.slane %v1873, 4
        %v1882 = vrot.slane %v1874, 4
        %v1883 = vrot.slane %v1875, 4
        %v1884 = vrot.slane %v1876, 4
        %v1889 = vld [vmem:[#allocation2 + $0x80] sm:$0x30]
        %v1890 = vsel %vm1080, %v1881, %v1889
        %1891 = vst [vmem:[#allocation2 + $0x80] sm:$0x30] %v1890
        %v1892 = vld [vmem:[#allocation2 + $0x88] sm:$0x30]
        %v1893 = vsel %vm1080, %v1882, %v1892
        %1894 = vst [vmem:[#allocation2 + $0x88] sm:$0x30] %v1893
        %v1895 = vld [vmem:[#allocation2 + $0x90] sm:$0x30]
        %v1896 = vsel %vm1080, %v1883, %v1895
        %1897 = vst [vmem:[#allocation2 + $0x90] sm:$0x30] %v1896
        %v1898 = vld [vmem:[#allocation2 + $0x98] sm:$0x30]
        %v1899 = vsel %vm1080, %v1884, %v1898
        %1900 = vst [vmem:[#allocation2 + $0x98] sm:$0x30] %v1899
        %v1901 = vmul.f32 %v665, %v1865
        %v1902 = vmul.f32 %v666, %v1866
        %v1903 = vsub.f32 %v1901, %v1803
        %v1904 = vsub.f32 %v1902, %v1804
        %v1907 = vcombine.high %v1903, %v1903
        %v1908 = vcombine.high %v1904, %v1904
        %v1911 = vpack.c.bf16 %v1903, %v1903
        %v1912 = vpack.c.bf16 %v1907, %v1907
        %v1913 = vpack.c.bf16 %v1904, %v1904
        %v1914 = vpack.c.bf16 %v1908, %v1908
        %v1916 = vshrl.u32 %v1911, 16
        %v1918 = vrot.slane %v1916, 2
        %v1919 = vshll.u32 %v1911, 16
        %v1921 = vrot.slane %v1919, 3
        %v1922 = vor.u32 %v1918, %v1921
        %v1924 = vshrl.u32 %v1912, 16
        %v1926 = vrot.slane %v1924, 2
        %v1927 = vshll.u32 %v1912, 16
        %v1929 = vrot.slane %v1927, 3
        %v1930 = vor.u32 %v1926, %v1929
        %v1932 = vshrl.u32 %v1913, 16
        %v1934 = vrot.slane %v1932, 2
        %v1935 = vshll.u32 %v1913, 16
        %v1937 = vrot.slane %v1935, 3
        %v1938 = vor.u32 %v1934, %v1937
        %v1940 = vshrl.u32 %v1914, 16
        %v1942 = vrot.slane %v1940, 2
        %v1943 = vshll.u32 %v1914, 16
        %v1945 = vrot.slane %v1943, 3
        %v1946 = vor.u32 %v1942, %v1945
        %v1951 = vld [vmem:[#allocation2 + $0x80] sm:$0x60]
        %v1952 = vsel %vm1145, %v1922, %v1951
        %1953 = vst [vmem:[#allocation2 + $0x80] sm:$0x60] %v1952
        %v1954 = vld [vmem:[#allocation2 + $0x88] sm:$0x60]
        %v1955 = vsel %vm1145, %v1930, %v1954
        %1956 = vst [vmem:[#allocation2 + $0x88] sm:$0x60] %v1955
        %v1957 = vld [vmem:[#allocation2 + $0x90] sm:$0x60]
        %v1958 = vsel %vm1145, %v1938, %v1957
        %1959 = vst [vmem:[#allocation2 + $0x90] sm:$0x60] %v1958
        %v1960 = vld [vmem:[#allocation2 + $0x98] sm:$0x60]
        %v1961 = vsel %vm1145, %v1946, %v1960
        %1962 = vst [vmem:[#allocation2 + $0x98] sm:$0x60] %v1961
        %v1963 = vmul.f32 %v665, %v1903
        %v1964 = vmul.f32 %v666, %v1904
        %v1965 = vsub.f32 %v1963, %v1865
        %v1966 = vsub.f32 %v1964, %v1866
        %v1969 = vcombine.high %v1965, %v1965
        %v1970 = vcombine.high %v1966, %v1966
        %v1973 = vpack.c.bf16 %v1965, %v1965
        %v1974 = vpack.c.bf16 %v1969, %v1969
        %v1975 = vpack.c.bf16 %v1966, %v1966
        %v1976 = vpack.c.bf16 %v1970, %v1970
        %v1981 = vrot.slane %v1973, 1
        %v1982 = vrot.slane %v1974, 1
        %v1983 = vrot.slane %v1975, 1
        %v1984 = vrot.slane %v1976, 1
        %1989 = vst [vmem:[#allocation2 + $0x80] sm:$0x80] %v1981
        %1990 = vst [vmem:[#allocation2 + $0x88] sm:$0x80] %v1982
        %1991 = vst [vmem:[#allocation2 + $0x90] sm:$0x80] %v1983
        %1992 = vst [vmem:[#allocation2 + $0x98] sm:$0x80] %v1984
        %v1993 = vld [vmem:[#allocation2 + $0xa0] sm:$0x1]
        %v1994 = vsel %vm1190, %v1981, %v1993
        %1995 = vst [vmem:[#allocation2 + $0xa0] sm:$0x1] %v1994
        %v1996 = vld [vmem:[#allocation2 + $0xa8] sm:$0x1]
        %v1997 = vsel %vm1190, %v1982, %v1996
        %1998 = vst [vmem:[#allocation2 + $0xa8] sm:$0x1] %v1997
        %v1999 = vld [vmem:[#allocation2 + $0xb0] sm:$0x1]
        %v2000 = vsel %vm1190, %v1983, %v1999
        %2001 = vst [vmem:[#allocation2 + $0xb0] sm:$0x1] %v2000
        %v2002 = vld [vmem:[#allocation2 + $0xb8] sm:$0x1]
        %v2003 = vsel %vm1190, %v1984, %v2002
        %2004 = vst [vmem:[#allocation2 + $0xb8] sm:$0x1] %v2003
        %v2005 = vmul.f32 %v665, %v1965
        %v2006 = vmul.f32 %v666, %v1966
        %v2007 = vsub.f32 %v2005, %v1903
        %v2008 = vsub.f32 %v2006, %v1904
        %v2011 = vcombine.high %v2007, %v2007
        %v2012 = vcombine.high %v2008, %v2008
        %v2015 = vpack.c.bf16 %v2007, %v2007
        %v2016 = vpack.c.bf16 %v2011, %v2011
        %v2017 = vpack.c.bf16 %v2008, %v2008
        %v2018 = vpack.c.bf16 %v2012, %v2012
        %v2020 = vshrl.u32 %v2015, 16
        %v2022 = vrot.slane %v2020, 7
        %v2023 = vshll.u32 %v2015, 16
        %v2025 = vor.u32 %v2022, %v2023
        %v2027 = vshrl.u32 %v2016, 16
        %v2029 = vrot.slane %v2027, 7
        %v2030 = vshll.u32 %v2016, 16
        %v2032 = vor.u32 %v2029, %v2030
        %v2034 = vshrl.u32 %v2017, 16
        %v2036 = vrot.slane %v2034, 7
        %v2037 = vshll.u32 %v2017, 16
        %v2039 = vor.u32 %v2036, %v2037
        %v2041 = vshrl.u32 %v2018, 16
        %v2043 = vrot.slane %v2041, 7
        %v2044 = vshll.u32 %v2018, 16
        %v2046 = vor.u32 %v2043, %v2044
        %v2051 = vld [vmem:[#allocation2 + $0xa0] sm:$0x3]
        %v2052 = vsel %vm1250, %v2025, %v2051
        %2053 = vst [vmem:[#allocation2 + $0xa0] sm:$0x3] %v2052
        %v2054 = vld [vmem:[#allocation2 + $0xa8] sm:$0x3]
        %v2055 = vsel %vm1250, %v2032, %v2054
        %2056 = vst [vmem:[#allocation2 + $0xa8] sm:$0x3] %v2055
        %v2057 = vld [vmem:[#allocation2 + $0xb0] sm:$0x3]
        %v2058 = vsel %vm1250, %v2039, %v2057
        %2059 = vst [vmem:[#allocation2 + $0xb0] sm:$0x3] %v2058
        %v2060 = vld [vmem:[#allocation2 + $0xb8] sm:$0x3]
        %v2061 = vsel %vm1250, %v2046, %v2060
        %2062 = vst [vmem:[#allocation2 + $0xb8] sm:$0x3] %v2061
        %v2063 = vmul.f32 %v665, %v2007
        %v2064 = vmul.f32 %v666, %v2008
        %v2065 = vsub.f32 %v2063, %v1965
        %v2066 = vsub.f32 %v2064, %v1966
        %v2069 = vcombine.high %v2065, %v2065
        %v2070 = vcombine.high %v2066, %v2066
        %v2073 = vpack.c.bf16 %v2065, %v2065
        %v2074 = vpack.c.bf16 %v2069, %v2069
        %v2075 = vpack.c.bf16 %v2066, %v2066
        %v2076 = vpack.c.bf16 %v2070, %v2070
        %v2081 = vrot.slane %v2073, 6
        %v2082 = vrot.slane %v2074, 6
        %v2083 = vrot.slane %v2075, 6
        %v2084 = vrot.slane %v2076, 6
        %v2089 = vld [vmem:[#allocation2 + $0xa0] sm:$0xc]
        %v2090 = vsel %vm1290, %v2081, %v2089
        %2091 = vst [vmem:[#allocation2 + $0xa0] sm:$0xc] %v2090
        %v2092 = vld [vmem:[#allocation2 + $0xa8] sm:$0xc]
        %v2093 = vsel %vm1290, %v2082, %v2092
        %2094 = vst [vmem:[#allocation2 + $0xa8] sm:$0xc] %v2093
        %v2095 = vld [vmem:[#allocation2 + $0xb0] sm:$0xc]
        %v2096 = vsel %vm1290, %v2083, %v2095
        %2097 = vst [vmem:[#allocation2 + $0xb0] sm:$0xc] %v2096
        %v2098 = vld [vmem:[#allocation2 + $0xb8] sm:$0xc]
        %v2099 = vsel %vm1290, %v2084, %v2098
        %2100 = vst [vmem:[#allocation2 + $0xb8] sm:$0xc] %v2099
        %v2101 = vmul.f32 %v665, %v2065
        %v2102 = vmul.f32 %v666, %v2066
        %v2103 = vsub.f32 %v2101, %v2007
        %v2104 = vsub.f32 %v2102, %v2008
        %v2107 = vcombine.high %v2103, %v2103
        %v2108 = vcombine.high %v2104, %v2104
        %v2111 = vpack.c.bf16 %v2103, %v2103
        %v2112 = vpack.c.bf16 %v2107, %v2107
        %v2113 = vpack.c.bf16 %v2104, %v2104
        %v2114 = vpack.c.bf16 %v2108, %v2108
        %v2116 = vshrl.u32 %v2111, 16
        %v2118 = vrot.slane %v2116, 4
        %v2119 = vshll.u32 %v2111, 16
        %v2121 = vrot.slane %v2119, 5
        %v2122 = vor.u32 %v2118, %v2121
        %v2124 = vshrl.u32 %v2112, 16
        %v2126 = vrot.slane %v2124, 4
        %v2127 = vshll.u32 %v2112, 16
        %v2129 = vrot.slane %v2127, 5
        %v2130 = vor.u32 %v2126, %v2129
        %v2132 = vshrl.u32 %v2113, 16
        %v2134 = vrot.slane %v2132, 4
        %v2135 = vshll.u32 %v2113, 16
        %v2137 = vrot.slane %v2135, 5
        %v2138 = vor.u32 %v2134, %v2137
        %v2140 = vshrl.u32 %v2114, 16
        %v2142 = vrot.slane %v2140, 4
        %v2143 = vshll.u32 %v2114, 16
        %v2145 = vrot.slane %v2143, 5
        %v2146 = vor.u32 %v2142, %v2145
        %v2151 = vld [vmem:[#allocation2 + $0xa0] sm:$0x18]
        %v2152 = vsel %vm1354, %v2122, %v2151
        %2153 = vst [vmem:[#allocation2 + $0xa0] sm:$0x18] %v2152
        %v2154 = vld [vmem:[#allocation2 + $0xa8] sm:$0x18]
        %v2155 = vsel %vm1354, %v2130, %v2154
        %2156 = vst [vmem:[#allocation2 + $0xa8] sm:$0x18] %v2155
        %v2157 = vld [vmem:[#allocation2 + $0xb0] sm:$0x18]
        %v2158 = vsel %vm1354, %v2138, %v2157
        %2159 = vst [vmem:[#allocation2 + $0xb0] sm:$0x18] %v2158
        %v2160 = vld [vmem:[#allocation2 + $0xb8] sm:$0x18]
        %v2161 = vsel %vm1354, %v2146, %v2160
        %2162 = vst [vmem:[#allocation2 + $0xb8] sm:$0x18] %v2161
        %v2163 = vmul.f32 %v665, %v2103
        %v2164 = vmul.f32 %v666, %v2104
        %v2165 = vsub.f32 %v2163, %v2065
        %v2166 = vsub.f32 %v2164, %v2066
        %v2169 = vcombine.high %v2165, %v2165
        %v2170 = vcombine.high %v2166, %v2166
        %v2173 = vpack.c.bf16 %v2165, %v2165
        %v2174 = vpack.c.bf16 %v2169, %v2169
        %v2175 = vpack.c.bf16 %v2166, %v2166
        %v2176 = vpack.c.bf16 %v2170, %v2170
        %v2181 = vrot.slane %v2173, 3
        %v2182 = vrot.slane %v2174, 3
        %v2183 = vrot.slane %v2175, 3
        %v2184 = vrot.slane %v2176, 3
        %v2189 = vld [vmem:[#allocation2 + $0xa0] sm:$0x60]
        %v2190 = vsel %vm1394, %v2181, %v2189
        %2191 = vst [vmem:[#allocation2 + $0xa0] sm:$0x60] %v2190
        %v2192 = vld [vmem:[#allocation2 + $0xa8] sm:$0x60]
        %v2193 = vsel %vm1394, %v2182, %v2192
        %2194 = vst [vmem:[#allocation2 + $0xa8] sm:$0x60] %v2193
        %v2195 = vld [vmem:[#allocation2 + $0xb0] sm:$0x60]
        %v2196 = vsel %vm1394, %v2183, %v2195
        %2197 = vst [vmem:[#allocation2 + $0xb0] sm:$0x60] %v2196
        %v2198 = vld [vmem:[#allocation2 + $0xb8] sm:$0x60]
        %v2199 = vsel %vm1394, %v2184, %v2198
        %2200 = vst [vmem:[#allocation2 + $0xb8] sm:$0x60] %v2199
        %v2201 = vmul.f32 %v665, %v2165
        %v2202 = vmul.f32 %v666, %v2166
        %v2203 = vsub.f32 %v2201, %v2103
        %v2204 = vsub.f32 %v2202, %v2104
        %v2207 = vcombine.high %v2203, %v2203
        %v2208 = vcombine.high %v2204, %v2204
        %v2211 = vpack.c.bf16 %v2203, %v2203
        %v2212 = vpack.c.bf16 %v2207, %v2207
        %v2213 = vpack.c.bf16 %v2204, %v2204
        %v2214 = vpack.c.bf16 %v2208, %v2208
        %v2216 = vshrl.u32 %v2211, 16
        %v2218 = vrot.slane %v2216, 1
        %v2219 = vshll.u32 %v2211, 16
        %v2221 = vrot.slane %v2219, 2
        %v2222 = vor.u32 %v2218, %v2221
        %v2224 = vshrl.u32 %v2212, 16
        %v2226 = vrot.slane %v2224, 1
        %v2227 = vshll.u32 %v2212, 16
        %v2229 = vrot.slane %v2227, 2
        %v2230 = vor.u32 %v2226, %v2229
        %v2232 = vshrl.u32 %v2213, 16
        %v2234 = vrot.slane %v2232, 1
        %v2235 = vshll.u32 %v2213, 16
        %v2237 = vrot.slane %v2235, 2
        %v2238 = vor.u32 %v2234, %v2237
        %v2240 = vshrl.u32 %v2214, 16
        %v2242 = vrot.slane %v2240, 1
        %v2243 = vshll.u32 %v2214, 16
        %v2245 = vrot.slane %v2243, 2
        %v2246 = vor.u32 %v2242, %v2245
        %v2251 = vld [vmem:[#allocation2 + $0xa0] sm:$0xc0]
        %v2252 = vsel %vm1458, %v2222, %v2251
        %2253 = vst [vmem:[#allocation2 + $0xa0] sm:$0xc0] %v2252
        %v2254 = vld [vmem:[#allocation2 + $0xa8] sm:$0xc0]
        %v2255 = vsel %vm1458, %v2230, %v2254
        %2256 = vst [vmem:[#allocation2 + $0xa8] sm:$0xc0] %v2255
        %v2257 = vld [vmem:[#allocation2 + $0xb0] sm:$0xc0]
        %v2258 = vsel %vm1458, %v2238, %v2257
        %2259 = vst [vmem:[#allocation2 + $0xb0] sm:$0xc0] %v2258
        %v2260 = vld [vmem:[#allocation2 + $0xb8] sm:$0xc0]
        %v2261 = vsel %vm1458, %v2246, %v2260
        %2262 = vst [vmem:[#allocation2 + $0xb8] sm:$0xc0] %v2261
        %v2263 = vmul.f32 %v665, %v2203
        %v2264 = vmul.f32 %v666, %v2204
        %v2265 = vsub.f32 %v2263, %v2165
        %v2266 = vsub.f32 %v2264, %v2166
        %v2269 = vcombine.high %v2265, %v2265
        %v2270 = vcombine.high %v2266, %v2266
        %v2273 = vpack.c.bf16 %v2265, %v2265
        %v2274 = vpack.c.bf16 %v2269, %v2269
        %v2275 = vpack.c.bf16 %v2266, %v2266
        %v2276 = vpack.c.bf16 %v2270, %v2270
        %v2277 = vld [vmem:[#allocation2 + $0xc0] sm:$0x3]
        %v2278 = vsel %vm652, %v2273, %v2277
        %2279 = vst [vmem:[#allocation2 + $0xc0] sm:$0x3] %v2278
        %v2280 = vld [vmem:[#allocation2 + $0xc8] sm:$0x3]
        %v2281 = vsel %vm652, %v2274, %v2280
        %2282 = vst [vmem:[#allocation2 + $0xc8] sm:$0x3] %v2281
        %v2283 = vld [vmem:[#allocation2 + $0xd0] sm:$0x3]
        %v2284 = vsel %vm652, %v2275, %v2283
        %2285 = vst [vmem:[#allocation2 + $0xd0] sm:$0x3] %v2284
        %v2286 = vld [vmem:[#allocation2 + $0xd8] sm:$0x3]
        %v2287 = vsel %vm652, %v2276, %v2286
        %2288 = vst [vmem:[#allocation2 + $0xd8] sm:$0x3] %v2287
        %v2289 = vmul.f32 %v665, %v2265
        %v2290 = vmul.f32 %v666, %v2266
        %v2291 = vsub.f32 %v2289, %v2203
        %v2292 = vsub.f32 %v2290, %v2204
        %v2295 = vcombine.high %v2291, %v2291
        %v2296 = vcombine.high %v2292, %v2292
        %v2299 = vpack.c.bf16 %v2291, %v2291
        %v2300 = vpack.c.bf16 %v2295, %v2295
        %v2301 = vpack.c.bf16 %v2292, %v2292
        %v2302 = vpack.c.bf16 %v2296, %v2296
        %v2304 = vshrl.u32 %v2299, 16
        %v2306 = vrot.slane %v2304, 6
        %v2307 = vshll.u32 %v2299, 16
        %v2309 = vrot.slane %v2307, 7
        %v2310 = vor.u32 %v2306, %v2309
        %v2312 = vshrl.u32 %v2300, 16
        %v2314 = vrot.slane %v2312, 6
        %v2315 = vshll.u32 %v2300, 16
        %v2317 = vrot.slane %v2315, 7
        %v2318 = vor.u32 %v2314, %v2317
        %v2320 = vshrl.u32 %v2301, 16
        %v2322 = vrot.slane %v2320, 6
        %v2323 = vshll.u32 %v2301, 16
        %v2325 = vrot.slane %v2323, 7
        %v2326 = vor.u32 %v2322, %v2325
        %v2328 = vshrl.u32 %v2302, 16
        %v2330 = vrot.slane %v2328, 6
        %v2331 = vshll.u32 %v2302, 16
        %v2333 = vrot.slane %v2331, 7
        %v2334 = vor.u32 %v2330, %v2333
        %v2339 = vld [vmem:[#allocation2 + $0xc0] sm:$0x6]
        %v2340 = vsel %vm719, %v2310, %v2339
        %2341 = vst [vmem:[#allocation2 + $0xc0] sm:$0x6] %v2340
        %v2342 = vld [vmem:[#allocation2 + $0xc8] sm:$0x6]
        %v2343 = vsel %vm719, %v2318, %v2342
        %2344 = vst [vmem:[#allocation2 + $0xc8] sm:$0x6] %v2343
        %v2345 = vld [vmem:[#allocation2 + $0xd0] sm:$0x6]
        %v2346 = vsel %vm719, %v2326, %v2345
        %2347 = vst [vmem:[#allocation2 + $0xd0] sm:$0x6] %v2346
        %v2348 = vld [vmem:[#allocation2 + $0xd8] sm:$0x6]
        %v2349 = vsel %vm719, %v2334, %v2348
        %2350 = vst [vmem:[#allocation2 + $0xd8] sm:$0x6] %v2349
        %v2351 = vmul.f32 %v665, %v2291
        %v2352 = vmul.f32 %v666, %v2292
        %v2353 = vsub.f32 %v2351, %v2265
        %v2354 = vsub.f32 %v2352, %v2266
        %v2357 = vcombine.high %v2353, %v2353
        %v2358 = vcombine.high %v2354, %v2354
        %v2361 = vpack.c.bf16 %v2353, %v2353
        %v2362 = vpack.c.bf16 %v2357, %v2357
        %v2363 = vpack.c.bf16 %v2354, %v2354
        %v2364 = vpack.c.bf16 %v2358, %v2358
        %v2369 = vrot.slane %v2361, 5
        %v2370 = vrot.slane %v2362, 5
        %v2371 = vrot.slane %v2363, 5
        %v2372 = vrot.slane %v2364, 5
        %v2377 = vld [vmem:[#allocation2 + $0xc0] sm:$0x18]
        %v2378 = vsel %vm760, %v2369, %v2377
        %2379 = vst [vmem:[#allocation2 + $0xc0] sm:$0x18] %v2378
        %v2380 = vld [vmem:[#allocation2 + $0xc8] sm:$0x18]
        %v2381 = vsel %vm760, %v2370, %v2380
        %2382 = vst [vmem:[#allocation2 + $0xc8] sm:$0x18] %v2381
        %v2383 = vld [vmem:[#allocation2 + $0xd0] sm:$0x18]
        %v2384 = vsel %vm760, %v2371, %v2383
        %2385 = vst [vmem:[#allocation2 + $0xd0] sm:$0x18] %v2384
        %v2386 = vld [vmem:[#allocation2 + $0xd8] sm:$0x18]
        %v2387 = vsel %vm760, %v2372, %v2386
        %2388 = vst [vmem:[#allocation2 + $0xd8] sm:$0x18] %v2387
        %v2389 = vmul.f32 %v665, %v2353
        %v2390 = vmul.f32 %v666, %v2354
        %v2391 = vsub.f32 %v2389, %v2291
        %v2392 = vsub.f32 %v2390, %v2292
        %v2395 = vcombine.high %v2391, %v2391
        %v2396 = vcombine.high %v2392, %v2392
        %v2399 = vpack.c.bf16 %v2391, %v2391
        %v2400 = vpack.c.bf16 %v2395, %v2395
        %v2401 = vpack.c.bf16 %v2392, %v2392
        %v2402 = vpack.c.bf16 %v2396, %v2396
        %v2404 = vshrl.u32 %v2399, 16
        %v2406 = vrot.slane %v2404, 3
        %v2407 = vshll.u32 %v2399, 16
        %v2409 = vrot.slane %v2407, 4
        %v2410 = vor.u32 %v2406, %v2409
        %v2412 = vshrl.u32 %v2400, 16
        %v2414 = vrot.slane %v2412, 3
        %v2415 = vshll.u32 %v2400, 16
        %v2417 = vrot.slane %v2415, 4
        %v2418 = vor.u32 %v2414, %v2417
        %v2420 = vshrl.u32 %v2401, 16
        %v2422 = vrot.slane %v2420, 3
        %v2423 = vshll.u32 %v2401, 16
        %v2425 = vrot.slane %v2423, 4
        %v2426 = vor.u32 %v2422, %v2425
        %v2428 = vshrl.u32 %v2402, 16
        %v2430 = vrot.slane %v2428, 3
        %v2431 = vshll.u32 %v2402, 16
        %v2433 = vrot.slane %v2431, 4
        %v2434 = vor.u32 %v2430, %v2433
        %v2439 = vld [vmem:[#allocation2 + $0xc0] sm:$0x30]
        %v2440 = vsel %vm825, %v2410, %v2439
        %2441 = vst [vmem:[#allocation2 + $0xc0] sm:$0x30] %v2440
        %v2442 = vld [vmem:[#allocation2 + $0xc8] sm:$0x30]
        %v2443 = vsel %vm825, %v2418, %v2442
        %2444 = vst [vmem:[#allocation2 + $0xc8] sm:$0x30] %v2443
        %v2445 = vld [vmem:[#allocation2 + $0xd0] sm:$0x30]
        %v2446 = vsel %vm825, %v2426, %v2445
        %2447 = vst [vmem:[#allocation2 + $0xd0] sm:$0x30] %v2446
        %v2448 = vld [vmem:[#allocation2 + $0xd8] sm:$0x30]
        %v2449 = vsel %vm825, %v2434, %v2448
        %2450 = vst [vmem:[#allocation2 + $0xd8] sm:$0x30] %v2449
        %v2451 = vmul.f32 %v665, %v2391
        %v2452 = vmul.f32 %v666, %v2392
        %v2453 = vsub.f32 %v2451, %v2353
        %v2454 = vsub.f32 %v2452, %v2354
        %v2457 = vcombine.high %v2453, %v2453
        %v2458 = vcombine.high %v2454, %v2454
        %v2461 = vpack.c.bf16 %v2453, %v2453
        %v2462 = vpack.c.bf16 %v2457, %v2457
        %v2463 = vpack.c.bf16 %v2454, %v2454
        %v2464 = vpack.c.bf16 %v2458, %v2458
        %v2469 = vrot.slane %v2461, 2
        %v2470 = vrot.slane %v2462, 2
        %v2471 = vrot.slane %v2463, 2
        %v2472 = vrot.slane %v2464, 2
        %v2477 = vld [vmem:[#allocation2 + $0xc0] sm:$0xc0]
        %v2478 = vsel %vm866, %v2469, %v2477
        %2479 = vst [vmem:[#allocation2 + $0xc0] sm:$0xc0] %v2478
        %v2480 = vld [vmem:[#allocation2 + $0xc8] sm:$0xc0]
        %v2481 = vsel %vm866, %v2470, %v2480
        %2482 = vst [vmem:[#allocation2 + $0xc8] sm:$0xc0] %v2481
        %v2483 = vld [vmem:[#allocation2 + $0xd0] sm:$0xc0]
        %v2484 = vsel %vm866, %v2471, %v2483
        %2485 = vst [vmem:[#allocation2 + $0xd0] sm:$0xc0] %v2484
        %v2486 = vld [vmem:[#allocation2 + $0xd8] sm:$0xc0]
        %v2487 = vsel %vm866, %v2472, %v2486
        %2488 = vst [vmem:[#allocation2 + $0xd8] sm:$0xc0] %v2487
        %v2489 = vmul.f32 %v665, %v2453
        %v2490 = vmul.f32 %v666, %v2454
        %v2491 = vsub.f32 %v2489, %v2391
        %v2492 = vsub.f32 %v2490, %v2392
        %v2495 = vcombine.high %v2491, %v2491
        %v2496 = vcombine.high %v2492, %v2492
        %v2499 = vpack.c.bf16 %v2491, %v2491
        %v2500 = vpack.c.bf16 %v2495, %v2495
        %v2501 = vpack.c.bf16 %v2492, %v2492
        %v2502 = vpack.c.bf16 %v2496, %v2496
        %v2504 = vshll.u32 %v2499, 16
        %v2506 = vrot.slane %v2504, 1
        %v2508 = vshll.u32 %v2500, 16
        %v2510 = vrot.slane %v2508, 1
        %v2512 = vshll.u32 %v2501, 16
        %v2514 = vrot.slane %v2512, 1
        %v2516 = vshll.u32 %v2502, 16
        %v2518 = vrot.slane %v2516, 1
        %v2519 = vshrl.u32 %v2499, 16
        %v2521 = vor.u32 %v2519, %v2506
        %v2522 = vshrl.u32 %v2500, 16
        %v2524 = vor.u32 %v2522, %v2510
        %v2525 = vshrl.u32 %v2501, 16
        %v2527 = vor.u32 %v2525, %v2514
        %v2528 = vshrl.u32 %v2502, 16
        %v2530 = vor.u32 %v2528, %v2518
        %v2539 = vld [vmem:[#allocation2 + $0xc0] sm:$0x80]
        %v2540 = vsel %vm931, %v2506, %v2539
        %2541 = vst [vmem:[#allocation2 + $0xc0] sm:$0x80] %v2540
        %v2542 = vld [vmem:[#allocation2 + $0xc8] sm:$0x80]
        %v2543 = vsel %vm931, %v2510, %v2542
        %2544 = vst [vmem:[#allocation2 + $0xc8] sm:$0x80] %v2543
        %v2545 = vld [vmem:[#allocation2 + $0xd0] sm:$0x80]
        %v2546 = vsel %vm931, %v2514, %v2545
        %2547 = vst [vmem:[#allocation2 + $0xd0] sm:$0x80] %v2546
        %v2548 = vld [vmem:[#allocation2 + $0xd8] sm:$0x80]
        %v2549 = vsel %vm931, %v2518, %v2548
        %2550 = vst [vmem:[#allocation2 + $0xd8] sm:$0x80] %v2549
        %2551 = vst [vmem:[#allocation2 + $0xe0] sm:$0x1] %v2521
        %2552 = vst [vmem:[#allocation2 + $0xe8] sm:$0x1] %v2524
        %2553 = vst [vmem:[#allocation2 + $0xf0] sm:$0x1] %v2527
        %2554 = vst [vmem:[#allocation2 + $0xf8] sm:$0x1] %v2530
        %v2555 = vmul.f32 %v665, %v2491
        %v2556 = vmul.f32 %v666, %v2492
        %v2557 = vsub.f32 %v2555, %v2453
        %v2558 = vsub.f32 %v2556, %v2454
        %v2561 = vcombine.high %v2557, %v2557
        %v2562 = vcombine.high %v2558, %v2558
        %v2565 = vpack.c.bf16 %v2557, %v2557
        %v2566 = vpack.c.bf16 %v2561, %v2561
        %v2567 = vpack.c.bf16 %v2558, %v2558
        %v2568 = vpack.c.bf16 %v2562, %v2562
        %v2573 = vrot.slane %v2565, 7
        %v2574 = vrot.slane %v2566, 7
        %v2575 = vrot.slane %v2567, 7
        %v2576 = vrot.slane %v2568, 7
        %v2581 = vld [vmem:[#allocation2 + $0xe0] sm:$0x6]
        %v2582 = vsel %vm975, %v2573, %v2581
        %2583 = vst [vmem:[#allocation2 + $0xe0] sm:$0x6] %v2582
        %v2584 = vld [vmem:[#allocation2 + $0xe8] sm:$0x6]
        %v2585 = vsel %vm975, %v2574, %v2584
        %2586 = vst [vmem:[#allocation2 + $0xe8] sm:$0x6] %v2585
        %v2587 = vld [vmem:[#allocation2 + $0xf0] sm:$0x6]
        %v2588 = vsel %vm975, %v2575, %v2587
        %2589 = vst [vmem:[#allocation2 + $0xf0] sm:$0x6] %v2588
        %v2590 = vld [vmem:[#allocation2 + $0xf8] sm:$0x6]
        %v2591 = vsel %vm975, %v2576, %v2590
        %2592 = vst [vmem:[#allocation2 + $0xf8] sm:$0x6] %v2591
        %v2593 = vmul.f32 %v665, %v2557
        %v2594 = vmul.f32 %v666, %v2558
        %v2595 = vsub.f32 %v2593, %v2491
        %v2596 = vsub.f32 %v2594, %v2492
        %v2599 = vcombine.high %v2595, %v2595
        %v2600 = vcombine.high %v2596, %v2596
        %v2603 = vpack.c.bf16 %v2595, %v2595
        %v2604 = vpack.c.bf16 %v2599, %v2599
        %v2605 = vpack.c.bf16 %v2596, %v2596
        %v2606 = vpack.c.bf16 %v2600, %v2600
        %v2608 = vshrl.u32 %v2603, 16
        %v2610 = vrot.slane %v2608, 5
        %v2611 = vshll.u32 %v2603, 16
        %v2613 = vrot.slane %v2611, 6
        %v2614 = vor.u32 %v2610, %v2613
        %v2616 = vshrl.u32 %v2604, 16
        %v2618 = vrot.slane %v2616, 5
        %v2619 = vshll.u32 %v2604, 16
        %v2621 = vrot.slane %v2619, 6
        %v2622 = vor.u32 %v2618, %v2621
        %v2624 = vshrl.u32 %v2605, 16
        %v2626 = vrot.slane %v2624, 5
        %v2627 = vshll.u32 %v2605, 16
        %v2629 = vrot.slane %v2627, 6
        %v2630 = vor.u32 %v2626, %v2629
        %v2632 = vshrl.u32 %v2606, 16
        %v2634 = vrot.slane %v2632, 5
        %v2635 = vshll.u32 %v2606, 16
        %v2637 = vrot.slane %v2635, 6
        %v2638 = vor.u32 %v2634, %v2637
        %v2643 = vld [vmem:[#allocation2 + $0xe0] sm:$0xc]
        %v2644 = vsel %vm1040, %v2614, %v2643
        %2645 = vst [vmem:[#allocation2 + $0xe0] sm:$0xc] %v2644
        %v2646 = vld [vmem:[#allocation2 + $0xe8] sm:$0xc]
        %v2647 = vsel %vm1040, %v2622, %v2646
        %2648 = vst [vmem:[#allocation2 + $0xe8] sm:$0xc] %v2647
        %v2649 = vld [vmem:[#allocation2 + $0xf0] sm:$0xc]
        %v2650 = vsel %vm1040, %v2630, %v2649
        %2651 = vst [vmem:[#allocation2 + $0xf0] sm:$0xc] %v2650
        %v2652 = vld [vmem:[#allocation2 + $0xf8] sm:$0xc]
        %v2653 = vsel %vm1040, %v2638, %v2652
        %2654 = vst [vmem:[#allocation2 + $0xf8] sm:$0xc] %v2653
        %2655 = vst [vmem:[#allocation2 + $0xe0] sm:$0xf0] 0
        %2656 = vst [vmem:[#allocation2 + $0xe8] sm:$0xf0] 0
        %2657 = vst [vmem:[#allocation2 + $0xf0] sm:$0xf0] 0
        %2658 = vst [vmem:[#allocation2 + $0xf8] sm:$0xf0] 0
        %v2659 = vld [vmem:[%s1] sm:$0xf]
        %v2660 = vld [vmem:[%s1 + $0x4] sm:$0xf]
        %v2661 = vld [vmem:[%s1 + $0x8] sm:$0xf]
        %v2662 = vld [vmem:[%s1 + $0xc] sm:$0xf]
        %v2663 = vld [vmem:[%s1 + $0x10] sm:$0xf]
        %v2664 = vld [vmem:[%s1 + $0x14] sm:$0xf]
        %v2665 = vld [vmem:[%s1 + $0x18] sm:$0xf]
        %v2666 = vld [vmem:[%s1 + $0x1c] sm:$0xf]
        %v2667 = vld [vmem:[%s1 + $0x20] sm:$0xf]
        %v2668 = vld [vmem:[%s1 + $0x24] sm:$0xf]
        %v2669 = vld [vmem:[%s1 + $0x28] sm:$0xf]
        %v2670 = vld [vmem:[%s1 + $0x2c] sm:$0xf]
        %v2671 = vld [vmem:[%s1 + $0x30] sm:$0xf]
        %v2672 = vld [vmem:[%s1 + $0x34] sm:$0xf]
        %v2673 = vld [vmem:[%s1 + $0x38] sm:$0xf]
        %v2674 = vld [vmem:[%s1 + $0x3c] sm:$0xf]
        %v2675 = vld [vmem:[%s1 + $0x40] sm:$0xf]
        %v2676 = vld [vmem:[%s1 + $0x44] sm:$0xf]
        %v2677 = vld [vmem:[%s1 + $0x48] sm:$0xf]
        %v2678 = vld [vmem:[%s1 + $0x4c] sm:$0xf]
        %v2679 = vld [vmem:[%s1 + $0x50] sm:$0xf]
        %v2680 = vld [vmem:[%s1 + $0x54] sm:$0xf]
        %v2681 = vld [vmem:[%s1 + $0x58] sm:$0xf]
        %v2682 = vld [vmem:[%s1 + $0x5c] sm:$0xf]
        %v2683 = vld [vmem:[%s1 + $0x60] sm:$0xf]
        %v2684 = vld [vmem:[%s1 + $0x64] sm:$0xf]
        %v2685 = vld [vmem:[%s1 + $0x68] sm:$0xf]
        %v2686 = vld [vmem:[%s1 + $0x6c] sm:$0xf]
        %v2687 = vld [vmem:[%s1 + $0x70] sm:$0xf]
        %v2688 = vld [vmem:[%s1 + $0x74] sm:$0xf]
        %v2689 = vld [vmem:[%s1 + $0x78] sm:$0xf]
        %v2690 = vld [vmem:[%s1 + $0x7c] sm:$0xf]
        %v2691 = vld [vmem:[#allocation2] sm:$0xff]
        %v2692 = vld [vmem:[#allocation2 + $0x8] sm:$0xff]
        %v2693 = vld [vmem:[#allocation2 + $0x10] sm:$0xff]
        %v2694 = vld [vmem:[#allocation2 + $0x18] sm:$0xff]
        %v2695 = vld [vmem:[#allocation2 + $0x20] sm:$0xff]
        %v2696 = vld [vmem:[#allocation2 + $0x28] sm:$0xff]
        %v2697 = vld [vmem:[#allocation2 + $0x30] sm:$0xff]
        %v2698 = vld [vmem:[#allocation2 + $0x38] sm:$0xff]
        %v2699 = vld [vmem:[#allocation2 + $0x40] sm:$0xff]
        %v2700 = vld [vmem:[#allocation2 + $0x48] sm:$0xff]
        %v2701 = vld [vmem:[#allocation2 + $0x50] sm:$0xff]
        %v2702 = vld [vmem:[#allocation2 + $0x58] sm:$0xff]
        %v2703 = vld [vmem:[#allocation2 + $0x60] sm:$0xff]
        %v2704 = vld [vmem:[#allocation2 + $0x68] sm:$0xff]
        %v2705 = vld [vmem:[#allocation2 + $0x70] sm:$0xff]
        %v2706 = vld [vmem:[#allocation2 + $0x78] sm:$0xff]
        %v2707 = vld [vmem:[#allocation2 + $0x80] sm:$0xff]
        %v2708 = vld [vmem:[#allocation2 + $0x88] sm:$0xff]
        %v2709 = vld [vmem:[#allocation2 + $0x90] sm:$0xff]
        %v2710 = vld [vmem:[#allocation2 + $0x98] sm:$0xff]
        %v2711 = vld [vmem:[#allocation2 + $0xa0] sm:$0xff]
        %v2712 = vld [vmem:[#allocation2 + $0xa8] sm:$0xff]
        %v2713 = vld [vmem:[#allocation2 + $0xb0] sm:$0xff]
        %v2714 = vld [vmem:[#allocation2 + $0xb8] sm:$0xff]
        %v2715 = vld [vmem:[#allocation2 + $0xc0] sm:$0xff]
        %v2716 = vld [vmem:[#allocation2 + $0xc8] sm:$0xff]
        %v2717 = vld [vmem:[#allocation2 + $0xd0] sm:$0xff]
        %v2718 = vld [vmem:[#allocation2 + $0xd8] sm:$0xff]
        %v2719 = vld [vmem:[#allocation2 + $0xe0] sm:$0xff]
        %v2720 = vld [vmem:[#allocation2 + $0xe8] sm:$0xff]
        %v2721 = vld [vmem:[#allocation2 + $0xf0] sm:$0xff]
        %v2722 = vld [vmem:[#allocation2 + $0xf8] sm:$0xff]
        %v2723 = vld [vmem:[%s2] sm:$0xff]
        %v2724 = vld [vmem:[%s2 + $0x8] sm:$0xff]
        %v2725 = vld [vmem:[%s2 + $0x10] sm:$0xff]
        %v2726 = vld [vmem:[%s2 + $0x18] sm:$0xff]
        %v2727 = vld [vmem:[%s2 + $0x20] sm:$0xff]
        %v2728 = vld [vmem:[%s2 + $0x28] sm:$0xff]
        %v2729 = vld [vmem:[%s2 + $0x30] sm:$0xff]
        %v2730 = vld [vmem:[%s2 + $0x38] sm:$0xff]
        %v2731 = vld [vmem:[%s2 + $0x40] sm:$0xff]
        %v2732 = vld [vmem:[%s2 + $0x48] sm:$0xff]
        %v2733 = vld [vmem:[%s2 + $0x50] sm:$0xff]
        %v2734 = vld [vmem:[%s2 + $0x58] sm:$0xff]
        %v2735 = vld [vmem:[%s2 + $0x60] sm:$0xff]
        %v2736 = vld [vmem:[%s2 + $0x68] sm:$0xff]
        %v2737 = vld [vmem:[%s2 + $0x70] sm:$0xff]
        %v2738 = vld [vmem:[%s2 + $0x78] sm:$0xff]
        %v2739 = vld [vmem:[%s2 + $0x80] sm:$0xff]
        %v2740 = vld [vmem:[%s2 + $0x88] sm:$0xff]
        %v2741 = vld [vmem:[%s2 + $0x90] sm:$0xff]
        %v2742 = vld [vmem:[%s2 + $0x98] sm:$0xff]
        %v2743 = vld [vmem:[%s2 + $0xa0] sm:$0xff]
        %v2744 = vld [vmem:[%s2 + $0xa8] sm:$0xff]
        %v2745 = vld [vmem:[%s2 + $0xb0] sm:$0xff]
        %v2746 = vld [vmem:[%s2 + $0xb8] sm:$0xff]
        %v2747 = vld [vmem:[%s2 + $0xc0] sm:$0xff]
        %v2748 = vld [vmem:[%s2 + $0xc8] sm:$0xff]
        %v2749 = vld [vmem:[%s2 + $0xd0] sm:$0xff]
        %v2750 = vld [vmem:[%s2 + $0xd8] sm:$0xff]
        %v2751 = vld [vmem:[%s2 + $0xe0] sm:$0xff]
        %v2752 = vld [vmem:[%s2 + $0xe8] sm:$0xff]
        %v2753 = vld [vmem:[%s2 + $0xf0] sm:$0xff]
        %v2754 = vld [vmem:[%s2 + $0xf8] sm:$0xff]
        %2756 = vset.pattern.permute.xlu0 0
        %2757 = vperm.xlu0 %2756, %v2723
        %v2758 = vpop.permute.xlu0 %2757
        %2761 = vset.pattern.permute.xlu0 0
        %2762 = vperm.xlu0 %2761, %v2724
        %v2763 = vpop.permute.xlu0 %2762
        %2766 = vset.pattern.permute.xlu0 0
        %2767 = vperm.xlu0 %2766, %v2725
        %v2768 = vpop.permute.xlu0 %2767
        %2771 = vset.pattern.permute.xlu0 0
        %2772 = vperm.xlu0 %2771, %v2726
        %v2773 = vpop.permute.xlu0 %2772
        %2776 = vset.pattern.permute.xlu0 0
        %2777 = vperm.xlu0 %2776, %v2727
        %v2778 = vpop.permute.xlu0 %2777
        %2781 = vset.pattern.permute.xlu0 0
        %2782 = vperm.xlu0 %2781, %v2728
        %v2783 = vpop.permute.xlu0 %2782
        %2786 = vset.pattern.permute.xlu0 0
        %2787 = vperm.xlu0 %2786, %v2729
        %v2788 = vpop.permute.xlu0 %2787
        %2791 = vset.pattern.permute.xlu0 0
        %2792 = vperm.xlu0 %2791, %v2730
        %v2793 = vpop.permute.xlu0 %2792
        %2796 = vset.pattern.permute.xlu0 0
        %2797 = vperm.xlu0 %2796, %v2731
        %v2798 = vpop.permute.xlu0 %2797
        %2801 = vset.pattern.permute.xlu0 0
        %2802 = vperm.xlu0 %2801, %v2732
        %v2803 = vpop.permute.xlu0 %2802
        %2806 = vset.pattern.permute.xlu0 0
        %2807 = vperm.xlu0 %2806, %v2733
        %v2808 = vpop.permute.xlu0 %2807
        %2811 = vset.pattern.permute.xlu0 0
        %2812 = vperm.xlu0 %2811, %v2734
        %v2813 = vpop.permute.xlu0 %2812
        %2816 = vset.pattern.permute.xlu0 0
        %2817 = vperm.xlu0 %2816, %v2735
        %v2818 = vpop.permute.xlu0 %2817
        %2821 = vset.pattern.permute.xlu0 0
        %2822 = vperm.xlu0 %2821, %v2736
        %v2823 = vpop.permute.xlu0 %2822
        %2826 = vset.pattern.permute.xlu0 0
        %2827 = vperm.xlu0 %2826, %v2737
        %v2828 = vpop.permute.xlu0 %2827
        %2831 = vset.pattern.permute.xlu0 0
        %2832 = vperm.xlu0 %2831, %v2738
        %v2833 = vpop.permute.xlu0 %2832
        %2836 = vset.pattern.permute.xlu0 0
        %2837 = vperm.xlu0 %2836, %v2739
        %v2838 = vpop.permute.xlu0 %2837
        %2841 = vset.pattern.permute.xlu0 0
        %2842 = vperm.xlu0 %2841, %v2740
        %v2843 = vpop.permute.xlu0 %2842
        %2846 = vset.pattern.permute.xlu0 0
        %2847 = vperm.xlu0 %2846, %v2741
        %v2848 = vpop.permute.xlu0 %2847
        %2851 = vset.pattern.permute.xlu0 0
        %2852 = vperm.xlu0 %2851, %v2742
        %v2853 = vpop.permute.xlu0 %2852
        %2856 = vset.pattern.permute.xlu0 0
        %2857 = vperm.xlu0 %2856, %v2743
        %v2858 = vpop.permute.xlu0 %2857
        %2861 = vset.pattern.permute.xlu0 0
        %2862 = vperm.xlu0 %2861, %v2744
        %v2863 = vpop.permute.xlu0 %2862
        %2866 = vset.pattern.permute.xlu0 0
        %2867 = vperm.xlu0 %2866, %v2745
        %v2868 = vpop.permute.xlu0 %2867
        %2871 = vset.pattern.permute.xlu0 0
        %2872 = vperm.xlu0 %2871, %v2746
        %v2873 = vpop.permute.xlu0 %2872
        %2876 = vset.pattern.permute.xlu0 0
        %2877 = vperm.xlu0 %2876, %v2747
        %v2878 = vpop.permute.xlu0 %2877
        %2881 = vset.pattern.permute.xlu0 0
        %2882 = vperm.xlu0 %2881, %v2748
        %v2883 = vpop.permute.xlu0 %2882
        %2886 = vset.pattern.permute.xlu0 0
        %2887 = vperm.xlu0 %2886, %v2749
        %v2888 = vpop.permute.xlu0 %2887
        %2891 = vset.pattern.permute.xlu0 0
        %2892 = vperm.xlu0 %2891, %v2750
        %v2893 = vpop.permute.xlu0 %2892
        %2896 = vset.pattern.permute.xlu0 0
        %2897 = vperm.xlu0 %2896, %v2751
        %v2898 = vpop.permute.xlu0 %2897
        %2901 = vset.pattern.permute.xlu0 0
        %2902 = vperm.xlu0 %2901, %v2752
        %v2903 = vpop.permute.xlu0 %2902
        %2906 = vset.pattern.permute.xlu0 0
        %2907 = vperm.xlu0 %2906, %v2753
        %v2908 = vpop.permute.xlu0 %2907
        %2911 = vset.pattern.permute.xlu0 0
        %2912 = vperm.xlu0 %2911, %v2754
        %v2913 = vpop.permute.xlu0 %2912
        %v2947 = vunpack.c.l.b16 %v2659
        %v2948 = vunpack.c.l.b16 %v2660
        %v2949 = vunpack.c.l.b16 %v2661
        %v2950 = vunpack.c.l.b16 %v2662
        %v2951 = vunpack.c.l.b16 %v2663
        %v2952 = vunpack.c.l.b16 %v2664
        %v2953 = vunpack.c.l.b16 %v2665
        %v2954 = vunpack.c.l.b16 %v2666
        %v2955 = vunpack.c.l.b16 %v2667
        %v2956 = vunpack.c.l.b16 %v2668
        %v2957 = vunpack.c.l.b16 %v2669
        %v2958 = vunpack.c.l.b16 %v2670
        %v2959 = vunpack.c.l.b16 %v2671
        %v2960 = vunpack.c.l.b16 %v2672
        %v2961 = vunpack.c.l.b16 %v2673
        %v2962 = vunpack.c.l.b16 %v2674
        %v2963 = vunpack.c.l.b16 %v2675
        %v2964 = vunpack.c.l.b16 %v2676
        %v2965 = vunpack.c.l.b16 %v2677
        %v2966 = vunpack.c.l.b16 %v2678
        %v2967 = vunpack.c.l.b16 %v2679
        %v2968 = vunpack.c.l.b16 %v2680
        %v2969 = vunpack.c.l.b16 %v2681
        %v2970 = vunpack.c.l.b16 %v2682
        %v2971 = vunpack.c.l.b16 %v2683
        %v2972 = vunpack.c.l.b16 %v2684
        %v2973 = vunpack.c.l.b16 %v2685
        %v2974 = vunpack.c.l.b16 %v2686
        %v2975 = vunpack.c.l.b16 %v2687
        %v2976 = vunpack.c.l.b16 %v2688
        %v2977 = vunpack.c.l.b16 %v2689
        %v2978 = vunpack.c.l.b16 %v2690
        %v2979 = vpack.c.b16 %v2948, %v2947
        %v2980 = vpack.c.b16 %v2950, %v2949
        %v2981 = vpack.c.b16 %v2952, %v2951
        %v2982 = vpack.c.b16 %v2954, %v2953
        %v2983 = vpack.c.b16 %v2956, %v2955
        %v2984 = vpack.c.b16 %v2958, %v2957
        %v2985 = vpack.c.b16 %v2960, %v2959
        %v2986 = vpack.c.b16 %v2962, %v2961
        %v2987 = vpack.c.b16 %v2964, %v2963
        %v2988 = vpack.c.b16 %v2966, %v2965
        %v2989 = vpack.c.b16 %v2968, %v2967
        %v2990 = vpack.c.b16 %v2970, %v2969
        %v2991 = vpack.c.b16 %v2972, %v2971
        %v2992 = vpack.c.b16 %v2974, %v2973
        %v2993 = vpack.c.b16 %v2976, %v2975
        %v2994 = vpack.c.b16 %v2978, %v2977
        %3011 = vmatprep.subr.bf16.mxu0 %v2692
        %3012 = vmatpush1.bf16.msra.mxu0 %v2691
        %3013 = vmatprep.subr.bf16.mxu0 %v2696
        %3014 = vmatpush1.bf16.msra.mxu0 %v2695
        %3015 = vmatprep.subr.bf16.mxu0 %v2700
        %3016 = vmatpush1.bf16.msra.mxu0 %v2699
        %3017 = vmatprep.subr.bf16.mxu0 %v2704
        %3018 = vmatpush1.bf16.msra.mxu0 %v2703
        %3019 = vmatprep.subr.bf16.mxu0 %v2708
        %3020 = vmatpush1.bf16.msra.mxu0 %v2707
        %3021 = vmatprep.subr.bf16.mxu0 %v2712
        %3022 = vmatpush1.bf16.msra.mxu0 %v2711
        %3023 = vmatprep.subr.bf16.mxu0 %v2716
        %3024 = vmatpush1.bf16.msra.mxu0 %v2715
        %3025 = vmatprep.subr.bf16.mxu0 %v2720
        %3026 = vmatpush1.bf16.msra.mxu0 %v2719
        %3027 = vmatprep.subr.bf16.mxu0 0
        %3028 = vmatpush1.bf16.msra.mxu0 0
        %3029 = vmatprep.subr.bf16.mxu0 0
        %3030 = vmatpush1.bf16.msra.mxu0 0
        %3031 = vmatprep.subr.bf16.mxu0 0
        %3032 = vmatpush1.bf16.msra.mxu0 0
        %3033 = vmatprep.subr.bf16.mxu0 0
        %3034 = vmatpush1.bf16.msra.mxu0 0
        %3035 = vmatprep.subr.bf16.mxu0 0
        %3036 = vmatpush1.bf16.msra.mxu0 0
        %3037 = vmatprep.subr.bf16.mxu0 0
        %3038 = vmatpush1.bf16.msra.mxu0 0
        %3039 = vmatprep.subr.bf16.mxu0 0
        %3040 = vmatpush1.bf16.msra.mxu0 0
        %3041 = vmatprep.subr.bf16.mxu0 0
        %3042 = vmatpush1.bf16.msra.mxu0 0
        %3043 = vmatprep.mubr.bf16.mxu0 0
        %3044 = vmatmul.mubr.bf16.gmra.mrb[0].mxu0 %v2979
        %v3045 = vpop.f32.mrb[0].mxu0
        %v3046 = vadd.f32 %v2758, %v3045
        %v3047 = vpop.f32.mrb[0].mxu0
        %v3048 = vadd.f32 %v2758, %v3047
        %v3049 = vpop.f32.mrb[0].mxu0
        %v3050 = vadd.f32 %v2763, %v3049
        %v3051 = vpop.f32.mrb[0].mxu0
        %v3052 = vadd.f32 %v2763, %v3051
        %3053 = vmatprep.mubr.bf16.mxu0 0
        %3054 = vmatmul.mubr.bf16.gmra.mrb[0].mxu0 %v2980
        %v3055 = vpop.f32.mrb[0].mxu0
        %v3056 = vadd.f32 %v2768, %v3055
        %v3057 = vpop.f32.mrb[0].mxu0
        %v3058 = vadd.f32 %v2768, %v3057
        %v3059 = vpop.f32.mrb[0].mxu0
        %v3060 = vadd.f32 %v2773, %v3059
        %v3061 = vpop.f32.mrb[0].mxu0
        %v3062 = vadd.f32 %v2773, %v3061
        %3063 = vmatprep.mubr.bf16.mxu0 0
        %3064 = vmatmul.mubr.bf16.gmra.mrb[0].mxu0 %v2981
        %v3065 = vpop.f32.mrb[0].mxu0
        %v3066 = vadd.f32 %v2778, %v3065
        %v3067 = vpop.f32.mrb[0].mxu0
        %v3068 = vadd.f32 %v2778, %v3067
        %v3069 = vpop.f32.mrb[0].mxu0
        %v3070 = vadd.f32 %v2783, %v3069
        %v3071 = vpop.f32.mrb[0].mxu0
        %v3072 = vadd.f32 %v2783, %v3071
        %3073 = vmatprep.mubr.bf16.mxu0 0
        %3074 = vmatmul.mubr.bf16.gmra.mrb[0].mxu0 %v2982
        %v3075 = vpop.f32.mrb[0].mxu0
        %v3076 = vadd.f32 %v2788, %v3075
        %v3077 = vpop.f32.mrb[0].mxu0
        %v3078 = vadd.f32 %v2788, %v3077
        %v3079 = vpop.f32.mrb[0].mxu0
        %v3080 = vadd.f32 %v2793, %v3079
        %v3081 = vpop.f32.mrb[0].mxu0
        %v3082 = vadd.f32 %v2793, %v3081
        %3083 = vmatprep.mubr.bf16.mxu0 0
        %3084 = vmatmul.mubr.bf16.gmra.mrb[0].mxu0 %v2983
        %v3085 = vpop.f32.mrb[0].mxu0
        %v3086 = vadd.f32 %v2798, %v3085
        %v3087 = vpop.f32.mrb[0].mxu0
        %v3088 = vadd.f32 %v2798, %v3087
        %v3089 = vpop.f32.mrb[0].mxu0
        %v3090 = vadd.f32 %v2803, %v3089
        %v3091 = vpop.f32.mrb[0].mxu0
        %v3092 = vadd.f32 %v2803, %v3091
        %3093 = vmatprep.mubr.bf16.mxu0 0
        %3094 = vmatmul.mubr.bf16.gmra.mrb[0].mxu0 %v2984
        %v3095 = vpop.f32.mrb[0].mxu0
        %v3096 = vadd.f32 %v2808, %v3095
        %v3097 = vpop.f32.mrb[0].mxu0
        %v3098 = vadd.f32 %v2808, %v3097
        %v3099 = vpop.f32.mrb[0].mxu0
        %v3100 = vadd.f32 %v2813, %v3099
        %v3101 = vpop.f32.mrb[0].mxu0
        %v3102 = vadd.f32 %v2813, %v3101
        %3103 = vmatprep.mubr.bf16.mxu0 0
        %3104 = vmatmul.mubr.bf16.gmra.mrb[0].mxu0 %v2985
        %v3105 = vpop.f32.mrb[0].mxu0
        %v3106 = vadd.f32 %v2818, %v3105
        %v3107 = vpop.f32.mrb[0].mxu0
        %v3108 = vadd.f32 %v2818, %v3107
        %v3109 = vpop.f32.mrb[0].mxu0
        %v3110 = vadd.f32 %v2823, %v3109
        %v3111 = vpop.f32.mrb[0].mxu0
        %v3112 = vadd.f32 %v2823, %v3111
        %3113 = vmatprep.mubr.bf16.mxu0 0
        %3114 = vmatmul.mubr.bf16.gmra.mrb[0].mxu0 %v2986
        %v3115 = vpop.f32.mrb[0].mxu0
        %v3116 = vadd.f32 %v2828, %v3115
        %v3117 = vpop.f32.mrb[0].mxu0
        %v3118 = vadd.f32 %v2828, %v3117
        %v3119 = vpop.f32.mrb[0].mxu0
        %v3120 = vadd.f32 %v2833, %v3119
        %v3121 = vpop.f32.mrb[0].mxu0
        %v3122 = vadd.f32 %v2833, %v3121
        %3123 = vmatprep.mubr.bf16.mxu0 0
        %3124 = vmatmul.mubr.bf16.gmra.mrb[0].mxu0 %v2987
        %v3125 = vpop.f32.mrb[0].mxu0
        %v3126 = vadd.f32 %v2838, %v3125
        %v3127 = vpop.f32.mrb[0].mxu0
        %v3128 = vadd.f32 %v2838, %v3127
        %v3129 = vpop.f32.mrb[0].mxu0
        %v3130 = vadd.f32 %v2843, %v3129
        %v3131 = vpop.f32.mrb[0].mxu0
        %v3132 = vadd.f32 %v2843, %v3131
        %3133 = vmatprep.mubr.bf16.mxu0 0
        %3134 = vmatmul.mubr.bf16.gmra.mrb[0].mxu0 %v2988
        %v3135 = vpop.f32.mrb[0].mxu0
        %v3136 = vadd.f32 %v2848, %v3135
        %v3137 = vpop.f32.mrb[0].mxu0
        %v3138 = vadd.f32 %v2848, %v3137
        %v3139 = vpop.f32.mrb[0].mxu0
        %v3140 = vadd.f32 %v2853, %v3139
        %v3141 = vpop.f32.mrb[0].mxu0
        %v3142 = vadd.f32 %v2853, %v3141
        %3143 = vmatprep.mubr.bf16.mxu0 0
        %3144 = vmatmul.mubr.bf16.gmra.mrb[0].mxu0 %v2989
        %v3145 = vpop.f32.mrb[0].mxu0
        %v3146 = vadd.f32 %v2858, %v3145
        %v3147 = vpop.f32.mrb[0].mxu0
        %v3148 = vadd.f32 %v2858, %v3147
        %v3149 = vpop.f32.mrb[0].mxu0
        %v3150 = vadd.f32 %v2863, %v3149
        %v3151 = vpop.f32.mrb[0].mxu0
        %v3152 = vadd.f32 %v2863, %v3151
        %3153 = vmatprep.mubr.bf16.mxu0 0
        %3154 = vmatmul.mubr.bf16.gmra.mrb[0].mxu0 %v2990
        %v3155 = vpop.f32.mrb[0].mxu0
        %v3156 = vadd.f32 %v2868, %v3155
        %v3157 = vpop.f32.mrb[0].mxu0
        %v3158 = vadd.f32 %v2868, %v3157
        %v3159 = vpop.f32.mrb[0].mxu0
        %v3160 = vadd.f32 %v2873, %v3159
        %v3161 = vpop.f32.mrb[0].mxu0
        %v3162 = vadd.f32 %v2873, %v3161
        %3163 = vmatprep.mubr.bf16.mxu0 0
        %3164 = vmatmul.mubr.bf16.gmra.mrb[0].mxu0 %v2991
        %v3165 = vpop.f32.mrb[0].mxu0
        %v3166 = vadd.f32 %v2878, %v3165
        %v3167 = vpop.f32.mrb[0].mxu0
        %v3168 = vadd.f32 %v2878, %v3167
        %v3169 = vpop.f32.mrb[0].mxu0
        %v3170 = vadd.f32 %v2883, %v3169
        %v3171 = vpop.f32.mrb[0].mxu0
        %v3172 = vadd.f32 %v2883, %v3171
        %3173 = vmatprep.mubr.bf16.mxu0 0
        %3174 = vmatmul.mubr.bf16.gmra.mrb[0].mxu0 %v2992
        %v3175 = vpop.f32.mrb[0].mxu0
        %v3176 = vadd.f32 %v2888, %v3175
        %v3177 = vpop.f32.mrb[0].mxu0
        %v3178 = vadd.f32 %v2888, %v3177
        %v3179 = vpop.f32.mrb[0].mxu0
        %v3180 = vadd.f32 %v2893, %v3179
        %v3181 = vpop.f32.mrb[0].mxu0
        %v3182 = vadd.f32 %v2893, %v3181
        %3183 = vmatprep.mubr.bf16.mxu0 0
        %3184 = vmatmul.mubr.bf16.gmra.mrb[0].mxu0 %v2993
        %v3185 = vpop.f32.mrb[0].mxu0
        %v3186 = vadd.f32 %v2898, %v3185
        %v3187 = vpop.f32.mrb[0].mxu0
        %v3188 = vadd.f32 %v2898, %v3187
        %v3189 = vpop.f32.mrb[0].mxu0
        %v3190 = vadd.f32 %v2903, %v3189
        %v3191 = vpop.f32.mrb[0].mxu0
        %v3192 = vadd.f32 %v2903, %v3191
        %3193 = vmatprep.mubr.bf16.mxu0 0
        %3194 = vmatmul.mubr.bf16.gmra.mrb[0].mxu0 %v2994
        %v3195 = vpop.f32.mrb[0].mxu0
        %v3196 = vadd.f32 %v2908, %v3195
        %v3197 = vpop.f32.mrb[0].mxu0
        %v3198 = vadd.f32 %v2908, %v3197
        %v3199 = vpop.f32.mrb[0].mxu0
        %v3200 = vadd.f32 %v2913, %v3199
        %v3201 = vpop.f32.mrb[0].mxu0
        %v3202 = vadd.f32 %v2913, %v3201
        %3203 = vdwg.mxu0
        %3204 = vmatprep.subr.bf16.mxu0 %v2694
        %3205 = vmatpush1.bf16.msra.mxu0 %v2693
        %3206 = vmatprep.subr.bf16.mxu0 %v2698
        %3207 = vmatpush1.bf16.msra.mxu0 %v2697
        %3208 = vmatprep.subr.bf16.mxu0 %v2702
        %3209 = vmatpush1.bf16.msra.mxu0 %v2701
        %3210 = vmatprep.subr.bf16.mxu0 %v2706
        %3211 = vmatpush1.bf16.msra.mxu0 %v2705
        %3212 = vmatprep.subr.bf16.mxu0 %v2710
        %3213 = vmatpush1.bf16.msra.mxu0 %v2709
        %3214 = vmatprep.subr.bf16.mxu0 %v2714
        %3215 = vmatpush1.bf16.msra.mxu0 %v2713
        %3216 = vmatprep.subr.bf16.mxu0 %v2718
        %3217 = vmatpush1.bf16.msra.mxu0 %v2717
        %3218 = vmatprep.subr.bf16.mxu0 %v2722
        %3219 = vmatpush1.bf16.msra.mxu0 %v2721
        %3220 = vmatprep.subr.bf16.mxu0 0
        %3221 = vmatpush1.bf16.msra.mxu0 0
        %3222 = vmatprep.subr.bf16.mxu0 0
        %3223 = vmatpush1.bf16.msra.mxu0 0
        %3224 = vmatprep.subr.bf16.mxu0 0
        %3225 = vmatpush1.bf16.msra.mxu0 0
        %3226 = vmatprep.subr.bf16.mxu0 0
        %3227 = vmatpush1.bf16.msra.mxu0 0
        %3228 = vmatprep.subr.bf16.mxu0 0
        %3229 = vmatpush1.bf16.msra.mxu0 0
        %3230 = vmatprep.subr.bf16.mxu0 0
        %3231 = vmatpush1.bf16.msra.mxu0 0
        %3232 = vmatprep.subr.bf16.mxu0 0
        %3233 = vmatpush1.bf16.msra.mxu0 0
        %3234 = vmatprep.subr.bf16.mxu0 0
        %3235 = vmatpush1.bf16.msra.mxu0 0
        %3236 = vmatprep.mubr.bf16.mxu0 0
        %3237 = vmatmul.mubr.bf16.gmra.mrb[0].mxu0 %v2979
        %v3238 = vpop.f32.mrb[0].mxu0
        %v3239 = vadd.f32 %v2758, %v3238
        %v3240 = vpop.f32.mrb[0].mxu0
        %v3241 = vadd.f32 %v2758, %v3240
        %v3242 = vpop.f32.mrb[0].mxu0
        %v3243 = vadd.f32 %v2763, %v3242
        %v3244 = vpop.f32.mrb[0].mxu0
        %v3245 = vadd.f32 %v2763, %v3244
        %3246 = vmatprep.mubr.bf16.mxu0 0
        %3247 = vmatmul.mubr.bf16.gmra.mrb[0].mxu0 %v2980
        %v3248 = vpop.f32.mrb[0].mxu0
        %v3249 = vadd.f32 %v2768, %v3248
        %v3250 = vpop.f32.mrb[0].mxu0
        %v3251 = vadd.f32 %v2768, %v3250
        %v3252 = vpop.f32.mrb[0].mxu0
        %v3253 = vadd.f32 %v2773, %v3252
        %v3254 = vpop.f32.mrb[0].mxu0
        %v3255 = vadd.f32 %v2773, %v3254
        %3256 = vmatprep.mubr.bf16.mxu0 0
        %3257 = vmatmul.mubr.bf16.gmra.mrb[0].mxu0 %v2981
        %v3258 = vpop.f32.mrb[0].mxu0
        %v3259 = vadd.f32 %v2778, %v3258
        %v3260 = vpop.f32.mrb[0].mxu0
        %v3261 = vadd.f32 %v2778, %v3260
        %v3262 = vpop.f32.mrb[0].mxu0
        %v3263 = vadd.f32 %v2783, %v3262
        %v3264 = vpop.f32.mrb[0].mxu0
        %v3265 = vadd.f32 %v2783, %v3264
        %3266 = vmatprep.mubr.bf16.mxu0 0
        %3267 = vmatmul.mubr.bf16.gmra.mrb[0].mxu0 %v2982
        %v3268 = vpop.f32.mrb[0].mxu0
        %v3269 = vadd.f32 %v2788, %v3268
        %v3270 = vpop.f32.mrb[0].mxu0
        %v3271 = vadd.f32 %v2788, %v3270
        %v3272 = vpop.f32.mrb[0].mxu0
        %v3273 = vadd.f32 %v2793, %v3272
        %v3274 = vpop.f32.mrb[0].mxu0
        %v3275 = vadd.f32 %v2793, %v3274
        %3276 = vmatprep.mubr.bf16.mxu0 0
        %3277 = vmatmul.mubr.bf16.gmra.mrb[0].mxu0 %v2983
        %v3278 = vpop.f32.mrb[0].mxu0
        %v3279 = vadd.f32 %v2798, %v3278
        %v3280 = vpop.f32.mrb[0].mxu0
        %v3281 = vadd.f32 %v2798, %v3280
        %v3282 = vpop.f32.mrb[0].mxu0
        %v3283 = vadd.f32 %v2803, %v3282
        %v3284 = vpop.f32.mrb[0].mxu0
        %v3285 = vadd.f32 %v2803, %v3284
        %3286 = vmatprep.mubr.bf16.mxu0 0
        %3287 = vmatmul.mubr.bf16.gmra.mrb[0].mxu0 %v2984
        %v3288 = vpop.f32.mrb[0].mxu0
        %v3289 = vadd.f32 %v2808, %v3288
        %v3290 = vpop.f32.mrb[0].mxu0
        %v3291 = vadd.f32 %v2808, %v3290
        %v3292 = vpop.f32.mrb[0].mxu0
        %v3293 = vadd.f32 %v2813, %v3292
        %v3294 = vpop.f32.mrb[0].mxu0
        %v3295 = vadd.f32 %v2813, %v3294
        %3296 = vmatprep.mubr.bf16.mxu0 0
        %3297 = vmatmul.mubr.bf16.gmra.mrb[0].mxu0 %v2985
        %v3298 = vpop.f32.mrb[0].mxu0
        %v3299 = vadd.f32 %v2818, %v3298
        %v3300 = vpop.f32.mrb[0].mxu0
        %v3301 = vadd.f32 %v2818, %v3300
        %v3302 = vpop.f32.mrb[0].mxu0
        %v3303 = vadd.f32 %v2823, %v3302
        %v3304 = vpop.f32.mrb[0].mxu0
        %v3305 = vadd.f32 %v2823, %v3304
        %3306 = vmatprep.mubr.bf16.mxu0 0
        %3307 = vmatmul.mubr.bf16.gmra.mrb[0].mxu0 %v2986
        %v3308 = vpop.f32.mrb[0].mxu0
        %v3309 = vadd.f32 %v2828, %v3308
        %v3310 = vpop.f32.mrb[0].mxu0
        %v3311 = vadd.f32 %v2828, %v3310
        %v3312 = vpop.f32.mrb[0].mxu0
        %v3313 = vadd.f32 %v2833, %v3312
        %v3314 = vpop.f32.mrb[0].mxu0
        %v3315 = vadd.f32 %v2833, %v3314
        %3316 = vmatprep.mubr.bf16.mxu0 0
        %3317 = vmatmul.mubr.bf16.gmra.mrb[0].mxu0 %v2987
        %v3318 = vpop.f32.mrb[0].mxu0
        %v3319 = vadd.f32 %v2838, %v3318
        %v3320 = vpop.f32.mrb[0].mxu0
        %v3321 = vadd.f32 %v2838, %v3320
        %v3322 = vpop.f32.mrb[0].mxu0
        %v3323 = vadd.f32 %v2843, %v3322
        %v3324 = vpop.f32.mrb[0].mxu0
        %v3325 = vadd.f32 %v2843, %v3324
        %3326 = vmatprep.mubr.bf16.mxu0 0
        %3327 = vmatmul.mubr.bf16.gmra.mrb[0].mxu0 %v2988
        %v3328 = vpop.f32.mrb[0].mxu0
        %v3329 = vadd.f32 %v2848, %v3328
        %v3330 = vpop.f32.mrb[0].mxu0
        %v3331 = vadd.f32 %v2848, %v3330
        %v3332 = vpop.f32.mrb[0].mxu0
        %v3333 = vadd.f32 %v2853, %v3332
        %v3334 = vpop.f32.mrb[0].mxu0
        %v3335 = vadd.f32 %v2853, %v3334
        %3336 = vmatprep.mubr.bf16.mxu0 0
        %3337 = vmatmul.mubr.bf16.gmra.mrb[0].mxu0 %v2989
        %v3338 = vpop.f32.mrb[0].mxu0
        %v3339 = vadd.f32 %v2858, %v3338
        %v3340 = vpop.f32.mrb[0].mxu0
        %v3341 = vadd.f32 %v2858, %v3340
        %v3342 = vpop.f32.mrb[0].mxu0
        %v3343 = vadd.f32 %v2863, %v3342
        %v3344 = vpop.f32.mrb[0].mxu0
        %v3345 = vadd.f32 %v2863, %v3344
        %3346 = vmatprep.mubr.bf16.mxu0 0
        %3347 = vmatmul.mubr.bf16.gmra.mrb[0].mxu0 %v2990
        %v3348 = vpop.f32.mrb[0].mxu0
        %v3349 = vadd.f32 %v2868, %v3348
        %v3350 = vpop.f32.mrb[0].mxu0
        %v3351 = vadd.f32 %v2868, %v3350
        %v3352 = vpop.f32.mrb[0].mxu0
        %v3353 = vadd.f32 %v2873, %v3352
        %v3354 = vpop.f32.mrb[0].mxu0
        %v3355 = vadd.f32 %v2873, %v3354
        %3356 = vmatprep.mubr.bf16.mxu0 0
        %3357 = vmatmul.mubr.bf16.gmra.mrb[0].mxu0 %v2991
        %v3358 = vpop.f32.mrb[0].mxu0
        %v3359 = vadd.f32 %v2878, %v3358
        %v3360 = vpop.f32.mrb[0].mxu0
        %v3361 = vadd.f32 %v2878, %v3360
        %v3362 = vpop.f32.mrb[0].mxu0
        %v3363 = vadd.f32 %v2883, %v3362
        %v3364 = vpop.f32.mrb[0].mxu0
        %v3365 = vadd.f32 %v2883, %v3364
        %3366 = vmatprep.mubr.bf16.mxu0 0
        %3367 = vmatmul.mubr.bf16.gmra.mrb[0].mxu0 %v2992
        %v3368 = vpop.f32.mrb[0].mxu0
        %v3369 = vadd.f32 %v2888, %v3368
        %v3370 = vpop.f32.mrb[0].mxu0
        %v3371 = vadd.f32 %v2888, %v3370
        %v3372 = vpop.f32.mrb[0].mxu0
        %v3373 = vadd.f32 %v2893, %v3372
        %v3374 = vpop.f32.mrb[0].mxu0
        %v3375 = vadd.f32 %v2893, %v3374
        %3376 = vmatprep.mubr.bf16.mxu0 0
        %3377 = vmatmul.mubr.bf16.gmra.mrb[0].mxu0 %v2993
        %v3378 = vpop.f32.mrb[0].mxu0
        %v3379 = vadd.f32 %v2898, %v3378
        %v3380 = vpop.f32.mrb[0].mxu0
        %v3381 = vadd.f32 %v2898, %v3380
        %v3382 = vpop.f32.mrb[0].mxu0
        %v3383 = vadd.f32 %v2903, %v3382
        %v3384 = vpop.f32.mrb[0].mxu0
        %v3385 = vadd.f32 %v2903, %v3384
        %3386 = vmatprep.mubr.bf16.mxu0 0
        %3387 = vmatmul.mubr.bf16.gmra.mrb[0].mxu0 %v2994
        %v3388 = vpop.f32.mrb[0].mxu0
        %v3389 = vadd.f32 %v2908, %v3388
        %v3390 = vpop.f32.mrb[0].mxu0
        %v3391 = vadd.f32 %v2908, %v3390
        %v3392 = vpop.f32.mrb[0].mxu0
        %v3393 = vadd.f32 %v2913, %v3392
        %v3394 = vpop.f32.mrb[0].mxu0
        %v3395 = vadd.f32 %v2913, %v3394
        %3396 = vdwg.mxu0
        %v3397 = vld [vmem:[%s3] sm:$0xff]
        %v3398 = vld [vmem:[%s3 + $0x8] sm:$0xff]
        %v3399 = vld [vmem:[%s3 + $0x10] sm:$0xff]
        %v3400 = vld [vmem:[%s3 + $0x18] sm:$0xff]
        %v3401 = vld [vmem:[%s3 + $0x20] sm:$0xff]
        %v3402 = vld [vmem:[%s3 + $0x28] sm:$0xff]
        %v3403 = vld [vmem:[%s3 + $0x30] sm:$0xff]
        %v3404 = vld [vmem:[%s3 + $0x38] sm:$0xff]
        %v3405 = vld [vmem:[%s3 + $0x40] sm:$0xff]
        %v3406 = vld [vmem:[%s3 + $0x48] sm:$0xff]
        %v3407 = vld [vmem:[%s3 + $0x50] sm:$0xff]
        %v3408 = vld [vmem:[%s3 + $0x58] sm:$0xff]
        %v3409 = vld [vmem:[%s3 + $0x60] sm:$0xff]
        %v3410 = vld [vmem:[%s3 + $0x68] sm:$0xff]
        %v3411 = vld [vmem:[%s3 + $0x70] sm:$0xff]
        %v3412 = vld [vmem:[%s3 + $0x78] sm:$0xff]
        %v3413 = vld [vmem:[%s3 + $0x80] sm:$0xff]
        %v3414 = vld [vmem:[%s3 + $0x88] sm:$0xff]
        %v3415 = vld [vmem:[%s3 + $0x90] sm:$0xff]
        %v3416 = vld [vmem:[%s3 + $0x98] sm:$0xff]
        %v3417 = vld [vmem:[%s3 + $0xa0] sm:$0xff]
        %v3418 = vld [vmem:[%s3 + $0xa8] sm:$0xff]
        %v3419 = vld [vmem:[%s3 + $0xb0] sm:$0xff]
        %v3420 = vld [vmem:[%s3 + $0xb8] sm:$0xff]
        %v3421 = vld [vmem:[%s3 + $0xc0] sm:$0xff]
        %v3422 = vld [vmem:[%s3 + $0xc8] sm:$0xff]
        %v3423 = vld [vmem:[%s3 + $0xd0] sm:$0xff]
        %v3424 = vld [vmem:[%s3 + $0xd8] sm:$0xff]
        %v3425 = vld [vmem:[%s3 + $0xe0] sm:$0xff]
        %v3426 = vld [vmem:[%s3 + $0xe8] sm:$0xff]
        %v3427 = vld [vmem:[%s3 + $0xf0] sm:$0xff]
        %v3428 = vld [vmem:[%s3 + $0xf8] sm:$0xff]
        %v3429 = vld [vmem:[%s4] sm:$0xff]
        %v3430 = vld [vmem:[%s4 + $0x8] sm:$0xff]
        %v3431 = vld [vmem:[%s4 + $0x10] sm:$0xff]
        %v3432 = vld [vmem:[%s4 + $0x18] sm:$0xff]
        %v3433 = vld [vmem:[%s4 + $0x20] sm:$0xff]
        %v3434 = vld [vmem:[%s4 + $0x28] sm:$0xff]
        %v3435 = vld [vmem:[%s4 + $0x30] sm:$0xff]
        %v3436 = vld [vmem:[%s4 + $0x38] sm:$0xff]
        %v3437 = vld [vmem:[%s4 + $0x40] sm:$0xff]
        %v3438 = vld [vmem:[%s4 + $0x48] sm:$0xff]
        %v3439 = vld [vmem:[%s4 + $0x50] sm:$0xff]
        %v3440 = vld [vmem:[%s4 + $0x58] sm:$0xff]
        %v3441 = vld [vmem:[%s4 + $0x60] sm:$0xff]
        %v3442 = vld [vmem:[%s4 + $0x68] sm:$0xff]
        %v3443 = vld [vmem:[%s4 + $0x70] sm:$0xff]
        %v3444 = vld [vmem:[%s4 + $0x78] sm:$0xff]
        %v3445 = vld [vmem:[%s4 + $0x80] sm:$0xff]
        %v3446 = vld [vmem:[%s4 + $0x88] sm:$0xff]
        %v3447 = vld [vmem:[%s4 + $0x90] sm:$0xff]
        %v3448 = vld [vmem:[%s4 + $0x98] sm:$0xff]
        %v3449 = vld [vmem:[%s4 + $0xa0] sm:$0xff]
        %v3450 = vld [vmem:[%s4 + $0xa8] sm:$0xff]
        %v3451 = vld [vmem:[%s4 + $0xb0] sm:$0xff]
        %v3452 = vld [vmem:[%s4 + $0xb8] sm:$0xff]
        %v3453 = vld [vmem:[%s4 + $0xc0] sm:$0xff]
        %v3454 = vld [vmem:[%s4 + $0xc8] sm:$0xff]
        %v3455 = vld [vmem:[%s4 + $0xd0] sm:$0xff]
        %v3456 = vld [vmem:[%s4 + $0xd8] sm:$0xff]
        %v3457 = vld [vmem:[%s4 + $0xe0] sm:$0xff]
        %v3458 = vld [vmem:[%s4 + $0xe8] sm:$0xff]
        %v3459 = vld [vmem:[%s4 + $0xf0] sm:$0xff]
        %v3460 = vld [vmem:[%s4 + $0xf8] sm:$0xff]
        %v3461 = vadd.f32 %v3046, %v3050
        %v3462 = vadd.f32 %v3461, %v3056
        %v3463 = vadd.f32 %v3462, %v3060
        %v3464 = vadd.f32 %v3463, %v3066
        %v3465 = vadd.f32 %v3464, %v3070
        %v3466 = vadd.f32 %v3465, %v3076
        %v3467 = vadd.f32 %v3466, %v3080
        %v3468 = vadd.f32 %v3467, %v3086
        %v3469 = vadd.f32 %v3468, %v3090
        %v3470 = vadd.f32 %v3469, %v3096
        %v3471 = vadd.f32 %v3470, %v3100
        %v3472 = vadd.f32 %v3471, %v3106
        %v3473 = vadd.f32 %v3472, %v3110
        %v3474 = vadd.f32 %v3473, %v3116
        %v3475 = vadd.f32 %v3474, %v3120
        %v3476 = vadd.f32 %v3475, %v3126
        %v3477 = vadd.f32 %v3476, %v3130
        %v3478 = vadd.f32 %v3477, %v3136
        %v3479 = vadd.f32 %v3478, %v3140
        %v3480 = vadd.f32 %v3479, %v3146
        %v3481 = vadd.f32 %v3480, %v3150
        %v3482 = vadd.f32 %v3481, %v3156
        %v3483 = vadd.f32 %v3482, %v3160
        %v3484 = vadd.f32 %v3483, %v3166
        %v3485 = vadd.f32 %v3484, %v3170
        %v3486 = vadd.f32 %v3485, %v3176
        %v3487 = vadd.f32 %v3486, %v3180
        %v3488 = vadd.f32 %v3487, %v3186
        %v3489 = vadd.f32 %v3488, %v3190
        %v3490 = vadd.f32 %v3489, %v3196
        %v3491 = vadd.f32 %v3490, %v3200
        %v3492 = vrot.slane %v3491, 4
        %v3493 = vadd.f32 %v3491, %v3492
        %v3494 = vrot.slane %v3493, 2
        %v3495 = vadd.f32 %v3493, %v3494
        %v3496 = vrot.slane %v3495, 1
        %v3497 = vadd.f32 %v3495, %v3496
        %v3498 = vadd.f32 %v3048, %v3052
        %v3499 = vadd.f32 %v3498, %v3058
        %v3500 = vadd.f32 %v3499, %v3062
        %v3501 = vadd.f32 %v3500, %v3068
        %v3502 = vadd.f32 %v3501, %v3072
        %v3503 = vadd.f32 %v3502, %v3078
        %v3504 = vadd.f32 %v3503, %v3082
        %v3505 = vadd.f32 %v3504, %v3088
        %v3506 = vadd.f32 %v3505, %v3092
        %v3507 = vadd.f32 %v3506, %v3098
        %v3508 = vadd.f32 %v3507, %v3102
        %v3509 = vadd.f32 %v3508, %v3108
        %v3510 = vadd.f32 %v3509, %v3112
        %v3511 = vadd.f32 %v3510, %v3118
        %v3512 = vadd.f32 %v3511, %v3122
        %v3513 = vadd.f32 %v3512, %v3128
        %v3514 = vadd.f32 %v3513, %v3132
        %v3515 = vadd.f32 %v3514, %v3138
        %v3516 = vadd.f32 %v3515, %v3142
        %v3517 = vadd.f32 %v3516, %v3148
        %v3518 = vadd.f32 %v3517, %v3152
        %v3519 = vadd.f32 %v3518, %v3158
        %v3520 = vadd.f32 %v3519, %v3162
        %v3521 = vadd.f32 %v3520, %v3168
        %v3522 = vadd.f32 %v3521, %v3172
        %v3523 = vadd.f32 %v3522, %v3178
        %v3524 = vadd.f32 %v3523, %v3182
        %v3525 = vadd.f32 %v3524, %v3188
        %v3526 = vadd.f32 %v3525, %v3192
        %v3527 = vadd.f32 %v3526, %v3198
        %v3528 = vadd.f32 %v3527, %v3202
        %v3529 = vrot.slane %v3528, 4
        %v3530 = vadd.f32 %v3528, %v3529
        %v3531 = vrot.slane %v3530, 2
        %v3532 = vadd.f32 %v3530, %v3531
        %v3533 = vrot.slane %v3532, 1
        %v3534 = vadd.f32 %v3532, %v3533
        %v3535 = vadd.f32 %v3239, %v3243
        %v3536 = vadd.f32 %v3535, %v3249
        %v3537 = vadd.f32 %v3536, %v3253
        %v3538 = vadd.f32 %v3537, %v3259
        %v3539 = vadd.f32 %v3538, %v3263
        %v3540 = vadd.f32 %v3539, %v3269
        %v3541 = vadd.f32 %v3540, %v3273
        %v3542 = vadd.f32 %v3541, %v3279
        %v3543 = vadd.f32 %v3542, %v3283
        %v3544 = vadd.f32 %v3543, %v3289
        %v3545 = vadd.f32 %v3544, %v3293
        %v3546 = vadd.f32 %v3545, %v3299
        %v3547 = vadd.f32 %v3546, %v3303
        %v3548 = vadd.f32 %v3547, %v3309
        %v3549 = vadd.f32 %v3548, %v3313
        %v3550 = vadd.f32 %v3549, %v3319
        %v3551 = vadd.f32 %v3550, %v3323
        %v3552 = vadd.f32 %v3551, %v3329
        %v3553 = vadd.f32 %v3552, %v3333
        %v3554 = vadd.f32 %v3553, %v3339
        %v3555 = vadd.f32 %v3554, %v3343
        %v3556 = vadd.f32 %v3555, %v3349
        %v3557 = vadd.f32 %v3556, %v3353
        %v3558 = vadd.f32 %v3557, %v3359
        %v3559 = vadd.f32 %v3558, %v3363
        %v3560 = vadd.f32 %v3559, %v3369
        %v3561 = vadd.f32 %v3560, %v3373
        %v3562 = vadd.f32 %v3561, %v3379
        %v3563 = vadd.f32 %v3562, %v3383
        %v3564 = vadd.f32 %v3563, %v3389
        %v3565 = vadd.f32 %v3564, %v3393
        %v3566 = vrot.slane %v3565, 4
        %v3567 = vadd.f32 %v3565, %v3566
        %v3568 = vrot.slane %v3567, 2
        %v3569 = vadd.f32 %v3567, %v3568
        %v3570 = vrot.slane %v3569, 1
        %v3571 = vadd.f32 %v3569, %v3570
        %v3572 = vadd.f32 %v3241, %v3245
        %v3573 = vadd.f32 %v3572, %v3251
        %v3574 = vadd.f32 %v3573, %v3255
        %v3575 = vadd.f32 %v3574, %v3261
        %v3576 = vadd.f32 %v3575, %v3265
        %v3577 = vadd.f32 %v3576, %v3271
        %v3578 = vadd.f32 %v3577, %v3275
        %v3579 = vadd.f32 %v3578, %v3281
        %v3580 = vadd.f32 %v3579, %v3285
        %v3581 = vadd.f32 %v3580, %v3291
        %v3582 = vadd.f32 %v3581, %v3295
        %v3583 = vadd.f32 %v3582, %v3301
        %v3584 = vadd.f32 %v3583, %v3305
        %v3585 = vadd.f32 %v3584, %v3311
        %v3586 = vadd.f32 %v3585, %v3315
        %v3587 = vadd.f32 %v3586, %v3321
        %v3588 = vadd.f32 %v3587, %v3325
        %v3589 = vadd.f32 %v3588, %v3331
        %v3590 = vadd.f32 %v3589, %v3335
        %v3591 = vadd.f32 %v3590, %v3341
        %v3592 = vadd.f32 %v3591, %v3345
        %v3593 = vadd.f32 %v3592, %v3351
        %v3594 = vadd.f32 %v3593, %v3355
        %v3595 = vadd.f32 %v3594, %v3361
        %v3596 = vadd.f32 %v3595, %v3365
        %v3597 = vadd.f32 %v3596, %v3371
        %v3598 = vadd.f32 %v3597, %v3375
        %v3599 = vadd.f32 %v3598, %v3381
        %v3600 = vadd.f32 %v3599, %v3385
        %v3601 = vadd.f32 %v3600, %v3391
        %v3602 = vadd.f32 %v3601, %v3395
        %v3603 = vrot.slane %v3602, 4
        %v3604 = vadd.f32 %v3602, %v3603
        %v3605 = vrot.slane %v3604, 2
        %v3606 = vadd.f32 %v3604, %v3605
        %v3607 = vrot.slane %v3606, 1
        %v3608 = vadd.f32 %v3606, %v3607
        %v3609 = vrcp.pop 256.0
        %v3610 = vmul.f32 %v3497, %v3609
        %v3611 = vmul.f32 %v3534, %v3609
        %v3612 = vmul.f32 %v3571, %v3609
        %v3613 = vmul.f32 %v3608, %v3609
        %v3614 = vmul.f32 %v3046, %v3046
        %v3615 = vmul.f32 %v3048, %v3048
        %v3616 = vmul.f32 %v3239, %v3239
        %v3617 = vmul.f32 %v3241, %v3241
        %v3618 = vmul.f32 %v3050, %v3050
        %v3619 = vmul.f32 %v3052, %v3052
        %v3620 = vmul.f32 %v3243, %v3243
        %v3621 = vmul.f32 %v3245, %v3245
        %v3622 = vmul.f32 %v3056, %v3056
        %v3623 = vmul.f32 %v3058, %v3058
        %v3624 = vmul.f32 %v3249, %v3249
        %v3625 = vmul.f32 %v3251, %v3251
        %v3626 = vmul.f32 %v3060, %v3060
        %v3627 = vmul.f32 %v3062, %v3062
        %v3628 = vmul.f32 %v3253, %v3253
        %v3629 = vmul.f32 %v3255, %v3255
        %v3630 = vmul.f32 %v3066, %v3066
        %v3631 = vmul.f32 %v3068, %v3068
        %v3632 = vmul.f32 %v3259, %v3259
        %v3633 = vmul.f32 %v3261, %v3261
        %v3634 = vmul.f32 %v3070, %v3070
        %v3635 = vmul.f32 %v3072, %v3072
        %v3636 = vmul.f32 %v3263, %v3263
        %v3637 = vmul.f32 %v3265, %v3265
        %v3638 = vmul.f32 %v3076, %v3076
        %v3639 = vmul.f32 %v3078, %v3078
        %v3640 = vmul.f32 %v3269, %v3269
        %v3641 = vmul.f32 %v3271, %v3271
        %v3642 = vmul.f32 %v3080, %v3080
        %v3643 = vmul.f32 %v3082, %v3082
        %v3644 = vmul.f32 %v3273, %v3273
        %v3645 = vmul.f32 %v3275, %v3275
        %v3646 = vmul.f32 %v3086, %v3086
        %v3647 = vmul.f32 %v3088, %v3088
        %v3648 = vmul.f32 %v3279, %v3279
        %v3649 = vmul.f32 %v3281, %v3281
        %v3650 = vmul.f32 %v3090, %v3090
        %v3651 = vmul.f32 %v3092, %v3092
        %v3652 = vmul.f32 %v3283, %v3283
        %v3653 = vmul.f32 %v3285, %v3285
        %v3654 = vmul.f32 %v3096, %v3096
        %v3655 = vmul.f32 %v3098, %v3098
        %v3656 = vmul.f32 %v3289, %v3289
        %v3657 = vmul.f32 %v3291, %v3291
        %v3658 = vmul.f32 %v3100, %v3100
        %v3659 = vmul.f32 %v3102, %v3102
        %v3660 = vmul.f32 %v3293, %v3293
        %v3661 = vmul.f32 %v3295, %v3295
        %v3662 = vmul.f32 %v3106, %v3106
        %v3663 = vmul.f32 %v3108, %v3108
        %v3664 = vmul.f32 %v3299, %v3299
        %v3665 = vmul.f32 %v3301, %v3301
        %v3666 = vmul.f32 %v3110, %v3110
        %v3667 = vmul.f32 %v3112, %v3112
        %v3668 = vmul.f32 %v3303, %v3303
        %v3669 = vmul.f32 %v3305, %v3305
        %v3670 = vmul.f32 %v3116, %v3116
        %v3671 = vmul.f32 %v3118, %v3118
        %v3672 = vmul.f32 %v3309, %v3309
        %v3673 = vmul.f32 %v3311, %v3311
        %v3674 = vmul.f32 %v3120, %v3120
        %v3675 = vmul.f32 %v3122, %v3122
        %v3676 = vmul.f32 %v3313, %v3313
        %v3677 = vmul.f32 %v3315, %v3315
        %v3678 = vmul.f32 %v3126, %v3126
        %v3679 = vmul.f32 %v3128, %v3128
        %v3680 = vmul.f32 %v3319, %v3319
        %v3681 = vmul.f32 %v3321, %v3321
        %v3682 = vmul.f32 %v3130, %v3130
        %v3683 = vmul.f32 %v3132, %v3132
        %v3684 = vmul.f32 %v3323, %v3323
        %v3685 = vmul.f32 %v3325, %v3325
        %v3686 = vmul.f32 %v3136, %v3136
        %v3687 = vmul.f32 %v3138, %v3138
        %v3688 = vmul.f32 %v3329, %v3329
        %v3689 = vmul.f32 %v3331, %v3331
        %v3690 = vmul.f32 %v3140, %v3140
        %v3691 = vmul.f32 %v3142, %v3142
        %v3692 = vmul.f32 %v3333, %v3333
        %v3693 = vmul.f32 %v3335, %v3335
        %v3694 = vmul.f32 %v3146, %v3146
        %v3695 = vmul.f32 %v3148, %v3148
        %v3696 = vmul.f32 %v3339, %v3339
        %v3697 = vmul.f32 %v3341, %v3341
        %v3698 = vmul.f32 %v3150, %v3150
        %v3699 = vmul.f32 %v3152, %v3152
        %v3700 = vmul.f32 %v3343, %v3343
        %v3701 = vmul.f32 %v3345, %v3345
        %v3702 = vmul.f32 %v3156, %v3156
        %v3703 = vmul.f32 %v3158, %v3158
        %v3704 = vmul.f32 %v3349, %v3349
        %v3705 = vmul.f32 %v3351, %v3351
        %v3706 = vmul.f32 %v3160, %v3160
        %v3707 = vmul.f32 %v3162, %v3162
        %v3708 = vmul.f32 %v3353, %v3353
        %v3709 = vmul.f32 %v3355, %v3355
        %v3710 = vmul.f32 %v3166, %v3166
        %v3711 = vmul.f32 %v3168, %v3168
        %v3712 = vmul.f32 %v3359, %v3359
        %v3713 = vmul.f32 %v3361, %v3361
        %v3714 = vmul.f32 %v3170, %v3170
        %v3715 = vmul.f32 %v3172, %v3172
        %v3716 = vmul.f32 %v3363, %v3363
        %v3717 = vmul.f32 %v3365, %v3365
        %v3718 = vmul.f32 %v3176, %v3176
        %v3719 = vmul.f32 %v3178, %v3178
        %v3720 = vmul.f32 %v3369, %v3369
        %v3721 = vmul.f32 %v3371, %v3371
        %v3722 = vmul.f32 %v3180, %v3180
        %v3723 = vmul.f32 %v3182, %v3182
        %v3724 = vmul.f32 %v3373, %v3373
        %v3725 = vmul.f32 %v3375, %v3375
        %v3726 = vmul.f32 %v3186, %v3186
        %v3727 = vmul.f32 %v3188, %v3188
        %v3728 = vmul.f32 %v3379, %v3379
        %v3729 = vmul.f32 %v3381, %v3381
        %v3730 = vmul.f32 %v3190, %v3190
        %v3731 = vmul.f32 %v3192, %v3192
        %v3732 = vmul.f32 %v3383, %v3383
        %v3733 = vmul.f32 %v3385, %v3385
        %v3734 = vmul.f32 %v3196, %v3196
        %v3735 = vmul.f32 %v3198, %v3198
        %v3736 = vmul.f32 %v3389, %v3389
        %v3737 = vmul.f32 %v3391, %v3391
        %v3738 = vmul.f32 %v3200, %v3200
        %v3739 = vmul.f32 %v3202, %v3202
        %v3740 = vmul.f32 %v3393, %v3393
        %v3741 = vmul.f32 %v3395, %v3395
        %v3742 = vadd.f32 %v3614, %v3618
        %v3743 = vadd.f32 %v3742, %v3622
        %v3744 = vadd.f32 %v3743, %v3626
        %v3745 = vadd.f32 %v3744, %v3630
        %v3746 = vadd.f32 %v3745, %v3634
        %v3747 = vadd.f32 %v3746, %v3638
        %v3748 = vadd.f32 %v3747, %v3642
        %v3749 = vadd.f32 %v3748, %v3646
        %v3750 = vadd.f32 %v3749, %v3650
        %v3751 = vadd.f32 %v3750, %v3654
        %v3752 = vadd.f32 %v3751, %v3658
        %v3753 = vadd.f32 %v3752, %v3662
        %v3754 = vadd.f32 %v3753, %v3666
        %v3755 = vadd.f32 %v3754, %v3670
        %v3756 = vadd.f32 %v3755, %v3674
        %v3757 = vadd.f32 %v3756, %v3678
        %v3758 = vadd.f32 %v3757, %v3682
        %v3759 = vadd.f32 %v3758, %v3686
        %v3760 = vadd.f32 %v3759, %v3690
        %v3761 = vadd.f32 %v3760, %v3694
        %v3762 = vadd.f32 %v3761, %v3698
        %v3763 = vadd.f32 %v3762, %v3702
        %v3764 = vadd.f32 %v3763, %v3706
        %v3765 = vadd.f32 %v3764, %v3710
        %v3766 = vadd.f32 %v3765, %v3714
        %v3767 = vadd.f32 %v3766, %v3718
        %v3768 = vadd.f32 %v3767, %v3722
        %v3769 = vadd.f32 %v3768, %v3726
        %v3770 = vadd.f32 %v3769, %v3730
        %v3771 = vadd.f32 %v3770, %v3734
        %v3772 = vadd.f32 %v3771, %v3738
        %v3773 = vrot.slane %v3772, 4
        %v3774 = vadd.f32 %v3772, %v3773
        %v3775 = vrot.slane %v3774, 2
        %v3776 = vadd.f32 %v3774, %v3775
        %v3777 = vrot.slane %v3776, 1
        %v3778 = vadd.f32 %v3776, %v3777
        %v3779 = vadd.f32 %v3615, %v3619
        %v3780 = vadd.f32 %v3779, %v3623
        %v3781 = vadd.f32 %v3780, %v3627
        %v3782 = vadd.f32 %v3781, %v3631
        %v3783 = vadd.f32 %v3782, %v3635
        %v3784 = vadd.f32 %v3783, %v3639
        %v3785 = vadd.f32 %v3784, %v3643
        %v3786 = vadd.f32 %v3785, %v3647
        %v3787 = vadd.f32 %v3786, %v3651
        %v3788 = vadd.f32 %v3787, %v3655
        %v3789 = vadd.f32 %v3788, %v3659
        %v3790 = vadd.f32 %v3789, %v3663
        %v3791 = vadd.f32 %v3790, %v3667
        %v3792 = vadd.f32 %v3791, %v3671
        %v3793 = vadd.f32 %v3792, %v3675
        %v3794 = vadd.f32 %v3793, %v3679
        %v3795 = vadd.f32 %v3794, %v3683
        %v3796 = vadd.f32 %v3795, %v3687
        %v3797 = vadd.f32 %v3796, %v3691
        %v3798 = vadd.f32 %v3797, %v3695
        %v3799 = vadd.f32 %v3798, %v3699
        %v3800 = vadd.f32 %v3799, %v3703
        %v3801 = vadd.f32 %v3800, %v3707
        %v3802 = vadd.f32 %v3801, %v3711
        %v3803 = vadd.f32 %v3802, %v3715
        %v3804 = vadd.f32 %v3803, %v3719
        %v3805 = vadd.f32 %v3804, %v3723
        %v3806 = vadd.f32 %v3805, %v3727
        %v3807 = vadd.f32 %v3806, %v3731
        %v3808 = vadd.f32 %v3807, %v3735
        %v3809 = vadd.f32 %v3808, %v3739
        %v3810 = vrot.slane %v3809, 4
        %v3811 = vadd.f32 %v3809, %v3810
        %v3812 = vrot.slane %v3811, 2
        %v3813 = vadd.f32 %v3811, %v3812
        %v3814 = vrot.slane %v3813, 1
        %v3815 = vadd.f32 %v3813, %v3814
        %v3816 = vadd.f32 %v3616, %v3620
        %v3817 = vadd.f32 %v3816, %v3624
        %v3818 = vadd.f32 %v3817, %v3628
        %v3819 = vadd.f32 %v3818, %v3632
        %v3820 = vadd.f32 %v3819, %v3636
        %v3821 = vadd.f32 %v3820, %v3640
        %v3822 = vadd.f32 %v3821, %v3644
        %v3823 = vadd.f32 %v3822, %v3648
        %v3824 = vadd.f32 %v3823, %v3652
        %v3825 = vadd.f32 %v3824, %v3656
        %v3826 = vadd.f32 %v3825, %v3660
        %v3827 = vadd.f32 %v3826, %v3664
        %v3828 = vadd.f32 %v3827, %v3668
        %v3829 = vadd.f32 %v3828, %v3672
        %v3830 = vadd.f32 %v3829, %v3676
        %v3831 = vadd.f32 %v3830, %v3680
        %v3832 = vadd.f32 %v3831, %v3684
        %v3833 = vadd.f32 %v3832, %v3688
        %v3834 = vadd.f32 %v3833, %v3692
        %v3835 = vadd.f32 %v3834, %v3696
        %v3836 = vadd.f32 %v3835, %v3700
        %v3837 = vadd.f32 %v3836, %v3704
        %v3838 = vadd.f32 %v3837, %v3708
        %v3839 = vadd.f32 %v3838, %v3712
        %v3840 = vadd.f32 %v3839, %v3716
        %v3841 = vadd.f32 %v3840, %v3720
        %v3842 = vadd.f32 %v3841, %v3724
        %v3843 = vadd.f32 %v3842, %v3728
        %v3844 = vadd.f32 %v3843, %v3732
        %v3845 = vadd.f32 %v3844, %v3736
        %v3846 = vadd.f32 %v3845, %v3740
        %v3847 = vrot.slane %v3846, 4
        %v3848 = vadd.f32 %v3846, %v3847
        %v3849 = vrot.slane %v3848, 2
        %v3850 = vadd.f32 %v3848, %v3849
        %v3851 = vrot.slane %v3850, 1
        %v3852 = vadd.f32 %v3850, %v3851
        %v3853 = vadd.f32 %v3617, %v3621
        %v3854 = vadd.f32 %v3853, %v3625
        %v3855 = vadd.f32 %v3854, %v3629
        %v3856 = vadd.f32 %v3855, %v3633
        %v3857 = vadd.f32 %v3856, %v3637
        %v3858 = vadd.f32 %v3857, %v3641
        %v3859 = vadd.f32 %v3858, %v3645
        %v3860 = vadd.f32 %v3859, %v3649
        %v3861 = vadd.f32 %v3860, %v3653
        %v3862 = vadd.f32 %v3861, %v3657
        %v3863 = vadd.f32 %v3862, %v3661
        %v3864 = vadd.f32 %v3863, %v3665
        %v3865 = vadd.f32 %v3864, %v3669
        %v3866 = vadd.f32 %v3865, %v3673
        %v3867 = vadd.f32 %v3866, %v3677
        %v3868 = vadd.f32 %v3867, %v3681
        %v3869 = vadd.f32 %v3868, %v3685
        %v3870 = vadd.f32 %v3869, %v3689
        %v3871 = vadd.f32 %v3870, %v3693
        %v3872 = vadd.f32 %v3871, %v3697
        %v3873 = vadd.f32 %v3872, %v3701
        %v3874 = vadd.f32 %v3873, %v3705
        %v3875 = vadd.f32 %v3874, %v3709
        %v3876 = vadd.f32 %v3875, %v3713
        %v3877 = vadd.f32 %v3876, %v3717
        %v3878 = vadd.f32 %v3877, %v3721
        %v3879 = vadd.f32 %v3878, %v3725
        %v3880 = vadd.f32 %v3879, %v3729
        %v3881 = vadd.f32 %v3880, %v3733
        %v3882 = vadd.f32 %v3881, %v3737
        %v3883 = vadd.f32 %v3882, %v3741
        %v3884 = vrot.slane %v3883, 4
        %v3885 = vadd.f32 %v3883, %v3884
        %v3886 = vrot.slane %v3885, 2
        %v3887 = vadd.f32 %v3885, %v3886
        %v3888 = vrot.slane %v3887, 1
        %v3889 = vadd.f32 %v3887, %v3888
        %v3890 = vmul.f32 %v3778, %v3609
        %v3891 = vmul.f32 %v3815, %v3609
        %v3892 = vmul.f32 %v3852, %v3609
        %v3893 = vmul.f32 %v3889, %v3609
        %v3894 = vmul.f32 %v3610, %v3610
        %v3895 = vmul.f32 %v3611, %v3611
        %v3896 = vmul.f32 %v3612, %v3612
        %v3897 = vmul.f32 %v3613, %v3613
        %v3898 = vsub.f32 %v3890, %v3894
        %v3899 = vsub.f32 %v3891, %v3895
        %v3900 = vsub.f32 %v3892, %v3896
        %v3901 = vsub.f32 %v3893, %v3897
        %v3902 = vmax.f32 %v3898, 0.0
        %v3903 = vmax.f32 %v3899, 0.0
        %v3904 = vmax.f32 %v3900, 0.0
        %v3905 = vmax.f32 %v3901, 0.0
        %v3906 = vadd.f32 %v3902, 1e-05
        %v3907 = vadd.f32 %v3903, 1e-05
        %v3908 = vadd.f32 %v3904, 1e-05
        %v3909 = vadd.f32 %v3905, 1e-05
        %v3910 = vrsqrt.pop %v3906
        %v3911 = vrsqrt.pop %v3907
        %v3912 = vrsqrt.pop %v3908
        %v3913 = vrsqrt.pop %v3909
        %v3914 = vsub.f32 %v3046, %v3610
        %v3915 = vsub.f32 %v3048, %v3611
        %v3916 = vsub.f32 %v3239, %v3612
        %v3917 = vsub.f32 %v3241, %v3613
        %v3918 = vsub.f32 %v3050, %v3610
        %v3919 = vsub.f32 %v3052, %v3611
        %v3920 = vsub.f32 %v3243, %v3612
        %v3921 = vsub.f32 %v3245, %v3613
        %v3922 = vsub.f32 %v3056, %v3610
        %v3923 = vsub.f32 %v3058, %v3611
        %v3924 = vsub.f32 %v3249, %v3612
        %v3925 = vsub.f32 %v3251, %v3613
        %v3926 = vsub.f32 %v3060, %v3610
        %v3927 = vsub.f32 %v3062, %v3611
        %v3928 = vsub.f32 %v3253, %v3612
        %v3929 = vsub.f32 %v3255, %v3613
        %v3930 = vsub.f32 %v3066, %v3610
        %v3931 = vsub.f32 %v3068, %v3611
        %v3932 = vsub.f32 %v3259, %v3612
        %v3933 = vsub.f32 %v3261, %v3613
        %v3934 = vsub.f32 %v3070, %v3610
        %v3935 = vsub.f32 %v3072, %v3611
        %v3936 = vsub.f32 %v3263, %v3612
        %v3937 = vsub.f32 %v3265, %v3613
        %v3938 = vsub.f32 %v3076, %v3610
        %v3939 = vsub.f32 %v3078, %v3611
        %v3940 = vsub.f32 %v3269, %v3612
        %v3941 = vsub.f32 %v3271, %v3613
        %v3942 = vsub.f32 %v3080, %v3610
        %v3943 = vsub.f32 %v3082, %v3611
        %v3944 = vsub.f32 %v3273, %v3612
        %v3945 = vsub.f32 %v3275, %v3613
        %v3946 = vsub.f32 %v3086, %v3610
        %v3947 = vsub.f32 %v3088, %v3611
        %v3948 = vsub.f32 %v3279, %v3612
        %v3949 = vsub.f32 %v3281, %v3613
        %v3950 = vsub.f32 %v3090, %v3610
        %v3951 = vsub.f32 %v3092, %v3611
        %v3952 = vsub.f32 %v3283, %v3612
        %v3953 = vsub.f32 %v3285, %v3613
        %v3954 = vsub.f32 %v3096, %v3610
        %v3955 = vsub.f32 %v3098, %v3611
        %v3956 = vsub.f32 %v3289, %v3612
        %v3957 = vsub.f32 %v3291, %v3613
        %v3958 = vsub.f32 %v3100, %v3610
        %v3959 = vsub.f32 %v3102, %v3611
        %v3960 = vsub.f32 %v3293, %v3612
        %v3961 = vsub.f32 %v3295, %v3613
        %v3962 = vsub.f32 %v3106, %v3610
        %v3963 = vsub.f32 %v3108, %v3611
        %v3964 = vsub.f32 %v3299, %v3612
        %v3965 = vsub.f32 %v3301, %v3613
        %v3966 = vsub.f32 %v3110, %v3610
        %v3967 = vsub.f32 %v3112, %v3611
        %v3968 = vsub.f32 %v3303, %v3612
        %v3969 = vsub.f32 %v3305, %v3613
        %v3970 = vsub.f32 %v3116, %v3610
        %v3971 = vsub.f32 %v3118, %v3611
        %v3972 = vsub.f32 %v3309, %v3612
        %v3973 = vsub.f32 %v3311, %v3613
        %v3974 = vsub.f32 %v3120, %v3610
        %v3975 = vsub.f32 %v3122, %v3611
        %v3976 = vsub.f32 %v3313, %v3612
        %v3977 = vsub.f32 %v3315, %v3613
        %v3978 = vsub.f32 %v3126, %v3610
        %v3979 = vsub.f32 %v3128, %v3611
        %v3980 = vsub.f32 %v3319, %v3612
        %v3981 = vsub.f32 %v3321, %v3613
        %v3982 = vsub.f32 %v3130, %v3610
        %v3983 = vsub.f32 %v3132, %v3611
        %v3984 = vsub.f32 %v3323, %v3612
        %v3985 = vsub.f32 %v3325, %v3613
        %v3986 = vsub.f32 %v3136, %v3610
        %v3987 = vsub.f32 %v3138, %v3611
        %v3988 = vsub.f32 %v3329, %v3612
        %v3989 = vsub.f32 %v3331, %v3613
        %v3990 = vsub.f32 %v3140, %v3610
        %v3991 = vsub.f32 %v3142, %v3611
        %v3992 = vsub.f32 %v3333, %v3612
        %v3993 = vsub.f32 %v3335, %v3613
        %v3994 = vsub.f32 %v3146, %v3610
        %v3995 = vsub.f32 %v3148, %v3611
        %v3996 = vsub.f32 %v3339, %v3612
        %v3997 = vsub.f32 %v3341, %v3613
        %v3998 = vsub.f32 %v3150, %v3610
        %v3999 = vsub.f32 %v3152, %v3611
        %v4000 = vsub.f32 %v3343, %v3612
        %v4001 = vsub.f32 %v3345, %v3613
        %v4002 = vsub.f32 %v3156, %v3610
        %v4003 = vsub.f32 %v3158, %v3611
        %v4004 = vsub.f32 %v3349, %v3612
        %v4005 = vsub.f32 %v3351, %v3613
        %v4006 = vsub.f32 %v3160, %v3610
        %v4007 = vsub.f32 %v3162, %v3611
        %v4008 = vsub.f32 %v3353, %v3612
        %v4009 = vsub.f32 %v3355, %v3613
        %v4010 = vsub.f32 %v3166, %v3610
        %v4011 = vsub.f32 %v3168, %v3611
        %v4012 = vsub.f32 %v3359, %v3612
        %v4013 = vsub.f32 %v3361, %v3613
        %v4014 = vsub.f32 %v3170, %v3610
        %v4015 = vsub.f32 %v3172, %v3611
        %v4016 = vsub.f32 %v3363, %v3612
        %v4017 = vsub.f32 %v3365, %v3613
        %v4018 = vsub.f32 %v3176, %v3610
        %v4019 = vsub.f32 %v3178, %v3611
        %v4020 = vsub.f32 %v3369, %v3612
        %v4021 = vsub.f32 %v3371, %v3613
        %v4022 = vsub.f32 %v3180, %v3610
        %v4023 = vsub.f32 %v3182, %v3611
        %v4024 = vsub.f32 %v3373, %v3612
        %v4025 = vsub.f32 %v3375, %v3613
        %v4026 = vsub.f32 %v3186, %v3610
        %v4027 = vsub.f32 %v3188, %v3611
        %v4028 = vsub.f32 %v3379, %v3612
        %v4029 = vsub.f32 %v3381, %v3613
        %v4030 = vsub.f32 %v3190, %v3610
        %v4031 = vsub.f32 %v3192, %v3611
        %v4032 = vsub.f32 %v3383, %v3612
        %v4033 = vsub.f32 %v3385, %v3613
        %v4034 = vsub.f32 %v3196, %v3610
        %v4035 = vsub.f32 %v3198, %v3611
        %v4036 = vsub.f32 %v3389, %v3612
        %v4037 = vsub.f32 %v3391, %v3613
        %v4038 = vsub.f32 %v3200, %v3610
        %v4039 = vsub.f32 %v3202, %v3611
        %v4040 = vsub.f32 %v3393, %v3612
        %v4041 = vsub.f32 %v3395, %v3613
        %v4042 = vmul.f32 %v3914, %v3910
        %v4043 = vmul.f32 %v3915, %v3911
        %v4044 = vmul.f32 %v3916, %v3912
        %v4045 = vmul.f32 %v3917, %v3913
        %v4046 = vmul.f32 %v3918, %v3910
        %v4047 = vmul.f32 %v3919, %v3911
        %v4048 = vmul.f32 %v3920, %v3912
        %v4049 = vmul.f32 %v3921, %v3913
        %v4050 = vmul.f32 %v3922, %v3910
        %v4051 = vmul.f32 %v3923, %v3911
        %v4052 = vmul.f32 %v3924, %v3912
        %v4053 = vmul.f32 %v3925, %v3913
        %v4054 = vmul.f32 %v3926, %v3910
        %v4055 = vmul.f32 %v3927, %v3911
        %v4056 = vmul.f32 %v3928, %v3912
        %v4057 = vmul.f32 %v3929, %v3913
        %v4058 = vmul.f32 %v3930, %v3910
        %v4059 = vmul.f32 %v3931, %v3911
        %v4060 = vmul.f32 %v3932, %v3912
        %v4061 = vmul.f32 %v3933, %v3913
        %v4062 = vmul.f32 %v3934, %v3910
        %v4063 = vmul.f32 %v3935, %v3911
        %v4064 = vmul.f32 %v3936, %v3912
        %v4065 = vmul.f32 %v3937, %v3913
        %v4066 = vmul.f32 %v3938, %v3910
        %v4067 = vmul.f32 %v3939, %v3911
        %v4068 = vmul.f32 %v3940, %v3912
        %v4069 = vmul.f32 %v3941, %v3913
        %v4070 = vmul.f32 %v3942, %v3910
        %v4071 = vmul.f32 %v3943, %v3911
        %v4072 = vmul.f32 %v3944, %v3912
        %v4073 = vmul.f32 %v3945, %v3913
        %v4074 = vmul.f32 %v3946, %v3910
        %v4075 = vmul.f32 %v3947, %v3911
        %v4076 = vmul.f32 %v3948, %v3912
        %v4077 = vmul.f32 %v3949, %v3913
        %v4078 = vmul.f32 %v3950, %v3910
        %v4079 = vmul.f32 %v3951, %v3911
        %v4080 = vmul.f32 %v3952, %v3912
        %v4081 = vmul.f32 %v3953, %v3913
        %v4082 = vmul.f32 %v3954, %v3910
        %v4083 = vmul.f32 %v3955, %v3911
        %v4084 = vmul.f32 %v3956, %v3912
        %v4085 = vmul.f32 %v3957, %v3913
        %v4086 = vmul.f32 %v3958, %v3910
        %v4087 = vmul.f32 %v3959, %v3911
        %v4088 = vmul.f32 %v3960, %v3912
        %v4089 = vmul.f32 %v3961, %v3913
        %v4090 = vmul.f32 %v3962, %v3910
        %v4091 = vmul.f32 %v3963, %v3911
        %v4092 = vmul.f32 %v3964, %v3912
        %v4093 = vmul.f32 %v3965, %v3913
        %v4094 = vmul.f32 %v3966, %v3910
        %v4095 = vmul.f32 %v3967, %v3911
        %v4096 = vmul.f32 %v3968, %v3912
        %v4097 = vmul.f32 %v3969, %v3913
        %v4098 = vmul.f32 %v3970, %v3910
        %v4099 = vmul.f32 %v3971, %v3911
        %v4100 = vmul.f32 %v3972, %v3912
        %v4101 = vmul.f32 %v3973, %v3913
        %v4102 = vmul.f32 %v3974, %v3910
        %v4103 = vmul.f32 %v3975, %v3911
        %v4104 = vmul.f32 %v3976, %v3912
        %v4105 = vmul.f32 %v3977, %v3913
        %v4106 = vmul.f32 %v3978, %v3910
        %v4107 = vmul.f32 %v3979, %v3911
        %v4108 = vmul.f32 %v3980, %v3912
        %v4109 = vmul.f32 %v3981, %v3913
        %v4110 = vmul.f32 %v3982, %v3910
        %v4111 = vmul.f32 %v3983, %v3911
        %v4112 = vmul.f32 %v3984, %v3912
        %v4113 = vmul.f32 %v3985, %v3913
        %v4114 = vmul.f32 %v3986, %v3910
        %v4115 = vmul.f32 %v3987, %v3911
        %v4116 = vmul.f32 %v3988, %v3912
        %v4117 = vmul.f32 %v3989, %v3913
        %v4118 = vmul.f32 %v3990, %v3910
        %v4119 = vmul.f32 %v3991, %v3911
        %v4120 = vmul.f32 %v3992, %v3912
        %v4121 = vmul.f32 %v3993, %v3913
        %v4122 = vmul.f32 %v3994, %v3910
        %v4123 = vmul.f32 %v3995, %v3911
        %v4124 = vmul.f32 %v3996, %v3912
        %v4125 = vmul.f32 %v3997, %v3913
        %v4126 = vmul.f32 %v3998, %v3910
        %v4127 = vmul.f32 %v3999, %v3911
        %v4128 = vmul.f32 %v4000, %v3912
        %v4129 = vmul.f32 %v4001, %v3913
        %v4130 = vmul.f32 %v4002, %v3910
        %v4131 = vmul.f32 %v4003, %v3911
        %v4132 = vmul.f32 %v4004, %v3912
        %v4133 = vmul.f32 %v4005, %v3913
        %v4134 = vmul.f32 %v4006, %v3910
        %v4135 = vmul.f32 %v4007, %v3911
        %v4136 = vmul.f32 %v4008, %v3912
        %v4137 = vmul.f32 %v4009, %v3913
        %v4138 = vmul.f32 %v4010, %v3910
        %v4139 = vmul.f32 %v4011, %v3911
        %v4140 = vmul.f32 %v4012, %v3912
        %v4141 = vmul.f32 %v4013, %v3913
        %v4142 = vmul.f32 %v4014, %v3910
        %v4143 = vmul.f32 %v4015, %v3911
        %v4144 = vmul.f32 %v4016, %v3912
        %v4145 = vmul.f32 %v4017, %v3913
        %v4146 = vmul.f32 %v4018, %v3910
        %v4147 = vmul.f32 %v4019, %v3911
        %v4148 = vmul.f32 %v4020, %v3912
        %v4149 = vmul.f32 %v4021, %v3913
        %v4150 = vmul.f32 %v4022, %v3910
        %v4151 = vmul.f32 %v4023, %v3911
        %v4152 = vmul.f32 %v4024, %v3912
        %v4153 = vmul.f32 %v4025, %v3913
        %v4154 = vmul.f32 %v4026, %v3910
        %v4155 = vmul.f32 %v4027, %v3911
        %v4156 = vmul.f32 %v4028, %v3912
        %v4157 = vmul.f32 %v4029, %v3913
        %v4158 = vmul.f32 %v4030, %v3910
        %v4159 = vmul.f32 %v4031, %v3911
        %v4160 = vmul.f32 %v4032, %v3912
        %v4161 = vmul.f32 %v4033, %v3913
        %v4162 = vmul.f32 %v4034, %v3910
        %v4163 = vmul.f32 %v4035, %v3911
        %v4164 = vmul.f32 %v4036, %v3912
        %v4165 = vmul.f32 %v4037, %v3913
        %v4166 = vmul.f32 %v4038, %v3910
        %v4167 = vmul.f32 %v4039, %v3911
        %v4168 = vmul.f32 %v4040, %v3912
        %v4169 = vmul.f32 %v4041, %v3913
        %4171 = vset.pattern.permute.xlu0 0
        %4172 = vperm.xlu0 %4171, %v3397
        %v4173 = vpop.permute.xlu0 %4172
        %4176 = vset.pattern.permute.xlu0 0
        %4177 = vperm.xlu0 %4176, %v3398
        %v4178 = vpop.permute.xlu0 %4177
        %4181 = vset.pattern.permute.xlu0 0
        %4182 = vperm.xlu0 %4181, %v3399
        %v4183 = vpop.permute.xlu0 %4182
        %4186 = vset.pattern.permute.xlu0 0
        %4187 = vperm.xlu0 %4186, %v3400
        %v4188 = vpop.permute.xlu0 %4187
        %4191 = vset.pattern.permute.xlu0 0
        %4192 = vperm.xlu0 %4191, %v3401
        %v4193 = vpop.permute.xlu0 %4192
        %4196 = vset.pattern.permute.xlu0 0
        %4197 = vperm.xlu0 %4196, %v3402
        %v4198 = vpop.permute.xlu0 %4197
        %4201 = vset.pattern.permute.xlu0 0
        %4202 = vperm.xlu0 %4201, %v3403
        %v4203 = vpop.permute.xlu0 %4202
        %4206 = vset.pattern.permute.xlu0 0
        %4207 = vperm.xlu0 %4206, %v3404
        %v4208 = vpop.permute.xlu0 %4207
        %4211 = vset.pattern.permute.xlu0 0
        %4212 = vperm.xlu0 %4211, %v3405
        %v4213 = vpop.permute.xlu0 %4212
        %4216 = vset.pattern.permute.xlu0 0
        %4217 = vperm.xlu0 %4216, %v3406
        %v4218 = vpop.permute.xlu0 %4217
        %4221 = vset.pattern.permute.xlu0 0
        %4222 = vperm.xlu0 %4221, %v3407
        %v4223 = vpop.permute.xlu0 %4222
        %4226 = vset.pattern.permute.xlu0 0
        %4227 = vperm.xlu0 %4226, %v3408
        %v4228 = vpop.permute.xlu0 %4227
        %4231 = vset.pattern.permute.xlu0 0
        %4232 = vperm.xlu0 %4231, %v3409
        %v4233 = vpop.permute.xlu0 %4232
        %4236 = vset.pattern.permute.xlu0 0
        %4237 = vperm.xlu0 %4236, %v3410
        %v4238 = vpop.permute.xlu0 %4237
        %4241 = vset.pattern.permute.xlu0 0
        %4242 = vperm.xlu0 %4241, %v3411
        %v4243 = vpop.permute.xlu0 %4242
        %4246 = vset.pattern.permute.xlu0 0
        %4247 = vperm.xlu0 %4246, %v3412
        %v4248 = vpop.permute.xlu0 %4247
        %4251 = vset.pattern.permute.xlu0 0
        %4252 = vperm.xlu0 %4251, %v3413
        %v4253 = vpop.permute.xlu0 %4252
        %4256 = vset.pattern.permute.xlu0 0
        %4257 = vperm.xlu0 %4256, %v3414
        %v4258 = vpop.permute.xlu0 %4257
        %4261 = vset.pattern.permute.xlu0 0
        %4262 = vperm.xlu0 %4261, %v3415
        %v4263 = vpop.permute.xlu0 %4262
        %4266 = vset.pattern.permute.xlu0 0
        %4267 = vperm.xlu0 %4266, %v3416
        %v4268 = vpop.permute.xlu0 %4267
        %4271 = vset.pattern.permute.xlu0 0
        %4272 = vperm.xlu0 %4271, %v3417
        %v4273 = vpop.permute.xlu0 %4272
        %4276 = vset.pattern.permute.xlu0 0
        %4277 = vperm.xlu0 %4276, %v3418
        %v4278 = vpop.permute.xlu0 %4277
        %4281 = vset.pattern.permute.xlu0 0
        %4282 = vperm.xlu0 %4281, %v3419
        %v4283 = vpop.permute.xlu0 %4282
        %4286 = vset.pattern.permute.xlu0 0
        %4287 = vperm.xlu0 %4286, %v3420
        %v4288 = vpop.permute.xlu0 %4287
        %4291 = vset.pattern.permute.xlu0 0
        %4292 = vperm.xlu0 %4291, %v3421
        %v4293 = vpop.permute.xlu0 %4292
        %4296 = vset.pattern.permute.xlu0 0
        %4297 = vperm.xlu0 %4296, %v3422
        %v4298 = vpop.permute.xlu0 %4297
        %4301 = vset.pattern.permute.xlu0 0
        %4302 = vperm.xlu0 %4301, %v3423
        %v4303 = vpop.permute.xlu0 %4302
        %4306 = vset.pattern.permute.xlu0 0
        %4307 = vperm.xlu0 %4306, %v3424
        %v4308 = vpop.permute.xlu0 %4307
        %4311 = vset.pattern.permute.xlu0 0
        %4312 = vperm.xlu0 %4311, %v3425
        %v4313 = vpop.permute.xlu0 %4312
        %4316 = vset.pattern.permute.xlu0 0
        %4317 = vperm.xlu0 %4316, %v3426
        %v4318 = vpop.permute.xlu0 %4317
        %4321 = vset.pattern.permute.xlu0 0
        %4322 = vperm.xlu0 %4321, %v3427
        %v4323 = vpop.permute.xlu0 %4322
        %4326 = vset.pattern.permute.xlu0 0
        %4327 = vperm.xlu0 %4326, %v3428
        %v4328 = vpop.permute.xlu0 %4327
        %v4330 = vmul.f32 %v4042, %v4173
        %v4331 = vmul.f32 %v4043, %v4173
        %v4332 = vmul.f32 %v4044, %v4173
        %v4333 = vmul.f32 %v4045, %v4173
        %v4334 = vmul.f32 %v4046, %v4178
        %v4335 = vmul.f32 %v4047, %v4178
        %v4336 = vmul.f32 %v4048, %v4178
        %v4337 = vmul.f32 %v4049, %v4178
        %v4338 = vmul.f32 %v4050, %v4183
        %v4339 = vmul.f32 %v4051, %v4183
        %v4340 = vmul.f32 %v4052, %v4183
        %v4341 = vmul.f32 %v4053, %v4183
        %v4342 = vmul.f32 %v4054, %v4188
        %v4343 = vmul.f32 %v4055, %v4188
        %v4344 = vmul.f32 %v4056, %v4188
        %v4345 = vmul.f32 %v4057, %v4188
        %v4346 = vmul.f32 %v4058, %v4193
        %v4347 = vmul.f32 %v4059, %v4193
        %v4348 = vmul.f32 %v4060, %v4193
        %v4349 = vmul.f32 %v4061, %v4193
        %v4350 = vmul.f32 %v4062, %v4198
        %v4351 = vmul.f32 %v4063, %v4198
        %v4352 = vmul.f32 %v4064, %v4198
        %v4353 = vmul.f32 %v4065, %v4198
        %v4354 = vmul.f32 %v4066, %v4203
        %v4355 = vmul.f32 %v4067, %v4203
        %v4356 = vmul.f32 %v4068, %v4203
        %v4357 = vmul.f32 %v4069, %v4203
        %v4358 = vmul.f32 %v4070, %v4208
        %v4359 = vmul.f32 %v4071, %v4208
        %v4360 = vmul.f32 %v4072, %v4208
        %v4361 = vmul.f32 %v4073, %v4208
        %v4362 = vmul.f32 %v4074, %v4213
        %v4363 = vmul.f32 %v4075, %v4213
        %v4364 = vmul.f32 %v4076, %v4213
        %v4365 = vmul.f32 %v4077, %v4213
        %v4366 = vmul.f32 %v4078, %v4218
        %v4367 = vmul.f32 %v4079, %v4218
        %v4368 = vmul.f32 %v4080, %v4218
        %v4369 = vmul.f32 %v4081, %v4218
        %v4370 = vmul.f32 %v4082, %v4223
        %v4371 = vmul.f32 %v4083, %v4223
        %v4372 = vmul.f32 %v4084, %v4223
        %v4373 = vmul.f32 %v4085, %v4223
        %v4374 = vmul.f32 %v4086, %v4228
        %v4375 = vmul.f32 %v4087, %v4228
        %v4376 = vmul.f32 %v4088, %v4228
        %v4377 = vmul.f32 %v4089, %v4228
        %v4378 = vmul.f32 %v4090, %v4233
        %v4379 = vmul.f32 %v4091, %v4233
        %v4380 = vmul.f32 %v4092, %v4233
        %v4381 = vmul.f32 %v4093, %v4233
        %v4382 = vmul.f32 %v4094, %v4238
        %v4383 = vmul.f32 %v4095, %v4238
        %v4384 = vmul.f32 %v4096, %v4238
        %v4385 = vmul.f32 %v4097, %v4238
        %v4386 = vmul.f32 %v4098, %v4243
        %v4387 = vmul.f32 %v4099, %v4243
        %v4388 = vmul.f32 %v4100, %v4243
        %v4389 = vmul.f32 %v4101, %v4243
        %v4390 = vmul.f32 %v4102, %v4248
        %v4391 = vmul.f32 %v4103, %v4248
        %v4392 = vmul.f32 %v4104, %v4248
        %v4393 = vmul.f32 %v4105, %v4248
        %v4394 = vmul.f32 %v4106, %v4253
        %v4395 = vmul.f32 %v4107, %v4253
        %v4396 = vmul.f32 %v4108, %v4253
        %v4397 = vmul.f32 %v4109, %v4253
        %v4398 = vmul.f32 %v4110, %v4258
        %v4399 = vmul.f32 %v4111, %v4258
        %v4400 = vmul.f32 %v4112, %v4258
        %v4401 = vmul.f32 %v4113, %v4258
        %v4402 = vmul.f32 %v4114, %v4263
        %v4403 = vmul.f32 %v4115, %v4263
        %v4404 = vmul.f32 %v4116, %v4263
        %v4405 = vmul.f32 %v4117, %v4263
        %v4406 = vmul.f32 %v4118, %v4268
        %v4407 = vmul.f32 %v4119, %v4268
        %v4408 = vmul.f32 %v4120, %v4268
        %v4409 = vmul.f32 %v4121, %v4268
        %v4410 = vmul.f32 %v4122, %v4273
        %v4411 = vmul.f32 %v4123, %v4273
        %v4412 = vmul.f32 %v4124, %v4273
        %v4413 = vmul.f32 %v4125, %v4273
        %v4414 = vmul.f32 %v4126, %v4278
        %v4415 = vmul.f32 %v4127, %v4278
        %v4416 = vmul.f32 %v4128, %v4278
        %v4417 = vmul.f32 %v4129, %v4278
        %v4418 = vmul.f32 %v4130, %v4283
        %v4419 = vmul.f32 %v4131, %v4283
        %v4420 = vmul.f32 %v4132, %v4283
        %v4421 = vmul.f32 %v4133, %v4283
        %v4422 = vmul.f32 %v4134, %v4288
        %v4423 = vmul.f32 %v4135, %v4288
        %v4424 = vmul.f32 %v4136, %v4288
        %v4425 = vmul.f32 %v4137, %v4288
        %v4426 = vmul.f32 %v4138, %v4293
        %v4427 = vmul.f32 %v4139, %v4293
        %v4428 = vmul.f32 %v4140, %v4293
        %v4429 = vmul.f32 %v4141, %v4293
        %v4430 = vmul.f32 %v4142, %v4298
        %v4431 = vmul.f32 %v4143, %v4298
        %v4432 = vmul.f32 %v4144, %v4298
        %v4433 = vmul.f32 %v4145, %v4298
        %v4434 = vmul.f32 %v4146, %v4303
        %v4435 = vmul.f32 %v4147, %v4303
        %v4436 = vmul.f32 %v4148, %v4303
        %v4437 = vmul.f32 %v4149, %v4303
        %v4438 = vmul.f32 %v4150, %v4308
        %v4439 = vmul.f32 %v4151, %v4308
        %v4440 = vmul.f32 %v4152, %v4308
        %v4441 = vmul.f32 %v4153, %v4308
        %v4442 = vmul.f32 %v4154, %v4313
        %v4443 = vmul.f32 %v4155, %v4313
        %v4444 = vmul.f32 %v4156, %v4313
        %v4445 = vmul.f32 %v4157, %v4313
        %v4446 = vmul.f32 %v4158, %v4318
        %v4447 = vmul.f32 %v4159, %v4318
        %v4448 = vmul.f32 %v4160, %v4318
        %v4449 = vmul.f32 %v4161, %v4318
        %v4450 = vmul.f32 %v4162, %v4323
        %v4451 = vmul.f32 %v4163, %v4323
        %v4452 = vmul.f32 %v4164, %v4323
        %v4453 = vmul.f32 %v4165, %v4323
        %v4454 = vmul.f32 %v4166, %v4328
        %v4455 = vmul.f32 %v4167, %v4328
        %v4456 = vmul.f32 %v4168, %v4328
        %v4457 = vmul.f32 %v4169, %v4328
        %4459 = vset.pattern.permute.xlu0 0
        %4460 = vperm.xlu0 %4459, %v3429
        %v4461 = vpop.permute.xlu0 %4460
        %4464 = vset.pattern.permute.xlu0 0
        %4465 = vperm.xlu0 %4464, %v3430
        %v4466 = vpop.permute.xlu0 %4465
        %4469 = vset.pattern.permute.xlu0 0
        %4470 = vperm.xlu0 %4469, %v3431
        %v4471 = vpop.permute.xlu0 %4470
        %4474 = vset.pattern.permute.xlu0 0
        %4475 = vperm.xlu0 %4474, %v3432
        %v4476 = vpop.permute.xlu0 %4475
        %4479 = vset.pattern.permute.xlu0 0
        %4480 = vperm.xlu0 %4479, %v3433
        %v4481 = vpop.permute.xlu0 %4480
        %4484 = vset.pattern.permute.xlu0 0
        %4485 = vperm.xlu0 %4484, %v3434
        %v4486 = vpop.permute.xlu0 %4485
        %4489 = vset.pattern.permute.xlu0 0
        %4490 = vperm.xlu0 %4489, %v3435
        %v4491 = vpop.permute.xlu0 %4490
        %4494 = vset.pattern.permute.xlu0 0
        %4495 = vperm.xlu0 %4494, %v3436
        %v4496 = vpop.permute.xlu0 %4495
        %4499 = vset.pattern.permute.xlu0 0
        %4500 = vperm.xlu0 %4499, %v3437
        %v4501 = vpop.permute.xlu0 %4500
        %4504 = vset.pattern.permute.xlu0 0
        %4505 = vperm.xlu0 %4504, %v3438
        %v4506 = vpop.permute.xlu0 %4505
        %4509 = vset.pattern.permute.xlu0 0
        %4510 = vperm.xlu0 %4509, %v3439
        %v4511 = vpop.permute.xlu0 %4510
        %4514 = vset.pattern.permute.xlu0 0
        %4515 = vperm.xlu0 %4514, %v3440
        %v4516 = vpop.permute.xlu0 %4515
        %4519 = vset.pattern.permute.xlu0 0
        %4520 = vperm.xlu0 %4519, %v3441
        %v4521 = vpop.permute.xlu0 %4520
        %4524 = vset.pattern.permute.xlu0 0
        %4525 = vperm.xlu0 %4524, %v3442
        %v4526 = vpop.permute.xlu0 %4525
        %4529 = vset.pattern.permute.xlu0 0
        %4530 = vperm.xlu0 %4529, %v3443
        %v4531 = vpop.permute.xlu0 %4530
        %4534 = vset.pattern.permute.xlu0 0
        %4535 = vperm.xlu0 %4534, %v3444
        %v4536 = vpop.permute.xlu0 %4535
        %4539 = vset.pattern.permute.xlu0 0
        %4540 = vperm.xlu0 %4539, %v3445
        %v4541 = vpop.permute.xlu0 %4540
        %4544 = vset.pattern.permute.xlu0 0
        %4545 = vperm.xlu0 %4544, %v3446
        %v4546 = vpop.permute.xlu0 %4545
        %4549 = vset.pattern.permute.xlu0 0
        %4550 = vperm.xlu0 %4549, %v3447
        %v4551 = vpop.permute.xlu0 %4550
        %4554 = vset.pattern.permute.xlu0 0
        %4555 = vperm.xlu0 %4554, %v3448
        %v4556 = vpop.permute.xlu0 %4555
        %4559 = vset.pattern.permute.xlu0 0
        %4560 = vperm.xlu0 %4559, %v3449
        %v4561 = vpop.permute.xlu0 %4560
        %4564 = vset.pattern.permute.xlu0 0
        %4565 = vperm.xlu0 %4564, %v3450
        %v4566 = vpop.permute.xlu0 %4565
        %4569 = vset.pattern.permute.xlu0 0
        %4570 = vperm.xlu0 %4569, %v3451
        %v4571 = vpop.permute.xlu0 %4570
        %4574 = vset.pattern.permute.xlu0 0
        %4575 = vperm.xlu0 %4574, %v3452
        %v4576 = vpop.permute.xlu0 %4575
        %4579 = vset.pattern.permute.xlu0 0
        %4580 = vperm.xlu0 %4579, %v3453
        %v4581 = vpop.permute.xlu0 %4580
        %4584 = vset.pattern.permute.xlu0 0
        %4585 = vperm.xlu0 %4584, %v3454
        %v4586 = vpop.permute.xlu0 %4585
        %4589 = vset.pattern.permute.xlu0 0
        %4590 = vperm.xlu0 %4589, %v3455
        %v4591 = vpop.permute.xlu0 %4590
        %4594 = vset.pattern.permute.xlu0 0
        %4595 = vperm.xlu0 %4594, %v3456
        %v4596 = vpop.permute.xlu0 %4595
        %4599 = vset.pattern.permute.xlu0 0
        %4600 = vperm.xlu0 %4599, %v3457
        %v4601 = vpop.permute.xlu0 %4600
        %4604 = vset.pattern.permute.xlu0 0
        %4605 = vperm.xlu0 %4604, %v3458
        %v4606 = vpop.permute.xlu0 %4605
        %4609 = vset.pattern.permute.xlu0 0
        %4610 = vperm.xlu0 %4609, %v3459
        %v4611 = vpop.permute.xlu0 %4610
        %4614 = vset.pattern.permute.xlu0 0
        %4615 = vperm.xlu0 %4614, %v3460
        %v4616 = vpop.permute.xlu0 %4615
        %v4618 = vadd.f32 %v4330, %v4461
        %v4619 = vadd.f32 %v4331, %v4461
        %v4620 = vadd.f32 %v4332, %v4461
        %v4621 = vadd.f32 %v4333, %v4461
        %v4622 = vadd.f32 %v4334, %v4466
        %v4623 = vadd.f32 %v4335, %v4466
        %v4624 = vadd.f32 %v4336, %v4466
        %v4625 = vadd.f32 %v4337, %v4466
        %v4626 = vadd.f32 %v4338, %v4471
        %v4627 = vadd.f32 %v4339, %v4471
        %v4628 = vadd.f32 %v4340, %v4471
        %v4629 = vadd.f32 %v4341, %v4471
        %v4630 = vadd.f32 %v4342, %v4476
        %v4631 = vadd.f32 %v4343, %v4476
        %v4632 = vadd.f32 %v4344, %v4476
        %v4633 = vadd.f32 %v4345, %v4476
        %v4634 = vadd.f32 %v4346, %v4481
        %v4635 = vadd.f32 %v4347, %v4481
        %v4636 = vadd.f32 %v4348, %v4481
        %v4637 = vadd.f32 %v4349, %v4481
        %v4638 = vadd.f32 %v4350, %v4486
        %v4639 = vadd.f32 %v4351, %v4486
        %v4640 = vadd.f32 %v4352, %v4486
        %v4641 = vadd.f32 %v4353, %v4486
        %v4642 = vadd.f32 %v4354, %v4491
        %v4643 = vadd.f32 %v4355, %v4491
        %v4644 = vadd.f32 %v4356, %v4491
        %v4645 = vadd.f32 %v4357, %v4491
        %v4646 = vadd.f32 %v4358, %v4496
        %v4647 = vadd.f32 %v4359, %v4496
        %v4648 = vadd.f32 %v4360, %v4496
        %v4649 = vadd.f32 %v4361, %v4496
        %v4650 = vadd.f32 %v4362, %v4501
        %v4651 = vadd.f32 %v4363, %v4501
        %v4652 = vadd.f32 %v4364, %v4501
        %v4653 = vadd.f32 %v4365, %v4501
        %v4654 = vadd.f32 %v4366, %v4506
        %v4655 = vadd.f32 %v4367, %v4506
        %v4656 = vadd.f32 %v4368, %v4506
        %v4657 = vadd.f32 %v4369, %v4506
        %v4658 = vadd.f32 %v4370, %v4511
        %v4659 = vadd.f32 %v4371, %v4511
        %v4660 = vadd.f32 %v4372, %v4511
        %v4661 = vadd.f32 %v4373, %v4511
        %v4662 = vadd.f32 %v4374, %v4516
        %v4663 = vadd.f32 %v4375, %v4516
        %v4664 = vadd.f32 %v4376, %v4516
        %v4665 = vadd.f32 %v4377, %v4516
        %v4666 = vadd.f32 %v4378, %v4521
        %v4667 = vadd.f32 %v4379, %v4521
        %v4668 = vadd.f32 %v4380, %v4521
        %v4669 = vadd.f32 %v4381, %v4521
        %v4670 = vadd.f32 %v4382, %v4526
        %v4671 = vadd.f32 %v4383, %v4526
        %v4672 = vadd.f32 %v4384, %v4526
        %v4673 = vadd.f32 %v4385, %v4526
        %v4674 = vadd.f32 %v4386, %v4531
        %v4675 = vadd.f32 %v4387, %v4531
        %v4676 = vadd.f32 %v4388, %v4531
        %v4677 = vadd.f32 %v4389, %v4531
        %v4678 = vadd.f32 %v4390, %v4536
        %v4679 = vadd.f32 %v4391, %v4536
        %v4680 = vadd.f32 %v4392, %v4536
        %v4681 = vadd.f32 %v4393, %v4536
        %v4682 = vadd.f32 %v4394, %v4541
        %v4683 = vadd.f32 %v4395, %v4541
        %v4684 = vadd.f32 %v4396, %v4541
        %v4685 = vadd.f32 %v4397, %v4541
        %v4686 = vadd.f32 %v4398, %v4546
        %v4687 = vadd.f32 %v4399, %v4546
        %v4688 = vadd.f32 %v4400, %v4546
        %v4689 = vadd.f32 %v4401, %v4546
        %v4690 = vadd.f32 %v4402, %v4551
        %v4691 = vadd.f32 %v4403, %v4551
        %v4692 = vadd.f32 %v4404, %v4551
        %v4693 = vadd.f32 %v4405, %v4551
        %v4694 = vadd.f32 %v4406, %v4556
        %v4695 = vadd.f32 %v4407, %v4556
        %v4696 = vadd.f32 %v4408, %v4556
        %v4697 = vadd.f32 %v4409, %v4556
        %v4698 = vadd.f32 %v4410, %v4561
        %v4699 = vadd.f32 %v4411, %v4561
        %v4700 = vadd.f32 %v4412, %v4561
        %v4701 = vadd.f32 %v4413, %v4561
        %v4702 = vadd.f32 %v4414, %v4566
        %v4703 = vadd.f32 %v4415, %v4566
        %v4704 = vadd.f32 %v4416, %v4566
        %v4705 = vadd.f32 %v4417, %v4566
        %v4706 = vadd.f32 %v4418, %v4571
        %v4707 = vadd.f32 %v4419, %v4571
        %v4708 = vadd.f32 %v4420, %v4571
        %v4709 = vadd.f32 %v4421, %v4571
        %v4710 = vadd.f32 %v4422, %v4576
        %v4711 = vadd.f32 %v4423, %v4576
        %v4712 = vadd.f32 %v4424, %v4576
        %v4713 = vadd.f32 %v4425, %v4576
        %v4714 = vadd.f32 %v4426, %v4581
        %v4715 = vadd.f32 %v4427, %v4581
        %v4716 = vadd.f32 %v4428, %v4581
        %v4717 = vadd.f32 %v4429, %v4581
        %v4718 = vadd.f32 %v4430, %v4586
        %v4719 = vadd.f32 %v4431, %v4586
        %v4720 = vadd.f32 %v4432, %v4586
        %v4721 = vadd.f32 %v4433, %v4586
        %v4722 = vadd.f32 %v4434, %v4591
        %v4723 = vadd.f32 %v4435, %v4591
        %v4724 = vadd.f32 %v4436, %v4591
        %v4725 = vadd.f32 %v4437, %v4591
        %v4726 = vadd.f32 %v4438, %v4596
        %v4727 = vadd.f32 %v4439, %v4596
        %v4728 = vadd.f32 %v4440, %v4596
        %v4729 = vadd.f32 %v4441, %v4596
        %v4730 = vadd.f32 %v4442, %v4601
        %v4731 = vadd.f32 %v4443, %v4601
        %v4732 = vadd.f32 %v4444, %v4601
        %v4733 = vadd.f32 %v4445, %v4601
        %v4734 = vadd.f32 %v4446, %v4606
        %v4735 = vadd.f32 %v4447, %v4606
        %v4736 = vadd.f32 %v4448, %v4606
        %v4737 = vadd.f32 %v4449, %v4606
        %v4738 = vadd.f32 %v4450, %v4611
        %v4739 = vadd.f32 %v4451, %v4611
        %v4740 = vadd.f32 %v4452, %v4611
        %v4741 = vadd.f32 %v4453, %v4611
        %v4742 = vadd.f32 %v4454, %v4616
        %v4743 = vadd.f32 %v4455, %v4616
        %v4744 = vadd.f32 %v4456, %v4616
        %v4745 = vadd.f32 %v4457, %v4616
        %v4746 = vtanh.pop %v4618
        %v4747 = vtanh.pop %v4619
        %v4748 = vtanh.pop %v4620
        %v4749 = vtanh.pop %v4621
        %v4750 = vtanh.pop %v4622
        %v4751 = vtanh.pop %v4623
        %v4752 = vtanh.pop %v4624
        %v4753 = vtanh.pop %v4625
        %v4754 = vtanh.pop %v4626
        %v4755 = vtanh.pop %v4627
        %v4756 = vtanh.pop %v4628
        %v4757 = vtanh.pop %v4629
        %v4758 = vtanh.pop %v4630
        %v4759 = vtanh.pop %v4631
        %v4760 = vtanh.pop %v4632
        %v4761 = vtanh.pop %v4633
        %v4762 = vtanh.pop %v4634
        %v4763 = vtanh.pop %v4635
        %v4764 = vtanh.pop %v4636
        %v4765 = vtanh.pop %v4637
        %v4766 = vtanh.pop %v4638
        %v4767 = vtanh.pop %v4639
        %v4768 = vtanh.pop %v4640
        %v4769 = vtanh.pop %v4641
        %v4770 = vtanh.pop %v4642
        %v4771 = vtanh.pop %v4643
        %v4772 = vtanh.pop %v4644
        %v4773 = vtanh.pop %v4645
        %v4774 = vtanh.pop %v4646
        %v4775 = vtanh.pop %v4647
        %v4776 = vtanh.pop %v4648
        %v4777 = vtanh.pop %v4649
        %v4778 = vtanh.pop %v4650
        %v4779 = vtanh.pop %v4651
        %v4780 = vtanh.pop %v4652
        %v4781 = vtanh.pop %v4653
        %v4782 = vtanh.pop %v4654
        %v4783 = vtanh.pop %v4655
        %v4784 = vtanh.pop %v4656
        %v4785 = vtanh.pop %v4657
        %v4786 = vtanh.pop %v4658
        %v4787 = vtanh.pop %v4659
        %v4788 = vtanh.pop %v4660
        %v4789 = vtanh.pop %v4661
        %v4790 = vtanh.pop %v4662
        %v4791 = vtanh.pop %v4663
        %v4792 = vtanh.pop %v4664
        %v4793 = vtanh.pop %v4665
        %v4794 = vtanh.pop %v4666
        %v4795 = vtanh.pop %v4667
        %v4796 = vtanh.pop %v4668
        %v4797 = vtanh.pop %v4669
        %v4798 = vtanh.pop %v4670
        %v4799 = vtanh.pop %v4671
        %v4800 = vtanh.pop %v4672
        %v4801 = vtanh.pop %v4673
        %v4802 = vtanh.pop %v4674
        %v4803 = vtanh.pop %v4675
        %v4804 = vtanh.pop %v4676
        %v4805 = vtanh.pop %v4677
        %v4806 = vtanh.pop %v4678
        %v4807 = vtanh.pop %v4679
        %v4808 = vtanh.pop %v4680
        %v4809 = vtanh.pop %v4681
        %v4810 = vtanh.pop %v4682
        %v4811 = vtanh.pop %v4683
        %v4812 = vtanh.pop %v4684
        %v4813 = vtanh.pop %v4685
        %v4814 = vtanh.pop %v4686
        %v4815 = vtanh.pop %v4687
        %v4816 = vtanh.pop %v4688
        %v4817 = vtanh.pop %v4689
        %v4818 = vtanh.pop %v4690
        %v4819 = vtanh.pop %v4691
        %v4820 = vtanh.pop %v4692
        %v4821 = vtanh.pop %v4693
        %v4822 = vtanh.pop %v4694
        %v4823 = vtanh.pop %v4695
        %v4824 = vtanh.pop %v4696
        %v4825 = vtanh.pop %v4697
        %v4826 = vtanh.pop %v4698
        %v4827 = vtanh.pop %v4699
        %v4828 = vtanh.pop %v4700
        %v4829 = vtanh.pop %v4701
        %v4830 = vtanh.pop %v4702
        %v4831 = vtanh.pop %v4703
        %v4832 = vtanh.pop %v4704
        %v4833 = vtanh.pop %v4705
        %v4834 = vtanh.pop %v4706
        %v4835 = vtanh.pop %v4707
        %v4836 = vtanh.pop %v4708
        %v4837 = vtanh.pop %v4709
        %v4838 = vtanh.pop %v4710
        %v4839 = vtanh.pop %v4711
        %v4840 = vtanh.pop %v4712
        %v4841 = vtanh.pop %v4713
        %v4842 = vtanh.pop %v4714
        %v4843 = vtanh.pop %v4715
        %v4844 = vtanh.pop %v4716
        %v4845 = vtanh.pop %v4717
        %v4846 = vtanh.pop %v4718
        %v4847 = vtanh.pop %v4719
        %v4848 = vtanh.pop %v4720
        %v4849 = vtanh.pop %v4721
        %v4850 = vtanh.pop %v4722
        %v4851 = vtanh.pop %v4723
        %v4852 = vtanh.pop %v4724
        %v4853 = vtanh.pop %v4725
        %v4854 = vtanh.pop %v4726
        %v4855 = vtanh.pop %v4727
        %v4856 = vtanh.pop %v4728
        %v4857 = vtanh.pop %v4729
        %v4858 = vtanh.pop %v4730
        %v4859 = vtanh.pop %v4731
        %v4860 = vtanh.pop %v4732
        %v4861 = vtanh.pop %v4733
        %v4862 = vtanh.pop %v4734
        %v4863 = vtanh.pop %v4735
        %v4864 = vtanh.pop %v4736
        %v4865 = vtanh.pop %v4737
        %v4866 = vtanh.pop %v4738
        %v4867 = vtanh.pop %v4739
        %v4868 = vtanh.pop %v4740
        %v4869 = vtanh.pop %v4741
        %v4870 = vtanh.pop %v4742
        %v4871 = vtanh.pop %v4743
        %v4872 = vtanh.pop %v4744
        %v4873 = vtanh.pop %v4745
        %v4874 = vpack.c.bf16 %v4750, %v4746
        %v4875 = vpack.c.bf16 %v4751, %v4747
        %v4876 = vpack.c.bf16 %v4752, %v4748
        %v4877 = vpack.c.bf16 %v4753, %v4749
        %v4878 = vpack.c.bf16 %v4758, %v4754
        %v4879 = vpack.c.bf16 %v4759, %v4755
        %v4880 = vpack.c.bf16 %v4760, %v4756
        %v4881 = vpack.c.bf16 %v4761, %v4757
        %v4882 = vpack.c.bf16 %v4766, %v4762
        %v4883 = vpack.c.bf16 %v4767, %v4763
        %v4884 = vpack.c.bf16 %v4768, %v4764
        %v4885 = vpack.c.bf16 %v4769, %v4765
        %v4886 = vpack.c.bf16 %v4774, %v4770
        %v4887 = vpack.c.bf16 %v4775, %v4771
        %v4888 = vpack.c.bf16 %v4776, %v4772
        %v4889 = vpack.c.bf16 %v4777, %v4773
        %v4890 = vpack.c.bf16 %v4782, %v4778
        %v4891 = vpack.c.bf16 %v4783, %v4779
        %v4892 = vpack.c.bf16 %v4784, %v4780
        %v4893 = vpack.c.bf16 %v4785, %v4781
        %v4894 = vpack.c.bf16 %v4790, %v4786
        %v4895 = vpack.c.bf16 %v4791, %v4787
        %v4896 = vpack.c.bf16 %v4792, %v4788
        %v4897 = vpack.c.bf16 %v4793, %v4789
        %v4898 = vpack.c.bf16 %v4798, %v4794
        %v4899 = vpack.c.bf16 %v4799, %v4795
        %v4900 = vpack.c.bf16 %v4800, %v4796
        %v4901 = vpack.c.bf16 %v4801, %v4797
        %v4902 = vpack.c.bf16 %v4806, %v4802
        %v4903 = vpack.c.bf16 %v4807, %v4803
        %v4904 = vpack.c.bf16 %v4808, %v4804
        %v4905 = vpack.c.bf16 %v4809, %v4805
        %v4906 = vpack.c.bf16 %v4814, %v4810
        %v4907 = vpack.c.bf16 %v4815, %v4811
        %v4908 = vpack.c.bf16 %v4816, %v4812
        %v4909 = vpack.c.bf16 %v4817, %v4813
        %v4910 = vpack.c.bf16 %v4822, %v4818
        %v4911 = vpack.c.bf16 %v4823, %v4819
        %v4912 = vpack.c.bf16 %v4824, %v4820
        %v4913 = vpack.c.bf16 %v4825, %v4821
        %v4914 = vpack.c.bf16 %v4830, %v4826
        %v4915 = vpack.c.bf16 %v4831, %v4827
        %v4916 = vpack.c.bf16 %v4832, %v4828
        %v4917 = vpack.c.bf16 %v4833, %v4829
        %v4918 = vpack.c.bf16 %v4838, %v4834
        %v4919 = vpack.c.bf16 %v4839, %v4835
        %v4920 = vpack.c.bf16 %v4840, %v4836
        %v4921 = vpack.c.bf16 %v4841, %v4837
        %v4922 = vpack.c.bf16 %v4846, %v4842
        %v4923 = vpack.c.bf16 %v4847, %v4843
        %v4924 = vpack.c.bf16 %v4848, %v4844
        %v4925 = vpack.c.bf16 %v4849, %v4845
        %v4926 = vpack.c.bf16 %v4854, %v4850
        %v4927 = vpack.c.bf16 %v4855, %v4851
        %v4928 = vpack.c.bf16 %v4856, %v4852
        %v4929 = vpack.c.bf16 %v4857, %v4853
        %v4930 = vpack.c.bf16 %v4862, %v4858
        %v4931 = vpack.c.bf16 %v4863, %v4859
        %v4932 = vpack.c.bf16 %v4864, %v4860
        %v4933 = vpack.c.bf16 %v4865, %v4861
        %v4934 = vpack.c.bf16 %v4870, %v4866
        %v4935 = vpack.c.bf16 %v4871, %v4867
        %v4936 = vpack.c.bf16 %v4872, %v4868
        %v4937 = vpack.c.bf16 %v4873, %v4869
        %v4938 = vld [vmem:[%s5] sm:$0xff]
        %v4939 = vld [vmem:[%s5 + $0x8] sm:$0xff]
        %v4940 = vld [vmem:[%s5 + $0x10] sm:$0xff]
        %v4941 = vld [vmem:[%s5 + $0x18] sm:$0xff]
        %v4942 = vld [vmem:[%s5 + $0x20] sm:$0xff]
        %v4943 = vld [vmem:[%s5 + $0x28] sm:$0xff]
        %v4944 = vld [vmem:[%s5 + $0x30] sm:$0xff]
        %v4945 = vld [vmem:[%s5 + $0x38] sm:$0xff]
        %v4946 = vmul.bf16 %v4874, 1073758208
        %v4947 = vmul.bf16 %v4875, 1073758208
        %v4948 = vmul.bf16 %v4876, 1073758208
        %v4949 = vmul.bf16 %v4877, 1073758208
        %v4950 = vmul.bf16 %v4878, 1073758208
        %v4951 = vmul.bf16 %v4879, 1073758208
        %v4952 = vmul.bf16 %v4880, 1073758208
        %v4953 = vmul.bf16 %v4881, 1073758208
        %v4954 = vmul.bf16 %v4882, 1073758208
        %v4955 = vmul.bf16 %v4883, 1073758208
        %v4956 = vmul.bf16 %v4884, 1073758208
        %v4957 = vmul.bf16 %v4885, 1073758208
        %v4958 = vmul.bf16 %v4886, 1073758208
        %v4959 = vmul.bf16 %v4887, 1073758208
        %v4960 = vmul.bf16 %v4888, 1073758208
        %v4961 = vmul.bf16 %v4889, 1073758208
        %v4962 = vmul.bf16 %v4890, 1073758208
        %v4963 = vmul.bf16 %v4891, 1073758208
        %v4964 = vmul.bf16 %v4892, 1073758208
        %v4965 = vmul.bf16 %v4893, 1073758208
        %v4966 = vmul.bf16 %v4894, 1073758208
        %v4967 = vmul.bf16 %v4895, 1073758208
        %v4968 = vmul.bf16 %v4896, 1073758208
        %v4969 = vmul.bf16 %v4897, 1073758208
        %v4970 = vmul.bf16 %v4898, 1073758208
        %v4971 = vmul.bf16 %v4899, 1073758208
        %v4972 = vmul.bf16 %v4900, 1073758208
        %v4973 = vmul.bf16 %v4901, 1073758208
        %v4974 = vmul.bf16 %v4902, 1073758208
        %v4975 = vmul.bf16 %v4903, 1073758208
        %v4976 = vmul.bf16 %v4904, 1073758208
        %v4977 = vmul.bf16 %v4905, 1073758208
        %v4978 = vmul.bf16 %v4906, 1073758208
        %v4979 = vmul.bf16 %v4907, 1073758208
        %v4980 = vmul.bf16 %v4908, 1073758208
        %v4981 = vmul.bf16 %v4909, 1073758208
        %v4982 = vmul.bf16 %v4910, 1073758208
        %v4983 = vmul.bf16 %v4911, 1073758208
        %v4984 = vmul.bf16 %v4912, 1073758208
        %v4985 = vmul.bf16 %v4913, 1073758208
        %v4986 = vmul.bf16 %v4914, 1073758208
        %v4987 = vmul.bf16 %v4915, 1073758208
        %v4988 = vmul.bf16 %v4916, 1073758208
        %v4989 = vmul.bf16 %v4917, 1073758208
        %v4990 = vmul.bf16 %v4918, 1073758208
        %v4991 = vmul.bf16 %v4919, 1073758208
        %v4992 = vmul.bf16 %v4920, 1073758208
        %v4993 = vmul.bf16 %v4921, 1073758208
        %v4994 = vmul.bf16 %v4922, 1073758208
        %v4995 = vmul.bf16 %v4923, 1073758208
        %v4996 = vmul.bf16 %v4924, 1073758208
        %v4997 = vmul.bf16 %v4925, 1073758208
        %v4998 = vmul.bf16 %v4926, 1073758208
        %v4999 = vmul.bf16 %v4927, 1073758208
        %v5000 = vmul.bf16 %v4928, 1073758208
        %v5001 = vmul.bf16 %v4929, 1073758208
        %v5002 = vmul.bf16 %v4930, 1073758208
        %v5003 = vmul.bf16 %v4931, 1073758208
        %v5004 = vmul.bf16 %v4932, 1073758208
        %v5005 = vmul.bf16 %v4933, 1073758208
        %v5006 = vmul.bf16 %v4934, 1073758208
        %v5007 = vmul.bf16 %v4935, 1073758208
        %v5008 = vmul.bf16 %v4936, 1073758208
        %v5009 = vmul.bf16 %v4937, 1073758208
        %v5010 = vmul.bf16 %v4946, %v4874
        %v5011 = vmul.bf16 %v4947, %v4875
        %v5012 = vmul.bf16 %v4948, %v4876
        %v5013 = vmul.bf16 %v4949, %v4877
        %v5014 = vmul.bf16 %v4950, %v4878
        %v5015 = vmul.bf16 %v4951, %v4879
        %v5016 = vmul.bf16 %v4952, %v4880
        %v5017 = vmul.bf16 %v4953, %v4881
        %v5018 = vmul.bf16 %v4954, %v4882
        %v5019 = vmul.bf16 %v4955, %v4883
        %v5020 = vmul.bf16 %v4956, %v4884
        %v5021 = vmul.bf16 %v4957, %v4885
        %v5022 = vmul.bf16 %v4958, %v4886
        %v5023 = vmul.bf16 %v4959, %v4887
        %v5024 = vmul.bf16 %v4960, %v4888
        %v5025 = vmul.bf16 %v4961, %v4889
        %v5026 = vmul.bf16 %v4962, %v4890
        %v5027 = vmul.bf16 %v4963, %v4891
        %v5028 = vmul.bf16 %v4964, %v4892
        %v5029 = vmul.bf16 %v4965, %v4893
        %v5030 = vmul.bf16 %v4966, %v4894
        %v5031 = vmul.bf16 %v4967, %v4895
        %v5032 = vmul.bf16 %v4968, %v4896
        %v5033 = vmul.bf16 %v4969, %v4897
        %v5034 = vmul.bf16 %v4970, %v4898
        %v5035 = vmul.bf16 %v4971, %v4899
        %v5036 = vmul.bf16 %v4972, %v4900
        %v5037 = vmul.bf16 %v4973, %v4901
        %v5038 = vmul.bf16 %v4974, %v4902
        %v5039 = vmul.bf16 %v4975, %v4903
        %v5040 = vmul.bf16 %v4976, %v4904
        %v5041 = vmul.bf16 %v4977, %v4905
        %v5042 = vmul.bf16 %v4978, %v4906
        %v5043 = vmul.bf16 %v4979, %v4907
        %v5044 = vmul.bf16 %v4980, %v4908
        %v5045 = vmul.bf16 %v4981, %v4909
        %v5046 = vmul.bf16 %v4982, %v4910
        %v5047 = vmul.bf16 %v4983, %v4911
        %v5048 = vmul.bf16 %v4984, %v4912
        %v5049 = vmul.bf16 %v4985, %v4913
        %v5050 = vmul.bf16 %v4986, %v4914
        %v5051 = vmul.bf16 %v4987, %v4915
        %v5052 = vmul.bf16 %v4988, %v4916
        %v5053 = vmul.bf16 %v4989, %v4917
        %v5054 = vmul.bf16 %v4990, %v4918
        %v5055 = vmul.bf16 %v4991, %v4919
        %v5056 = vmul.bf16 %v4992, %v4920
        %v5057 = vmul.bf16 %v4993, %v4921
        %v5058 = vmul.bf16 %v4994, %v4922
        %v5059 = vmul.bf16 %v4995, %v4923
        %v5060 = vmul.bf16 %v4996, %v4924
        %v5061 = vmul.bf16 %v4997, %v4925
        %v5062 = vmul.bf16 %v4998, %v4926
        %v5063 = vmul.bf16 %v4999, %v4927
        %v5064 = vmul.bf16 %v5000, %v4928
        %v5065 = vmul.bf16 %v5001, %v4929
        %v5066 = vmul.bf16 %v5002, %v4930
        %v5067 = vmul.bf16 %v5003, %v4931
        %v5068 = vmul.bf16 %v5004, %v4932
        %v5069 = vmul.bf16 %v5005, %v4933
        %v5070 = vmul.bf16 %v5006, %v4934
        %v5071 = vmul.bf16 %v5007, %v4935
        %v5072 = vmul.bf16 %v5008, %v4936
        %v5073 = vmul.bf16 %v5009, %v4937
        %v5074 = vsub.bf16 %v5010, 1065369472
        %v5075 = vsub.bf16 %v5011, 1065369472
        %v5076 = vsub.bf16 %v5012, 1065369472
        %v5077 = vsub.bf16 %v5013, 1065369472
        %v5078 = vsub.bf16 %v5014, 1065369472
        %v5079 = vsub.bf16 %v5015, 1065369472
        %v5080 = vsub.bf16 %v5016, 1065369472
        %v5081 = vsub.bf16 %v5017, 1065369472
        %v5082 = vsub.bf16 %v5018, 1065369472
        %v5083 = vsub.bf16 %v5019, 1065369472
        %v5084 = vsub.bf16 %v5020, 1065369472
        %v5085 = vsub.bf16 %v5021, 1065369472
        %v5086 = vsub.bf16 %v5022, 1065369472
        %v5087 = vsub.bf16 %v5023, 1065369472
        %v5088 = vsub.bf16 %v5024, 1065369472
        %v5089 = vsub.bf16 %v5025, 1065369472
        %v5090 = vsub.bf16 %v5026, 1065369472
        %v5091 = vsub.bf16 %v5027, 1065369472
        %v5092 = vsub.bf16 %v5028, 1065369472
        %v5093 = vsub.bf16 %v5029, 1065369472
        %v5094 = vsub.bf16 %v5030, 1065369472
        %v5095 = vsub.bf16 %v5031, 1065369472
        %v5096 = vsub.bf16 %v5032, 1065369472
        %v5097 = vsub.bf16 %v5033, 1065369472
        %v5098 = vsub.bf16 %v5034, 1065369472
        %v5099 = vsub.bf16 %v5035, 1065369472
        %v5100 = vsub.bf16 %v5036, 1065369472
        %v5101 = vsub.bf16 %v5037, 1065369472
        %v5102 = vsub.bf16 %v5038, 1065369472
        %v5103 = vsub.bf16 %v5039, 1065369472
        %v5104 = vsub.bf16 %v5040, 1065369472
        %v5105 = vsub.bf16 %v5041, 1065369472
        %v5106 = vsub.bf16 %v5042, 1065369472
        %v5107 = vsub.bf16 %v5043, 1065369472
        %v5108 = vsub.bf16 %v5044, 1065369472
        %v5109 = vsub.bf16 %v5045, 1065369472
        %v5110 = vsub.bf16 %v5046, 1065369472
        %v5111 = vsub.bf16 %v5047, 1065369472
        %v5112 = vsub.bf16 %v5048, 1065369472
        %v5113 = vsub.bf16 %v5049, 1065369472
        %v5114 = vsub.bf16 %v5050, 1065369472
        %v5115 = vsub.bf16 %v5051, 1065369472
        %v5116 = vsub.bf16 %v5052, 1065369472
        %v5117 = vsub.bf16 %v5053, 1065369472
        %v5118 = vsub.bf16 %v5054, 1065369472
        %v5119 = vsub.bf16 %v5055, 1065369472
        %v5120 = vsub.bf16 %v5056, 1065369472
        %v5121 = vsub.bf16 %v5057, 1065369472
        %v5122 = vsub.bf16 %v5058, 1065369472
        %v5123 = vsub.bf16 %v5059, 1065369472
        %v5124 = vsub.bf16 %v5060, 1065369472
        %v5125 = vsub.bf16 %v5061, 1065369472
        %v5126 = vsub.bf16 %v5062, 1065369472
        %v5127 = vsub.bf16 %v5063, 1065369472
        %v5128 = vsub.bf16 %v5064, 1065369472
        %v5129 = vsub.bf16 %v5065, 1065369472
        %v5130 = vsub.bf16 %v5066, 1065369472
        %v5131 = vsub.bf16 %v5067, 1065369472
        %v5132 = vsub.bf16 %v5068, 1065369472
        %v5133 = vsub.bf16 %v5069, 1065369472
        %v5134 = vsub.bf16 %v5070, 1065369472
        %v5135 = vsub.bf16 %v5071, 1065369472
        %v5136 = vsub.bf16 %v5072, 1065369472
        %v5137 = vsub.bf16 %v5073, 1065369472
        %s5138 = scalar_lea.vmem %s5, 64
        %v5139 = vld [vmem:[%s5138] sm:$0xff]
        %v5140 = vld [vmem:[%s5138 + $0x8] sm:$0xff]
        %v5141 = vld [vmem:[%s5138 + $0x10] sm:$0xff]
        %v5142 = vld [vmem:[%s5138 + $0x18] sm:$0xff]
        %v5143 = vld [vmem:[%s5138 + $0x20] sm:$0xff]
        %v5144 = vld [vmem:[%s5138 + $0x28] sm:$0xff]
        %v5145 = vld [vmem:[%s5138 + $0x30] sm:$0xff]
        %v5146 = vld [vmem:[%s5138 + $0x38] sm:$0xff]
        %v5155 = vunpack.c.l.b16 %v5139
        %v5156 = vunpack.c.h.b16 %v5139
        %v5157 = vunpack.c.l.b16 %v5140
        %v5158 = vunpack.c.h.b16 %v5140
        %v5159 = vunpack.c.l.b16 %v5141
        %v5160 = vunpack.c.h.b16 %v5141
        %v5161 = vunpack.c.l.b16 %v5142
        %v5162 = vunpack.c.h.b16 %v5142
        %v5163 = vunpack.c.l.b16 %v5143
        %v5164 = vunpack.c.h.b16 %v5143
        %v5165 = vunpack.c.l.b16 %v5144
        %v5166 = vunpack.c.h.b16 %v5144
        %v5167 = vunpack.c.l.b16 %v5145
        %v5168 = vunpack.c.h.b16 %v5145
        %v5169 = vunpack.c.l.b16 %v5146
        %v5170 = vunpack.c.h.b16 %v5146
        %v5171 = vpack.c.b16 %v5157, %v5155
        %v5172 = vpack.c.b16 %v5158, %v5156
        %v5173 = vpack.c.b16 %v5161, %v5159
        %v5174 = vpack.c.b16 %v5162, %v5160
        %v5175 = vpack.c.b16 %v5165, %v5163
        %v5176 = vpack.c.b16 %v5166, %v5164
        %v5177 = vpack.c.b16 %v5169, %v5167
        %v5178 = vpack.c.b16 %v5170, %v5168
        %5187 = vmatprep.subr.bf16.mxu0 %v5075
        %5188 = vmatpush1.bf16.msra.mxu0 %v5074
        %5189 = vmatprep.subr.bf16.mxu0 %v5079
        %5190 = vmatpush1.bf16.msra.mxu0 %v5078
        %5191 = vmatprep.subr.bf16.mxu0 %v5083
        %5192 = vmatpush1.bf16.msra.mxu0 %v5082
        %5193 = vmatprep.subr.bf16.mxu0 %v5087
        %5194 = vmatpush1.bf16.msra.mxu0 %v5086
        %5195 = vmatprep.subr.bf16.mxu0 %v5091
        %5196 = vmatpush1.bf16.msra.mxu0 %v5090
        %5197 = vmatprep.subr.bf16.mxu0 %v5095
        %5198 = vmatpush1.bf16.msra.mxu0 %v5094
        %5199 = vmatprep.subr.bf16.mxu0 %v5099
        %5200 = vmatpush1.bf16.msra.mxu0 %v5098
        %5201 = vmatprep.subr.bf16.mxu0 %v5103
        %5202 = vmatpush1.bf16.msra.mxu0 %v5102
        %5203 = vmatprep.subr.bf16.mxu0 %v5107
        %5204 = vmatpush1.bf16.msra.mxu0 %v5106
        %5205 = vmatprep.subr.bf16.mxu0 %v5111
        %5206 = vmatpush1.bf16.msra.mxu0 %v5110
        %5207 = vmatprep.subr.bf16.mxu0 %v5115
        %5208 = vmatpush1.bf16.msra.mxu0 %v5114
        %5209 = vmatprep.subr.bf16.mxu0 %v5119
        %5210 = vmatpush1.bf16.msra.mxu0 %v5118
        %5211 = vmatprep.subr.bf16.mxu0 %v5123
        %5212 = vmatpush1.bf16.msra.mxu0 %v5122
        %5213 = vmatprep.subr.bf16.mxu0 %v5127
        %5214 = vmatpush1.bf16.msra.mxu0 %v5126
        %5215 = vmatprep.subr.bf16.mxu0 %v5131
        %5216 = vmatpush1.bf16.msra.mxu0 %v5130
        %5217 = vmatprep.subr.bf16.mxu0 %v5135
        %5218 = vmatpush1.bf16.msra.mxu0 %v5134
        %5219 = vmatprep.mubr.bf16.mxu0 %v5172
        %5220 = vmatmul.mubr.bf16.gmra.mrb[0].mxu0 %v5171
        %v5221 = vpop.f32.mrb[0].mxu0
        %v5222 = vadd.f32 0.0, %v5221
        %v5223 = vpop.f32.mrb[0].mxu0
        %v5224 = vadd.f32 0.0, %v5223
        %v5225 = vpop.f32.mrb[0].mxu0
        %v5226 = vadd.f32 0.0, %v5225
        %v5227 = vpop.f32.mrb[0].mxu0
        %v5228 = vadd.f32 0.0, %v5227
        %5229 = vmatprep.mubr.bf16.mxu0 %v5174
        %5230 = vmatmul.mubr.bf16.gmra.mrb[0].mxu0 %v5173
        %v5231 = vpop.f32.mrb[0].mxu0
        %v5232 = vadd.f32 0.0, %v5231
        %v5233 = vpop.f32.mrb[0].mxu0
        %v5234 = vadd.f32 0.0, %v5233
        %v5235 = vpop.f32.mrb[0].mxu0
        %v5236 = vadd.f32 0.0, %v5235
        %v5237 = vpop.f32.mrb[0].mxu0
        %v5238 = vadd.f32 0.0, %v5237
        %5239 = vmatprep.mubr.bf16.mxu0 %v5176
        %5240 = vmatmul.mubr.bf16.gmra.mrb[0].mxu0 %v5175
        %v5241 = vpop.f32.mrb[0].mxu0
        %v5242 = vadd.f32 0.0, %v5241
        %v5243 = vpop.f32.mrb[0].mxu0
        %v5244 = vadd.f32 0.0, %v5243
        %v5245 = vpop.f32.mrb[0].mxu0
        %v5246 = vadd.f32 0.0, %v5245
        %v5247 = vpop.f32.mrb[0].mxu0
        %v5248 = vadd.f32 0.0, %v5247
        %5249 = vmatprep.mubr.bf16.mxu0 %v5178
        %5250 = vmatmul.mubr.bf16.gmra.mrb[0].mxu0 %v5177
        %v5251 = vpop.f32.mrb[0].mxu0
        %v5252 = vadd.f32 0.0, %v5251
        %v5253 = vpop.f32.mrb[0].mxu0
        %v5254 = vadd.f32 0.0, %v5253
        %v5255 = vpop.f32.mrb[0].mxu0
        %v5256 = vadd.f32 0.0, %v5255
        %v5257 = vpop.f32.mrb[0].mxu0
        %v5258 = vadd.f32 0.0, %v5257
        %5259 = vdwg.mxu0
        %5260 = vmatprep.subr.bf16.mxu0 %v5077
        %5261 = vmatpush1.bf16.msra.mxu0 %v5076
        %5262 = vmatprep.subr.bf16.mxu0 %v5081
        %5263 = vmatpush1.bf16.msra.mxu0 %v5080
        %5264 = vmatprep.subr.bf16.mxu0 %v5085
        %5265 = vmatpush1.bf16.msra.mxu0 %v5084
        %5266 = vmatprep.subr.bf16.mxu0 %v5089
        %5267 = vmatpush1.bf16.msra.mxu0 %v5088
        %5268 = vmatprep.subr.bf16.mxu0 %v5093
        %5269 = vmatpush1.bf16.msra.mxu0 %v5092
        %5270 = vmatprep.subr.bf16.mxu0 %v5097
        %5271 = vmatpush1.bf16.msra.mxu0 %v5096
        %5272 = vmatprep.subr.bf16.mxu0 %v5101
        %5273 = vmatpush1.bf16.msra.mxu0 %v5100
        %5274 = vmatprep.subr.bf16.mxu0 %v5105
        %5275 = vmatpush1.bf16.msra.mxu0 %v5104
        %5276 = vmatprep.subr.bf16.mxu0 %v5109
        %5277 = vmatpush1.bf16.msra.mxu0 %v5108
        %5278 = vmatprep.subr.bf16.mxu0 %v5113
        %5279 = vmatpush1.bf16.msra.mxu0 %v5112
        %5280 = vmatprep.subr.bf16.mxu0 %v5117
        %5281 = vmatpush1.bf16.msra.mxu0 %v5116
        %5282 = vmatprep.subr.bf16.mxu0 %v5121
        %5283 = vmatpush1.bf16.msra.mxu0 %v5120
        %5284 = vmatprep.subr.bf16.mxu0 %v5125
        %5285 = vmatpush1.bf16.msra.mxu0 %v5124
        %5286 = vmatprep.subr.bf16.mxu0 %v5129
        %5287 = vmatpush1.bf16.msra.mxu0 %v5128
        %5288 = vmatprep.subr.bf16.mxu0 %v5133
        %5289 = vmatpush1.bf16.msra.mxu0 %v5132
        %5290 = vmatprep.subr.bf16.mxu0 %v5137
        %5291 = vmatpush1.bf16.msra.mxu0 %v5136
        %5292 = vmatprep.mubr.bf16.mxu0 %v5172
        %5293 = vmatmul.mubr.bf16.gmra.mrb[0].mxu0 %v5171
        %v5294 = vpop.f32.mrb[0].mxu0
        %v5295 = vadd.f32 0.0, %v5294
        %v5296 = vpop.f32.mrb[0].mxu0
        %v5297 = vadd.f32 0.0, %v5296
        %v5298 = vpop.f32.mrb[0].mxu0
        %v5299 = vadd.f32 0.0, %v5298
        %v5300 = vpop.f32.mrb[0].mxu0
        %v5301 = vadd.f32 0.0, %v5300
        %5302 = vmatprep.mubr.bf16.mxu0 %v5174
        %5303 = vmatmul.mubr.bf16.gmra.mrb[0].mxu0 %v5173
        %v5304 = vpop.f32.mrb[0].mxu0
        %v5305 = vadd.f32 0.0, %v5304
        %v5306 = vpop.f32.mrb[0].mxu0
        %v5307 = vadd.f32 0.0, %v5306
        %v5308 = vpop.f32.mrb[0].mxu0
        %v5309 = vadd.f32 0.0, %v5308
        %v5310 = vpop.f32.mrb[0].mxu0
        %v5311 = vadd.f32 0.0, %v5310
        %5312 = vmatprep.mubr.bf16.mxu0 %v5176
        %5313 = vmatmul.mubr.bf16.gmra.mrb[0].mxu0 %v5175
        %v5314 = vpop.f32.mrb[0].mxu0
        %v5315 = vadd.f32 0.0, %v5314
        %v5316 = vpop.f32.mrb[0].mxu0
        %v5317 = vadd.f32 0.0, %v5316
        %v5318 = vpop.f32.mrb[0].mxu0
        %v5319 = vadd.f32 0.0, %v5318
        %v5320 = vpop.f32.mrb[0].mxu0
        %v5321 = vadd.f32 0.0, %v5320
        %5322 = vmatprep.mubr.bf16.mxu0 %v5178
        %5323 = vmatmul.mubr.bf16.gmra.mrb[0].mxu0 %v5177
        %v5324 = vpop.f32.mrb[0].mxu0
        %v5325 = vadd.f32 0.0, %v5324
        %v5326 = vpop.f32.mrb[0].mxu0
        %v5327 = vadd.f32 0.0, %v5326
        %v5328 = vpop.f32.mrb[0].mxu0
        %v5329 = vadd.f32 0.0, %v5328
        %v5330 = vpop.f32.mrb[0].mxu0
        %v5331 = vadd.f32 0.0, %v5330
        %5332 = vdwg.mxu0
        %v5341 = vunpack.c.l.b16 %v4938
        %v5342 = vunpack.c.h.b16 %v4938
        %v5343 = vunpack.c.l.b16 %v4939
        %v5344 = vunpack.c.h.b16 %v4939
        %v5345 = vunpack.c.l.b16 %v4940
        %v5346 = vunpack.c.h.b16 %v4940
        %v5347 = vunpack.c.l.b16 %v4941
        %v5348 = vunpack.c.h.b16 %v4941
        %v5349 = vunpack.c.l.b16 %v4942
        %v5350 = vunpack.c.h.b16 %v4942
        %v5351 = vunpack.c.l.b16 %v4943
        %v5352 = vunpack.c.h.b16 %v4943
        %v5353 = vunpack.c.l.b16 %v4944
        %v5354 = vunpack.c.h.b16 %v4944
        %v5355 = vunpack.c.l.b16 %v4945
        %v5356 = vunpack.c.h.b16 %v4945
        %v5357 = vpack.c.b16 %v5343, %v5341
        %v5358 = vpack.c.b16 %v5344, %v5342
        %v5359 = vpack.c.b16 %v5347, %v5345
        %v5360 = vpack.c.b16 %v5348, %v5346
        %v5361 = vpack.c.b16 %v5351, %v5349
        %v5362 = vpack.c.b16 %v5352, %v5350
        %v5363 = vpack.c.b16 %v5355, %v5353
        %v5364 = vpack.c.b16 %v5356, %v5354
        %5373 = vmatprep.subr.bf16.mxu0 %v4875
        %5374 = vmatpush1.bf16.msra.mxu0 %v4874
        %5375 = vmatprep.subr.bf16.mxu0 %v4879
        %5376 = vmatpush1.bf16.msra.mxu0 %v4878
        %5377 = vmatprep.subr.bf16.mxu0 %v4883
        %5378 = vmatpush1.bf16.msra.mxu0 %v4882
        %5379 = vmatprep.subr.bf16.mxu0 %v4887
        %5380 = vmatpush1.bf16.msra.mxu0 %v4886
        %5381 = vmatprep.subr.bf16.mxu0 %v4891
        %5382 = vmatpush1.bf16.msra.mxu0 %v4890
        %5383 = vmatprep.subr.bf16.mxu0 %v4895
        %5384 = vmatpush1.bf16.msra.mxu0 %v4894
        %5385 = vmatprep.subr.bf16.mxu0 %v4899
        %5386 = vmatpush1.bf16.msra.mxu0 %v4898
        %5387 = vmatprep.subr.bf16.mxu0 %v4903
        %5388 = vmatpush1.bf16.msra.mxu0 %v4902
        %5389 = vmatprep.subr.bf16.mxu0 %v4907
        %5390 = vmatpush1.bf16.msra.mxu0 %v4906
        %5391 = vmatprep.subr.bf16.mxu0 %v4911
        %5392 = vmatpush1.bf16.msra.mxu0 %v4910
        %5393 = vmatprep.subr.bf16.mxu0 %v4915
        %5394 = vmatpush1.bf16.msra.mxu0 %v4914
        %5395 = vmatprep.subr.bf16.mxu0 %v4919
        %5396 = vmatpush1.bf16.msra.mxu0 %v4918
        %5397 = vmatprep.subr.bf16.mxu0 %v4923
        %5398 = vmatpush1.bf16.msra.mxu0 %v4922
        %5399 = vmatprep.subr.bf16.mxu0 %v4927
        %5400 = vmatpush1.bf16.msra.mxu0 %v4926
        %5401 = vmatprep.subr.bf16.mxu0 %v4931
        %5402 = vmatpush1.bf16.msra.mxu0 %v4930
        %5403 = vmatprep.subr.bf16.mxu0 %v4935
        %5404 = vmatpush1.bf16.msra.mxu0 %v4934
        %5405 = vmatprep.mubr.bf16.mxu0 %v5358
        %5406 = vmatmul.mubr.bf16.gmra.mrb[0].mxu0 %v5357
        %v5407 = vpop.f32.mrb[0].mxu0
        %v5408 = vadd.f32 %v5222, %v5407
        %v5409 = vpop.f32.mrb[0].mxu0
        %v5410 = vadd.f32 %v5224, %v5409
        %v5411 = vpop.f32.mrb[0].mxu0
        %v5412 = vadd.f32 %v5226, %v5411
        %v5413 = vpop.f32.mrb[0].mxu0
        %v5414 = vadd.f32 %v5228, %v5413
        %5415 = vmatprep.mubr.bf16.mxu0 %v5360
        %5416 = vmatmul.mubr.bf16.gmra.mrb[0].mxu0 %v5359
        %v5417 = vpop.f32.mrb[0].mxu0
        %v5418 = vadd.f32 %v5232, %v5417
        %v5419 = vpop.f32.mrb[0].mxu0
        %v5420 = vadd.f32 %v5234, %v5419
        %v5421 = vpop.f32.mrb[0].mxu0
        %v5422 = vadd.f32 %v5236, %v5421
        %v5423 = vpop.f32.mrb[0].mxu0
        %v5424 = vadd.f32 %v5238, %v5423
        %5425 = vmatprep.mubr.bf16.mxu0 %v5362
        %5426 = vmatmul.mubr.bf16.gmra.mrb[0].mxu0 %v5361
        %v5427 = vpop.f32.mrb[0].mxu0
        %v5428 = vadd.f32 %v5242, %v5427
        %v5429 = vpop.f32.mrb[0].mxu0
        %v5430 = vadd.f32 %v5244, %v5429
        %v5431 = vpop.f32.mrb[0].mxu0
        %v5432 = vadd.f32 %v5246, %v5431
        %v5433 = vpop.f32.mrb[0].mxu0
        %v5434 = vadd.f32 %v5248, %v5433
        %5435 = vmatprep.mubr.bf16.mxu0 %v5364
        %5436 = vmatmul.mubr.bf16.gmra.mrb[0].mxu0 %v5363
        %v5437 = vpop.f32.mrb[0].mxu0
        %v5438 = vadd.f32 %v5252, %v5437
        %v5439 = vpop.f32.mrb[0].mxu0
        %v5440 = vadd.f32 %v5254, %v5439
        %v5441 = vpop.f32.mrb[0].mxu0
        %v5442 = vadd.f32 %v5256, %v5441
        %v5443 = vpop.f32.mrb[0].mxu0
        %v5444 = vadd.f32 %v5258, %v5443
        %5445 = vdwg.mxu0
        %5446 = vmatprep.subr.bf16.mxu0 %v4877
        %5447 = vmatpush1.bf16.msra.mxu0 %v4876
        %5448 = vmatprep.subr.bf16.mxu0 %v4881
        %5449 = vmatpush1.bf16.msra.mxu0 %v4880
        %5450 = vmatprep.subr.bf16.mxu0 %v4885
        %5451 = vmatpush1.bf16.msra.mxu0 %v4884
        %5452 = vmatprep.subr.bf16.mxu0 %v4889
        %5453 = vmatpush1.bf16.msra.mxu0 %v4888
        %5454 = vmatprep.subr.bf16.mxu0 %v4893
        %5455 = vmatpush1.bf16.msra.mxu0 %v4892
        %5456 = vmatprep.subr.bf16.mxu0 %v4897
        %5457 = vmatpush1.bf16.msra.mxu0 %v4896
        %5458 = vmatprep.subr.bf16.mxu0 %v4901
        %5459 = vmatpush1.bf16.msra.mxu0 %v4900
        %5460 = vmatprep.subr.bf16.mxu0 %v4905
        %5461 = vmatpush1.bf16.msra.mxu0 %v4904
        %5462 = vmatprep.subr.bf16.mxu0 %v4909
        %5463 = vmatpush1.bf16.msra.mxu0 %v4908
        %5464 = vmatprep.subr.bf16.mxu0 %v4913
        %5465 = vmatpush1.bf16.msra.mxu0 %v4912
        %5466 = vmatprep.subr.bf16.mxu0 %v4917
        %5467 = vmatpush1.bf16.msra.mxu0 %v4916
        %5468 = vmatprep.subr.bf16.mxu0 %v4921
        %5469 = vmatpush1.bf16.msra.mxu0 %v4920
        %5470 = vmatprep.subr.bf16.mxu0 %v4925
        %5471 = vmatpush1.bf16.msra.mxu0 %v4924
        %5472 = vmatprep.subr.bf16.mxu0 %v4929
        %5473 = vmatpush1.bf16.msra.mxu0 %v4928
        %5474 = vmatprep.subr.bf16.mxu0 %v4933
        %5475 = vmatpush1.bf16.msra.mxu0 %v4932
        %5476 = vmatprep.subr.bf16.mxu0 %v4937
        %5477 = vmatpush1.bf16.msra.mxu0 %v4936
        %5478 = vmatprep.mubr.bf16.mxu0 %v5358
        %5479 = vmatmul.mubr.bf16.gmra.mrb[0].mxu0 %v5357
        %v5480 = vpop.f32.mrb[0].mxu0
        %v5481 = vadd.f32 %v5295, %v5480
        %v5482 = vpop.f32.mrb[0].mxu0
        %v5483 = vadd.f32 %v5297, %v5482
        %v5484 = vpop.f32.mrb[0].mxu0
        %v5485 = vadd.f32 %v5299, %v5484
        %v5486 = vpop.f32.mrb[0].mxu0
        %v5487 = vadd.f32 %v5301, %v5486
        %5488 = vmatprep.mubr.bf16.mxu0 %v5360
        %5489 = vmatmul.mubr.bf16.gmra.mrb[0].mxu0 %v5359
        %v5490 = vpop.f32.mrb[0].mxu0
        %v5491 = vadd.f32 %v5305, %v5490
        %v5492 = vpop.f32.mrb[0].mxu0
        %v5493 = vadd.f32 %v5307, %v5492
        %v5494 = vpop.f32.mrb[0].mxu0
        %v5495 = vadd.f32 %v5309, %v5494
        %v5496 = vpop.f32.mrb[0].mxu0
        %v5497 = vadd.f32 %v5311, %v5496
        %5498 = vmatprep.mubr.bf16.mxu0 %v5362
        %5499 = vmatmul.mubr.bf16.gmra.mrb[0].mxu0 %v5361
        %v5500 = vpop.f32.mrb[0].mxu0
        %v5501 = vadd.f32 %v5315, %v5500
        %v5502 = vpop.f32.mrb[0].mxu0
        %v5503 = vadd.f32 %v5317, %v5502
        %v5504 = vpop.f32.mrb[0].mxu0
        %v5505 = vadd.f32 %v5319, %v5504
        %v5506 = vpop.f32.mrb[0].mxu0
        %v5507 = vadd.f32 %v5321, %v5506
        %5508 = vmatprep.mubr.bf16.mxu0 %v5364
        %5509 = vmatmul.mubr.bf16.gmra.mrb[0].mxu0 %v5363
        %v5510 = vpop.f32.mrb[0].mxu0
        %v5511 = vadd.f32 %v5325, %v5510
        %v5512 = vpop.f32.mrb[0].mxu0
        %v5513 = vadd.f32 %v5327, %v5512
        %v5514 = vpop.f32.mrb[0].mxu0
        %v5515 = vadd.f32 %v5329, %v5514
        %v5516 = vpop.f32.mrb[0].mxu0
        %v5517 = vadd.f32 %v5331, %v5516
        %5518 = vdwg.mxu0
        %v5519 = vmul.bf16 %v4946, %v5074
        %v5520 = vmul.bf16 %v4947, %v5075
        %v5521 = vmul.bf16 %v4948, %v5076
        %v5522 = vmul.bf16 %v4949, %v5077
        %v5523 = vmul.bf16 %v4950, %v5078
        %v5524 = vmul.bf16 %v4951, %v5079
        %v5525 = vmul.bf16 %v4952, %v5080
        %v5526 = vmul.bf16 %v4953, %v5081
        %v5527 = vmul.bf16 %v4954, %v5082
        %v5528 = vmul.bf16 %v4955, %v5083
        %v5529 = vmul.bf16 %v4956, %v5084
        %v5530 = vmul.bf16 %v4957, %v5085
        %v5531 = vmul.bf16 %v4958, %v5086
        %v5532 = vmul.bf16 %v4959, %v5087
        %v5533 = vmul.bf16 %v4960, %v5088
        %v5534 = vmul.bf16 %v4961, %v5089
        %v5535 = vmul.bf16 %v4962, %v5090
        %v5536 = vmul.bf16 %v4963, %v5091
        %v5537 = vmul.bf16 %v4964, %v5092
        %v5538 = vmul.bf16 %v4965, %v5093
        %v5539 = vmul.bf16 %v4966, %v5094
        %v5540 = vmul.bf16 %v4967, %v5095
        %v5541 = vmul.bf16 %v4968, %v5096
        %v5542 = vmul.bf16 %v4969, %v5097
        %v5543 = vmul.bf16 %v4970, %v5098
        %v5544 = vmul.bf16 %v4971, %v5099
        %v5545 = vmul.bf16 %v4972, %v5100
        %v5546 = vmul.bf16 %v4973, %v5101
        %v5547 = vmul.bf16 %v4974, %v5102
        %v5548 = vmul.bf16 %v4975, %v5103
        %v5549 = vmul.bf16 %v4976, %v5104
        %v5550 = vmul.bf16 %v4977, %v5105
        %v5551 = vmul.bf16 %v4978, %v5106
        %v5552 = vmul.bf16 %v4979, %v5107
        %v5553 = vmul.bf16 %v4980, %v5108
        %v5554 = vmul.bf16 %v4981, %v5109
        %v5555 = vmul.bf16 %v4982, %v5110
        %v5556 = vmul.bf16 %v4983, %v5111
        %v5557 = vmul.bf16 %v4984, %v5112
        %v5558 = vmul.bf16 %v4985, %v5113
        %v5559 = vmul.bf16 %v4986, %v5114
        %v5560 = vmul.bf16 %v4987, %v5115
        %v5561 = vmul.bf16 %v4988, %v5116
        %v5562 = vmul.bf16 %v4989, %v5117
        %v5563 = vmul.bf16 %v4990, %v5118
        %v5564 = vmul.bf16 %v4991, %v5119
        %v5565 = vmul.bf16 %v4992, %v5120
        %v5566 = vmul.bf16 %v4993, %v5121
        %v5567 = vmul.bf16 %v4994, %v5122
        %v5568 = vmul.bf16 %v4995, %v5123
        %v5569 = vmul.bf16 %v4996, %v5124
        %v5570 = vmul.bf16 %v4997, %v5125
        %v5571 = vmul.bf16 %v4998, %v5126
        %v5572 = vmul.bf16 %v4999, %v5127
        %v5573 = vmul.bf16 %v5000, %v5128
        %v5574 = vmul.bf16 %v5001, %v5129
        %v5575 = vmul.bf16 %v5002, %v5130
        %v5576 = vmul.bf16 %v5003, %v5131
        %v5577 = vmul.bf16 %v5004, %v5132
        %v5578 = vmul.bf16 %v5005, %v5133
        %v5579 = vmul.bf16 %v5006, %v5134
        %v5580 = vmul.bf16 %v5007, %v5135
        %v5581 = vmul.bf16 %v5008, %v5136
        %v5582 = vmul.bf16 %v5009, %v5137
        %v5583 = vsub.bf16 %v5519, %v4874
        %v5584 = vsub.bf16 %v5520, %v4875
        %v5585 = vsub.bf16 %v5521, %v4876
        %v5586 = vsub.bf16 %v5522, %v4877
        %v5587 = vsub.bf16 %v5523, %v4878
        %v5588 = vsub.bf16 %v5524, %v4879
        %v5589 = vsub.bf16 %v5525, %v4880
        %v5590 = vsub.bf16 %v5526, %v4881
        %v5591 = vsub.bf16 %v5527, %v4882
        %v5592 = vsub.bf16 %v5528, %v4883
        %v5593 = vsub.bf16 %v5529, %v4884
        %v5594 = vsub.bf16 %v5530, %v4885
        %v5595 = vsub.bf16 %v5531, %v4886
        %v5596 = vsub.bf16 %v5532, %v4887
        %v5597 = vsub.bf16 %v5533, %v4888
        %v5598 = vsub.bf16 %v5534, %v4889
        %v5599 = vsub.bf16 %v5535, %v4890
        %v5600 = vsub.bf16 %v5536, %v4891
        %v5601 = vsub.bf16 %v5537, %v4892
        %v5602 = vsub.bf16 %v5538, %v4893
        %v5603 = vsub.bf16 %v5539, %v4894
        %v5604 = vsub.bf16 %v5540, %v4895
        %v5605 = vsub.bf16 %v5541, %v4896
        %v5606 = vsub.bf16 %v5542, %v4897
        %v5607 = vsub.bf16 %v5543, %v4898
        %v5608 = vsub.bf16 %v5544, %v4899
        %v5609 = vsub.bf16 %v5545, %v4900
        %v5610 = vsub.bf16 %v5546, %v4901
        %v5611 = vsub.bf16 %v5547, %v4902
        %v5612 = vsub.bf16 %v5548, %v4903
        %v5613 = vsub.bf16 %v5549, %v4904
        %v5614 = vsub.bf16 %v5550, %v4905
        %v5615 = vsub.bf16 %v5551, %v4906
        %v5616 = vsub.bf16 %v5552, %v4907
        %v5617 = vsub.bf16 %v5553, %v4908
        %v5618 = vsub.bf16 %v5554, %v4909
        %v5619 = vsub.bf16 %v5555, %v4910
        %v5620 = vsub.bf16 %v5556, %v4911
        %v5621 = vsub.bf16 %v5557, %v4912
        %v5622 = vsub.bf16 %v5558, %v4913
        %v5623 = vsub.bf16 %v5559, %v4914
        %v5624 = vsub.bf16 %v5560, %v4915
        %v5625 = vsub.bf16 %v5561, %v4916
        %v5626 = vsub.bf16 %v5562, %v4917
        %v5627 = vsub.bf16 %v5563, %v4918
        %v5628 = vsub.bf16 %v5564, %v4919
        %v5629 = vsub.bf16 %v5565, %v4920
        %v5630 = vsub.bf16 %v5566, %v4921
        %v5631 = vsub.bf16 %v5567, %v4922
        %v5632 = vsub.bf16 %v5568, %v4923
        %v5633 = vsub.bf16 %v5569, %v4924
        %v5634 = vsub.bf16 %v5570, %v4925
        %v5635 = vsub.bf16 %v5571, %v4926
        %v5636 = vsub.bf16 %v5572, %v4927
        %v5637 = vsub.bf16 %v5573, %v4928
        %v5638 = vsub.bf16 %v5574, %v4929
        %v5639 = vsub.bf16 %v5575, %v4930
        %v5640 = vsub.bf16 %v5576, %v4931
        %v5641 = vsub.bf16 %v5577, %v4932
        %v5642 = vsub.bf16 %v5578, %v4933
        %v5643 = vsub.bf16 %v5579, %v4934
        %v5644 = vsub.bf16 %v5580, %v4935
        %v5645 = vsub.bf16 %v5581, %v4936
        %v5646 = vsub.bf16 %v5582, %v4937
        %s5647 = scalar_lea.vmem %s5, 128
        %v5648 = vld [vmem:[%s5647] sm:$0xff]
        %v5649 = vld [vmem:[%s5647 + $0x8] sm:$0xff]
        %v5650 = vld [vmem:[%s5647 + $0x10] sm:$0xff]
        %v5651 = vld [vmem:[%s5647 + $0x18] sm:$0xff]
        %v5652 = vld [vmem:[%s5647 + $0x20] sm:$0xff]
        %v5653 = vld [vmem:[%s5647 + $0x28] sm:$0xff]
        %v5654 = vld [vmem:[%s5647 + $0x30] sm:$0xff]
        %v5655 = vld [vmem:[%s5647 + $0x38] sm:$0xff]
        %v5664 = vunpack.c.l.b16 %v5648
        %v5665 = vunpack.c.h.b16 %v5648
        %v5666 = vunpack.c.l.b16 %v5649
        %v5667 = vunpack.c.h.b16 %v5649
        %v5668 = vunpack.c.l.b16 %v5650
        %v5669 = vunpack.c.h.b16 %v5650
        %v5670 = vunpack.c.l.b16 %v5651
        %v5671 = vunpack.c.h.b16 %v5651
        %v5672 = vunpack.c.l.b16 %v5652
        %v5673 = vunpack.c.h.b16 %v5652
        %v5674 = vunpack.c.l.b16 %v5653
        %v5675 = vunpack.c.h.b16 %v5653
        %v5676 = vunpack.c.l.b16 %v5654
        %v5677 = vunpack.c.h.b16 %v5654
        %v5678 = vunpack.c.l.b16 %v5655
        %v5679 = vunpack.c.h.b16 %v5655
        %v5680 = vpack.c.b16 %v5666, %v5664
        %v5681 = vpack.c.b16 %v5667, %v5665
        %v5682 = vpack.c.b16 %v5670, %v5668
        %v5683 = vpack.c.b16 %v5671, %v5669
        %v5684 = vpack.c.b16 %v5674, %v5672
        %v5685 = vpack.c.b16 %v5675, %v5673
        %v5686 = vpack.c.b16 %v5678, %v5676
        %v5687 = vpack.c.b16 %v5679, %v5677
        %5696 = vmatprep.subr.bf16.mxu0 %v5584
        %5697 = vmatpush1.bf16.msra.mxu0 %v5583
        %5698 = vmatprep.subr.bf16.mxu0 %v5588
        %5699 = vmatpush1.bf16.msra.mxu0 %v5587
        %5700 = vmatprep.subr.bf16.mxu0 %v5592
        %5701 = vmatpush1.bf16.msra.mxu0 %v5591
        %5702 = vmatprep.subr.bf16.mxu0 %v5596
        %5703 = vmatpush1.bf16.msra.mxu0 %v5595
        %5704 = vmatprep.subr.bf16.mxu0 %v5600
        %5705 = vmatpush1.bf16.msra.mxu0 %v5599
        %5706 = vmatprep.subr.bf16.mxu0 %v5604
        %5707 = vmatpush1.bf16.msra.mxu0 %v5603
        %5708 = vmatprep.subr.bf16.mxu0 %v5608
        %5709 = vmatpush1.bf16.msra.mxu0 %v5607
        %5710 = vmatprep.subr.bf16.mxu0 %v5612
        %5711 = vmatpush1.bf16.msra.mxu0 %v5611
        %5712 = vmatprep.subr.bf16.mxu0 %v5616
        %5713 = vmatpush1.bf16.msra.mxu0 %v5615
        %5714 = vmatprep.subr.bf16.mxu0 %v5620
        %5715 = vmatpush1.bf16.msra.mxu0 %v5619
        %5716 = vmatprep.subr.bf16.mxu0 %v5624
        %5717 = vmatpush1.bf16.msra.mxu0 %v5623
        %5718 = vmatprep.subr.bf16.mxu0 %v5628
        %5719 = vmatpush1.bf16.msra.mxu0 %v5627
        %5720 = vmatprep.subr.bf16.mxu0 %v5632
        %5721 = vmatpush1.bf16.msra.mxu0 %v5631
        %5722 = vmatprep.subr.bf16.mxu0 %v5636
        %5723 = vmatpush1.bf16.msra.mxu0 %v5635
        %5724 = vmatprep.subr.bf16.mxu0 %v5640
        %5725 = vmatpush1.bf16.msra.mxu0 %v5639
        %5726 = vmatprep.subr.bf16.mxu0 %v5644
        %5727 = vmatpush1.bf16.msra.mxu0 %v5643
        %5728 = vmatprep.mubr.bf16.mxu0 %v5681
        %5729 = vmatmul.mubr.bf16.gmra.mrb[0].mxu0 %v5680
        %v5730 = vpop.f32.mrb[0].mxu0
        %v5731 = vadd.f32 0.0, %v5730
        %v5732 = vpop.f32.mrb[0].mxu0
        %v5733 = vadd.f32 0.0, %v5732
        %v5734 = vpop.f32.mrb[0].mxu0
        %v5735 = vadd.f32 0.0, %v5734
        %v5736 = vpop.f32.mrb[0].mxu0
        %v5737 = vadd.f32 0.0, %v5736
        %5738 = vmatprep.mubr.bf16.mxu0 %v5683
        %5739 = vmatmul.mubr.bf16.gmra.mrb[0].mxu0 %v5682
        %v5740 = vpop.f32.mrb[0].mxu0
        %v5741 = vadd.f32 0.0, %v5740
        %v5742 = vpop.f32.mrb[0].mxu0
        %v5743 = vadd.f32 0.0, %v5742
        %v5744 = vpop.f32.mrb[0].mxu0
        %v5745 = vadd.f32 0.0, %v5744
        %v5746 = vpop.f32.mrb[0].mxu0
        %v5747 = vadd.f32 0.0, %v5746
        %5748 = vmatprep.mubr.bf16.mxu0 %v5685
        %5749 = vmatmul.mubr.bf16.gmra.mrb[0].mxu0 %v5684
        %v5750 = vpop.f32.mrb[0].mxu0
        %v5751 = vadd.f32 0.0, %v5750
        %v5752 = vpop.f32.mrb[0].mxu0
        %v5753 = vadd.f32 0.0, %v5752
        %v5754 = vpop.f32.mrb[0].mxu0
        %v5755 = vadd.f32 0.0, %v5754
        %v5756 = vpop.f32.mrb[0].mxu0
        %v5757 = vadd.f32 0.0, %v5756
        %5758 = vmatprep.mubr.bf16.mxu0 %v5687
        %5759 = vmatmul.mubr.bf16.gmra.mrb[0].mxu0 %v5686
        %v5760 = vpop.f32.mrb[0].mxu0
        %v5761 = vadd.f32 0.0, %v5760
        %v5762 = vpop.f32.mrb[0].mxu0
        %v5763 = vadd.f32 0.0, %v5762
        %v5764 = vpop.f32.mrb[0].mxu0
        %v5765 = vadd.f32 0.0, %v5764
        %v5766 = vpop.f32.mrb[0].mxu0
        %v5767 = vadd.f32 0.0, %v5766
        %5768 = vdwg.mxu0
        %5769 = vmatprep.subr.bf16.mxu0 %v5586
        %5770 = vmatpush1.bf16.msra.mxu0 %v5585
        %5771 = vmatprep.subr.bf16.mxu0 %v5590
        %5772 = vmatpush1.bf16.msra.mxu0 %v5589
        %5773 = vmatprep.subr.bf16.mxu0 %v5594
        %5774 = vmatpush1.bf16.msra.mxu0 %v5593
        %5775 = vmatprep.subr.bf16.mxu0 %v5598
        %5776 = vmatpush1.bf16.msra.mxu0 %v5597
        %5777 = vmatprep.subr.bf16.mxu0 %v5602
        %5778 = vmatpush1.bf16.msra.mxu0 %v5601
        %5779 = vmatprep.subr.bf16.mxu0 %v5606
        %5780 = vmatpush1.bf16.msra.mxu0 %v5605
        %5781 = vmatprep.subr.bf16.mxu0 %v5610
        %5782 = vmatpush1.bf16.msra.mxu0 %v5609
        %5783 = vmatprep.subr.bf16.mxu0 %v5614
        %5784 = vmatpush1.bf16.msra.mxu0 %v5613
        %5785 = vmatprep.subr.bf16.mxu0 %v5618
        %5786 = vmatpush1.bf16.msra.mxu0 %v5617
        %5787 = vmatprep.subr.bf16.mxu0 %v5622
        %5788 = vmatpush1.bf16.msra.mxu0 %v5621
        %5789 = vmatprep.subr.bf16.mxu0 %v5626
        %5790 = vmatpush1.bf16.msra.mxu0 %v5625
        %5791 = vmatprep.subr.bf16.mxu0 %v5630
        %5792 = vmatpush1.bf16.msra.mxu0 %v5629
        %5793 = vmatprep.subr.bf16.mxu0 %v5634
        %5794 = vmatpush1.bf16.msra.mxu0 %v5633
        %5795 = vmatprep.subr.bf16.mxu0 %v5638
        %5796 = vmatpush1.bf16.msra.mxu0 %v5637
        %5797 = vmatprep.subr.bf16.mxu0 %v5642
        %5798 = vmatpush1.bf16.msra.mxu0 %v5641
        %5799 = vmatprep.subr.bf16.mxu0 %v5646
        %5800 = vmatpush1.bf16.msra.mxu0 %v5645
        %5801 = vmatprep.mubr.bf16.mxu0 %v5681
        %5802 = vmatmul.mubr.bf16.gmra.mrb[0].mxu0 %v5680
        %v5803 = vpop.f32.mrb[0].mxu0
        %v5804 = vadd.f32 0.0, %v5803
        %v5805 = vpop.f32.mrb[0].mxu0
        %v5806 = vadd.f32 0.0, %v5805
        %v5807 = vpop.f32.mrb[0].mxu0
        %v5808 = vadd.f32 0.0, %v5807
        %v5809 = vpop.f32.mrb[0].mxu0
        %v5810 = vadd.f32 0.0, %v5809
        %5811 = vmatprep.mubr.bf16.mxu0 %v5683
        %5812 = vmatmul.mubr.bf16.gmra.mrb[0].mxu0 %v5682
        %v5813 = vpop.f32.mrb[0].mxu0
        %v5814 = vadd.f32 0.0, %v5813
        %v5815 = vpop.f32.mrb[0].mxu0
        %v5816 = vadd.f32 0.0, %v5815
        %v5817 = vpop.f32.mrb[0].mxu0
        %v5818 = vadd.f32 0.0, %v5817
        %v5819 = vpop.f32.mrb[0].mxu0
        %v5820 = vadd.f32 0.0, %v5819
        %5821 = vmatprep.mubr.bf16.mxu0 %v5685
        %5822 = vmatmul.mubr.bf16.gmra.mrb[0].mxu0 %v5684
        %v5823 = vpop.f32.mrb[0].mxu0
        %v5824 = vadd.f32 0.0, %v5823
        %v5825 = vpop.f32.mrb[0].mxu0
        %v5826 = vadd.f32 0.0, %v5825
        %v5827 = vpop.f32.mrb[0].mxu0
        %v5828 = vadd.f32 0.0, %v5827
        %v5829 = vpop.f32.mrb[0].mxu0
        %v5830 = vadd.f32 0.0, %v5829
        %5831 = vmatprep.mubr.bf16.mxu0 %v5687
        %5832 = vmatmul.mubr.bf16.gmra.mrb[0].mxu0 %v5686
        %v5833 = vpop.f32.mrb[0].mxu0
        %v5834 = vadd.f32 0.0, %v5833
        %v5835 = vpop.f32.mrb[0].mxu0
        %v5836 = vadd.f32 0.0, %v5835
        %v5837 = vpop.f32.mrb[0].mxu0
        %v5838 = vadd.f32 0.0, %v5837
        %v5839 = vpop.f32.mrb[0].mxu0
        %v5840 = vadd.f32 0.0, %v5839
        %5841 = vdwg.mxu0
        %v5842 = vadd.f32 %v5408, %v5731
        %v5843 = vadd.f32 %v5410, %v5733
        %v5844 = vadd.f32 %v5481, %v5804
        %v5845 = vadd.f32 %v5483, %v5806
        %v5846 = vadd.f32 %v5412, %v5735
        %v5847 = vadd.f32 %v5414, %v5737
        %v5848 = vadd.f32 %v5485, %v5808
        %v5849 = vadd.f32 %v5487, %v5810
        %v5850 = vadd.f32 %v5418, %v5741
        %v5851 = vadd.f32 %v5420, %v5743
        %v5852 = vadd.f32 %v5491, %v5814
        %v5853 = vadd.f32 %v5493, %v5816
        %v5854 = vadd.f32 %v5422, %v5745
        %v5855 = vadd.f32 %v5424, %v5747
        %v5856 = vadd.f32 %v5495, %v5818
        %v5857 = vadd.f32 %v5497, %v5820
        %v5858 = vadd.f32 %v5428, %v5751
        %v5859 = vadd.f32 %v5430, %v5753
        %v5860 = vadd.f32 %v5501, %v5824
        %v5861 = vadd.f32 %v5503, %v5826
        %v5862 = vadd.f32 %v5432, %v5755
        %v5863 = vadd.f32 %v5434, %v5757
        %v5864 = vadd.f32 %v5505, %v5828
        %v5865 = vadd.f32 %v5507, %v5830
        %v5866 = vadd.f32 %v5438, %v5761
        %v5867 = vadd.f32 %v5440, %v5763
        %v5868 = vadd.f32 %v5511, %v5834
        %v5869 = vadd.f32 %v5513, %v5836
        %v5870 = vadd.f32 %v5442, %v5765
        %v5871 = vadd.f32 %v5444, %v5767
        %v5872 = vadd.f32 %v5515, %v5838
        %v5873 = vadd.f32 %v5517, %v5840
        %v5874 = vmul.bf16 %v4946, %v5583
        %v5875 = vmul.bf16 %v4947, %v5584
        %v5876 = vmul.bf16 %v4948, %v5585
        %v5877 = vmul.bf16 %v4949, %v5586
        %v5878 = vmul.bf16 %v4950, %v5587
        %v5879 = vmul.bf16 %v4951, %v5588
        %v5880 = vmul.bf16 %v4952, %v5589
        %v5881 = vmul.bf16 %v4953, %v5590
        %v5882 = vmul.bf16 %v4954, %v5591
        %v5883 = vmul.bf16 %v4955, %v5592
        %v5884 = vmul.bf16 %v4956, %v5593
        %v5885 = vmul.bf16 %v4957, %v5594
        %v5886 = vmul.bf16 %v4958, %v5595
        %v5887 = vmul.bf16 %v4959, %v5596
        %v5888 = vmul.bf16 %v4960, %v5597
        %v5889 = vmul.bf16 %v4961, %v5598
        %v5890 = vmul.bf16 %v4962, %v5599
        %v5891 = vmul.bf16 %v4963, %v5600
        %v5892 = vmul.bf16 %v4964, %v5601
        %v5893 = vmul.bf16 %v4965, %v5602
        %v5894 = vmul.bf16 %v4966, %v5603
        %v5895 = vmul.bf16 %v4967, %v5604
        %v5896 = vmul.bf16 %v4968, %v5605
        %v5897 = vmul.bf16 %v4969, %v5606
        %v5898 = vmul.bf16 %v4970, %v5607
        %v5899 = vmul.bf16 %v4971, %v5608
        %v5900 = vmul.bf16 %v4972, %v5609
        %v5901 = vmul.bf16 %v4973, %v5610
        %v5902 = vmul.bf16 %v4974, %v5611
        %v5903 = vmul.bf16 %v4975, %v5612
        %v5904 = vmul.bf16 %v4976, %v5613
        %v5905 = vmul.bf16 %v4977, %v5614
        %v5906 = vmul.bf16 %v4978, %v5615
        %v5907 = vmul.bf16 %v4979, %v5616
        %v5908 = vmul.bf16 %v4980, %v5617
        %v5909 = vmul.bf16 %v4981, %v5618
        %v5910 = vmul.bf16 %v4982, %v5619
        %v5911 = vmul.bf16 %v4983, %v5620
        %v5912 = vmul.bf16 %v4984, %v5621
        %v5913 = vmul.bf16 %v4985, %v5622
        %v5914 = vmul.bf16 %v4986, %v5623
        %v5915 = vmul.bf16 %v4987, %v5624
        %v5916 = vmul.bf16 %v4988, %v5625
        %v5917 = vmul.bf16 %v4989, %v5626
        %v5918 = vmul.bf16 %v4990, %v5627
        %v5919 = vmul.bf16 %v4991, %v5628
        %v5920 = vmul.bf16 %v4992, %v5629
        %v5921 = vmul.bf16 %v4993, %v5630
        %v5922 = vmul.bf16 %v4994, %v5631
        %v5923 = vmul.bf16 %v4995, %v5632
        %v5924 = vmul.bf16 %v4996, %v5633
        %v5925 = vmul.bf16 %v4997, %v5634
        %v5926 = vmul.bf16 %v4998, %v5635
        %v5927 = vmul.bf16 %v4999, %v5636
        %v5928 = vmul.bf16 %v5000, %v5637
        %v5929 = vmul.bf16 %v5001, %v5638
        %v5930 = vmul.bf16 %v5002, %v5639
        %v5931 = vmul.bf16 %v5003, %v5640
        %v5932 = vmul.bf16 %v5004, %v5641
        %v5933 = vmul.bf16 %v5005, %v5642
        %v5934 = vmul.bf16 %v5006, %v5643
        %v5935 = vmul.bf16 %v5007, %v5644
        %v5936 = vmul.bf16 %v5008, %v5645
        %v5937 = vmul.bf16 %v5009, %v5646
        %v5938 = vsub.bf16 %v5874, %v5074
        %v5939 = vsub.bf16 %v5875, %v5075
        %v5940 = vsub.bf16 %v5876, %v5076
        %v5941 = vsub.bf16 %v5877, %v5077
        %v5942 = vsub.bf16 %v5878, %v5078
        %v5943 = vsub.bf16 %v5879, %v5079
        %v5944 = vsub.bf16 %v5880, %v5080
        %v5945 = vsub.bf16 %v5881, %v5081
        %v5946 = vsub.bf16 %v5882, %v5082
        %v5947 = vsub.bf16 %v5883, %v5083
        %v5948 = vsub.bf16 %v5884, %v5084
        %v5949 = vsub.bf16 %v5885, %v5085
        %v5950 = vsub.bf16 %v5886, %v5086
        %v5951 = vsub.bf16 %v5887, %v5087
        %v5952 = vsub.bf16 %v5888, %v5088
        %v5953 = vsub.bf16 %v5889, %v5089
        %v5954 = vsub.bf16 %v5890, %v5090
        %v5955 = vsub.bf16 %v5891, %v5091
        %v5956 = vsub.bf16 %v5892, %v5092
        %v5957 = vsub.bf16 %v5893, %v5093
        %v5958 = vsub.bf16 %v5894, %v5094
        %v5959 = vsub.bf16 %v5895, %v5095
        %v5960 = vsub.bf16 %v5896, %v5096
        %v5961 = vsub.bf16 %v5897, %v5097
        %v5962 = vsub.bf16 %v5898, %v5098
        %v5963 = vsub.bf16 %v5899, %v5099
        %v5964 = vsub.bf16 %v5900, %v5100
        %v5965 = vsub.bf16 %v5901, %v5101
        %v5966 = vsub.bf16 %v5902, %v5102
        %v5967 = vsub.bf16 %v5903, %v5103
        %v5968 = vsub.bf16 %v5904, %v5104
        %v5969 = vsub.bf16 %v5905, %v5105
        %v5970 = vsub.bf16 %v5906, %v5106
        %v5971 = vsub.bf16 %v5907, %v5107
        %v5972 = vsub.bf16 %v5908, %v5108
        %v5973 = vsub.bf16 %v5909, %v5109
        %v5974 = vsub.bf16 %v5910, %v5110
        %v5975 = vsub.bf16 %v5911, %v5111
        %v5976 = vsub.bf16 %v5912, %v5112
        %v5977 = vsub.bf16 %v5913, %v5113
        %v5978 = vsub.bf16 %v5914, %v5114
        %v5979 = vsub.bf16 %v5915, %v5115
        %v5980 = vsub.bf16 %v5916, %v5116
        %v5981 = vsub.bf16 %v5917, %v5117
        %v5982 = vsub.bf16 %v5918, %v5118
        %v5983 = vsub.bf16 %v5919, %v5119
        %v5984 = vsub.bf16 %v5920, %v5120
        %v5985 = vsub.bf16 %v5921, %v5121
        %v5986 = vsub.bf16 %v5922, %v5122
        %v5987 = vsub.bf16 %v5923, %v5123
        %v5988 = vsub.bf16 %v5924, %v5124
        %v5989 = vsub.bf16 %v5925, %v5125
        %v5990 = vsub.bf16 %v5926, %v5126
        %v5991 = vsub.bf16 %v5927, %v5127
        %v5992 = vsub.bf16 %v5928, %v5128
        %v5993 = vsub.bf16 %v5929, %v5129
        %v5994 = vsub.bf16 %v5930, %v5130
        %v5995 = vsub.bf16 %v5931, %v5131
        %v5996 = vsub.bf16 %v5932, %v5132
        %v5997 = vsub.bf16 %v5933, %v5133
        %v5998 = vsub.bf16 %v5934, %v5134
        %v5999 = vsub.bf16 %v5935, %v5135
        %v6000 = vsub.bf16 %v5936, %v5136
        %v6001 = vsub.bf16 %v5937, %v5137
        %s6002 = scalar_lea.vmem %s5, 192
        %v6003 = vld [vmem:[%s6002] sm:$0xff]
        %v6004 = vld [vmem:[%s6002 + $0x8] sm:$0xff]
        %v6005 = vld [vmem:[%s6002 + $0x10] sm:$0xff]
        %v6006 = vld [vmem:[%s6002 + $0x18] sm:$0xff]
        %v6007 = vld [vmem:[%s6002 + $0x20] sm:$0xff]
        %v6008 = vld [vmem:[%s6002 + $0x28] sm:$0xff]
        %v6009 = vld [vmem:[%s6002 + $0x30] sm:$0xff]
        %v6010 = vld [vmem:[%s6002 + $0x38] sm:$0xff]
        %v6019 = vunpack.c.l.b16 %v6003
        %v6020 = vunpack.c.h.b16 %v6003
        %v6021 = vunpack.c.l.b16 %v6004
        %v6022 = vunpack.c.h.b16 %v6004
        %v6023 = vunpack.c.l.b16 %v6005
        %v6024 = vunpack.c.h.b16 %v6005
        %v6025 = vunpack.c.l.b16 %v6006
        %v6026 = vunpack.c.h.b16 %v6006
        %v6027 = vunpack.c.l.b16 %v6007
        %v6028 = vunpack.c.h.b16 %v6007
        %v6029 = vunpack.c.l.b16 %v6008
        %v6030 = vunpack.c.h.b16 %v6008
        %v6031 = vunpack.c.l.b16 %v6009
        %v6032 = vunpack.c.h.b16 %v6009
        %v6033 = vunpack.c.l.b16 %v6010
        %v6034 = vunpack.c.h.b16 %v6010
        %v6035 = vpack.c.b16 %v6021, %v6019
        %v6036 = vpack.c.b16 %v6022, %v6020
        %v6037 = vpack.c.b16 %v6025, %v6023
        %v6038 = vpack.c.b16 %v6026, %v6024
        %v6039 = vpack.c.b16 %v6029, %v6027
        %v6040 = vpack.c.b16 %v6030, %v6028
        %v6041 = vpack.c.b16 %v6033, %v6031
        %v6042 = vpack.c.b16 %v6034, %v6032
        %6051 = vmatprep.subr.bf16.mxu0 %v5939
        %6052 = vmatpush1.bf16.msra.mxu0 %v5938
        %6053 = vmatprep.subr.bf16.mxu0 %v5943
        %6054 = vmatpush1.bf16.msra.mxu0 %v5942
        %6055 = vmatprep.subr.bf16.mxu0 %v5947
        %6056 = vmatpush1.bf16.msra.mxu0 %v5946
        %6057 = vmatprep.subr.bf16.mxu0 %v5951
        %6058 = vmatpush1.bf16.msra.mxu0 %v5950
        %6059 = vmatprep.subr.bf16.mxu0 %v5955
        %6060 = vmatpush1.bf16.msra.mxu0 %v5954
        %6061 = vmatprep.subr.bf16.mxu0 %v5959
        %6062 = vmatpush1.bf16.msra.mxu0 %v5958
        %6063 = vmatprep.subr.bf16.mxu0 %v5963
        %6064 = vmatpush1.bf16.msra.mxu0 %v5962
        %6065 = vmatprep.subr.bf16.mxu0 %v5967
        %6066 = vmatpush1.bf16.msra.mxu0 %v5966
        %6067 = vmatprep.subr.bf16.mxu0 %v5971
        %6068 = vmatpush1.bf16.msra.mxu0 %v5970
        %6069 = vmatprep.subr.bf16.mxu0 %v5975
        %6070 = vmatpush1.bf16.msra.mxu0 %v5974
        %6071 = vmatprep.subr.bf16.mxu0 %v5979
        %6072 = vmatpush1.bf16.msra.mxu0 %v5978
        %6073 = vmatprep.subr.bf16.mxu0 %v5983
        %6074 = vmatpush1.bf16.msra.mxu0 %v5982
        %6075 = vmatprep.subr.bf16.mxu0 %v5987
        %6076 = vmatpush1.bf16.msra.mxu0 %v5986
        %6077 = vmatprep.subr.bf16.mxu0 %v5991
        %6078 = vmatpush1.bf16.msra.mxu0 %v5990
        %6079 = vmatprep.subr.bf16.mxu0 %v5995
        %6080 = vmatpush1.bf16.msra.mxu0 %v5994
        %6081 = vmatprep.subr.bf16.mxu0 %v5999
        %6082 = vmatpush1.bf16.msra.mxu0 %v5998
        %6083 = vmatprep.mubr.bf16.mxu0 %v6036
        %6084 = vmatmul.mubr.bf16.gmra.mrb[0].mxu0 %v6035
        %v6085 = vpop.f32.mrb[0].mxu0
        %v6086 = vadd.f32 0.0, %v6085
        %v6087 = vpop.f32.mrb[0].mxu0
        %v6088 = vadd.f32 0.0, %v6087
        %v6089 = vpop.f32.mrb[0].mxu0
        %v6090 = vadd.f32 0.0, %v6089
        %v6091 = vpop.f32.mrb[0].mxu0
        %v6092 = vadd.f32 0.0, %v6091
        %6093 = vmatprep.mubr.bf16.mxu0 %v6038
        %6094 = vmatmul.mubr.bf16.gmra.mrb[0].mxu0 %v6037
        %v6095 = vpop.f32.mrb[0].mxu0
        %v6096 = vadd.f32 0.0, %v6095
        %v6097 = vpop.f32.mrb[0].mxu0
        %v6098 = vadd.f32 0.0, %v6097
        %v6099 = vpop.f32.mrb[0].mxu0
        %v6100 = vadd.f32 0.0, %v6099
        %v6101 = vpop.f32.mrb[0].mxu0
        %v6102 = vadd.f32 0.0, %v6101
        %6103 = vmatprep.mubr.bf16.mxu0 %v6040
        %6104 = vmatmul.mubr.bf16.gmra.mrb[0].mxu0 %v6039
        %v6105 = vpop.f32.mrb[0].mxu0
        %v6106 = vadd.f32 0.0, %v6105
        %v6107 = vpop.f32.mrb[0].mxu0
        %v6108 = vadd.f32 0.0, %v6107
        %v6109 = vpop.f32.mrb[0].mxu0
        %v6110 = vadd.f32 0.0, %v6109
        %v6111 = vpop.f32.mrb[0].mxu0
        %v6112 = vadd.f32 0.0, %v6111
        %6113 = vmatprep.mubr.bf16.mxu0 %v6042
        %6114 = vmatmul.mubr.bf16.gmra.mrb[0].mxu0 %v6041
        %v6115 = vpop.f32.mrb[0].mxu0
        %v6116 = vadd.f32 0.0, %v6115
        %v6117 = vpop.f32.mrb[0].mxu0
        %v6118 = vadd.f32 0.0, %v6117
        %v6119 = vpop.f32.mrb[0].mxu0
        %v6120 = vadd.f32 0.0, %v6119
        %v6121 = vpop.f32.mrb[0].mxu0
        %v6122 = vadd.f32 0.0, %v6121
        %6123 = vdwg.mxu0
        %6124 = vmatprep.subr.bf16.mxu0 %v5941
        %6125 = vmatpush1.bf16.msra.mxu0 %v5940
        %6126 = vmatprep.subr.bf16.mxu0 %v5945
        %6127 = vmatpush1.bf16.msra.mxu0 %v5944
        %6128 = vmatprep.subr.bf16.mxu0 %v5949
        %6129 = vmatpush1.bf16.msra.mxu0 %v5948
        %6130 = vmatprep.subr.bf16.mxu0 %v5953
        %6131 = vmatpush1.bf16.msra.mxu0 %v5952
        %6132 = vmatprep.subr.bf16.mxu0 %v5957
        %6133 = vmatpush1.bf16.msra.mxu0 %v5956
        %6134 = vmatprep.subr.bf16.mxu0 %v5961
        %6135 = vmatpush1.bf16.msra.mxu0 %v5960
        %6136 = vmatprep.subr.bf16.mxu0 %v5965
        %6137 = vmatpush1.bf16.msra.mxu0 %v5964
        %6138 = vmatprep.subr.bf16.mxu0 %v5969
        %6139 = vmatpush1.bf16.msra.mxu0 %v5968
        %6140 = vmatprep.subr.bf16.mxu0 %v5973
        %6141 = vmatpush1.bf16.msra.mxu0 %v5972
        %6142 = vmatprep.subr.bf16.mxu0 %v5977
        %6143 = vmatpush1.bf16.msra.mxu0 %v5976
        %6144 = vmatprep.subr.bf16.mxu0 %v5981
        %6145 = vmatpush1.bf16.msra.mxu0 %v5980
        %6146 = vmatprep.subr.bf16.mxu0 %v5985
        %6147 = vmatpush1.bf16.msra.mxu0 %v5984
        %6148 = vmatprep.subr.bf16.mxu0 %v5989
        %6149 = vmatpush1.bf16.msra.mxu0 %v5988
        %6150 = vmatprep.subr.bf16.mxu0 %v5993
        %6151 = vmatpush1.bf16.msra.mxu0 %v5992
        %6152 = vmatprep.subr.bf16.mxu0 %v5997
        %6153 = vmatpush1.bf16.msra.mxu0 %v5996
        %6154 = vmatprep.subr.bf16.mxu0 %v6001
        %6155 = vmatpush1.bf16.msra.mxu0 %v6000
        %6156 = vmatprep.mubr.bf16.mxu0 %v6036
        %6157 = vmatmul.mubr.bf16.gmra.mrb[0].mxu0 %v6035
        %v6158 = vpop.f32.mrb[0].mxu0
        %v6159 = vadd.f32 0.0, %v6158
        %v6160 = vpop.f32.mrb[0].mxu0
        %v6161 = vadd.f32 0.0, %v6160
        %v6162 = vpop.f32.mrb[0].mxu0
        %v6163 = vadd.f32 0.0, %v6162
        %v6164 = vpop.f32.mrb[0].mxu0
        %v6165 = vadd.f32 0.0, %v6164
        %6166 = vmatprep.mubr.bf16.mxu0 %v6038
        %6167 = vmatmul.mubr.bf16.gmra.mrb[0].mxu0 %v6037
        %v6168 = vpop.f32.mrb[0].mxu0
        %v6169 = vadd.f32 0.0, %v6168
        %v6170 = vpop.f32.mrb[0].mxu0
        %v6171 = vadd.f32 0.0, %v6170
        %v6172 = vpop.f32.mrb[0].mxu0
        %v6173 = vadd.f32 0.0, %v6172
        %v6174 = vpop.f32.mrb[0].mxu0
        %v6175 = vadd.f32 0.0, %v6174
        %6176 = vmatprep.mubr.bf16.mxu0 %v6040
        %6177 = vmatmul.mubr.bf16.gmra.mrb[0].mxu0 %v6039
        %v6178 = vpop.f32.mrb[0].mxu0
        %v6179 = vadd.f32 0.0, %v6178
        %v6180 = vpop.f32.mrb[0].mxu0
        %v6181 = vadd.f32 0.0, %v6180
        %v6182 = vpop.f32.mrb[0].mxu0
        %v6183 = vadd.f32 0.0, %v6182
        %v6184 = vpop.f32.mrb[0].mxu0
        %v6185 = vadd.f32 0.0, %v6184
        %6186 = vmatprep.mubr.bf16.mxu0 %v6042
        %6187 = vmatmul.mubr.bf16.gmra.mrb[0].mxu0 %v6041
        %v6188 = vpop.f32.mrb[0].mxu0
        %v6189 = vadd.f32 0.0, %v6188
        %v6190 = vpop.f32.mrb[0].mxu0
        %v6191 = vadd.f32 0.0, %v6190
        %v6192 = vpop.f32.mrb[0].mxu0
        %v6193 = vadd.f32 0.0, %v6192
        %v6194 = vpop.f32.mrb[0].mxu0
        %v6195 = vadd.f32 0.0, %v6194
        %6196 = vdwg.mxu0
        %v6197 = vadd.f32 %v5842, %v6086
        %v6198 = vadd.f32 %v5843, %v6088
        %v6199 = vadd.f32 %v5844, %v6159
        %v6200 = vadd.f32 %v5845, %v6161
        %v6201 = vadd.f32 %v5846, %v6090
        %v6202 = vadd.f32 %v5847, %v6092
        %v6203 = vadd.f32 %v5848, %v6163
        %v6204 = vadd.f32 %v5849, %v6165
        %v6205 = vadd.f32 %v5850, %v6096
        %v6206 = vadd.f32 %v5851, %v6098
        %v6207 = vadd.f32 %v5852, %v6169
        %v6208 = vadd.f32 %v5853, %v6171
        %v6209 = vadd.f32 %v5854, %v6100
        %v6210 = vadd.f32 %v5855, %v6102
        %v6211 = vadd.f32 %v5856, %v6173
        %v6212 = vadd.f32 %v5857, %v6175
        %v6213 = vadd.f32 %v5858, %v6106
        %v6214 = vadd.f32 %v5859, %v6108
        %v6215 = vadd.f32 %v5860, %v6179
        %v6216 = vadd.f32 %v5861, %v6181
        %v6217 = vadd.f32 %v5862, %v6110
        %v6218 = vadd.f32 %v5863, %v6112
        %v6219 = vadd.f32 %v5864, %v6183
        %v6220 = vadd.f32 %v5865, %v6185
        %v6221 = vadd.f32 %v5866, %v6116
        %v6222 = vadd.f32 %v5867, %v6118
        %v6223 = vadd.f32 %v5868, %v6189
        %v6224 = vadd.f32 %v5869, %v6191
        %v6225 = vadd.f32 %v5870, %v6120
        %v6226 = vadd.f32 %v5871, %v6122
        %v6227 = vadd.f32 %v5872, %v6193
        %v6228 = vadd.f32 %v5873, %v6195
        %v6229 = vmul.bf16 %v4946, %v5938
        %v6230 = vmul.bf16 %v4947, %v5939
        %v6231 = vmul.bf16 %v4948, %v5940
        %v6232 = vmul.bf16 %v4949, %v5941
        %v6233 = vmul.bf16 %v4950, %v5942
        %v6234 = vmul.bf16 %v4951, %v5943
        %v6235 = vmul.bf16 %v4952, %v5944
        %v6236 = vmul.bf16 %v4953, %v5945
        %v6237 = vmul.bf16 %v4954, %v5946
        %v6238 = vmul.bf16 %v4955, %v5947
        %v6239 = vmul.bf16 %v4956, %v5948
        %v6240 = vmul.bf16 %v4957, %v5949
        %v6241 = vmul.bf16 %v4958, %v5950
        %v6242 = vmul.bf16 %v4959, %v5951
        %v6243 = vmul.bf16 %v4960, %v5952
        %v6244 = vmul.bf16 %v4961, %v5953
        %v6245 = vmul.bf16 %v4962, %v5954
        %v6246 = vmul.bf16 %v4963, %v5955
        %v6247 = vmul.bf16 %v4964, %v5956
        %v6248 = vmul.bf16 %v4965, %v5957
        %v6249 = vmul.bf16 %v4966, %v5958
        %v6250 = vmul.bf16 %v4967, %v5959
        %v6251 = vmul.bf16 %v4968, %v5960
        %v6252 = vmul.bf16 %v4969, %v5961
        %v6253 = vmul.bf16 %v4970, %v5962
        %v6254 = vmul.bf16 %v4971, %v5963
        %v6255 = vmul.bf16 %v4972, %v5964
        %v6256 = vmul.bf16 %v4973, %v5965
        %v6257 = vmul.bf16 %v4974, %v5966
        %v6258 = vmul.bf16 %v4975, %v5967
        %v6259 = vmul.bf16 %v4976, %v5968
        %v6260 = vmul.bf16 %v4977, %v5969
        %v6261 = vmul.bf16 %v4978, %v5970
        %v6262 = vmul.bf16 %v4979, %v5971
        %v6263 = vmul.bf16 %v4980, %v5972
        %v6264 = vmul.bf16 %v4981, %v5973
        %v6265 = vmul.bf16 %v4982, %v5974
        %v6266 = vmul.bf16 %v4983, %v5975
        %v6267 = vmul.bf16 %v4984, %v5976
        %v6268 = vmul.bf16 %v4985, %v5977
        %v6269 = vmul.bf16 %v4986, %v5978
        %v6270 = vmul.bf16 %v4987, %v5979
        %v6271 = vmul.bf16 %v4988, %v5980
        %v6272 = vmul.bf16 %v4989, %v5981
        %v6273 = vmul.bf16 %v4990, %v5982
        %v6274 = vmul.bf16 %v4991, %v5983
        %v6275 = vmul.bf16 %v4992, %v5984
        %v6276 = vmul.bf16 %v4993, %v5985
        %v6277 = vmul.bf16 %v4994, %v5986
        %v6278 = vmul.bf16 %v4995, %v5987
        %v6279 = vmul.bf16 %v4996, %v5988
        %v6280 = vmul.bf16 %v4997, %v5989
        %v6281 = vmul.bf16 %v4998, %v5990
        %v6282 = vmul.bf16 %v4999, %v5991
        %v6283 = vmul.bf16 %v5000, %v5992
        %v6284 = vmul.bf16 %v5001, %v5993
        %v6285 = vmul.bf16 %v5002, %v5994
        %v6286 = vmul.bf16 %v5003, %v5995
        %v6287 = vmul.bf16 %v5004, %v5996
        %v6288 = vmul.bf16 %v5005, %v5997
        %v6289 = vmul.bf16 %v5006, %v5998
        %v6290 = vmul.bf16 %v5007, %v5999
        %v6291 = vmul.bf16 %v5008, %v6000
        %v6292 = vmul.bf16 %v5009, %v6001
        %v6293 = vsub.bf16 %v6229, %v5583
        %v6294 = vsub.bf16 %v6230, %v5584
        %v6295 = vsub.bf16 %v6231, %v5585
        %v6296 = vsub.bf16 %v6232, %v5586
        %v6297 = vsub.bf16 %v6233, %v5587
        %v6298 = vsub.bf16 %v6234, %v5588
        %v6299 = vsub.bf16 %v6235, %v5589
        %v6300 = vsub.bf16 %v6236, %v5590
        %v6301 = vsub.bf16 %v6237, %v5591
        %v6302 = vsub.bf16 %v6238, %v5592
        %v6303 = vsub.bf16 %v6239, %v5593
        %v6304 = vsub.bf16 %v6240, %v5594
        %v6305 = vsub.bf16 %v6241, %v5595
        %v6306 = vsub.bf16 %v6242, %v5596
        %v6307 = vsub.bf16 %v6243, %v5597
        %v6308 = vsub.bf16 %v6244, %v5598
        %v6309 = vsub.bf16 %v6245, %v5599
        %v6310 = vsub.bf16 %v6246, %v5600
        %v6311 = vsub.bf16 %v6247, %v5601
        %v6312 = vsub.bf16 %v6248, %v5602
        %v6313 = vsub.bf16 %v6249, %v5603
        %v6314 = vsub.bf16 %v6250, %v5604
        %v6315 = vsub.bf16 %v6251, %v5605
        %v6316 = vsub.bf16 %v6252, %v5606
        %v6317 = vsub.bf16 %v6253, %v5607
        %v6318 = vsub.bf16 %v6254, %v5608
        %v6319 = vsub.bf16 %v6255, %v5609
        %v6320 = vsub.bf16 %v6256, %v5610
        %v6321 = vsub.bf16 %v6257, %v5611
        %v6322 = vsub.bf16 %v6258, %v5612
        %v6323 = vsub.bf16 %v6259, %v5613
        %v6324 = vsub.bf16 %v6260, %v5614
        %v6325 = vsub.bf16 %v6261, %v5615
        %v6326 = vsub.bf16 %v6262, %v5616
        %v6327 = vsub.bf16 %v6263, %v5617
        %v6328 = vsub.bf16 %v6264, %v5618
        %v6329 = vsub.bf16 %v6265, %v5619
        %v6330 = vsub.bf16 %v6266, %v5620
        %v6331 = vsub.bf16 %v6267, %v5621
        %v6332 = vsub.bf16 %v6268, %v5622
        %v6333 = vsub.bf16 %v6269, %v5623
        %v6334 = vsub.bf16 %v6270, %v5624
        %v6335 = vsub.bf16 %v6271, %v5625
        %v6336 = vsub.bf16 %v6272, %v5626
        %v6337 = vsub.bf16 %v6273, %v5627
        %v6338 = vsub.bf16 %v6274, %v5628
        %v6339 = vsub.bf16 %v6275, %v5629
        %v6340 = vsub.bf16 %v6276, %v5630
        %v6341 = vsub.bf16 %v6277, %v5631
        %v6342 = vsub.bf16 %v6278, %v5632
        %v6343 = vsub.bf16 %v6279, %v5633
        %v6344 = vsub.bf16 %v6280, %v5634
        %v6345 = vsub.bf16 %v6281, %v5635
        %v6346 = vsub.bf16 %v6282, %v5636
        %v6347 = vsub.bf16 %v6283, %v5637
        %v6348 = vsub.bf16 %v6284, %v5638
        %v6349 = vsub.bf16 %v6285, %v5639
        %v6350 = vsub.bf16 %v6286, %v5640
        %v6351 = vsub.bf16 %v6287, %v5641
        %v6352 = vsub.bf16 %v6288, %v5642
        %v6353 = vsub.bf16 %v6289, %v5643
        %v6354 = vsub.bf16 %v6290, %v5644
        %v6355 = vsub.bf16 %v6291, %v5645
        %v6356 = vsub.bf16 %v6292, %v5646
        %s6357 = scalar_lea.vmem %s5, 256
        %v6358 = vld [vmem:[%s6357] sm:$0xff]
        %v6359 = vld [vmem:[%s6357 + $0x8] sm:$0xff]
        %v6360 = vld [vmem:[%s6357 + $0x10] sm:$0xff]
        %v6361 = vld [vmem:[%s6357 + $0x18] sm:$0xff]
        %v6362 = vld [vmem:[%s6357 + $0x20] sm:$0xff]
        %v6363 = vld [vmem:[%s6357 + $0x28] sm:$0xff]
        %v6364 = vld [vmem:[%s6357 + $0x30] sm:$0xff]
        %v6365 = vld [vmem:[%s6357 + $0x38] sm:$0xff]
        %v6374 = vunpack.c.l.b16 %v6358
        %v6375 = vunpack.c.h.b16 %v6358
        %v6376 = vunpack.c.l.b16 %v6359
        %v6377 = vunpack.c.h.b16 %v6359
        %v6378 = vunpack.c.l.b16 %v6360
        %v6379 = vunpack.c.h.b16 %v6360
        %v6380 = vunpack.c.l.b16 %v6361
        %v6381 = vunpack.c.h.b16 %v6361
        %v6382 = vunpack.c.l.b16 %v6362
        %v6383 = vunpack.c.h.b16 %v6362
        %v6384 = vunpack.c.l.b16 %v6363
        %v6385 = vunpack.c.h.b16 %v6363
        %v6386 = vunpack.c.l.b16 %v6364
        %v6387 = vunpack.c.h.b16 %v6364
        %v6388 = vunpack.c.l.b16 %v6365
        %v6389 = vunpack.c.h.b16 %v6365
        %v6390 = vpack.c.b16 %v6376, %v6374
        %v6391 = vpack.c.b16 %v6377, %v6375
        %v6392 = vpack.c.b16 %v6380, %v6378
        %v6393 = vpack.c.b16 %v6381, %v6379
        %v6394 = vpack.c.b16 %v6384, %v6382
        %v6395 = vpack.c.b16 %v6385, %v6383
        %v6396 = vpack.c.b16 %v6388, %v6386
        %v6397 = vpack.c.b16 %v6389, %v6387
        %6406 = vmatprep.subr.bf16.mxu0 %v6294
        %6407 = vmatpush1.bf16.msra.mxu0 %v6293
        %6408 = vmatprep.subr.bf16.mxu0 %v6298
        %6409 = vmatpush1.bf16.msra.mxu0 %v6297
        %6410 = vmatprep.subr.bf16.mxu0 %v6302
        %6411 = vmatpush1.bf16.msra.mxu0 %v6301
        %6412 = vmatprep.subr.bf16.mxu0 %v6306
        %6413 = vmatpush1.bf16.msra.mxu0 %v6305
        %6414 = vmatprep.subr.bf16.mxu0 %v6310
        %6415 = vmatpush1.bf16.msra.mxu0 %v6309
        %6416 = vmatprep.subr.bf16.mxu0 %v6314
        %6417 = vmatpush1.bf16.msra.mxu0 %v6313
        %6418 = vmatprep.subr.bf16.mxu0 %v6318
        %6419 = vmatpush1.bf16.msra.mxu0 %v6317
        %6420 = vmatprep.subr.bf16.mxu0 %v6322
        %6421 = vmatpush1.bf16.msra.mxu0 %v6321
        %6422 = vmatprep.subr.bf16.mxu0 %v6326
        %6423 = vmatpush1.bf16.msra.mxu0 %v6325
        %6424 = vmatprep.subr.bf16.mxu0 %v6330
        %6425 = vmatpush1.bf16.msra.mxu0 %v6329
        %6426 = vmatprep.subr.bf16.mxu0 %v6334
        %6427 = vmatpush1.bf16.msra.mxu0 %v6333
        %6428 = vmatprep.subr.bf16.mxu0 %v6338
        %6429 = vmatpush1.bf16.msra.mxu0 %v6337
        %6430 = vmatprep.subr.bf16.mxu0 %v6342
        %6431 = vmatpush1.bf16.msra.mxu0 %v6341
        %6432 = vmatprep.subr.bf16.mxu0 %v6346
        %6433 = vmatpush1.bf16.msra.mxu0 %v6345
        %6434 = vmatprep.subr.bf16.mxu0 %v6350
        %6435 = vmatpush1.bf16.msra.mxu0 %v6349
        %6436 = vmatprep.subr.bf16.mxu0 %v6354
        %6437 = vmatpush1.bf16.msra.mxu0 %v6353
        %6438 = vmatprep.mubr.bf16.mxu0 %v6391
        %6439 = vmatmul.mubr.bf16.gmra.mrb[0].mxu0 %v6390
        %v6440 = vpop.f32.mrb[0].mxu0
        %v6441 = vadd.f32 0.0, %v6440
        %v6442 = vpop.f32.mrb[0].mxu0
        %v6443 = vadd.f32 0.0, %v6442
        %v6444 = vpop.f32.mrb[0].mxu0
        %v6445 = vadd.f32 0.0, %v6444
        %v6446 = vpop.f32.mrb[0].mxu0
        %v6447 = vadd.f32 0.0, %v6446
        %6448 = vmatprep.mubr.bf16.mxu0 %v6393
        %6449 = vmatmul.mubr.bf16.gmra.mrb[0].mxu0 %v6392
        %v6450 = vpop.f32.mrb[0].mxu0
        %v6451 = vadd.f32 0.0, %v6450
        %v6452 = vpop.f32.mrb[0].mxu0
        %v6453 = vadd.f32 0.0, %v6452
        %v6454 = vpop.f32.mrb[0].mxu0
        %v6455 = vadd.f32 0.0, %v6454
        %v6456 = vpop.f32.mrb[0].mxu0
        %v6457 = vadd.f32 0.0, %v6456
        %6458 = vmatprep.mubr.bf16.mxu0 %v6395
        %6459 = vmatmul.mubr.bf16.gmra.mrb[0].mxu0 %v6394
        %v6460 = vpop.f32.mrb[0].mxu0
        %v6461 = vadd.f32 0.0, %v6460
        %v6462 = vpop.f32.mrb[0].mxu0
        %v6463 = vadd.f32 0.0, %v6462
        %v6464 = vpop.f32.mrb[0].mxu0
        %v6465 = vadd.f32 0.0, %v6464
        %v6466 = vpop.f32.mrb[0].mxu0
        %v6467 = vadd.f32 0.0, %v6466
        %6468 = vmatprep.mubr.bf16.mxu0 %v6397
        %6469 = vmatmul.mubr.bf16.gmra.mrb[0].mxu0 %v6396
        %v6470 = vpop.f32.mrb[0].mxu0
        %v6471 = vadd.f32 0.0, %v6470
        %v6472 = vpop.f32.mrb[0].mxu0
        %v6473 = vadd.f32 0.0, %v6472
        %v6474 = vpop.f32.mrb[0].mxu0
        %v6475 = vadd.f32 0.0, %v6474
        %v6476 = vpop.f32.mrb[0].mxu0
        %v6477 = vadd.f32 0.0, %v6476
        %6478 = vdwg.mxu0
        %6479 = vmatprep.subr.bf16.mxu0 %v6296
        %6480 = vmatpush1.bf16.msra.mxu0 %v6295
        %6481 = vmatprep.subr.bf16.mxu0 %v6300
        %6482 = vmatpush1.bf16.msra.mxu0 %v6299
        %6483 = vmatprep.subr.bf16.mxu0 %v6304
        %6484 = vmatpush1.bf16.msra.mxu0 %v6303
        %6485 = vmatprep.subr.bf16.mxu0 %v6308
        %6486 = vmatpush1.bf16.msra.mxu0 %v6307
        %6487 = vmatprep.subr.bf16.mxu0 %v6312
        %6488 = vmatpush1.bf16.msra.mxu0 %v6311
        %6489 = vmatprep.subr.bf16.mxu0 %v6316
        %6490 = vmatpush1.bf16.msra.mxu0 %v6315
        %6491 = vmatprep.subr.bf16.mxu0 %v6320
        %6492 = vmatpush1.bf16.msra.mxu0 %v6319
        %6493 = vmatprep.subr.bf16.mxu0 %v6324
        %6494 = vmatpush1.bf16.msra.mxu0 %v6323
        %6495 = vmatprep.subr.bf16.mxu0 %v6328
        %6496 = vmatpush1.bf16.msra.mxu0 %v6327
        %6497 = vmatprep.subr.bf16.mxu0 %v6332
        %6498 = vmatpush1.bf16.msra.mxu0 %v6331
        %6499 = vmatprep.subr.bf16.mxu0 %v6336
        %6500 = vmatpush1.bf16.msra.mxu0 %v6335
        %6501 = vmatprep.subr.bf16.mxu0 %v6340
        %6502 = vmatpush1.bf16.msra.mxu0 %v6339
        %6503 = vmatprep.subr.bf16.mxu0 %v6344
        %6504 = vmatpush1.bf16.msra.mxu0 %v6343
        %6505 = vmatprep.subr.bf16.mxu0 %v6348
        %6506 = vmatpush1.bf16.msra.mxu0 %v6347
        %6507 = vmatprep.subr.bf16.mxu0 %v6352
        %6508 = vmatpush1.bf16.msra.mxu0 %v6351
        %6509 = vmatprep.subr.bf16.mxu0 %v6356
        %6510 = vmatpush1.bf16.msra.mxu0 %v6355
        %6511 = vmatprep.mubr.bf16.mxu0 %v6391
        %6512 = vmatmul.mubr.bf16.gmra.mrb[0].mxu0 %v6390
        %v6513 = vpop.f32.mrb[0].mxu0
        %v6514 = vadd.f32 0.0, %v6513
        %v6515 = vpop.f32.mrb[0].mxu0
        %v6516 = vadd.f32 0.0, %v6515
        %v6517 = vpop.f32.mrb[0].mxu0
        %v6518 = vadd.f32 0.0, %v6517
        %v6519 = vpop.f32.mrb[0].mxu0
        %v6520 = vadd.f32 0.0, %v6519
        %6521 = vmatprep.mubr.bf16.mxu0 %v6393
        %6522 = vmatmul.mubr.bf16.gmra.mrb[0].mxu0 %v6392
        %v6523 = vpop.f32.mrb[0].mxu0
        %v6524 = vadd.f32 0.0, %v6523
        %v6525 = vpop.f32.mrb[0].mxu0
        %v6526 = vadd.f32 0.0, %v6525
        %v6527 = vpop.f32.mrb[0].mxu0
        %v6528 = vadd.f32 0.0, %v6527
        %v6529 = vpop.f32.mrb[0].mxu0
        %v6530 = vadd.f32 0.0, %v6529
        %6531 = vmatprep.mubr.bf16.mxu0 %v6395
        %6532 = vmatmul.mubr.bf16.gmra.mrb[0].mxu0 %v6394
        %v6533 = vpop.f32.mrb[0].mxu0
        %v6534 = vadd.f32 0.0, %v6533
        %v6535 = vpop.f32.mrb[0].mxu0
        %v6536 = vadd.f32 0.0, %v6535
        %v6537 = vpop.f32.mrb[0].mxu0
        %v6538 = vadd.f32 0.0, %v6537
        %v6539 = vpop.f32.mrb[0].mxu0
        %v6540 = vadd.f32 0.0, %v6539
        %6541 = vmatprep.mubr.bf16.mxu0 %v6397
        %6542 = vmatmul.mubr.bf16.gmra.mrb[0].mxu0 %v6396
        %v6543 = vpop.f32.mrb[0].mxu0
        %v6544 = vadd.f32 0.0, %v6543
        %v6545 = vpop.f32.mrb[0].mxu0
        %v6546 = vadd.f32 0.0, %v6545
        %v6547 = vpop.f32.mrb[0].mxu0
        %v6548 = vadd.f32 0.0, %v6547
        %v6549 = vpop.f32.mrb[0].mxu0
        %v6550 = vadd.f32 0.0, %v6549
        %6551 = vdwg.mxu0
        %v6552 = vadd.f32 %v6197, %v6441
        %v6553 = vadd.f32 %v6198, %v6443
        %v6554 = vadd.f32 %v6199, %v6514
        %v6555 = vadd.f32 %v6200, %v6516
        %v6556 = vadd.f32 %v6201, %v6445
        %v6557 = vadd.f32 %v6202, %v6447
        %v6558 = vadd.f32 %v6203, %v6518
        %v6559 = vadd.f32 %v6204, %v6520
        %v6560 = vadd.f32 %v6205, %v6451
        %v6561 = vadd.f32 %v6206, %v6453
        %v6562 = vadd.f32 %v6207, %v6524
        %v6563 = vadd.f32 %v6208, %v6526
        %v6564 = vadd.f32 %v6209, %v6455
        %v6565 = vadd.f32 %v6210, %v6457
        %v6566 = vadd.f32 %v6211, %v6528
        %v6567 = vadd.f32 %v6212, %v6530
        %v6568 = vadd.f32 %v6213, %v6461
        %v6569 = vadd.f32 %v6214, %v6463
        %v6570 = vadd.f32 %v6215, %v6534
        %v6571 = vadd.f32 %v6216, %v6536
        %v6572 = vadd.f32 %v6217, %v6465
        %v6573 = vadd.f32 %v6218, %v6467
        %v6574 = vadd.f32 %v6219, %v6538
        %v6575 = vadd.f32 %v6220, %v6540
        %v6576 = vadd.f32 %v6221, %v6471
        %v6577 = vadd.f32 %v6222, %v6473
        %v6578 = vadd.f32 %v6223, %v6544
        %v6579 = vadd.f32 %v6224, %v6546
        %v6580 = vadd.f32 %v6225, %v6475
        %v6581 = vadd.f32 %v6226, %v6477
        %v6582 = vadd.f32 %v6227, %v6548
        %v6583 = vadd.f32 %v6228, %v6550
        %v6584 = vld [vmem:[%s6] sm:$0xff]
        %v6585 = vld [vmem:[%s6 + $0x8] sm:$0xff]
        %v6586 = vld [vmem:[%s6 + $0x10] sm:$0xff]
        %v6587 = vld [vmem:[%s6 + $0x18] sm:$0xff]
        %v6588 = vld [vmem:[%s6 + $0x20] sm:$0xff]
        %v6589 = vld [vmem:[%s6 + $0x28] sm:$0xff]
        %v6590 = vld [vmem:[%s6 + $0x30] sm:$0xff]
        %v6591 = vld [vmem:[%s6 + $0x38] sm:$0xff]
        %6593 = vset.pattern.permute.xlu0 0
        %6594 = vperm.xlu0 %6593, %v6584
        %v6595 = vpop.permute.xlu0 %6594
        %6598 = vset.pattern.permute.xlu0 0
        %6599 = vperm.xlu0 %6598, %v6585
        %v6600 = vpop.permute.xlu0 %6599
        %6603 = vset.pattern.permute.xlu0 0
        %6604 = vperm.xlu0 %6603, %v6586
        %v6605 = vpop.permute.xlu0 %6604
        %6608 = vset.pattern.permute.xlu0 0
        %6609 = vperm.xlu0 %6608, %v6587
        %v6610 = vpop.permute.xlu0 %6609
        %6613 = vset.pattern.permute.xlu0 0
        %6614 = vperm.xlu0 %6613, %v6588
        %v6615 = vpop.permute.xlu0 %6614
        %6618 = vset.pattern.permute.xlu0 0
        %6619 = vperm.xlu0 %6618, %v6589
        %v6620 = vpop.permute.xlu0 %6619
        %6623 = vset.pattern.permute.xlu0 0
        %6624 = vperm.xlu0 %6623, %v6590
        %v6625 = vpop.permute.xlu0 %6624
        %6628 = vset.pattern.permute.xlu0 0
        %6629 = vperm.xlu0 %6628, %v6591
        %v6630 = vpop.permute.xlu0 %6629
        %v6632 = vadd.f32 %v6552, %v6595
        %v6633 = vadd.f32 %v6553, %v6595
        %v6634 = vadd.f32 %v6554, %v6595
        %v6635 = vadd.f32 %v6555, %v6595
        %v6636 = vadd.f32 %v6556, %v6600
        %v6637 = vadd.f32 %v6557, %v6600
        %v6638 = vadd.f32 %v6558, %v6600
        %v6639 = vadd.f32 %v6559, %v6600
        %v6640 = vadd.f32 %v6560, %v6605
        %v6641 = vadd.f32 %v6561, %v6605
        %v6642 = vadd.f32 %v6562, %v6605
        %v6643 = vadd.f32 %v6563, %v6605
        %v6644 = vadd.f32 %v6564, %v6610
        %v6645 = vadd.f32 %v6565, %v6610
        %v6646 = vadd.f32 %v6566, %v6610
        %v6647 = vadd.f32 %v6567, %v6610
        %v6648 = vadd.f32 %v6568, %v6615
        %v6649 = vadd.f32 %v6569, %v6615
        %v6650 = vadd.f32 %v6570, %v6615
        %v6651 = vadd.f32 %v6571, %v6615
        %v6652 = vadd.f32 %v6572, %v6620
        %v6653 = vadd.f32 %v6573, %v6620
        %v6654 = vadd.f32 %v6574, %v6620
        %v6655 = vadd.f32 %v6575, %v6620
        %v6656 = vadd.f32 %v6576, %v6625
        %v6657 = vadd.f32 %v6577, %v6625
        %v6658 = vadd.f32 %v6578, %v6625
        %v6659 = vadd.f32 %v6579, %v6625
        %v6660 = vadd.f32 %v6580, %v6630
        %v6661 = vadd.f32 %v6581, %v6630
        %v6662 = vadd.f32 %v6582, %v6630
        %v6663 = vadd.f32 %v6583, %v6630
        %v6664 = vld [vmem:[%s7] sm:$0xff]
        %v6665 = vld [vmem:[%s7 + $0x8] sm:$0xff]
        %v6666 = vld [vmem:[%s7 + $0x10] sm:$0xff]
        %v6667 = vld [vmem:[%s7 + $0x18] sm:$0xff]
        %v6668 = vld [vmem:[%s7 + $0x20] sm:$0xff]
        %v6669 = vld [vmem:[%s7 + $0x28] sm:$0xff]
        %v6670 = vld [vmem:[%s7 + $0x30] sm:$0xff]
        %v6671 = vld [vmem:[%s7 + $0x38] sm:$0xff]
        %v6672 = vld [vmem:[%s8] sm:$0xff]
        %v6673 = vld [vmem:[%s8 + $0x8] sm:$0xff]
        %v6674 = vld [vmem:[%s8 + $0x10] sm:$0xff]
        %v6675 = vld [vmem:[%s8 + $0x18] sm:$0xff]
        %v6676 = vld [vmem:[%s8 + $0x20] sm:$0xff]
        %v6677 = vld [vmem:[%s8 + $0x28] sm:$0xff]
        %v6678 = vld [vmem:[%s8 + $0x30] sm:$0xff]
        %v6679 = vld [vmem:[%s8 + $0x38] sm:$0xff]
        %v6680 = vadd.f32 %v6632, %v6636
        %v6681 = vadd.f32 %v6680, %v6640
        %v6682 = vadd.f32 %v6681, %v6644
        %v6683 = vadd.f32 %v6682, %v6648
        %v6684 = vadd.f32 %v6683, %v6652
        %v6685 = vadd.f32 %v6684, %v6656
        %v6686 = vadd.f32 %v6685, %v6660
        %v6687 = vrot.slane %v6686, 4
        %v6688 = vadd.f32 %v6686, %v6687
        %v6689 = vrot.slane %v6688, 2
        %v6690 = vadd.f32 %v6688, %v6689
        %v6691 = vrot.slane %v6690, 1
        %v6692 = vadd.f32 %v6690, %v6691
        %v6693 = vadd.f32 %v6633, %v6637
        %v6694 = vadd.f32 %v6693, %v6641
        %v6695 = vadd.f32 %v6694, %v6645
        %v6696 = vadd.f32 %v6695, %v6649
        %v6697 = vadd.f32 %v6696, %v6653
        %v6698 = vadd.f32 %v6697, %v6657
        %v6699 = vadd.f32 %v6698, %v6661
        %v6700 = vrot.slane %v6699, 4
        %v6701 = vadd.f32 %v6699, %v6700
        %v6702 = vrot.slane %v6701, 2
        %v6703 = vadd.f32 %v6701, %v6702
        %v6704 = vrot.slane %v6703, 1
        %v6705 = vadd.f32 %v6703, %v6704
        %v6706 = vadd.f32 %v6634, %v6638
        %v6707 = vadd.f32 %v6706, %v6642
        %v6708 = vadd.f32 %v6707, %v6646
        %v6709 = vadd.f32 %v6708, %v6650
        %v6710 = vadd.f32 %v6709, %v6654
        %v6711 = vadd.f32 %v6710, %v6658
        %v6712 = vadd.f32 %v6711, %v6662
        %v6713 = vrot.slane %v6712, 4
        %v6714 = vadd.f32 %v6712, %v6713
        %v6715 = vrot.slane %v6714, 2
        %v6716 = vadd.f32 %v6714, %v6715
        %v6717 = vrot.slane %v6716, 1
        %v6718 = vadd.f32 %v6716, %v6717
        %v6719 = vadd.f32 %v6635, %v6639
        %v6720 = vadd.f32 %v6719, %v6643
        %v6721 = vadd.f32 %v6720, %v6647
        %v6722 = vadd.f32 %v6721, %v6651
        %v6723 = vadd.f32 %v6722, %v6655
        %v6724 = vadd.f32 %v6723, %v6659
        %v6725 = vadd.f32 %v6724, %v6663
        %v6726 = vrot.slane %v6725, 4
        %v6727 = vadd.f32 %v6725, %v6726
        %v6728 = vrot.slane %v6727, 2
        %v6729 = vadd.f32 %v6727, %v6728
        %v6730 = vrot.slane %v6729, 1
        %v6731 = vadd.f32 %v6729, %v6730
        %v6732 = vrcp.pop 64.0
        %v6733 = vmul.f32 %v6692, %v6732
        %v6734 = vmul.f32 %v6705, %v6732
        %v6735 = vmul.f32 %v6718, %v6732
        %v6736 = vmul.f32 %v6731, %v6732
        %v6737 = vmul.f32 %v6632, %v6632
        %v6738 = vmul.f32 %v6633, %v6633
        %v6739 = vmul.f32 %v6634, %v6634
        %v6740 = vmul.f32 %v6635, %v6635
        %v6741 = vmul.f32 %v6636, %v6636
        %v6742 = vmul.f32 %v6637, %v6637
        %v6743 = vmul.f32 %v6638, %v6638
        %v6744 = vmul.f32 %v6639, %v6639
        %v6745 = vmul.f32 %v6640, %v6640
        %v6746 = vmul.f32 %v6641, %v6641
        %v6747 = vmul.f32 %v6642, %v6642
        %v6748 = vmul.f32 %v6643, %v6643
        %v6749 = vmul.f32 %v6644, %v6644
        %v6750 = vmul.f32 %v6645, %v6645
        %v6751 = vmul.f32 %v6646, %v6646
        %v6752 = vmul.f32 %v6647, %v6647
        %v6753 = vmul.f32 %v6648, %v6648
        %v6754 = vmul.f32 %v6649, %v6649
        %v6755 = vmul.f32 %v6650, %v6650
        %v6756 = vmul.f32 %v6651, %v6651
        %v6757 = vmul.f32 %v6652, %v6652
        %v6758 = vmul.f32 %v6653, %v6653
        %v6759 = vmul.f32 %v6654, %v6654
        %v6760 = vmul.f32 %v6655, %v6655
        %v6761 = vmul.f32 %v6656, %v6656
        %v6762 = vmul.f32 %v6657, %v6657
        %v6763 = vmul.f32 %v6658, %v6658
        %v6764 = vmul.f32 %v6659, %v6659
        %v6765 = vmul.f32 %v6660, %v6660
        %v6766 = vmul.f32 %v6661, %v6661
        %v6767 = vmul.f32 %v6662, %v6662
        %v6768 = vmul.f32 %v6663, %v6663
        %v6769 = vadd.f32 %v6737, %v6741
        %v6770 = vadd.f32 %v6769, %v6745
        %v6771 = vadd.f32 %v6770, %v6749
        %v6772 = vadd.f32 %v6771, %v6753
        %v6773 = vadd.f32 %v6772, %v6757
        %v6774 = vadd.f32 %v6773, %v6761
        %v6775 = vadd.f32 %v6774, %v6765
        %v6776 = vrot.slane %v6775, 4
        %v6777 = vadd.f32 %v6775, %v6776
        %v6778 = vrot.slane %v6777, 2
        %v6779 = vadd.f32 %v6777, %v6778
        %v6780 = vrot.slane %v6779, 1
        %v6781 = vadd.f32 %v6779, %v6780
        %v6782 = vadd.f32 %v6738, %v6742
        %v6783 = vadd.f32 %v6782, %v6746
        %v6784 = vadd.f32 %v6783, %v6750
        %v6785 = vadd.f32 %v6784, %v6754
        %v6786 = vadd.f32 %v6785, %v6758
        %v6787 = vadd.f32 %v6786, %v6762
        %v6788 = vadd.f32 %v6787, %v6766
        %v6789 = vrot.slane %v6788, 4
        %v6790 = vadd.f32 %v6788, %v6789
        %v6791 = vrot.slane %v6790, 2
        %v6792 = vadd.f32 %v6790, %v6791
        %v6793 = vrot.slane %v6792, 1
        %v6794 = vadd.f32 %v6792, %v6793
        %v6795 = vadd.f32 %v6739, %v6743
        %v6796 = vadd.f32 %v6795, %v6747
        %v6797 = vadd.f32 %v6796, %v6751
        %v6798 = vadd.f32 %v6797, %v6755
        %v6799 = vadd.f32 %v6798, %v6759
        %v6800 = vadd.f32 %v6799, %v6763
        %v6801 = vadd.f32 %v6800, %v6767
        %v6802 = vrot.slane %v6801, 4
        %v6803 = vadd.f32 %v6801, %v6802
        %v6804 = vrot.slane %v6803, 2
        %v6805 = vadd.f32 %v6803, %v6804
        %v6806 = vrot.slane %v6805, 1
        %v6807 = vadd.f32 %v6805, %v6806
        %v6808 = vadd.f32 %v6740, %v6744
        %v6809 = vadd.f32 %v6808, %v6748
        %v6810 = vadd.f32 %v6809, %v6752
        %v6811 = vadd.f32 %v6810, %v6756
        %v6812 = vadd.f32 %v6811, %v6760
        %v6813 = vadd.f32 %v6812, %v6764
        %v6814 = vadd.f32 %v6813, %v6768
        %v6815 = vrot.slane %v6814, 4
        %v6816 = vadd.f32 %v6814, %v6815
        %v6817 = vrot.slane %v6816, 2
        %v6818 = vadd.f32 %v6816, %v6817
        %v6819 = vrot.slane %v6818, 1
        %v6820 = vadd.f32 %v6818, %v6819
        %v6821 = vmul.f32 %v6781, %v6732
        %v6822 = vmul.f32 %v6794, %v6732
        %v6823 = vmul.f32 %v6807, %v6732
        %v6824 = vmul.f32 %v6820, %v6732
        %v6825 = vmul.f32 %v6733, %v6733
        %v6826 = vmul.f32 %v6734, %v6734
        %v6827 = vmul.f32 %v6735, %v6735
        %v6828 = vmul.f32 %v6736, %v6736
        %v6829 = vsub.f32 %v6821, %v6825
        %v6830 = vsub.f32 %v6822, %v6826
        %v6831 = vsub.f32 %v6823, %v6827
        %v6832 = vsub.f32 %v6824, %v6828
        %v6833 = vmax.f32 %v6829, 0.0
        %v6834 = vmax.f32 %v6830, 0.0
        %v6835 = vmax.f32 %v6831, 0.0
        %v6836 = vmax.f32 %v6832, 0.0
        %v6837 = vadd.f32 %v6833, 1e-05
        %v6838 = vadd.f32 %v6834, 1e-05
        %v6839 = vadd.f32 %v6835, 1e-05
        %v6840 = vadd.f32 %v6836, 1e-05
        %v6841 = vrsqrt.pop %v6837
        %v6842 = vrsqrt.pop %v6838
        %v6843 = vrsqrt.pop %v6839
        %v6844 = vrsqrt.pop %v6840
        %v6845 = vsub.f32 %v6632, %v6733
        %v6846 = vsub.f32 %v6633, %v6734
        %v6847 = vsub.f32 %v6634, %v6735
        %v6848 = vsub.f32 %v6635, %v6736
        %v6849 = vsub.f32 %v6636, %v6733
        %v6850 = vsub.f32 %v6637, %v6734
        %v6851 = vsub.f32 %v6638, %v6735
        %v6852 = vsub.f32 %v6639, %v6736
        %v6853 = vsub.f32 %v6640, %v6733
        %v6854 = vsub.f32 %v6641, %v6734
        %v6855 = vsub.f32 %v6642, %v6735
        %v6856 = vsub.f32 %v6643, %v6736
        %v6857 = vsub.f32 %v6644, %v6733
        %v6858 = vsub.f32 %v6645, %v6734
        %v6859 = vsub.f32 %v6646, %v6735
        %v6860 = vsub.f32 %v6647, %v6736
        %v6861 = vsub.f32 %v6648, %v6733
        %v6862 = vsub.f32 %v6649, %v6734
        %v6863 = vsub.f32 %v6650, %v6735
        %v6864 = vsub.f32 %v6651, %v6736
        %v6865 = vsub.f32 %v6652, %v6733
        %v6866 = vsub.f32 %v6653, %v6734
        %v6867 = vsub.f32 %v6654, %v6735
        %v6868 = vsub.f32 %v6655, %v6736
        %v6869 = vsub.f32 %v6656, %v6733
        %v6870 = vsub.f32 %v6657, %v6734
        %v6871 = vsub.f32 %v6658, %v6735
        %v6872 = vsub.f32 %v6659, %v6736
        %v6873 = vsub.f32 %v6660, %v6733
        %v6874 = vsub.f32 %v6661, %v6734
        %v6875 = vsub.f32 %v6662, %v6735
        %v6876 = vsub.f32 %v6663, %v6736
        %v6877 = vmul.f32 %v6845, %v6841
        %v6878 = vmul.f32 %v6846, %v6842
        %v6879 = vmul.f32 %v6847, %v6843
        %v6880 = vmul.f32 %v6848, %v6844
        %v6881 = vmul.f32 %v6849, %v6841
        %v6882 = vmul.f32 %v6850, %v6842
        %v6883 = vmul.f32 %v6851, %v6843
        %v6884 = vmul.f32 %v6852, %v6844
        %v6885 = vmul.f32 %v6853, %v6841
        %v6886 = vmul.f32 %v6854, %v6842
        %v6887 = vmul.f32 %v6855, %v6843
        %v6888 = vmul.f32 %v6856, %v6844
        %v6889 = vmul.f32 %v6857, %v6841
        %v6890 = vmul.f32 %v6858, %v6842
        %v6891 = vmul.f32 %v6859, %v6843
        %v6892 = vmul.f32 %v6860, %v6844
        %v6893 = vmul.f32 %v6861, %v6841
        %v6894 = vmul.f32 %v6862, %v6842
        %v6895 = vmul.f32 %v6863, %v6843
        %v6896 = vmul.f32 %v6864, %v6844
        %v6897 = vmul.f32 %v6865, %v6841
        %v6898 = vmul.f32 %v6866, %v6842
        %v6899 = vmul.f32 %v6867, %v6843
        %v6900 = vmul.f32 %v6868, %v6844
        %v6901 = vmul.f32 %v6869, %v6841
        %v6902 = vmul.f32 %v6870, %v6842
        %v6903 = vmul.f32 %v6871, %v6843
        %v6904 = vmul.f32 %v6872, %v6844
        %v6905 = vmul.f32 %v6873, %v6841
        %v6906 = vmul.f32 %v6874, %v6842
        %v6907 = vmul.f32 %v6875, %v6843
        %v6908 = vmul.f32 %v6876, %v6844
        %6910 = vset.pattern.permute.xlu0 0
        %6911 = vperm.xlu0 %6910, %v6664
        %v6912 = vpop.permute.xlu0 %6911
        %6915 = vset.pattern.permute.xlu0 0
        %6916 = vperm.xlu0 %6915, %v6665
        %v6917 = vpop.permute.xlu0 %6916
        %6920 = vset.pattern.permute.xlu0 0
        %6921 = vperm.xlu0 %6920, %v6666
        %v6922 = vpop.permute.xlu0 %6921
        %6925 = vset.pattern.permute.xlu0 0
        %6926 = vperm.xlu0 %6925, %v6667
        %v6927 = vpop.permute.xlu0 %6926
        %6930 = vset.pattern.permute.xlu0 0
        %6931 = vperm.xlu0 %6930, %v6668
        %v6932 = vpop.permute.xlu0 %6931
        %6935 = vset.pattern.permute.xlu0 0
        %6936 = vperm.xlu0 %6935, %v6669
        %v6937 = vpop.permute.xlu0 %6936
        %6940 = vset.pattern.permute.xlu0 0
        %6941 = vperm.xlu0 %6940, %v6670
        %v6942 = vpop.permute.xlu0 %6941
        %6945 = vset.pattern.permute.xlu0 0
        %6946 = vperm.xlu0 %6945, %v6671
        %v6947 = vpop.permute.xlu0 %6946
        %v6949 = vmul.f32 %v6877, %v6912
        %v6950 = vmul.f32 %v6878, %v6912
        %v6951 = vmul.f32 %v6879, %v6912
        %v6952 = vmul.f32 %v6880, %v6912
        %v6953 = vmul.f32 %v6881, %v6917
        %v6954 = vmul.f32 %v6882, %v6917
        %v6955 = vmul.f32 %v6883, %v6917
        %v6956 = vmul.f32 %v6884, %v6917
        %v6957 = vmul.f32 %v6885, %v6922
        %v6958 = vmul.f32 %v6886, %v6922
        %v6959 = vmul.f32 %v6887, %v6922
        %v6960 = vmul.f32 %v6888, %v6922
        %v6961 = vmul.f32 %v6889, %v6927
        %v6962 = vmul.f32 %v6890, %v6927
        %v6963 = vmul.f32 %v6891, %v6927
        %v6964 = vmul.f32 %v6892, %v6927
        %v6965 = vmul.f32 %v6893, %v6932
        %v6966 = vmul.f32 %v6894, %v6932
        %v6967 = vmul.f32 %v6895, %v6932
        %v6968 = vmul.f32 %v6896, %v6932
        %v6969 = vmul.f32 %v6897, %v6937
        %v6970 = vmul.f32 %v6898, %v6937
        %v6971 = vmul.f32 %v6899, %v6937
        %v6972 = vmul.f32 %v6900, %v6937
        %v6973 = vmul.f32 %v6901, %v6942
        %v6974 = vmul.f32 %v6902, %v6942
        %v6975 = vmul.f32 %v6903, %v6942
        %v6976 = vmul.f32 %v6904, %v6942
        %v6977 = vmul.f32 %v6905, %v6947
        %v6978 = vmul.f32 %v6906, %v6947
        %v6979 = vmul.f32 %v6907, %v6947
        %v6980 = vmul.f32 %v6908, %v6947
        %6982 = vset.pattern.permute.xlu0 0
        %6983 = vperm.xlu0 %6982, %v6672
        %v6984 = vpop.permute.xlu0 %6983
        %6987 = vset.pattern.permute.xlu0 0
        %6988 = vperm.xlu0 %6987, %v6673
        %v6989 = vpop.permute.xlu0 %6988
        %6992 = vset.pattern.permute.xlu0 0
        %6993 = vperm.xlu0 %6992, %v6674
        %v6994 = vpop.permute.xlu0 %6993
        %6997 = vset.pattern.permute.xlu0 0
        %6998 = vperm.xlu0 %6997, %v6675
        %v6999 = vpop.permute.xlu0 %6998
        %7002 = vset.pattern.permute.xlu0 0
        %7003 = vperm.xlu0 %7002, %v6676
        %v7004 = vpop.permute.xlu0 %7003
        %7007 = vset.pattern.permute.xlu0 0
        %7008 = vperm.xlu0 %7007, %v6677
        %v7009 = vpop.permute.xlu0 %7008
        %7012 = vset.pattern.permute.xlu0 0
        %7013 = vperm.xlu0 %7012, %v6678
        %v7014 = vpop.permute.xlu0 %7013
        %7017 = vset.pattern.permute.xlu0 0
        %7018 = vperm.xlu0 %7017, %v6679
        %v7019 = vpop.permute.xlu0 %7018
        %v7021 = vadd.f32 %v6949, %v6984
        %v7022 = vadd.f32 %v6950, %v6984
        %v7023 = vadd.f32 %v6951, %v6984
        %v7024 = vadd.f32 %v6952, %v6984
        %v7025 = vadd.f32 %v6953, %v6989
        %v7026 = vadd.f32 %v6954, %v6989
        %v7027 = vadd.f32 %v6955, %v6989
        %v7028 = vadd.f32 %v6956, %v6989
        %v7029 = vadd.f32 %v6957, %v6994
        %v7030 = vadd.f32 %v6958, %v6994
        %v7031 = vadd.f32 %v6959, %v6994
        %v7032 = vadd.f32 %v6960, %v6994
        %v7033 = vadd.f32 %v6961, %v6999
        %v7034 = vadd.f32 %v6962, %v6999
        %v7035 = vadd.f32 %v6963, %v6999
        %v7036 = vadd.f32 %v6964, %v6999
        %v7037 = vadd.f32 %v6965, %v7004
        %v7038 = vadd.f32 %v6966, %v7004
        %v7039 = vadd.f32 %v6967, %v7004
        %v7040 = vadd.f32 %v6968, %v7004
        %v7041 = vadd.f32 %v6969, %v7009
        %v7042 = vadd.f32 %v6970, %v7009
        %v7043 = vadd.f32 %v6971, %v7009
        %v7044 = vadd.f32 %v6972, %v7009
        %v7045 = vadd.f32 %v6973, %v7014
        %v7046 = vadd.f32 %v6974, %v7014
        %v7047 = vadd.f32 %v6975, %v7014
        %v7048 = vadd.f32 %v6976, %v7014
        %v7049 = vadd.f32 %v6977, %v7019
        %v7050 = vadd.f32 %v6978, %v7019
        %v7051 = vadd.f32 %v6979, %v7019
        %v7052 = vadd.f32 %v6980, %v7019
        %v7053 = vtanh.pop %v7021
        %v7054 = vtanh.pop %v7022
        %v7055 = vtanh.pop %v7023
        %v7056 = vtanh.pop %v7024
        %v7057 = vtanh.pop %v7025
        %v7058 = vtanh.pop %v7026
        %v7059 = vtanh.pop %v7027
        %v7060 = vtanh.pop %v7028
        %v7061 = vtanh.pop %v7029
        %v7062 = vtanh.pop %v7030
        %v7063 = vtanh.pop %v7031
        %v7064 = vtanh.pop %v7032
        %v7065 = vtanh.pop %v7033
        %v7066 = vtanh.pop %v7034
        %v7067 = vtanh.pop %v7035
        %v7068 = vtanh.pop %v7036
        %v7069 = vtanh.pop %v7037
        %v7070 = vtanh.pop %v7038
        %v7071 = vtanh.pop %v7039
        %v7072 = vtanh.pop %v7040
        %v7073 = vtanh.pop %v7041
        %v7074 = vtanh.pop %v7042
        %v7075 = vtanh.pop %v7043
        %v7076 = vtanh.pop %v7044
        %v7077 = vtanh.pop %v7045
        %v7078 = vtanh.pop %v7046
        %v7079 = vtanh.pop %v7047
        %v7080 = vtanh.pop %v7048
        %v7081 = vtanh.pop %v7049
        %v7082 = vtanh.pop %v7050
        %v7083 = vtanh.pop %v7051
        %v7084 = vtanh.pop %v7052
        %v7085 = vpack.c.bf16 %v7057, %v7053
        %v7086 = vpack.c.bf16 %v7058, %v7054
        %v7087 = vpack.c.bf16 %v7059, %v7055
        %v7088 = vpack.c.bf16 %v7060, %v7056
        %v7089 = vpack.c.bf16 %v7065, %v7061
        %v7090 = vpack.c.bf16 %v7066, %v7062
        %v7091 = vpack.c.bf16 %v7067, %v7063
        %v7092 = vpack.c.bf16 %v7068, %v7064
        %v7093 = vpack.c.bf16 %v7073, %v7069
        %v7094 = vpack.c.bf16 %v7074, %v7070
        %v7095 = vpack.c.bf16 %v7075, %v7071
        %v7096 = vpack.c.bf16 %v7076, %v7072
        %v7097 = vpack.c.bf16 %v7081, %v7077
        %v7098 = vpack.c.bf16 %v7082, %v7078
        %v7099 = vpack.c.bf16 %v7083, %v7079
        %v7100 = vpack.c.bf16 %v7084, %v7080
        %v7101 = vld [vmem:[%s9] sm:$0xf]
        %v7102 = vld [vmem:[%s9 + $0x4] sm:$0xf]
        %v7103 = vmul.bf16 %v7085, 1073758208
        %v7104 = vmul.bf16 %v7086, 1073758208
        %v7105 = vmul.bf16 %v7087, 1073758208
        %v7106 = vmul.bf16 %v7088, 1073758208
        %v7107 = vmul.bf16 %v7089, 1073758208
        %v7108 = vmul.bf16 %v7090, 1073758208
        %v7109 = vmul.bf16 %v7091, 1073758208
        %v7110 = vmul.bf16 %v7092, 1073758208
        %v7111 = vmul.bf16 %v7093, 1073758208
        %v7112 = vmul.bf16 %v7094, 1073758208
        %v7113 = vmul.bf16 %v7095, 1073758208
        %v7114 = vmul.bf16 %v7096, 1073758208
        %v7115 = vmul.bf16 %v7097, 1073758208
        %v7116 = vmul.bf16 %v7098, 1073758208
        %v7117 = vmul.bf16 %v7099, 1073758208
        %v7118 = vmul.bf16 %v7100, 1073758208
        %v7119 = vmul.bf16 %v7103, %v7085
        %v7120 = vmul.bf16 %v7104, %v7086
        %v7121 = vmul.bf16 %v7105, %v7087
        %v7122 = vmul.bf16 %v7106, %v7088
        %v7123 = vmul.bf16 %v7107, %v7089
        %v7124 = vmul.bf16 %v7108, %v7090
        %v7125 = vmul.bf16 %v7109, %v7091
        %v7126 = vmul.bf16 %v7110, %v7092
        %v7127 = vmul.bf16 %v7111, %v7093
        %v7128 = vmul.bf16 %v7112, %v7094
        %v7129 = vmul.bf16 %v7113, %v7095
        %v7130 = vmul.bf16 %v7114, %v7096
        %v7131 = vmul.bf16 %v7115, %v7097
        %v7132 = vmul.bf16 %v7116, %v7098
        %v7133 = vmul.bf16 %v7117, %v7099
        %v7134 = vmul.bf16 %v7118, %v7100
        %v7135 = vsub.bf16 %v7119, 1065369472
        %v7136 = vsub.bf16 %v7120, 1065369472
        %v7137 = vsub.bf16 %v7121, 1065369472
        %v7138 = vsub.bf16 %v7122, 1065369472
        %v7139 = vsub.bf16 %v7123, 1065369472
        %v7140 = vsub.bf16 %v7124, 1065369472
        %v7141 = vsub.bf16 %v7125, 1065369472
        %v7142 = vsub.bf16 %v7126, 1065369472
        %v7143 = vsub.bf16 %v7127, 1065369472
        %v7144 = vsub.bf16 %v7128, 1065369472
        %v7145 = vsub.bf16 %v7129, 1065369472
        %v7146 = vsub.bf16 %v7130, 1065369472
        %v7147 = vsub.bf16 %v7131, 1065369472
        %v7148 = vsub.bf16 %v7132, 1065369472
        %v7149 = vsub.bf16 %v7133, 1065369472
        %v7150 = vsub.bf16 %v7134, 1065369472
        %s7151 = scalar_lea.vmem %s9, 8
        %v7152 = vld [vmem:[%s7151] sm:$0xf]
        %v7153 = vld [vmem:[%s7151 + $0x4] sm:$0xf]
        %v7156 = vunpack.c.l.b16 %v7152
        %v7157 = vunpack.c.l.b16 %v7153
        %v7158 = vpack.c.b16 %v7157, %v7156
        %vm7159 = vcmask 523264
        %v7161 = vsel %vm7159, %v7158, 0
        %7163 = vmatprep.subr.bf16.mxu0 %v7136
        %7164 = vmatpush1.bf16.msra.mxu0 %v7135
        %7165 = vmatprep.subr.bf16.mxu0 %v7140
        %7166 = vmatpush1.bf16.msra.mxu0 %v7139
        %7167 = vmatprep.subr.bf16.mxu0 %v7144
        %7168 = vmatpush1.bf16.msra.mxu0 %v7143
        %7169 = vmatprep.subr.bf16.mxu0 %v7148
        %7170 = vmatpush1.bf16.msra.mxu0 %v7147
        %7171 = vmatprep.subr.bf16.mxu0 0
        %7172 = vmatpush1.bf16.msra.mxu0 0
        %7173 = vmatprep.subr.bf16.mxu0 0
        %7174 = vmatpush1.bf16.msra.mxu0 0
        %7175 = vmatprep.subr.bf16.mxu0 0
        %7176 = vmatpush1.bf16.msra.mxu0 0
        %7177 = vmatprep.subr.bf16.mxu0 0
        %7178 = vmatpush1.bf16.msra.mxu0 0
        %7179 = vmatprep.subr.bf16.mxu0 0
        %7180 = vmatpush1.bf16.msra.mxu0 0
        %7181 = vmatprep.subr.bf16.mxu0 0
        %7182 = vmatpush1.bf16.msra.mxu0 0
        %7183 = vmatprep.subr.bf16.mxu0 0
        %7184 = vmatpush1.bf16.msra.mxu0 0
        %7185 = vmatprep.subr.bf16.mxu0 0
        %7186 = vmatpush1.bf16.msra.mxu0 0
        %7187 = vmatprep.subr.bf16.mxu0 0
        %7188 = vmatpush1.bf16.msra.mxu0 0
        %7189 = vmatprep.subr.bf16.mxu0 0
        %7190 = vmatpush1.bf16.msra.mxu0 0
        %7191 = vmatprep.subr.bf16.mxu0 0
        %7192 = vmatpush1.bf16.msra.mxu0 0
        %7193 = vmatprep.subr.bf16.mxu0 0
        %7194 = vmatpush1.bf16.msra.mxu0 0
        %7195 = vmatprep.mubr.bf16.mxu0 0
        %7196 = vmatmul.mubr.bf16.gmra.mrb[0].mxu0 %v7161
        %v7197 = vpop.f32.mrb[0].mxu0
        %v7198 = vadd.f32 0.0, %v7197
        %v7199 = vpop.f32.mrb[0].mxu0
        %v7200 = vadd.f32 0.0, %v7199
        %v7201 = vpop.f32.mrb[0].mxu0
        %v7202 = vadd.f32 0.0, %v7201
        %v7203 = vpop.f32.mrb[0].mxu0
        %v7204 = vadd.f32 0.0, %v7203
        %7205 = vdwg.mxu0
        %7206 = vmatprep.subr.bf16.mxu0 %v7138
        %7207 = vmatpush1.bf16.msra.mxu0 %v7137
        %7208 = vmatprep.subr.bf16.mxu0 %v7142
        %7209 = vmatpush1.bf16.msra.mxu0 %v7141
        %7210 = vmatprep.subr.bf16.mxu0 %v7146
        %7211 = vmatpush1.bf16.msra.mxu0 %v7145
        %7212 = vmatprep.subr.bf16.mxu0 %v7150
        %7213 = vmatpush1.bf16.msra.mxu0 %v7149
        %7214 = vmatprep.subr.bf16.mxu0 0
        %7215 = vmatpush1.bf16.msra.mxu0 0
        %7216 = vmatprep.subr.bf16.mxu0 0
        %7217 = vmatpush1.bf16.msra.mxu0 0
        %7218 = vmatprep.subr.bf16.mxu0 0
        %7219 = vmatpush1.bf16.msra.mxu0 0
        %7220 = vmatprep.subr.bf16.mxu0 0
        %7221 = vmatpush1.bf16.msra.mxu0 0
        %7222 = vmatprep.subr.bf16.mxu0 0
        %7223 = vmatpush1.bf16.msra.mxu0 0
        %7224 = vmatprep.subr.bf16.mxu0 0
        %7225 = vmatpush1.bf16.msra.mxu0 0
        %7226 = vmatprep.subr.bf16.mxu0 0
        %7227 = vmatpush1.bf16.msra.mxu0 0
        %7228 = vmatprep.subr.bf16.mxu0 0
        %7229 = vmatpush1.bf16.msra.mxu0 0
        %7230 = vmatprep.subr.bf16.mxu0 0
        %7231 = vmatpush1.bf16.msra.mxu0 0
        %7232 = vmatprep.subr.bf16.mxu0 0
        %7233 = vmatpush1.bf16.msra.mxu0 0
        %7234 = vmatprep.subr.bf16.mxu0 0
        %7235 = vmatpush1.bf16.msra.mxu0 0
        %7236 = vmatprep.subr.bf16.mxu0 0
        %7237 = vmatpush1.bf16.msra.mxu0 0
        %7238 = vmatprep.mubr.bf16.mxu0 0
        %7239 = vmatmul.mubr.bf16.gmra.mrb[0].mxu0 %v7161
        %v7240 = vpop.f32.mrb[0].mxu0
        %v7241 = vadd.f32 0.0, %v7240
        %v7242 = vpop.f32.mrb[0].mxu0
        %v7243 = vadd.f32 0.0, %v7242
        %v7244 = vpop.f32.mrb[0].mxu0
        %v7245 = vadd.f32 0.0, %v7244
        %v7246 = vpop.f32.mrb[0].mxu0
        %v7247 = vadd.f32 0.0, %v7246
        %7248 = vdwg.mxu0
        %v7251 = vunpack.c.l.b16 %v7101
        %v7252 = vunpack.c.l.b16 %v7102
        %v7253 = vpack.c.b16 %v7252, %v7251
        %v7255 = vsel %vm7159, %v7253, 0
        %7257 = vmatprep.subr.bf16.mxu0 %v7086
        %7258 = vmatpush1.bf16.msra.mxu0 %v7085
        %7259 = vmatprep.subr.bf16.mxu0 %v7090
        %7260 = vmatpush1.bf16.msra.mxu0 %v7089
        %7261 = vmatprep.subr.bf16.mxu0 %v7094
        %7262 = vmatpush1.bf16.msra.mxu0 %v7093
        %7263 = vmatprep.subr.bf16.mxu0 %v7098
        %7264 = vmatpush1.bf16.msra.mxu0 %v7097
        %7265 = vmatprep.subr.bf16.mxu0 0
        %7266 = vmatpush1.bf16.msra.mxu0 0
        %7267 = vmatprep.subr.bf16.mxu0 0
        %7268 = vmatpush1.bf16.msra.mxu0 0
        %7269 = vmatprep.subr.bf16.mxu0 0
        %7270 = vmatpush1.bf16.msra.mxu0 0
        %7271 = vmatprep.subr.bf16.mxu0 0
        %7272 = vmatpush1.bf16.msra.mxu0 0
        %7273 = vmatprep.subr.bf16.mxu0 0
        %7274 = vmatpush1.bf16.msra.mxu0 0
        %7275 = vmatprep.subr.bf16.mxu0 0
        %7276 = vmatpush1.bf16.msra.mxu0 0
        %7277 = vmatprep.subr.bf16.mxu0 0
        %7278 = vmatpush1.bf16.msra.mxu0 0
        %7279 = vmatprep.subr.bf16.mxu0 0
        %7280 = vmatpush1.bf16.msra.mxu0 0
        %7281 = vmatprep.subr.bf16.mxu0 0
        %7282 = vmatpush1.bf16.msra.mxu0 0
        %7283 = vmatprep.subr.bf16.mxu0 0
        %7284 = vmatpush1.bf16.msra.mxu0 0
        %7285 = vmatprep.subr.bf16.mxu0 0
        %7286 = vmatpush1.bf16.msra.mxu0 0
        %7287 = vmatprep.subr.bf16.mxu0 0
        %7288 = vmatpush1.bf16.msra.mxu0 0
        %7289 = vmatprep.mubr.bf16.mxu0 0
        %7290 = vmatmul.mubr.bf16.gmra.mrb[0].mxu0 %v7255
        %v7291 = vpop.f32.mrb[0].mxu0
        %v7292 = vadd.f32 %v7198, %v7291
        %v7293 = vpop.f32.mrb[0].mxu0
        %v7294 = vadd.f32 %v7200, %v7293
        %v7295 = vpop.f32.mrb[0].mxu0
        %v7296 = vadd.f32 %v7202, %v7295
        %v7297 = vpop.f32.mrb[0].mxu0
        %v7298 = vadd.f32 %v7204, %v7297
        %7299 = vdwg.mxu0
        %7300 = vmatprep.subr.bf16.mxu0 %v7088
        %7301 = vmatpush1.bf16.msra.mxu0 %v7087
        %7302 = vmatprep.subr.bf16.mxu0 %v7092
        %7303 = vmatpush1.bf16.msra.mxu0 %v7091
        %7304 = vmatprep.subr.bf16.mxu0 %v7096
        %7305 = vmatpush1.bf16.msra.mxu0 %v7095
        %7306 = vmatprep.subr.bf16.mxu0 %v7100
        %7307 = vmatpush1.bf16.msra.mxu0 %v7099
        %7308 = vmatprep.subr.bf16.mxu0 0
        %7309 = vmatpush1.bf16.msra.mxu0 0
        %7310 = vmatprep.subr.bf16.mxu0 0
        %7311 = vmatpush1.bf16.msra.mxu0 0
        %7312 = vmatprep.subr.bf16.mxu0 0
        %7313 = vmatpush1.bf16.msra.mxu0 0
        %7314 = vmatprep.subr.bf16.mxu0 0
        %7315 = vmatpush1.bf16.msra.mxu0 0
        %7316 = vmatprep.subr.bf16.mxu0 0
        %7317 = vmatpush1.bf16.msra.mxu0 0
        %7318 = vmatprep.subr.bf16.mxu0 0
        %7319 = vmatpush1.bf16.msra.mxu0 0
        %7320 = vmatprep.subr.bf16.mxu0 0
        %7321 = vmatpush1.bf16.msra.mxu0 0
        %7322 = vmatprep.subr.bf16.mxu0 0
        %7323 = vmatpush1.bf16.msra.mxu0 0
        %7324 = vmatprep.subr.bf16.mxu0 0
        %7325 = vmatpush1.bf16.msra.mxu0 0
        %7326 = vmatprep.subr.bf16.mxu0 0
        %7327 = vmatpush1.bf16.msra.mxu0 0
        %7328 = vmatprep.subr.bf16.mxu0 0
        %7329 = vmatpush1.bf16.msra.mxu0 0
        %7330 = vmatprep.subr.bf16.mxu0 0
        %7331 = vmatpush1.bf16.msra.mxu0 0
        %7332 = vmatprep.mubr.bf16.mxu0 0
        %7333 = vmatmul.mubr.bf16.gmra.mrb[0].mxu0 %v7255
        %v7334 = vpop.f32.mrb[0].mxu0
        %v7335 = vadd.f32 %v7241, %v7334
        %v7336 = vpop.f32.mrb[0].mxu0
        %v7337 = vadd.f32 %v7243, %v7336
        %v7338 = vpop.f32.mrb[0].mxu0
        %v7339 = vadd.f32 %v7245, %v7338
        %v7340 = vpop.f32.mrb[0].mxu0
        %v7341 = vadd.f32 %v7247, %v7340
        %7342 = vdwg.mxu0
        %v7343 = vmul.bf16 %v7103, %v7135
        %v7344 = vmul.bf16 %v7104, %v7136
        %v7345 = vmul.bf16 %v7105, %v7137
        %v7346 = vmul.bf16 %v7106, %v7138
        %v7347 = vmul.bf16 %v7107, %v7139
        %v7348 = vmul.bf16 %v7108, %v7140
        %v7349 = vmul.bf16 %v7109, %v7141
        %v7350 = vmul.bf16 %v7110, %v7142
        %v7351 = vmul.bf16 %v7111, %v7143
        %v7352 = vmul.bf16 %v7112, %v7144
        %v7353 = vmul.bf16 %v7113, %v7145
        %v7354 = vmul.bf16 %v7114, %v7146
        %v7355 = vmul.bf16 %v7115, %v7147
        %v7356 = vmul.bf16 %v7116, %v7148
        %v7357 = vmul.bf16 %v7117, %v7149
        %v7358 = vmul.bf16 %v7118, %v7150
        %v7359 = vsub.bf16 %v7343, %v7085
        %v7360 = vsub.bf16 %v7344, %v7086
        %v7361 = vsub.bf16 %v7345, %v7087
        %v7362 = vsub.bf16 %v7346, %v7088
        %v7363 = vsub.bf16 %v7347, %v7089
        %v7364 = vsub.bf16 %v7348, %v7090
        %v7365 = vsub.bf16 %v7349, %v7091
        %v7366 = vsub.bf16 %v7350, %v7092
        %v7367 = vsub.bf16 %v7351, %v7093
        %v7368 = vsub.bf16 %v7352, %v7094
        %v7369 = vsub.bf16 %v7353, %v7095
        %v7370 = vsub.bf16 %v7354, %v7096
        %v7371 = vsub.bf16 %v7355, %v7097
        %v7372 = vsub.bf16 %v7356, %v7098
        %v7373 = vsub.bf16 %v7357, %v7099
        %v7374 = vsub.bf16 %v7358, %v7100
        %s7375 = scalar_lea.vmem %s9, 16
        %v7376 = vld [vmem:[%s7375] sm:$0xf]
        %v7377 = vld [vmem:[%s7375 + $0x4] sm:$0xf]
        %v7380 = vunpack.c.l.b16 %v7376
        %v7381 = vunpack.c.l.b16 %v7377
        %v7382 = vpack.c.b16 %v7381, %v7380
        %v7384 = vsel %vm7159, %v7382, 0
        %7386 = vmatprep.subr.bf16.mxu0 %v7360
        %7387 = vmatpush1.bf16.msra.mxu0 %v7359
        %7388 = vmatprep.subr.bf16.mxu0 %v7364
        %7389 = vmatpush1.bf16.msra.mxu0 %v7363
        %7390 = vmatprep.subr.bf16.mxu0 %v7368
        %7391 = vmatpush1.bf16.msra.mxu0 %v7367
        %7392 = vmatprep.subr.bf16.mxu0 %v7372
        %7393 = vmatpush1.bf16.msra.mxu0 %v7371
        %7394 = vmatprep.subr.bf16.mxu0 0
        %7395 = vmatpush1.bf16.msra.mxu0 0
        %7396 = vmatprep.subr.bf16.mxu0 0
        %7397 = vmatpush1.bf16.msra.mxu0 0
        %7398 = vmatprep.subr.bf16.mxu0 0
        %7399 = vmatpush1.bf16.msra.mxu0 0
        %7400 = vmatprep.subr.bf16.mxu0 0
        %7401 = vmatpush1.bf16.msra.mxu0 0
        %7402 = vmatprep.subr.bf16.mxu0 0
        %7403 = vmatpush1.bf16.msra.mxu0 0
        %7404 = vmatprep.subr.bf16.mxu0 0
        %7405 = vmatpush1.bf16.msra.mxu0 0
        %7406 = vmatprep.subr.bf16.mxu0 0
        %7407 = vmatpush1.bf16.msra.mxu0 0
        %7408 = vmatprep.subr.bf16.mxu0 0
        %7409 = vmatpush1.bf16.msra.mxu0 0
        %7410 = vmatprep.subr.bf16.mxu0 0
        %7411 = vmatpush1.bf16.msra.mxu0 0
        %7412 = vmatprep.subr.bf16.mxu0 0
        %7413 = vmatpush1.bf16.msra.mxu0 0
        %7414 = vmatprep.subr.bf16.mxu0 0
        %7415 = vmatpush1.bf16.msra.mxu0 0
        %7416 = vmatprep.subr.bf16.mxu0 0
        %7417 = vmatpush1.bf16.msra.mxu0 0
        %7418 = vmatprep.mubr.bf16.mxu0 0
        %7419 = vmatmul.mubr.bf16.gmra.mrb[0].mxu0 %v7384
        %v7420 = vpop.f32.mrb[0].mxu0
        %v7421 = vadd.f32 0.0, %v7420
        %v7422 = vpop.f32.mrb[0].mxu0
        %v7423 = vadd.f32 0.0, %v7422
        %v7424 = vpop.f32.mrb[0].mxu0
        %v7425 = vadd.f32 0.0, %v7424
        %v7426 = vpop.f32.mrb[0].mxu0
        %v7427 = vadd.f32 0.0, %v7426
        %7428 = vdwg.mxu0
        %7429 = vmatprep.subr.bf16.mxu0 %v7362
        %7430 = vmatpush1.bf16.msra.mxu0 %v7361
        %7431 = vmatprep.subr.bf16.mxu0 %v7366
        %7432 = vmatpush1.bf16.msra.mxu0 %v7365
        %7433 = vmatprep.subr.bf16.mxu0 %v7370
        %7434 = vmatpush1.bf16.msra.mxu0 %v7369
        %7435 = vmatprep.subr.bf16.mxu0 %v7374
        %7436 = vmatpush1.bf16.msra.mxu0 %v7373
        %7437 = vmatprep.subr.bf16.mxu0 0
        %7438 = vmatpush1.bf16.msra.mxu0 0
        %7439 = vmatprep.subr.bf16.mxu0 0
        %7440 = vmatpush1.bf16.msra.mxu0 0
        %7441 = vmatprep.subr.bf16.mxu0 0
        %7442 = vmatpush1.bf16.msra.mxu0 0
        %7443 = vmatprep.subr.bf16.mxu0 0
        %7444 = vmatpush1.bf16.msra.mxu0 0
        %7445 = vmatprep.subr.bf16.mxu0 0
        %7446 = vmatpush1.bf16.msra.mxu0 0
        %7447 = vmatprep.subr.bf16.mxu0 0
        %7448 = vmatpush1.bf16.msra.mxu0 0
        %7449 = vmatprep.subr.bf16.mxu0 0
        %7450 = vmatpush1.bf16.msra.mxu0 0
        %7451 = vmatprep.subr.bf16.mxu0 0
        %7452 = vmatpush1.bf16.msra.mxu0 0
        %7453 = vmatprep.subr.bf16.mxu0 0
        %7454 = vmatpush1.bf16.msra.mxu0 0
        %7455 = vmatprep.subr.bf16.mxu0 0
        %7456 = vmatpush1.bf16.msra.mxu0 0
        %7457 = vmatprep.subr.bf16.mxu0 0
        %7458 = vmatpush1.bf16.msra.mxu0 0
        %7459 = vmatprep.subr.bf16.mxu0 0
        %7460 = vmatpush1.bf16.msra.mxu0 0
        %7461 = vmatprep.mubr.bf16.mxu0 0
        %7462 = vmatmul.mubr.bf16.gmra.mrb[0].mxu0 %v7384
        %v7463 = vpop.f32.mrb[0].mxu0
        %v7464 = vadd.f32 0.0, %v7463
        %v7465 = vpop.f32.mrb[0].mxu0
        %v7466 = vadd.f32 0.0, %v7465
        %v7467 = vpop.f32.mrb[0].mxu0
        %v7468 = vadd.f32 0.0, %v7467
        %v7469 = vpop.f32.mrb[0].mxu0
        %v7470 = vadd.f32 0.0, %v7469
        %7471 = vdwg.mxu0
        %v7472 = vadd.f32 %v7292, %v7421
        %v7473 = vadd.f32 %v7294, %v7423
        %v7474 = vadd.f32 %v7335, %v7464
        %v7475 = vadd.f32 %v7337, %v7466
        %v7476 = vadd.f32 %v7296, %v7425
        %v7477 = vadd.f32 %v7298, %v7427
        %v7478 = vadd.f32 %v7339, %v7468
        %v7479 = vadd.f32 %v7341, %v7470
        %v7480 = vmul.bf16 %v7103, %v7359
        %v7481 = vmul.bf16 %v7104, %v7360
        %v7482 = vmul.bf16 %v7105, %v7361
        %v7483 = vmul.bf16 %v7106, %v7362
        %v7484 = vmul.bf16 %v7107, %v7363
        %v7485 = vmul.bf16 %v7108, %v7364
        %v7486 = vmul.bf16 %v7109, %v7365
        %v7487 = vmul.bf16 %v7110, %v7366
        %v7488 = vmul.bf16 %v7111, %v7367
        %v7489 = vmul.bf16 %v7112, %v7368
        %v7490 = vmul.bf16 %v7113, %v7369
        %v7491 = vmul.bf16 %v7114, %v7370
        %v7492 = vmul.bf16 %v7115, %v7371
        %v7493 = vmul.bf16 %v7116, %v7372
        %v7494 = vmul.bf16 %v7117, %v7373
        %v7495 = vmul.bf16 %v7118, %v7374
        %v7496 = vsub.bf16 %v7480, %v7135
        %v7497 = vsub.bf16 %v7481, %v7136
        %v7498 = vsub.bf16 %v7482, %v7137
        %v7499 = vsub.bf16 %v7483, %v7138
        %v7500 = vsub.bf16 %v7484, %v7139
        %v7501 = vsub.bf16 %v7485, %v7140
        %v7502 = vsub.bf16 %v7486, %v7141
        %v7503 = vsub.bf16 %v7487, %v7142
        %v7504 = vsub.bf16 %v7488, %v7143
        %v7505 = vsub.bf16 %v7489, %v7144
        %v7506 = vsub.bf16 %v7490, %v7145
        %v7507 = vsub.bf16 %v7491, %v7146
        %v7508 = vsub.bf16 %v7492, %v7147
        %v7509 = vsub.bf16 %v7493, %v7148
        %v7510 = vsub.bf16 %v7494, %v7149
        %v7511 = vsub.bf16 %v7495, %v7150
        %s7512 = scalar_lea.vmem %s9, 24
        %v7513 = vld [vmem:[%s7512] sm:$0xf]
        %v7514 = vld [vmem:[%s7512 + $0x4] sm:$0xf]
        %v7517 = vunpack.c.l.b16 %v7513
        %v7518 = vunpack.c.l.b16 %v7514
        %v7519 = vpack.c.b16 %v7518, %v7517
        %v7521 = vsel %vm7159, %v7519, 0
        %7523 = vmatprep.subr.bf16.mxu0 %v7497
        %7524 = vmatpush1.bf16.msra.mxu0 %v7496
        %7525 = vmatprep.subr.bf16.mxu0 %v7501
        %7526 = vmatpush1.bf16.msra.mxu0 %v7500
        %7527 = vmatprep.subr.bf16.mxu0 %v7505
        %7528 = vmatpush1.bf16.msra.mxu0 %v7504
        %7529 = vmatprep.subr.bf16.mxu0 %v7509
        %7530 = vmatpush1.bf16.msra.mxu0 %v7508
        %7531 = vmatprep.subr.bf16.mxu0 0
        %7532 = vmatpush1.bf16.msra.mxu0 0
        %7533 = vmatprep.subr.bf16.mxu0 0
        %7534 = vmatpush1.bf16.msra.mxu0 0
        %7535 = vmatprep.subr.bf16.mxu0 0
        %7536 = vmatpush1.bf16.msra.mxu0 0
        %7537 = vmatprep.subr.bf16.mxu0 0
        %7538 = vmatpush1.bf16.msra.mxu0 0
        %7539 = vmatprep.subr.bf16.mxu0 0
        %7540 = vmatpush1.bf16.msra.mxu0 0
        %7541 = vmatprep.subr.bf16.mxu0 0
        %7542 = vmatpush1.bf16.msra.mxu0 0
        %7543 = vmatprep.subr.bf16.mxu0 0
        %7544 = vmatpush1.bf16.msra.mxu0 0
        %7545 = vmatprep.subr.bf16.mxu0 0
        %7546 = vmatpush1.bf16.msra.mxu0 0
        %7547 = vmatprep.subr.bf16.mxu0 0
        %7548 = vmatpush1.bf16.msra.mxu0 0
        %7549 = vmatprep.subr.bf16.mxu0 0
        %7550 = vmatpush1.bf16.msra.mxu0 0
        %7551 = vmatprep.subr.bf16.mxu0 0
        %7552 = vmatpush1.bf16.msra.mxu0 0
        %7553 = vmatprep.subr.bf16.mxu0 0
        %7554 = vmatpush1.bf16.msra.mxu0 0
        %7555 = vmatprep.mubr.bf16.mxu0 0
        %7556 = vmatmul.mubr.bf16.gmra.mrb[0].mxu0 %v7521
        %v7557 = vpop.f32.mrb[0].mxu0
        %v7558 = vadd.f32 0.0, %v7557
        %v7559 = vpop.f32.mrb[0].mxu0
        %v7560 = vadd.f32 0.0, %v7559
        %v7561 = vpop.f32.mrb[0].mxu0
        %v7562 = vadd.f32 0.0, %v7561
        %v7563 = vpop.f32.mrb[0].mxu0
        %v7564 = vadd.f32 0.0, %v7563
        %7565 = vdwg.mxu0
        %7566 = vmatprep.subr.bf16.mxu0 %v7499
        %7567 = vmatpush1.bf16.msra.mxu0 %v7498
        %7568 = vmatprep.subr.bf16.mxu0 %v7503
        %7569 = vmatpush1.bf16.msra.mxu0 %v7502
        %7570 = vmatprep.subr.bf16.mxu0 %v7507
        %7571 = vmatpush1.bf16.msra.mxu0 %v7506
        %7572 = vmatprep.subr.bf16.mxu0 %v7511
        %7573 = vmatpush1.bf16.msra.mxu0 %v7510
        %7574 = vmatprep.subr.bf16.mxu0 0
        %7575 = vmatpush1.bf16.msra.mxu0 0
        %7576 = vmatprep.subr.bf16.mxu0 0
        %7577 = vmatpush1.bf16.msra.mxu0 0
        %7578 = vmatprep.subr.bf16.mxu0 0
        %7579 = vmatpush1.bf16.msra.mxu0 0
        %7580 = vmatprep.subr.bf16.mxu0 0
        %7581 = vmatpush1.bf16.msra.mxu0 0
        %7582 = vmatprep.subr.bf16.mxu0 0
        %7583 = vmatpush1.bf16.msra.mxu0 0
        %7584 = vmatprep.subr.bf16.mxu0 0
        %7585 = vmatpush1.bf16.msra.mxu0 0
        %7586 = vmatprep.subr.bf16.mxu0 0
        %7587 = vmatpush1.bf16.msra.mxu0 0
        %7588 = vmatprep.subr.bf16.mxu0 0
        %7589 = vmatpush1.bf16.msra.mxu0 0
        %7590 = vmatprep.subr.bf16.mxu0 0
        %7591 = vmatpush1.bf16.msra.mxu0 0
        %7592 = vmatprep.subr.bf16.mxu0 0
        %7593 = vmatpush1.bf16.msra.mxu0 0
        %7594 = vmatprep.subr.bf16.mxu0 0
        %7595 = vmatpush1.bf16.msra.mxu0 0
        %7596 = vmatprep.subr.bf16.mxu0 0
        %7597 = vmatpush1.bf16.msra.mxu0 0
        %7598 = vmatprep.mubr.bf16.mxu0 0
        %7599 = vmatmul.mubr.bf16.gmra.mrb[0].mxu0 %v7521
        %v7600 = vpop.f32.mrb[0].mxu0
        %v7601 = vadd.f32 0.0, %v7600
        %v7602 = vpop.f32.mrb[0].mxu0
        %v7603 = vadd.f32 0.0, %v7602
        %v7604 = vpop.f32.mrb[0].mxu0
        %v7605 = vadd.f32 0.0, %v7604
        %v7606 = vpop.f32.mrb[0].mxu0
        %v7607 = vadd.f32 0.0, %v7606
        %7608 = vdwg.mxu0
        %v7609 = vadd.f32 %v7472, %v7558
        %v7610 = vadd.f32 %v7473, %v7560
        %v7611 = vadd.f32 %v7474, %v7601
        %v7612 = vadd.f32 %v7475, %v7603
        %v7613 = vadd.f32 %v7476, %v7562
        %v7614 = vadd.f32 %v7477, %v7564
        %v7615 = vadd.f32 %v7478, %v7605
        %v7616 = vadd.f32 %v7479, %v7607
        %v7617 = vld [vmem:[%s10] sm:$0xff]
        %v7618 = vld [vmem:[%s10 + $0x8] sm:$0xff]
        %7620 = vset.pattern.permute.xlu0 0
        %7621 = vperm.xlu0 %7620, %v7617
        %v7622 = vpop.permute.xlu0 %7621
        %7625 = vset.pattern.permute.xlu0 0
        %7626 = vperm.xlu0 %7625, %v7618
        %v7627 = vpop.permute.xlu0 %7626
        %v7629 = vadd.f32 %v7609, %v7622
        %v7630 = vadd.f32 %v7610, %v7622
        %v7631 = vadd.f32 %v7611, %v7622
        %v7632 = vadd.f32 %v7612, %v7622
        %v7633 = vadd.f32 %v7613, %v7627
        %v7634 = vadd.f32 %v7614, %v7627
        %v7635 = vadd.f32 %v7615, %v7627
        %v7636 = vadd.f32 %v7616, %v7627
        %v7637 = vld [vmem:[%s11] sm:$0xff]
        %v7638 = vld [vmem:[%s11 + $0x8] sm:$0xff]
        %v7639 = vld [vmem:[%s12] sm:$0xff]
        %v7640 = vld [vmem:[%s12 + $0x8] sm:$0xff]
        %v7641 = vadd.f32 %v7629, %v7633
        %v7642 = vrot.slane %v7641, 4
        %v7643 = vadd.f32 %v7641, %v7642
        %v7644 = vrot.slane %v7643, 2
        %v7645 = vadd.f32 %v7643, %v7644
        %v7646 = vrot.slane %v7645, 1
        %v7647 = vadd.f32 %v7645, %v7646
        %v7648 = vadd.f32 %v7630, %v7634
        %v7649 = vrot.slane %v7648, 4
        %v7650 = vadd.f32 %v7648, %v7649
        %v7651 = vrot.slane %v7650, 2
        %v7652 = vadd.f32 %v7650, %v7651
        %v7653 = vrot.slane %v7652, 1
        %v7654 = vadd.f32 %v7652, %v7653
        %v7655 = vadd.f32 %v7631, %v7635
        %v7656 = vrot.slane %v7655, 4
        %v7657 = vadd.f32 %v7655, %v7656
        %v7658 = vrot.slane %v7657, 2
        %v7659 = vadd.f32 %v7657, %v7658
        %v7660 = vrot.slane %v7659, 1
        %v7661 = vadd.f32 %v7659, %v7660
        %v7662 = vadd.f32 %v7632, %v7636
        %v7663 = vrot.slane %v7662, 4
        %v7664 = vadd.f32 %v7662, %v7663
        %v7665 = vrot.slane %v7664, 2
        %v7666 = vadd.f32 %v7664, %v7665
        %v7667 = vrot.slane %v7666, 1
        %v7668 = vadd.f32 %v7666, %v7667
        %v7669 = vrcp.pop 16.0
        %v7670 = vmul.f32 %v7647, %v7669
        %v7671 = vmul.f32 %v7654, %v7669
        %v7672 = vmul.f32 %v7661, %v7669
        %v7673 = vmul.f32 %v7668, %v7669
        %v7674 = vmul.f32 %v7629, %v7629
        %v7675 = vmul.f32 %v7630, %v7630
        %v7676 = vmul.f32 %v7631, %v7631
        %v7677 = vmul.f32 %v7632, %v7632
        %v7678 = vmul.f32 %v7633, %v7633
        %v7679 = vmul.f32 %v7634, %v7634
        %v7680 = vmul.f32 %v7635, %v7635
        %v7681 = vmul.f32 %v7636, %v7636
        %v7682 = vadd.f32 %v7674, %v7678
        %v7683 = vrot.slane %v7682, 4
        %v7684 = vadd.f32 %v7682, %v7683
        %v7685 = vrot.slane %v7684, 2
        %v7686 = vadd.f32 %v7684, %v7685
        %v7687 = vrot.slane %v7686, 1
        %v7688 = vadd.f32 %v7686, %v7687
        %v7689 = vadd.f32 %v7675, %v7679
        %v7690 = vrot.slane %v7689, 4
        %v7691 = vadd.f32 %v7689, %v7690
        %v7692 = vrot.slane %v7691, 2
        %v7693 = vadd.f32 %v7691, %v7692
        %v7694 = vrot.slane %v7693, 1
        %v7695 = vadd.f32 %v7693, %v7694
        %v7696 = vadd.f32 %v7676, %v7680
        %v7697 = vrot.slane %v7696, 4
        %v7698 = vadd.f32 %v7696, %v7697
        %v7699 = vrot.slane %v7698, 2
        %v7700 = vadd.f32 %v7698, %v7699
        %v7701 = vrot.slane %v7700, 1
        %v7702 = vadd.f32 %v7700, %v7701
        %v7703 = vadd.f32 %v7677, %v7681
        %v7704 = vrot.slane %v7703, 4
        %v7705 = vadd.f32 %v7703, %v7704
        %v7706 = vrot.slane %v7705, 2
        %v7707 = vadd.f32 %v7705, %v7706
        %v7708 = vrot.slane %v7707, 1
        %v7709 = vadd.f32 %v7707, %v7708
        %v7710 = vmul.f32 %v7688, %v7669
        %v7711 = vmul.f32 %v7695, %v7669
        %v7712 = vmul.f32 %v7702, %v7669
        %v7713 = vmul.f32 %v7709, %v7669
        %v7714 = vmul.f32 %v7670, %v7670
        %v7715 = vmul.f32 %v7671, %v7671
        %v7716 = vmul.f32 %v7672, %v7672
        %v7717 = vmul.f32 %v7673, %v7673
        %v7718 = vsub.f32 %v7710, %v7714
        %v7719 = vsub.f32 %v7711, %v7715
        %v7720 = vsub.f32 %v7712, %v7716
        %v7721 = vsub.f32 %v7713, %v7717
        %v7722 = vmax.f32 %v7718, 0.0
        %v7723 = vmax.f32 %v7719, 0.0
        %v7724 = vmax.f32 %v7720, 0.0
        %v7725 = vmax.f32 %v7721, 0.0
        %v7726 = vadd.f32 %v7722, 1e-05
        %v7727 = vadd.f32 %v7723, 1e-05
        %v7728 = vadd.f32 %v7724, 1e-05
        %v7729 = vadd.f32 %v7725, 1e-05
        %v7730 = vrsqrt.pop %v7726
        %v7731 = vrsqrt.pop %v7727
        %v7732 = vrsqrt.pop %v7728
        %v7733 = vrsqrt.pop %v7729
        %v7734 = vsub.f32 %v7629, %v7670
        %v7735 = vsub.f32 %v7630, %v7671
        %v7736 = vsub.f32 %v7631, %v7672
        %v7737 = vsub.f32 %v7632, %v7673
        %v7738 = vsub.f32 %v7633, %v7670
        %v7739 = vsub.f32 %v7634, %v7671
        %v7740 = vsub.f32 %v7635, %v7672
        %v7741 = vsub.f32 %v7636, %v7673
        %v7742 = vmul.f32 %v7734, %v7730
        %v7743 = vmul.f32 %v7735, %v7731
        %v7744 = vmul.f32 %v7736, %v7732
        %v7745 = vmul.f32 %v7737, %v7733
        %v7746 = vmul.f32 %v7738, %v7730
        %v7747 = vmul.f32 %v7739, %v7731
        %v7748 = vmul.f32 %v7740, %v7732
        %v7749 = vmul.f32 %v7741, %v7733
        %7751 = vset.pattern.permute.xlu0 0
        %7752 = vperm.xlu0 %7751, %v7637
        %v7753 = vpop.permute.xlu0 %7752
        %7756 = vset.pattern.permute.xlu0 0
        %7757 = vperm.xlu0 %7756, %v7638
        %v7758 = vpop.permute.xlu0 %7757
        %v7760 = vmul.f32 %v7742, %v7753
        %v7761 = vmul.f32 %v7743, %v7753
        %v7762 = vmul.f32 %v7744, %v7753
        %v7763 = vmul.f32 %v7745, %v7753
        %v7764 = vmul.f32 %v7746, %v7758
        %v7765 = vmul.f32 %v7747, %v7758
        %v7766 = vmul.f32 %v7748, %v7758
        %v7767 = vmul.f32 %v7749, %v7758
        %7769 = vset.pattern.permute.xlu0 0
        %7770 = vperm.xlu0 %7769, %v7639
        %v7771 = vpop.permute.xlu0 %7770
        %7774 = vset.pattern.permute.xlu0 0
        %7775 = vperm.xlu0 %7774, %v7640
        %v7776 = vpop.permute.xlu0 %7775
        %v7778 = vadd.f32 %v7760, %v7771
        %v7779 = vadd.f32 %v7761, %v7771
        %v7780 = vadd.f32 %v7762, %v7771
        %v7781 = vadd.f32 %v7763, %v7771
        %v7782 = vadd.f32 %v7764, %v7776
        %v7783 = vadd.f32 %v7765, %v7776
        %v7784 = vadd.f32 %v7766, %v7776
        %v7785 = vadd.f32 %v7767, %v7776
        %v7786 = vtanh.pop %v7778
        %v7787 = vtanh.pop %v7779
        %v7788 = vtanh.pop %v7780
        %v7789 = vtanh.pop %v7781
        %v7790 = vtanh.pop %v7782
        %v7791 = vtanh.pop %v7783
        %v7792 = vtanh.pop %v7784
        %v7793 = vtanh.pop %v7785
        %v7794 = vpack.c.bf16 %v7790, %v7786
        %v7795 = vpack.c.bf16 %v7791, %v7787
        %v7796 = vpack.c.bf16 %v7792, %v7788
        %v7797 = vpack.c.bf16 %v7793, %v7789
        %v7798 = vld [vmem:[%s13] sm:$0x3]
        %v7799 = vmul.bf16 %v7794, 1073758208
        %v7800 = vmul.bf16 %v7795, 1073758208
        %v7801 = vmul.bf16 %v7796, 1073758208
        %v7802 = vmul.bf16 %v7797, 1073758208
        %v7803 = vmul.bf16 %v7799, %v7794
        %v7804 = vmul.bf16 %v7800, %v7795
        %v7805 = vmul.bf16 %v7801, %v7796
        %v7806 = vmul.bf16 %v7802, %v7797
        %v7807 = vsub.bf16 %v7803, 1065369472
        %v7808 = vsub.bf16 %v7804, 1065369472
        %v7809 = vsub.bf16 %v7805, 1065369472
        %v7810 = vsub.bf16 %v7806, 1065369472
        %s7811 = scalar_lea.vmem %s13, 2
        %v7812 = vld [vmem:[%s7811] sm:$0x3]
        %vm7813 = vcmask 130048
        %v7815 = vsel %vm7813, %v7812, 0
        %7817 = vmatprep.subr.bf16.mxu0 %v7808
        %7818 = vmatpush1.bf16.msra.mxu0 %v7807
        %7819 = vmatprep.subr.bf16.mxu0 0
        %7820 = vmatpush1.bf16.msra.mxu0 0
        %7821 = vmatprep.subr.bf16.mxu0 0
        %7822 = vmatpush1.bf16.msra.mxu0 0
        %7823 = vmatprep.subr.bf16.mxu0 0
        %7824 = vmatpush1.bf16.msra.mxu0 0
        %7825 = vmatprep.subr.bf16.mxu0 0
        %7826 = vmatpush1.bf16.msra.mxu0 0
        %7827 = vmatprep.subr.bf16.mxu0 0
        %7828 = vmatpush1.bf16.msra.mxu0 0
        %7829 = vmatprep.subr.bf16.mxu0 0
        %7830 = vmatpush1.bf16.msra.mxu0 0
        %7831 = vmatprep.subr.bf16.mxu0 0
        %7832 = vmatpush1.bf16.msra.mxu0 0
        %7833 = vmatprep.subr.bf16.mxu0 0
        %7834 = vmatpush1.bf16.msra.mxu0 0
        %7835 = vmatprep.subr.bf16.mxu0 0
        %7836 = vmatpush1.bf16.msra.mxu0 0
        %7837 = vmatprep.subr.bf16.mxu0 0
        %7838 = vmatpush1.bf16.msra.mxu0 0
        %7839 = vmatprep.subr.bf16.mxu0 0
        %7840 = vmatpush1.bf16.msra.mxu0 0
        %7841 = vmatprep.subr.bf16.mxu0 0
        %7842 = vmatpush1.bf16.msra.mxu0 0
        %7843 = vmatprep.subr.bf16.mxu0 0
        %7844 = vmatpush1.bf16.msra.mxu0 0
        %7845 = vmatprep.subr.bf16.mxu0 0
        %7846 = vmatpush1.bf16.msra.mxu0 0
        %7847 = vmatprep.subr.bf16.mxu0 0
        %7848 = vmatpush1.bf16.msra.mxu0 0
        %7849 = vmatprep.mubr.bf16.mxu0 0
        %7850 = vmatmul.mubr.bf16.gmra.mrb[0].mxu0 %v7815
        %v7851 = vpop.f32.mrb[0].mxu0
        %v7852 = vadd.f32 0.0, %v7851
        %v7853 = vpop.f32.mrb[0].mxu0
        %v7854 = vadd.f32 0.0, %v7853
        %v7855 = vpop.f32.mrb[0].mxu0
        %v7856 = vpop.f32.mrb[0].mxu0
        %7857 = vdwg.mxu0
        %7858 = vmatprep.subr.bf16.mxu0 %v7810
        %7859 = vmatpush1.bf16.msra.mxu0 %v7809
        %7860 = vmatprep.subr.bf16.mxu0 0
        %7861 = vmatpush1.bf16.msra.mxu0 0
        %7862 = vmatprep.subr.bf16.mxu0 0
        %7863 = vmatpush1.bf16.msra.mxu0 0
        %7864 = vmatprep.subr.bf16.mxu0 0
        %7865 = vmatpush1.bf16.msra.mxu0 0
        %7866 = vmatprep.subr.bf16.mxu0 0
        %7867 = vmatpush1.bf16.msra.mxu0 0
        %7868 = vmatprep.subr.bf16.mxu0 0
        %7869 = vmatpush1.bf16.msra.mxu0 0
        %7870 = vmatprep.subr.bf16.mxu0 0
        %7871 = vmatpush1.bf16.msra.mxu0 0
        %7872 = vmatprep.subr.bf16.mxu0 0
        %7873 = vmatpush1.bf16.msra.mxu0 0
        %7874 = vmatprep.subr.bf16.mxu0 0
        %7875 = vmatpush1.bf16.msra.mxu0 0
        %7876 = vmatprep.subr.bf16.mxu0 0
        %7877 = vmatpush1.bf16.msra.mxu0 0
        %7878 = vmatprep.subr.bf16.mxu0 0
        %7879 = vmatpush1.bf16.msra.mxu0 0
        %7880 = vmatprep.subr.bf16.mxu0 0
        %7881 = vmatpush1.bf16.msra.mxu0 0
        %7882 = vmatprep.subr.bf16.mxu0 0
        %7883 = vmatpush1.bf16.msra.mxu0 0
        %7884 = vmatprep.subr.bf16.mxu0 0
        %7885 = vmatpush1.bf16.msra.mxu0 0
        %7886 = vmatprep.subr.bf16.mxu0 0
        %7887 = vmatpush1.bf16.msra.mxu0 0
        %7888 = vmatprep.subr.bf16.mxu0 0
        %7889 = vmatpush1.bf16.msra.mxu0 0
        %7890 = vmatprep.mubr.bf16.mxu0 0
        %7891 = vmatmul.mubr.bf16.gmra.mrb[0].mxu0 %v7815
        %v7892 = vpop.f32.mrb[0].mxu0
        %v7893 = vadd.f32 0.0, %v7892
        %v7894 = vpop.f32.mrb[0].mxu0
        %v7895 = vadd.f32 0.0, %v7894
        %v7896 = vpop.f32.mrb[0].mxu0
        %v7897 = vpop.f32.mrb[0].mxu0
        %7898 = vdwg.mxu0
        %v7900 = vsel %vm7813, %v7798, 0
        %7902 = vmatprep.subr.bf16.mxu0 %v7795
        %7903 = vmatpush1.bf16.msra.mxu0 %v7794
        %7904 = vmatprep.subr.bf16.mxu0 0
        %7905 = vmatpush1.bf16.msra.mxu0 0
        %7906 = vmatprep.subr.bf16.mxu0 0
        %7907 = vmatpush1.bf16.msra.mxu0 0
        %7908 = vmatprep.subr.bf16.mxu0 0
        %7909 = vmatpush1.bf16.msra.mxu0 0
        %7910 = vmatprep.subr.bf16.mxu0 0
        %7911 = vmatpush1.bf16.msra.mxu0 0
        %7912 = vmatprep.subr.bf16.mxu0 0
        %7913 = vmatpush1.bf16.msra.mxu0 0
        %7914 = vmatprep.subr.bf16.mxu0 0
        %7915 = vmatpush1.bf16.msra.mxu0 0
        %7916 = vmatprep.subr.bf16.mxu0 0
        %7917 = vmatpush1.bf16.msra.mxu0 0
        %7918 = vmatprep.subr.bf16.mxu0 0
        %7919 = vmatpush1.bf16.msra.mxu0 0
        %7920 = vmatprep.subr.bf16.mxu0 0
        %7921 = vmatpush1.bf16.msra.mxu0 0
        %7922 = vmatprep.subr.bf16.mxu0 0
        %7923 = vmatpush1.bf16.msra.mxu0 0
        %7924 = vmatprep.subr.bf16.mxu0 0
        %7925 = vmatpush1.bf16.msra.mxu0 0
        %7926 = vmatprep.subr.bf16.mxu0 0
        %7927 = vmatpush1.bf16.msra.mxu0 0
        %7928 = vmatprep.subr.bf16.mxu0 0
        %7929 = vmatpush1.bf16.msra.mxu0 0
        %7930 = vmatprep.subr.bf16.mxu0 0
        %7931 = vmatpush1.bf16.msra.mxu0 0
        %7932 = vmatprep.subr.bf16.mxu0 0
        %7933 = vmatpush1.bf16.msra.mxu0 0
        %7934 = vmatprep.mubr.bf16.mxu0 0
        %7935 = vmatmul.mubr.bf16.gmra.mrb[0].mxu0 %v7900
        %v7936 = vpop.f32.mrb[0].mxu0
        %v7937 = vadd.f32 %v7852, %v7936
        %v7938 = vpop.f32.mrb[0].mxu0
        %v7939 = vadd.f32 %v7854, %v7938
        %v7940 = vpop.f32.mrb[0].mxu0
        %v7941 = vpop.f32.mrb[0].mxu0
        %7942 = vdwg.mxu0
        %7943 = vmatprep.subr.bf16.mxu0 %v7797
        %7944 = vmatpush1.bf16.msra.mxu0 %v7796
        %7945 = vmatprep.subr.bf16.mxu0 0
        %7946 = vmatpush1.bf16.msra.mxu0 0
        %7947 = vmatprep.subr.bf16.mxu0 0
        %7948 = vmatpush1.bf16.msra.mxu0 0
        %7949 = vmatprep.subr.bf16.mxu0 0
        %7950 = vmatpush1.bf16.msra.mxu0 0
        %7951 = vmatprep.subr.bf16.mxu0 0
        %7952 = vmatpush1.bf16.msra.mxu0 0
        %7953 = vmatprep.subr.bf16.mxu0 0
        %7954 = vmatpush1.bf16.msra.mxu0 0
        %7955 = vmatprep.subr.bf16.mxu0 0
        %7956 = vmatpush1.bf16.msra.mxu0 0
        %7957 = vmatprep.subr.bf16.mxu0 0
        %7958 = vmatpush1.bf16.msra.mxu0 0
        %7959 = vmatprep.subr.bf16.mxu0 0
        %7960 = vmatpush1.bf16.msra.mxu0 0
        %7961 = vmatprep.subr.bf16.mxu0 0
        %7962 = vmatpush1.bf16.msra.mxu0 0
        %7963 = vmatprep.subr.bf16.mxu0 0
        %7964 = vmatpush1.bf16.msra.mxu0 0
        %7965 = vmatprep.subr.bf16.mxu0 0
        %7966 = vmatpush1.bf16.msra.mxu0 0
        %7967 = vmatprep.subr.bf16.mxu0 0
        %7968 = vmatpush1.bf16.msra.mxu0 0
        %7969 = vmatprep.subr.bf16.mxu0 0
        %7970 = vmatpush1.bf16.msra.mxu0 0
        %7971 = vmatprep.subr.bf16.mxu0 0
        %7972 = vmatpush1.bf16.msra.mxu0 0
        %7973 = vmatprep.subr.bf16.mxu0 0
        %7974 = vmatpush1.bf16.msra.mxu0 0
        %7975 = vmatprep.mubr.bf16.mxu0 0
        %7976 = vmatmul.mubr.bf16.gmra.mrb[0].mxu0 %v7900
        %v7977 = vpop.f32.mrb[0].mxu0
        %v7978 = vadd.f32 %v7893, %v7977
        %v7979 = vpop.f32.mrb[0].mxu0
        %v7980 = vadd.f32 %v7895, %v7979
        %v7981 = vpop.f32.mrb[0].mxu0
        %v7982 = vpop.f32.mrb[0].mxu0
        %7983 = vdwg.mxu0
        %v7984 = vmul.bf16 %v7799, %v7807
        %v7985 = vmul.bf16 %v7800, %v7808
        %v7986 = vmul.bf16 %v7801, %v7809
        %v7987 = vmul.bf16 %v7802, %v7810
        %v7988 = vsub.bf16 %v7984, %v7794
        %v7989 = vsub.bf16 %v7985, %v7795
        %v7990 = vsub.bf16 %v7986, %v7796
        %v7991 = vsub.bf16 %v7987, %v7797
        %s7992 = scalar_lea.vmem %s13, 4
        %v7993 = vld [vmem:[%s7992] sm:$0x3]
        %v7995 = vsel %vm7813, %v7993, 0
        %7997 = vmatprep.subr.bf16.mxu0 %v7989
        %7998 = vmatpush1.bf16.msra.mxu0 %v7988
        %7999 = vmatprep.subr.bf16.mxu0 0
        %8000 = vmatpush1.bf16.msra.mxu0 0
        %8001 = vmatprep.subr.bf16.mxu0 0
        %8002 = vmatpush1.bf16.msra.mxu0 0
        %8003 = vmatprep.subr.bf16.mxu0 0
        %8004 = vmatpush1.bf16.msra.mxu0 0
        %8005 = vmatprep.subr.bf16.mxu0 0
        %8006 = vmatpush1.bf16.msra.mxu0 0
        %8007 = vmatprep.subr.bf16.mxu0 0
        %8008 = vmatpush1.bf16.msra.mxu0 0
        %8009 = vmatprep.subr.bf16.mxu0 0
        %8010 = vmatpush1.bf16.msra.mxu0 0
        %8011 = vmatprep.subr.bf16.mxu0 0
        %8012 = vmatpush1.bf16.msra.mxu0 0
        %8013 = vmatprep.subr.bf16.mxu0 0
        %8014 = vmatpush1.bf16.msra.mxu0 0
        %8015 = vmatprep.subr.bf16.mxu0 0
        %8016 = vmatpush1.bf16.msra.mxu0 0
        %8017 = vmatprep.subr.bf16.mxu0 0
        %8018 = vmatpush1.bf16.msra.mxu0 0
        %8019 = vmatprep.subr.bf16.mxu0 0
        %8020 = vmatpush1.bf16.msra.mxu0 0
        %8021 = vmatprep.subr.bf16.mxu0 0
        %8022 = vmatpush1.bf16.msra.mxu0 0
        %8023 = vmatprep.subr.bf16.mxu0 0
        %8024 = vmatpush1.bf16.msra.mxu0 0
        %8025 = vmatprep.subr.bf16.mxu0 0
        %8026 = vmatpush1.bf16.msra.mxu0 0
        %8027 = vmatprep.subr.bf16.mxu0 0
        %8028 = vmatpush1.bf16.msra.mxu0 0
        %8029 = vmatprep.mubr.bf16.mxu0 0
        %8030 = vmatmul.mubr.bf16.gmra.mrb[0].mxu0 %v7995
        %v8031 = vpop.f32.mrb[0].mxu0
        %v8032 = vadd.f32 0.0, %v8031
        %v8033 = vpop.f32.mrb[0].mxu0
        %v8034 = vadd.f32 0.0, %v8033
        %v8035 = vpop.f32.mrb[0].mxu0
        %v8036 = vpop.f32.mrb[0].mxu0
        %8037 = vdwg.mxu0
        %8038 = vmatprep.subr.bf16.mxu0 %v7991
        %8039 = vmatpush1.bf16.msra.mxu0 %v7990
        %8040 = vmatprep.subr.bf16.mxu0 0
        %8041 = vmatpush1.bf16.msra.mxu0 0
        %8042 = vmatprep.subr.bf16.mxu0 0
        %8043 = vmatpush1.bf16.msra.mxu0 0
        %8044 = vmatprep.subr.bf16.mxu0 0
        %8045 = vmatpush1.bf16.msra.mxu0 0
        %8046 = vmatprep.subr.bf16.mxu0 0
        %8047 = vmatpush1.bf16.msra.mxu0 0
        %8048 = vmatprep.subr.bf16.mxu0 0
        %8049 = vmatpush1.bf16.msra.mxu0 0
        %8050 = vmatprep.subr.bf16.mxu0 0
        %8051 = vmatpush1.bf16.msra.mxu0 0
        %8052 = vmatprep.subr.bf16.mxu0 0
        %8053 = vmatpush1.bf16.msra.mxu0 0
        %8054 = vmatprep.subr.bf16.mxu0 0
        %8055 = vmatpush1.bf16.msra.mxu0 0
        %8056 = vmatprep.subr.bf16.mxu0 0
        %8057 = vmatpush1.bf16.msra.mxu0 0
        %8058 = vmatprep.subr.bf16.mxu0 0
        %8059 = vmatpush1.bf16.msra.mxu0 0
        %8060 = vmatprep.subr.bf16.mxu0 0
        %8061 = vmatpush1.bf16.msra.mxu0 0
        %8062 = vmatprep.subr.bf16.mxu0 0
        %8063 = vmatpush1.bf16.msra.mxu0 0
        %8064 = vmatprep.subr.bf16.mxu0 0
        %8065 = vmatpush1.bf16.msra.mxu0 0
        %8066 = vmatprep.subr.bf16.mxu0 0
        %8067 = vmatpush1.bf16.msra.mxu0 0
        %8068 = vmatprep.subr.bf16.mxu0 0
        %8069 = vmatpush1.bf16.msra.mxu0 0
        %8070 = vmatprep.mubr.bf16.mxu0 0
        %8071 = vmatmul.mubr.bf16.gmra.mrb[0].mxu0 %v7995
        %v8072 = vpop.f32.mrb[0].mxu0
        %v8073 = vadd.f32 0.0, %v8072
        %v8074 = vpop.f32.mrb[0].mxu0
        %v8075 = vadd.f32 0.0, %v8074
        %v8076 = vpop.f32.mrb[0].mxu0
        %v8077 = vpop.f32.mrb[0].mxu0
        %8078 = vdwg.mxu0
        %v8079 = vadd.f32 %v7937, %v8032
        %v8080 = vadd.f32 %v7939, %v8034
        %v8081 = vadd.f32 %v7978, %v8073
        %v8082 = vadd.f32 %v7980, %v8075
        %v8083 = vld [vmem:[%s14] sm:$0xf]
        %8085 = vset.pattern.permute.xlu0 0
        %8086 = vperm.xlu0 %8085, %v8083
        %v8087 = vpop.permute.xlu0 %8086
        %v8089 = vadd.f32 %v8079, %v8087
        %v8090 = vadd.f32 %v8080, %v8087
        %v8091 = vadd.f32 %v8081, %v8087
        %v8092 = vadd.f32 %v8082, %v8087
        %v8093 = vld [vmem:[%s15] sm:$0xf]
        %v8094 = vld [vmem:[%s16] sm:$0xf]
        %vm8095 = vcmask 1043456
        %v8096 = vsel %vm8095, %v8089, 0.0
        %v8097 = vrot.slane %v8096, 4
        %v8098 = vadd.f32 %v8096, %v8097
        %v8099 = vrot.slane %v8098, 2
        %v8100 = vadd.f32 %v8098, %v8099
        %v8101 = vrot.slane %v8100, 1
        %v8102 = vadd.f32 %v8100, %v8101
        %v8103 = vsel %vm8095, %v8090, 0.0
        %v8104 = vrot.slane %v8103, 4
        %v8105 = vadd.f32 %v8103, %v8104
        %v8106 = vrot.slane %v8105, 2
        %v8107 = vadd.f32 %v8105, %v8106
        %v8108 = vrot.slane %v8107, 1
        %v8109 = vadd.f32 %v8107, %v8108
        %v8110 = vsel %vm8095, %v8091, 0.0
        %v8111 = vrot.slane %v8110, 4
        %v8112 = vadd.f32 %v8110, %v8111
        %v8113 = vrot.slane %v8112, 2
        %v8114 = vadd.f32 %v8112, %v8113
        %v8115 = vrot.slane %v8114, 1
        %v8116 = vadd.f32 %v8114, %v8115
        %v8117 = vsel %vm8095, %v8092, 0.0
        %v8118 = vrot.slane %v8117, 4
        %v8119 = vadd.f32 %v8117, %v8118
        %v8120 = vrot.slane %v8119, 2
        %v8121 = vadd.f32 %v8119, %v8120
        %v8122 = vrot.slane %v8121, 1
        %v8123 = vadd.f32 %v8121, %v8122
        %v8124 = vrcp.pop 4.0
        %v8125 = vmul.f32 %v8102, %v8124
        %v8126 = vmul.f32 %v8109, %v8124
        %v8127 = vmul.f32 %v8116, %v8124
        %v8128 = vmul.f32 %v8123, %v8124
        %v8129 = vmul.f32 %v8089, %v8089
        %v8130 = vmul.f32 %v8090, %v8090
        %v8131 = vmul.f32 %v8091, %v8091
        %v8132 = vmul.f32 %v8092, %v8092
        %v8133 = vsel %vm8095, %v8129, 0.0
        %v8134 = vrot.slane %v8133, 4
        %v8135 = vadd.f32 %v8133, %v8134
        %v8136 = vrot.slane %v8135, 2
        %v8137 = vadd.f32 %v8135, %v8136
        %v8138 = vrot.slane %v8137, 1
        %v8139 = vadd.f32 %v8137, %v8138
        %v8140 = vsel %vm8095, %v8130, 0.0
        %v8141 = vrot.slane %v8140, 4
        %v8142 = vadd.f32 %v8140, %v8141
        %v8143 = vrot.slane %v8142, 2
        %v8144 = vadd.f32 %v8142, %v8143
        %v8145 = vrot.slane %v8144, 1
        %v8146 = vadd.f32 %v8144, %v8145
        %v8147 = vsel %vm8095, %v8131, 0.0
        %v8148 = vrot.slane %v8147, 4
        %v8149 = vadd.f32 %v8147, %v8148
        %v8150 = vrot.slane %v8149, 2
        %v8151 = vadd.f32 %v8149, %v8150
        %v8152 = vrot.slane %v8151, 1
        %v8153 = vadd.f32 %v8151, %v8152
        %v8154 = vsel %vm8095, %v8132, 0.0
        %v8155 = vrot.slane %v8154, 4
        %v8156 = vadd.f32 %v8154, %v8155
        %v8157 = vrot.slane %v8156, 2
        %v8158 = vadd.f32 %v8156, %v8157
        %v8159 = vrot.slane %v8158, 1
        %v8160 = vadd.f32 %v8158, %v8159
        %v8161 = vmul.f32 %v8139, %v8124
        %v8162 = vmul.f32 %v8146, %v8124
        %v8163 = vmul.f32 %v8153, %v8124
        %v8164 = vmul.f32 %v8160, %v8124
        %v8165 = vmul.f32 %v8125, %v8125
        %v8166 = vmul.f32 %v8126, %v8126
        %v8167 = vmul.f32 %v8127, %v8127
        %v8168 = vmul.f32 %v8128, %v8128
        %v8169 = vsub.f32 %v8161, %v8165
        %v8170 = vsub.f32 %v8162, %v8166
        %v8171 = vsub.f32 %v8163, %v8167
        %v8172 = vsub.f32 %v8164, %v8168
        %v8173 = vmax.f32 %v8169, 0.0
        %v8174 = vmax.f32 %v8170, 0.0
        %v8175 = vmax.f32 %v8171, 0.0
        %v8176 = vmax.f32 %v8172, 0.0
        %v8177 = vadd.f32 %v8173, 1e-05
        %v8178 = vadd.f32 %v8174, 1e-05
        %v8179 = vadd.f32 %v8175, 1e-05
        %v8180 = vadd.f32 %v8176, 1e-05
        %v8181 = vrsqrt.pop %v8177
        %v8182 = vrsqrt.pop %v8178
        %v8183 = vrsqrt.pop %v8179
        %v8184 = vrsqrt.pop %v8180
        %v8185 = vsub.f32 %v8089, %v8125
        %v8186 = vsub.f32 %v8090, %v8126
        %v8187 = vsub.f32 %v8091, %v8127
        %v8188 = vsub.f32 %v8092, %v8128
        %v8189 = vmul.f32 %v8185, %v8181
        %v8190 = vmul.f32 %v8186, %v8182
        %v8191 = vmul.f32 %v8187, %v8183
        %v8192 = vmul.f32 %v8188, %v8184
        %8194 = vset.pattern.permute.xlu0 0
        %8195 = vperm.xlu0 %8194, %v8093
        %v8196 = vpop.permute.xlu0 %8195
        %v8198 = vmul.f32 %v8189, %v8196
        %v8199 = vmul.f32 %v8190, %v8196
        %v8200 = vmul.f32 %v8191, %v8196
        %v8201 = vmul.f32 %v8192, %v8196
        %8203 = vset.pattern.permute.xlu0 0
        %8204 = vperm.xlu0 %8203, %v8094
        %v8205 = vpop.permute.xlu0 %8204
        %v8207 = vadd.f32 %v8198, %v8205
        %v8208 = vadd.f32 %v8199, %v8205
        %v8209 = vadd.f32 %v8200, %v8205
        %v8210 = vadd.f32 %v8201, %v8205
        %v8211 = vtanh.pop %v8207
        %v8212 = vtanh.pop %v8208
        %v8213 = vtanh.pop %v8209
        %v8214 = vtanh.pop %v8210
        %v8215 = vmul.f32 %v8211, 2.0
        %v8216 = vmul.f32 %v8212, 2.0
        %v8217 = vmul.f32 %v8213, 2.0
        %v8218 = vmul.f32 %v8214, 2.0
        %v8219 = vmul.f32 %v8215, %v8211
        %v8220 = vmul.f32 %v8216, %v8212
        %v8221 = vmul.f32 %v8217, %v8213
        %v8222 = vmul.f32 %v8218, %v8214
        %v8223 = vsub.f32 %v8219, 1.0
        %v8224 = vsub.f32 %v8220, 1.0
        %v8225 = vsub.f32 %v8221, 1.0
        %v8226 = vsub.f32 %v8222, 1.0
        %v8227 = vld [vmem:[#allocation3] sm:$0x1]
        %v8228 = vld [vmem:[%s17] sm:$0xf]
        %8230 = vset.pattern.permute.xlu0 0
        %8231 = vperm.xlu0 %8230, %v8228
        %v8232 = vpop.permute.xlu0 %8231
        %v8234 = vmul.f32 %v8232, %v8211
        %v8235 = vmul.f32 %v8232, %v8212
        %v8236 = vmul.f32 %v8232, %v8213
        %v8237 = vmul.f32 %v8232, %v8214
        %v8238 = vld [vmem:[%s18] sm:$0xf]
        %8240 = vset.pattern.permute.xlu0 0
        %8241 = vperm.xlu0 %8240, %v8238
        %v8242 = vpop.permute.xlu0 %8241
        %v8244 = vmul.f32 %v8242, %v8223
        %v8245 = vmul.f32 %v8242, %v8224
        %v8246 = vmul.f32 %v8242, %v8225
        %v8247 = vmul.f32 %v8242, %v8226
        %v8248 = vadd.f32 %v8234, %v8244
        %v8249 = vadd.f32 %v8235, %v8245
        %v8250 = vadd.f32 %v8236, %v8246
        %v8251 = vadd.f32 %v8237, %v8247
        %v8252 = vsel %vm8095, %v8248, 0.0
        %v8253 = vrot.slane %v8252, 4
        %v8254 = vadd.f32 %v8252, %v8253
        %v8255 = vrot.slane %v8254, 2
        %v8256 = vadd.f32 %v8254, %v8255
        %v8257 = vrot.slane %v8256, 1
        %v8258 = vadd.f32 %v8256, %v8257
        %v8259 = vsel %vm8095, %v8249, 0.0
        %v8260 = vrot.slane %v8259, 4
        %v8261 = vadd.f32 %v8259, %v8260
        %v8262 = vrot.slane %v8261, 2
        %v8263 = vadd.f32 %v8261, %v8262
        %v8264 = vrot.slane %v8263, 1
        %v8265 = vadd.f32 %v8263, %v8264
        %v8266 = vsel %vm8095, %v8250, 0.0
        %v8267 = vrot.slane %v8266, 4
        %v8268 = vadd.f32 %v8266, %v8267
        %v8269 = vrot.slane %v8268, 2
        %v8270 = vadd.f32 %v8268, %v8269
        %v8271 = vrot.slane %v8270, 1
        %v8272 = vadd.f32 %v8270, %v8271
        %v8273 = vsel %vm8095, %v8251, 0.0
        %v8274 = vrot.slane %v8273, 4
        %v8275 = vadd.f32 %v8273, %v8274
        %v8276 = vrot.slane %v8275, 2
        %v8277 = vadd.f32 %v8275, %v8276
        %v8278 = vrot.slane %v8277, 1
        %v8279 = vadd.f32 %v8277, %v8278
        %8281 = vset.pattern.permute.xlu0 0
        %8282 = vperm.xlu0 %8281, %v8227
        %v8283 = vpop.permute.xlu0 %8282
        %v8285 = vlaneseq
        %v8286 = vshrl.u32 %v8285, 7
        %v8287 = vsub.s32 0, %v8286
        %v8288 = vrot.slane %v8283, %v8287
        %v8289 = vadd.f32 %v8288, %v8258
        %v8290 = vadd.f32 %v8288, %v8265
        %v8291 = vadd.f32 %v8288, %v8272
        %v8292 = vadd.f32 %v8288, %v8279
        %v8293 = vand.u32 2147483647, %v8289
        %v8294 = vand.u32 2147483647, %v8290
        %v8295 = vand.u32 2147483647, %v8291
        %v8296 = vand.u32 2147483647, %v8292
        %v8301 = vcombine.low %v8293, %v8294
        %v8302 = vcombine.low %v8295, %v8296
        %v8304 = vunpack.c.l.s4 1966171168
        %v8305 = vunpack.c.0.s8 %v8304
        %v8306 = vlaneseq
        %v8307 = vshrl.u32 %v8306, 7
        %v8308 = vsub.s32 %v8305, %v8307
        %v8309 = vrot.slane %v8301, %v8308
        %v8311 = vunpack.c.l.s4 1966171168
        %v8312 = vunpack.c.0.s8 %v8311
        %v8313 = vlaneseq
        %v8314 = vshrl.u32 %v8313, 7
        %v8315 = vsub.s32 %v8312, %v8314
        %v8316 = vrot.slane %v8302, %v8315
        %v8317 = vcombine.low %v8309, %v8316
        %v8319 = vunpack.c.l.s4 1966171168
        %v8320 = vunpack.c.0.s8 %v8319
        %v8321 = vlaneseq
        %v8322 = vshrl.u32 %v8321, 7
        %v8323 = vsub.s32 %v8320, %v8322
        %v8324 = vrot.slane %v8317, %v8323
        %v8326 = vlaneseq
        %vm8327 = vcmp.ge.s32.totalorder %v8326, 0
        %vm8328 = vcmp.lt.s32.totalorder %v8326, 512
        %vm8329 = vmand %vm8327, %vm8328
        %8330 = vst.msk [vmem:[%s625] sm:$0xf] %vm8329, %v8324
        %s8331 = sand.u32 %s469, 1
        %s8332 = scalar_lea.sflag [#allocation5], %s8331
        %s8333 = sand.u32 %s469, 1
        %s8334 = smul.addr %s8333, 4
        %s8335 = scalar_lea.vmem [#allocation4], %s8334
        // Predicated region
        $region101: #{tpu_custom_call.1} parent=99 // pred_check
          %p8336 = pneg %p479
        $region102: #{tpu_custom_call.1} parent=99 // pred_check_branch
          %8338 = sbr.rel (%p8336) target = $region104
        $region103: #{tpu_custom_call.1} parent=99 // pred_region
          %s8339 = smul.u32 4, %s36
          %s8341 = ssub.s32 64, 64
          %8342 = vsyncadd %s8332, %s8341
          %s8343 = smul.addr %s8339, 16
          %s8344 = scalar_lea.hbm %s20, %s8343
          %s8346 = sshll.u32 %s8335, 4
          %s8347 = int_to_ptr.vmem [resolvable:$true] %s8346
          %8349 = dma.vmem_to_hbm [thread:$0]  %s8347, 64, %s8344, %s8332
        $region104: #{tpu_custom_call.1} parent=99 // pred_fallthru
          _
      $region100: #{tpu_custom_call.1} parent=5 // pred_fallthru
        _
      %p8350 = scmp.le.s32.totalorder 2, %s31
      // Predicated region
      $region105: #{tpu_custom_call.1} parent=5 // pred_check
        %p8351 = pneg %p8350
      $region106: #{tpu_custom_call.1} parent=5 // pred_check_branch
        %8353 = sbr.rel (%p8351) target = $region108
      $region107: #{tpu_custom_call.1} parent=5 // pred_region
        %s8354 = ssub.s32 %s31, 2
        // Predicated region
        $region109: #{tpu_custom_call.1} parent=107 // pred_check
          %p8355 = pneg %p485
        $region110: #{tpu_custom_call.1} parent=107 // pred_check_branch
          %8357 = sbr.rel (%p8355) target = $region112
        $region111: #{tpu_custom_call.1} parent=107 // pred_region
          %s8358 = sand.u32 %s470, 1
          %s8359 = scalar_lea.sflag [#allocation5], %s8358
          %s8360 = sand.u32 %s470, 1
          %s8361 = smul.addr %s8360, 4
          %s8362 = scalar_lea.vmem [#allocation4], %s8361
          %8363 = dma.done %s8359, 64
        $region112: #{tpu_custom_call.1} parent=107 // pred_fallthru
          _
      $region108: #{tpu_custom_call.1} parent=5 // pred_fallthru
        _
    $region6: #{tpu_custom_call.1} parent=1 // loop_footer
      %s35 = sadd.s32 1, %s31
    $region7: #{tpu_custom_call.1} parent=1 // loop_footer_branch
      %30 = sbr.rel target = $region3
    $region8: #{tpu_custom_call.1} parent=1 // loop_exit
      _
    %8364 = vsyncpa [#allocation5], 1
    %s8365 = scalar_lea.sflag [#allocation5], 1
    %8366 = vsyncpa %s8365, 1

</llo_original>
